<compile_context>
chip_gen: v6e
topology: v6e:2x2x1
jax: 0.10.0
libtpu: 0.0.40
codegen_flags: <defaults>
</compile_context>

<pallas_src>
import jax
import jax.numpy as jnp
from jax import lax
from jax.experimental import pallas as pl
from jax.experimental.pallas import tpu as pltpu

# ----------------------------------------------------------------------------
# Static model dimensions.
# ----------------------------------------------------------------------------
N, CIN, H, W = 2, 4, 16, 16
C1, C2 = 8, 16
NUM_CLASSES = 114
CLASSES_PAD = 128           # lane-dense (unmasked) output width; sliced to 114 in wrapper
WP = 32                     # padded-W scratch width
W_OFF = 8                   # interior W offset (multiple of 8 -> aligned interior store);
                            # zero border lives at columns W_OFF-1 and W_OFF+W


# ----------------------------------------------------------------------------
# Single fused kernel: conv1+ReLU -> conv2+ReLU -> GAP -> Linear (padded to 128).
# ----------------------------------------------------------------------------
def fused_forward_kernel(x_ref, w1_ref, b1_ref, w2_ref, b2_ref, wg_ref, bg_ref,
                         o_ref, pad1_ref, pad2_ref):
    # x_ref : (N, H, W, CIN)        NHWC input
    # w1_ref: (3, 3, CIN, C1)       HWIO   b1_ref: (1, C1)
    # w2_ref: (3, 3, C1, C2)        HWIO   b2_ref: (1, C2)
    # wg_ref: (C2, CLASSES_PAD)            bg_ref: (1, CLASSES_PAD)
    # o_ref : (N, CLASSES_PAD)
    # pad1_ref: VMEM (N, H+2, WP, CIN) scratch, pad2_ref: VMEM (N, H+2, WP, C1)

    # ---- conv1: in-VMEM zero pad, then 9 shifted MXU matmuls, bias, ReLU ----
    pad1_ref[...] = jnp.zeros_like(pad1_ref)
    pad1_ref[:, 1:H + 1, W_OFF:W_OFF + W, :] = x_ref[...]          # aligned interior store
    acc1 = jnp.zeros((N * H * W, C1), dtype=jnp.float32)
    for dh in range(3):                                            # static -> fully unrolled
        for dw in range(3):
            patch = pad1_ref[:, dh:dh + H,
                             W_OFF - 1 + dw:W_OFF - 1 + dw + W, :].reshape(N * H * W, CIN)
            acc1 = acc1 + jnp.dot(patch, w1_ref[dh, dw],
                                  preferred_element_type=jnp.float32)
    a1 = jnp.maximum(acc1 + b1_ref[...], 0.0)                      # (N*H*W, C1), stays in VMEM

    # ---- conv2: same scheme, fed directly from the VMEM-resident activation ----
    pad2_ref[...] = jnp.zeros_like(pad2_ref)
    pad2_ref[:, 1:H + 1, W_OFF:W_OFF + W, :] = a1.reshape(N, H, W, C1)
    acc2 = jnp.zeros((N * H * W, C2), dtype=jnp.float32)
    for dh in range(3):
        for dw in range(3):
            patch = pad2_ref[:, dh:dh + H,
                             W_OFF - 1 + dw:W_OFF - 1 + dw + W, :].reshape(N * H * W, C1)
            acc2 = acc2 + jnp.dot(patch, w2_ref[dh, dw],
                                  preferred_element_type=jnp.float32)
    a2 = jnp.maximum(acc2 + b2_ref[...], 0.0)                      # (N*H*W, C2)

    # ---- global average pool as an MXU matmul (reduction on the K axis) ----
    hw = H * W
    row = lax.broadcasted_iota(jnp.int32, (N, N * hw), 0)
    col = lax.broadcasted_iota(jnp.int32, (N, N * hw), 1)
    d = col - row * hw
    pool = jnp.where((d >= 0) & (d < hw),
                     jnp.float32(1.0 / hw), jnp.float32(0.0))      # (N, N*H*W)
    pooled = jnp.dot(pool, a2, preferred_element_type=jnp.float32)  # (N, C2)

    # ---- final Linear `g`, lane-dense 128-wide output (unmasked store) ----
    o_ref[...] = (jnp.dot(pooled, wg_ref[...],
                          preferred_element_type=jnp.float32) + bg_ref[...])


# ----------------------------------------------------------------------------
# Wrapper.
# ----------------------------------------------------------------------------
def pack_params(params):
    """One-time parameter massaging (outside the jitted forward)."""
    return {
        "w1": params["w1"],                                         # (3,3,CIN,C1) HWIO
        "b1": params["b1"].reshape(1, C1),
        "w2": params["w2"],                                         # (3,3,C1,C2) HWIO
        "b2": params["b2"].reshape(1, C2),
        "wg": jnp.pad(params["wg"], ((0, 0), (0, CLASSES_PAD - NUM_CLASSES))),
        "bg": jnp.pad(params["bg"], (0, CLASSES_PAD - NUM_CLASSES)).reshape(1, CLASSES_PAD),
    }


@jax.jit
def modified_model_forward(x_nchw, packed):
    # Only the NCHW->NHWC permute runs in XLA; everything else is one kernel.
    x = jnp.transpose(x_nchw, (0, 2, 3, 1))

    flops = (2 * N * H * W * 9 * CIN * C1          # conv1
             + 2 * N * H * W * 9 * C1 * C2         # conv2
             + 2 * N * (N * H * W) * C2            # pooling matmul
             + 2 * N * C2 * CLASSES_PAD)           # final linear
    bytes_accessed = 4 * (x.size + sum(int(v.size) for v in packed.values())
                          + N * CLASSES_PAD)

    out_pad = pl.pallas_call(
        fused_forward_kernel,
        out_shape=jax.ShapeDtypeStruct((N, CLASSES_PAD), jnp.float32),
        in_specs=[pl.BlockSpec(memory_space=pltpu.MemorySpace.VMEM)] * 7,
        out_specs=pl.BlockSpec(memory_space=pltpu.MemorySpace.VMEM),
        scratch_shapes=[pltpu.VMEM((N, H + 2, WP, CIN), jnp.float32),
                        pltpu.VMEM((N, H + 2, WP, C1), jnp.float32)],
        cost_estimate=pl.CostEstimate(flops=flops, transcendentals=0,
                                      bytes_accessed=bytes_accessed),
        # No grid: the whole problem is ~40 KB and launch-overhead bound.  If N
        # grows, add grid=(N // tile,) with dimension_semantics=("parallel",)
        # so both v7x TensorCores get work.
    )(x, packed["w1"], packed["b1"], packed["w2"], packed["b2"],
      packed["wg"], packed["bg"])
    return out_pad[:, :NUM_CLASSES]


# Pure-JAX reference (same math, no Pallas) for a sanity check.
def reference_forward(x_nchw, params):
    x = jnp.transpose(x_nchw, (0, 2, 3, 1))
    dn = ("NHWC", "HWIO", "NHWC")
    x = lax.conv_general_dilated(x, params["w1"], (1, 1), "SAME",
                                 dimension_numbers=dn) + params["b1"]
    x = jnp.maximum(x, 0.0)
    x = lax.conv_general_dilated(x, params["w2"], (1, 1), "SAME",
                                 dimension_numbers=dn) + params["b2"]
    x = jnp.maximum(x, 0.0)
    pooled = jnp.mean(x, axis=(1, 2))
    return pooled @ params["wg"] + params["bg"]


if __name__ == "__main__":
    key = jax.random.PRNGKey(0)
    k = jax.random.split(key, 6)
    params = {
        "w1": 0.1 * jax.random.normal(k[0], (3, 3, CIN, C1), jnp.float32),
        "b1": 0.1 * jax.random.normal(k[1], (C1,), jnp.float32),
        "w2": 0.1 * jax.random.normal(k[2], (3, 3, C1, C2), jnp.float32),
        "b2": 0.1 * jax.random.normal(k[3], (C2,), jnp.float32),
        "wg": 0.1 * jax.random.normal(k[4], (C2, NUM_CLASSES), jnp.float32),
        "bg": 0.1 * jax.random.normal(k[5], (NUM_CLASSES,), jnp.float32),
    }
    x = jax.random.normal(jax.random.PRNGKey(1), (N, CIN, H, W), jnp.float32)

    packed = jax.tree_util.tree_map(jax.block_until_ready, pack_params(params))
    out = jax.block_until_ready(modified_model_forward(x, packed))
    ref = jax.block_until_ready(reference_forward(x, params))

    assert out.shape == (N, NUM_CLASSES), out.shape
    assert jnp.allclose(out, ref, atol=1e-3, rtol=1e-3), \
        float(jnp.max(jnp.abs(out - ref)))
    print("KERNEL_OK")
</pallas_src>

<mosaic_0001>
module attributes {stable_mosaic.version = 11 : i64} {
  func.func @fused_forward_kernel(%arg0: memref<2x16x16x4xf32, #tpu.memory_space<vmem>>, %arg1: memref<3x3x4x8xf32, #tpu.memory_space<vmem>>, %arg2: memref<1x8xf32, #tpu.memory_space<vmem>>, %arg3: memref<3x3x8x16xf32, #tpu.memory_space<vmem>>, %arg4: memref<1x16xf32, #tpu.memory_space<vmem>>, %arg5: memref<16x128xf32, #tpu.memory_space<vmem>>, %arg6: memref<1x128xf32, #tpu.memory_space<vmem>>, %arg7: memref<2x128xf32, #tpu.memory_space<vmem>>, %arg8: memref<2x18x32x4xf32, #tpu.memory_space<vmem>>, %arg9: memref<2x18x32x8xf32, #tpu.memory_space<vmem>>) attributes {dimension_semantics = [], scalar_prefetch = 0 : i64, scratch_operands = 2 : i64, tpu.core_type = #tpu.core_type<tc>} {
    %cst = arith.constant 0.000000e+00 : f32
    %0 = vector.broadcast %cst : f32 to vector<2x18x32x4xf32>
    %c0 = arith.constant 0 : index
    %c0_0 = arith.constant 0 : index
    %c0_1 = arith.constant 0 : index
    %c0_2 = arith.constant 0 : index
    %1 = vector.load %arg8[%c0, %c0_0, %c0_1, %c0_2] : memref<2x18x32x4xf32, #tpu.memory_space<vmem>>, vector<2x18x32x4xf32>
    tpu.vector_store %arg8[%c0, %c0_0, %c0_1, %c0_2], %0 {strides = array<i32>} : memref<2x18x32x4xf32, #tpu.memory_space<vmem>>, vector<2x18x32x4xf32>,
    %c0_3 = arith.constant 0 : index
    %c0_4 = arith.constant 0 : index
    %c0_5 = arith.constant 0 : index
    %c0_6 = arith.constant 0 : index
    %2 = vector.load %arg0[%c0_3, %c0_4, %c0_5, %c0_6] : memref<2x16x16x4xf32, #tpu.memory_space<vmem>>, vector<2x16x16x4xf32>
    %c0_7 = arith.constant 0 : index
    %c1 = arith.constant 1 : index
    %c8 = arith.constant 8 : index
    %c0_8 = arith.constant 0 : index
    %3 = vector.load %arg8[%c0_7, %c1, %c8, %c0_8] : memref<2x18x32x4xf32, #tpu.memory_space<vmem>>, vector<2x16x16x4xf32>
    tpu.vector_store %arg8[%c0_7, %c1, %c8, %c0_8], %2 {strides = array<i32>} : memref<2x18x32x4xf32, #tpu.memory_space<vmem>>, vector<2x16x16x4xf32>,
    %cst_9 = arith.constant 0.000000e+00 : f32
    %4 = vector.broadcast %cst_9 : f32 to vector<512x8xf32>
    %c0_10 = arith.constant 0 : index
    %c0_11 = arith.constant 0 : index
    %c7 = arith.constant 7 : index
    %c0_12 = arith.constant 0 : index
    %5 = vector.load %arg8[%c0_10, %c0_11, %c7, %c0_12] : memref<2x18x32x4xf32, #tpu.memory_space<vmem>>, vector<2x16x16x4xf32>
    %6 = vector.shape_cast %5 : vector<2x16x16x4xf32> to vector<512x4xf32>
    %c0_13 = arith.constant 0 : index
    %c0_14 = arith.constant 0 : index
    %c0_15 = arith.constant 0 : index
    %c0_16 = arith.constant 0 : index
    %7 = vector.load %arg1[%c0_13, %c0_14, %c0_15, %c0_16] : memref<3x3x4x8xf32, #tpu.memory_space<vmem>>, vector<1x1x4x8xf32>
    %8 = vector.shape_cast %7 : vector<1x1x4x8xf32> to vector<4x8xf32>
    %cst_17 = arith.constant dense<0.000000e+00> : vector<512x8xf32>
    %9 = tpu.matmul %6, %8, %cst_17 {dimension_numbers = #tpu.dot_dimension_numbers<[1], [0], [0], [1], [0, 0, 1, 1], [], []>} : vector<512x4xf32>, vector<4x8xf32>, vector<512x8xf32> -> vector<512x8xf32>
    %10 = arith.addf %4, %9 : vector<512x8xf32>
    %c0_18 = arith.constant 0 : index
    %c0_19 = arith.constant 0 : index
    %c8_20 = arith.constant 8 : index
    %c0_21 = arith.constant 0 : index
    %11 = vector.load %arg8[%c0_18, %c0_19, %c8_20, %c0_21] : memref<2x18x32x4xf32, #tpu.memory_space<vmem>>, vector<2x16x16x4xf32>
    %12 = vector.shape_cast %11 : vector<2x16x16x4xf32> to vector<512x4xf32>
    %c0_22 = arith.constant 0 : index
    %c1_23 = arith.constant 1 : index
    %c0_24 = arith.constant 0 : index
    %c0_25 = arith.constant 0 : index
    %13 = vector.load %arg1[%c0_22, %c1_23, %c0_24, %c0_25] : memref<3x3x4x8xf32, #tpu.memory_space<vmem>>, vector<1x1x4x8xf32>
    %14 = vector.shape_cast %13 : vector<1x1x4x8xf32> to vector<4x8xf32>
    %cst_26 = arith.constant dense<0.000000e+00> : vector<512x8xf32>
    %15 = tpu.matmul %12, %14, %cst_26 {dimension_numbers = #tpu.dot_dimension_numbers<[1], [0], [0], [1], [0, 0, 1, 1], [], []>} : vector<512x4xf32>, vector<4x8xf32>, vector<512x8xf32> -> vector<512x8xf32>
    %16 = arith.addf %10, %15 : vector<512x8xf32>
    %c0_27 = arith.constant 0 : index
    %c0_28 = arith.constant 0 : index
    %c9 = arith.constant 9 : index
    %c0_29 = arith.constant 0 : index
    %17 = vector.load %arg8[%c0_27, %c0_28, %c9, %c0_29] : memref<2x18x32x4xf32, #tpu.memory_space<vmem>>, vector<2x16x16x4xf32>
    %18 = vector.shape_cast %17 : vector<2x16x16x4xf32> to vector<512x4xf32>
    %c0_30 = arith.constant 0 : index
    %c2 = arith.constant 2 : index
    %c0_31 = arith.constant 0 : index
    %c0_32 = arith.constant 0 : index
    %19 = vector.load %arg1[%c0_30, %c2, %c0_31, %c0_32] : memref<3x3x4x8xf32, #tpu.memory_space<vmem>>, vector<1x1x4x8xf32>
    %20 = vector.shape_cast %19 : vector<1x1x4x8xf32> to vector<4x8xf32>
    %cst_33 = arith.constant dense<0.000000e+00> : vector<512x8xf32>
    %21 = tpu.matmul %18, %20, %cst_33 {dimension_numbers = #tpu.dot_dimension_numbers<[1], [0], [0], [1], [0, 0, 1, 1], [], []>} : vector<512x4xf32>, vector<4x8xf32>, vector<512x8xf32> -> vector<512x8xf32>
    %22 = arith.addf %16, %21 : vector<512x8xf32>
    %c0_34 = arith.constant 0 : index
    %c1_35 = arith.constant 1 : index
    %c7_36 = arith.constant 7 : index
    %c0_37 = arith.constant 0 : index
    %23 = vector.load %arg8[%c0_34, %c1_35, %c7_36, %c0_37] : memref<2x18x32x4xf32, #tpu.memory_space<vmem>>, vector<2x16x16x4xf32>
    %24 = vector.shape_cast %23 : vector<2x16x16x4xf32> to vector<512x4xf32>
    %c1_38 = arith.constant 1 : index
    %c0_39 = arith.constant 0 : index
    %c0_40 = arith.constant 0 : index
    %c0_41 = arith.constant 0 : index
    %25 = vector.load %arg1[%c1_38, %c0_39, %c0_40, %c0_41] : memref<3x3x4x8xf32, #tpu.memory_space<vmem>>, vector<1x1x4x8xf32>
    %26 = vector.shape_cast %25 : vector<1x1x4x8xf32> to vector<4x8xf32>
    %cst_42 = arith.constant dense<0.000000e+00> : vector<512x8xf32>
    %27 = tpu.matmul %24, %26, %cst_42 {dimension_numbers = #tpu.dot_dimension_numbers<[1], [0], [0], [1], [0, 0, 1, 1], [], []>} : vector<512x4xf32>, vector<4x8xf32>, vector<512x8xf32> -> vector<512x8xf32>
    %28 = arith.addf %22, %27 : vector<512x8xf32>
    %c0_43 = arith.constant 0 : index
    %c1_44 = arith.constant 1 : index
    %c8_45 = arith.constant 8 : index
    %c0_46 = arith.constant 0 : index
    %29 = vector.load %arg8[%c0_43, %c1_44, %c8_45, %c0_46] : memref<2x18x32x4xf32, #tpu.memory_space<vmem>>, vector<2x16x16x4xf32>
    %30 = vector.shape_cast %29 : vector<2x16x16x4xf32> to vector<512x4xf32>
    %c1_47 = arith.constant 1 : index
    %c1_48 = arith.constant 1 : index
    %c0_49 = arith.constant 0 : index
    %c0_50 = arith.constant 0 : index
    %31 = vector.load %arg1[%c1_47, %c1_48, %c0_49, %c0_50] : memref<3x3x4x8xf32, #tpu.memory_space<vmem>>, vector<1x1x4x8xf32>
    %32 = vector.shape_cast %31 : vector<1x1x4x8xf32> to vector<4x8xf32>
    %cst_51 = arith.constant dense<0.000000e+00> : vector<512x8xf32>
    %33 = tpu.matmul %30, %32, %cst_51 {dimension_numbers = #tpu.dot_dimension_numbers<[1], [0], [0], [1], [0, 0, 1, 1], [], []>} : vector<512x4xf32>, vector<4x8xf32>, vector<512x8xf32> -> vector<512x8xf32>
    %34 = arith.addf %28, %33 : vector<512x8xf32>
    %c0_52 = arith.constant 0 : index
    %c1_53 = arith.constant 1 : index
    %c9_54 = arith.constant 9 : index
    %c0_55 = arith.constant 0 : index
    %35 = vector.load %arg8[%c0_52, %c1_53, %c9_54, %c0_55] : memref<2x18x32x4xf32, #tpu.memory_space<vmem>>, vector<2x16x16x4xf32>
    %36 = vector.shape_cast %35 : vector<2x16x16x4xf32> to vector<512x4xf32>
    %c1_56 = arith.constant 1 : index
    %c2_57 = arith.constant 2 : index
    %c0_58 = arith.constant 0 : index
    %c0_59 = arith.constant 0 : index
    %37 = vector.load %arg1[%c1_56, %c2_57, %c0_58, %c0_59] : memref<3x3x4x8xf32, #tpu.memory_space<vmem>>, vector<1x1x4x8xf32>
    %38 = vector.shape_cast %37 : vector<1x1x4x8xf32> to vector<4x8xf32>
    %cst_60 = arith.constant dense<0.000000e+00> : vector<512x8xf32>
    %39 = tpu.matmul %36, %38, %cst_60 {dimension_numbers = #tpu.dot_dimension_numbers<[1], [0], [0], [1], [0, 0, 1, 1], [], []>} : vector<512x4xf32>, vector<4x8xf32>, vector<512x8xf32> -> vector<512x8xf32>
    %40 = arith.addf %34, %39 : vector<512x8xf32>
    %c0_61 = arith.constant 0 : index
    %c2_62 = arith.constant 2 : index
    %c7_63 = arith.constant 7 : index
    %c0_64 = arith.constant 0 : index
    %41 = vector.load %arg8[%c0_61, %c2_62, %c7_63, %c0_64] : memref<2x18x32x4xf32, #tpu.memory_space<vmem>>, vector<2x16x16x4xf32>
    %42 = vector.shape_cast %41 : vector<2x16x16x4xf32> to vector<512x4xf32>
    %c2_65 = arith.constant 2 : index
    %c0_66 = arith.constant 0 : index
    %c0_67 = arith.constant 0 : index
    %c0_68 = arith.constant 0 : index
    %43 = vector.load %arg1[%c2_65, %c0_66, %c0_67, %c0_68] : memref<3x3x4x8xf32, #tpu.memory_space<vmem>>, vector<1x1x4x8xf32>
    %44 = vector.shape_cast %43 : vector<1x1x4x8xf32> to vector<4x8xf32>
    %cst_69 = arith.constant dense<0.000000e+00> : vector<512x8xf32>
    %45 = tpu.matmul %42, %44, %cst_69 {dimension_numbers = #tpu.dot_dimension_numbers<[1], [0], [0], [1], [0, 0, 1, 1], [], []>} : vector<512x4xf32>, vector<4x8xf32>, vector<512x8xf32> -> vector<512x8xf32>
    %46 = arith.addf %40, %45 : vector<512x8xf32>
    %c0_70 = arith.constant 0 : index
    %c2_71 = arith.constant 2 : index
    %c8_72 = arith.constant 8 : index
    %c0_73 = arith.constant 0 : index
    %47 = vector.load %arg8[%c0_70, %c2_71, %c8_72, %c0_73] : memref<2x18x32x4xf32, #tpu.memory_space<vmem>>, vector<2x16x16x4xf32>
    %48 = vector.shape_cast %47 : vector<2x16x16x4xf32> to vector<512x4xf32>
    %c2_74 = arith.constant 2 : index
    %c1_75 = arith.constant 1 : index
    %c0_76 = arith.constant 0 : index
    %c0_77 = arith.constant 0 : index
    %49 = vector.load %arg1[%c2_74, %c1_75, %c0_76, %c0_77] : memref<3x3x4x8xf32, #tpu.memory_space<vmem>>, vector<1x1x4x8xf32>
    %50 = vector.shape_cast %49 : vector<1x1x4x8xf32> to vector<4x8xf32>
    %cst_78 = arith.constant dense<0.000000e+00> : vector<512x8xf32>
    %51 = tpu.matmul %48, %50, %cst_78 {dimension_numbers = #tpu.dot_dimension_numbers<[1], [0], [0], [1], [0, 0, 1, 1], [], []>} : vector<512x4xf32>, vector<4x8xf32>, vector<512x8xf32> -> vector<512x8xf32>
    %52 = arith.addf %46, %51 : vector<512x8xf32>
    %c0_79 = arith.constant 0 : index
    %c2_80 = arith.constant 2 : index
    %c9_81 = arith.constant 9 : index
    %c0_82 = arith.constant 0 : index
    %53 = vector.load %arg8[%c0_79, %c2_80, %c9_81, %c0_82] : memref<2x18x32x4xf32, #tpu.memory_space<vmem>>, vector<2x16x16x4xf32>
    %54 = vector.shape_cast %53 : vector<2x16x16x4xf32> to vector<512x4xf32>
    %c2_83 = arith.constant 2 : index
    %c2_84 = arith.constant 2 : index
    %c0_85 = arith.constant 0 : index
    %c0_86 = arith.constant 0 : index
    %55 = vector.load %arg1[%c2_83, %c2_84, %c0_85, %c0_86] : memref<3x3x4x8xf32, #tpu.memory_space<vmem>>, vector<1x1x4x8xf32>
    %56 = vector.shape_cast %55 : vector<1x1x4x8xf32> to vector<4x8xf32>
    %cst_87 = arith.constant dense<0.000000e+00> : vector<512x8xf32>
    %57 = tpu.matmul %54, %56, %cst_87 {dimension_numbers = #tpu.dot_dimension_numbers<[1], [0], [0], [1], [0, 0, 1, 1], [], []>} : vector<512x4xf32>, vector<4x8xf32>, vector<512x8xf32> -> vector<512x8xf32>
    %58 = arith.addf %52, %57 : vector<512x8xf32>
    %c0_88 = arith.constant 0 : index
    %c0_89 = arith.constant 0 : index
    %59 = vector.load %arg2[%c0_88, %c0_89] : memref<1x8xf32, #tpu.memory_space<vmem>>, vector<1x8xf32>
    %60 = vector.broadcast %59 : vector<1x8xf32> to vector<512x8xf32>
    %61 = arith.addf %58, %60 : vector<512x8xf32>
    %cst_90 = arith.constant 0.000000e+00 : f32
    %62 = vector.broadcast %cst_90 : f32 to vector<512x8xf32>
    %63 = arith.maximumf %61, %62 : vector<512x8xf32>
    %cst_91 = arith.constant 0.000000e+00 : f32
    %64 = vector.broadcast %cst_91 : f32 to vector<2x18x32x8xf32>
    %c0_92 = arith.constant 0 : index
    %c0_93 = arith.constant 0 : index
    %c0_94 = arith.constant 0 : index
    %c0_95 = arith.constant 0 : index
    %65 = vector.load %arg9[%c0_92, %c0_93, %c0_94, %c0_95] : memref<2x18x32x8xf32, #tpu.memory_space<vmem>>, vector<2x18x32x8xf32>
    tpu.vector_store %arg9[%c0_92, %c0_93, %c0_94, %c0_95], %64 {strides = array<i32>} : memref<2x18x32x8xf32, #tpu.memory_space<vmem>>, vector<2x18x32x8xf32>,
    %66 = vector.shape_cast %63 : vector<512x8xf32> to vector<2x16x16x8xf32>
    %c0_96 = arith.constant 0 : index
    %c1_97 = arith.constant 1 : index
    %c8_98 = arith.constant 8 : index
    %c0_99 = arith.constant 0 : index
    %67 = vector.load %arg9[%c0_96, %c1_97, %c8_98, %c0_99] : memref<2x18x32x8xf32, #tpu.memory_space<vmem>>, vector<2x16x16x8xf32>
    tpu.vector_store %arg9[%c0_96, %c1_97, %c8_98, %c0_99], %66 {strides = array<i32>} : memref<2x18x32x8xf32, #tpu.memory_space<vmem>>, vector<2x16x16x8xf32>,
    %cst_100 = arith.constant 0.000000e+00 : f32
    %68 = vector.broadcast %cst_100 : f32 to vector<512x16xf32>
    %c0_101 = arith.constant 0 : index
    %c0_102 = arith.constant 0 : index
    %c7_103 = arith.constant 7 : index
    %c0_104 = arith.constant 0 : index
    %69 = vector.load %arg9[%c0_101, %c0_102, %c7_103, %c0_104] : memref<2x18x32x8xf32, #tpu.memory_space<vmem>>, vector<2x16x16x8xf32>
    %70 = vector.shape_cast %69 : vector<2x16x16x8xf32> to vector<512x8xf32>
    %c0_105 = arith.constant 0 : index
    %c0_106 = arith.constant 0 : index
    %c0_107 = arith.constant 0 : index
    %c0_108 = arith.constant 0 : index
    %71 = vector.load %arg3[%c0_105, %c0_106, %c0_107, %c0_108] : memref<3x3x8x16xf32, #tpu.memory_space<vmem>>, vector<1x1x8x16xf32>
    %72 = vector.shape_cast %71 : vector<1x1x8x16xf32> to vector<8x16xf32>
    %cst_109 = arith.constant dense<0.000000e+00> : vector<512x16xf32>
    %73 = tpu.matmul %70, %72, %cst_109 {dimension_numbers = #tpu.dot_dimension_numbers<[1], [0], [0], [1], [0, 0, 1, 1], [], []>} : vector<512x8xf32>, vector<8x16xf32>, vector<512x16xf32> -> vector<512x16xf32>
    %74 = arith.addf %68, %73 : vector<512x16xf32>
    %c0_110 = arith.constant 0 : index
    %c0_111 = arith.constant 0 : index
    %c8_112 = arith.constant 8 : index
    %c0_113 = arith.constant 0 : index
    %75 = vector.load %arg9[%c0_110, %c0_111, %c8_112, %c0_113] : memref<2x18x32x8xf32, #tpu.memory_space<vmem>>, vector<2x16x16x8xf32>
    %76 = vector.shape_cast %75 : vector<2x16x16x8xf32> to vector<512x8xf32>
    %c0_114 = arith.constant 0 : index
    %c1_115 = arith.constant 1 : index
    %c0_116 = arith.constant 0 : index
    %c0_117 = arith.constant 0 : index
    %77 = vector.load %arg3[%c0_114, %c1_115, %c0_116, %c0_117] : memref<3x3x8x16xf32, #tpu.memory_space<vmem>>, vector<1x1x8x16xf32>
    %78 = vector.shape_cast %77 : vector<1x1x8x16xf32> to vector<8x16xf32>
    %cst_118 = arith.constant dense<0.000000e+00> : vector<512x16xf32>
    %79 = tpu.matmul %76, %78, %cst_118 {dimension_numbers = #tpu.dot_dimension_numbers<[1], [0], [0], [1], [0, 0, 1, 1], [], []>} : vector<512x8xf32>, vector<8x16xf32>, vector<512x16xf32> -> vector<512x16xf32>
    %80 = arith.addf %74, %79 : vector<512x16xf32>
    %c0_119 = arith.constant 0 : index
    %c0_120 = arith.constant 0 : index
    %c9_121 = arith.constant 9 : index
    %c0_122 = arith.constant 0 : index
    %81 = vector.load %arg9[%c0_119, %c0_120, %c9_121, %c0_122] : memref<2x18x32x8xf32, #tpu.memory_space<vmem>>, vector<2x16x16x8xf32>
    %82 = vector.shape_cast %81 : vector<2x16x16x8xf32> to vector<512x8xf32>
    %c0_123 = arith.constant 0 : index
    %c2_124 = arith.constant 2 : index
    %c0_125 = arith.constant 0 : index
    %c0_126 = arith.constant 0 : index
    %83 = vector.load %arg3[%c0_123, %c2_124, %c0_125, %c0_126] : memref<3x3x8x16xf32, #tpu.memory_space<vmem>>, vector<1x1x8x16xf32>
    %84 = vector.shape_cast %83 : vector<1x1x8x16xf32> to vector<8x16xf32>
    %cst_127 = arith.constant dense<0.000000e+00> : vector<512x16xf32>
    %85 = tpu.matmul %82, %84, %cst_127 {dimension_numbers = #tpu.dot_dimension_numbers<[1], [0], [0], [1], [0, 0, 1, 1], [], []>} : vector<512x8xf32>, vector<8x16xf32>, vector<512x16xf32> -> vector<512x16xf32>
    %86 = arith.addf %80, %85 : vector<512x16xf32>
    %c0_128 = arith.constant 0 : index
    %c1_129 = arith.constant 1 : index
    %c7_130 = arith.constant 7 : index
    %c0_131 = arith.constant 0 : index
    %87 = vector.load %arg9[%c0_128, %c1_129, %c7_130, %c0_131] : memref<2x18x32x8xf32, #tpu.memory_space<vmem>>, vector<2x16x16x8xf32>
    %88 = vector.shape_cast %87 : vector<2x16x16x8xf32> to vector<512x8xf32>
    %c1_132 = arith.constant 1 : index
    %c0_133 = arith.constant 0 : index
    %c0_134 = arith.constant 0 : index
    %c0_135 = arith.constant 0 : index
    %89 = vector.load %arg3[%c1_132, %c0_133, %c0_134, %c0_135] : memref<3x3x8x16xf32, #tpu.memory_space<vmem>>, vector<1x1x8x16xf32>
    %90 = vector.shape_cast %89 : vector<1x1x8x16xf32> to vector<8x16xf32>
    %cst_136 = arith.constant dense<0.000000e+00> : vector<512x16xf32>
    %91 = tpu.matmul %88, %90, %cst_136 {dimension_numbers = #tpu.dot_dimension_numbers<[1], [0], [0], [1], [0, 0, 1, 1], [], []>} : vector<512x8xf32>, vector<8x16xf32>, vector<512x16xf32> -> vector<512x16xf32>
    %92 = arith.addf %86, %91 : vector<512x16xf32>
    %c0_137 = arith.constant 0 : index
    %c1_138 = arith.constant 1 : index
    %c8_139 = arith.constant 8 : index
    %c0_140 = arith.constant 0 : index
    %93 = vector.load %arg9[%c0_137, %c1_138, %c8_139, %c0_140] : memref<2x18x32x8xf32, #tpu.memory_space<vmem>>, vector<2x16x16x8xf32>
    %94 = vector.shape_cast %93 : vector<2x16x16x8xf32> to vector<512x8xf32>
    %c1_141 = arith.constant 1 : index
    %c1_142 = arith.constant 1 : index
    %c0_143 = arith.constant 0 : index
    %c0_144 = arith.constant 0 : index
    %95 = vector.load %arg3[%c1_141, %c1_142, %c0_143, %c0_144] : memref<3x3x8x16xf32, #tpu.memory_space<vmem>>, vector<1x1x8x16xf32>
    %96 = vector.shape_cast %95 : vector<1x1x8x16xf32> to vector<8x16xf32>
    %cst_145 = arith.constant dense<0.000000e+00> : vector<512x16xf32>
    %97 = tpu.matmul %94, %96, %cst_145 {dimension_numbers = #tpu.dot_dimension_numbers<[1], [0], [0], [1], [0, 0, 1, 1], [], []>} : vector<512x8xf32>, vector<8x16xf32>, vector<512x16xf32> -> vector<512x16xf32>
    %98 = arith.addf %92, %97 : vector<512x16xf32>
    %c0_146 = arith.constant 0 : index
    %c1_147 = arith.constant 1 : index
    %c9_148 = arith.constant 9 : index
    %c0_149 = arith.constant 0 : index
    %99 = vector.load %arg9[%c0_146, %c1_147, %c9_148, %c0_149] : memref<2x18x32x8xf32, #tpu.memory_space<vmem>>, vector<2x16x16x8xf32>
    %100 = vector.shape_cast %99 : vector<2x16x16x8xf32> to vector<512x8xf32>
    %c1_150 = arith.constant 1 : index
    %c2_151 = arith.constant 2 : index
    %c0_152 = arith.constant 0 : index
    %c0_153 = arith.constant 0 : index
    %101 = vector.load %arg3[%c1_150, %c2_151, %c0_152, %c0_153] : memref<3x3x8x16xf32, #tpu.memory_space<vmem>>, vector<1x1x8x16xf32>
    %102 = vector.shape_cast %101 : vector<1x1x8x16xf32> to vector<8x16xf32>
    %cst_154 = arith.constant dense<0.000000e+00> : vector<512x16xf32>
    %103 = tpu.matmul %100, %102, %cst_154 {dimension_numbers = #tpu.dot_dimension_numbers<[1], [0], [0], [1], [0, 0, 1, 1], [], []>} : vector<512x8xf32>, vector<8x16xf32>, vector<512x16xf32> -> vector<512x16xf32>
    %104 = arith.addf %98, %103 : vector<512x16xf32>
    %c0_155 = arith.constant 0 : index
    %c2_156 = arith.constant 2 : index
    %c7_157 = arith.constant 7 : index
    %c0_158 = arith.constant 0 : index
    %105 = vector.load %arg9[%c0_155, %c2_156, %c7_157, %c0_158] : memref<2x18x32x8xf32, #tpu.memory_space<vmem>>, vector<2x16x16x8xf32>
    %106 = vector.shape_cast %105 : vector<2x16x16x8xf32> to vector<512x8xf32>
    %c2_159 = arith.constant 2 : index
    %c0_160 = arith.constant 0 : index
    %c0_161 = arith.constant 0 : index
    %c0_162 = arith.constant 0 : index
    %107 = vector.load %arg3[%c2_159, %c0_160, %c0_161, %c0_162] : memref<3x3x8x16xf32, #tpu.memory_space<vmem>>, vector<1x1x8x16xf32>
    %108 = vector.shape_cast %107 : vector<1x1x8x16xf32> to vector<8x16xf32>
    %cst_163 = arith.constant dense<0.000000e+00> : vector<512x16xf32>
    %109 = tpu.matmul %106, %108, %cst_163 {dimension_numbers = #tpu.dot_dimension_numbers<[1], [0], [0], [1], [0, 0, 1, 1], [], []>} : vector<512x8xf32>, vector<8x16xf32>, vector<512x16xf32> -> vector<512x16xf32>
    %110 = arith.addf %104, %109 : vector<512x16xf32>
    %c0_164 = arith.constant 0 : index
    %c2_165 = arith.constant 2 : index
    %c8_166 = arith.constant 8 : index
    %c0_167 = arith.constant 0 : index
    %111 = vector.load %arg9[%c0_164, %c2_165, %c8_166, %c0_167] : memref<2x18x32x8xf32, #tpu.memory_space<vmem>>, vector<2x16x16x8xf32>
    %112 = vector.shape_cast %111 : vector<2x16x16x8xf32> to vector<512x8xf32>
    %c2_168 = arith.constant 2 : index
    %c1_169 = arith.constant 1 : index
    %c0_170 = arith.constant 0 : index
    %c0_171 = arith.constant 0 : index
    %113 = vector.load %arg3[%c2_168, %c1_169, %c0_170, %c0_171] : memref<3x3x8x16xf32, #tpu.memory_space<vmem>>, vector<1x1x8x16xf32>
    %114 = vector.shape_cast %113 : vector<1x1x8x16xf32> to vector<8x16xf32>
    %cst_172 = arith.constant dense<0.000000e+00> : vector<512x16xf32>
    %115 = tpu.matmul %112, %114, %cst_172 {dimension_numbers = #tpu.dot_dimension_numbers<[1], [0], [0], [1], [0, 0, 1, 1], [], []>} : vector<512x8xf32>, vector<8x16xf32>, vector<512x16xf32> -> vector<512x16xf32>
    %116 = arith.addf %110, %115 : vector<512x16xf32>
    %c0_173 = arith.constant 0 : index
    %c2_174 = arith.constant 2 : index
    %c9_175 = arith.constant 9 : index
    %c0_176 = arith.constant 0 : index
    %117 = vector.load %arg9[%c0_173, %c2_174, %c9_175, %c0_176] : memref<2x18x32x8xf32, #tpu.memory_space<vmem>>, vector<2x16x16x8xf32>
    %118 = vector.shape_cast %117 : vector<2x16x16x8xf32> to vector<512x8xf32>
    %c2_177 = arith.constant 2 : index
    %c2_178 = arith.constant 2 : index
    %c0_179 = arith.constant 0 : index
    %c0_180 = arith.constant 0 : index
    %119 = vector.load %arg3[%c2_177, %c2_178, %c0_179, %c0_180] : memref<3x3x8x16xf32, #tpu.memory_space<vmem>>, vector<1x1x8x16xf32>
    %120 = vector.shape_cast %119 : vector<1x1x8x16xf32> to vector<8x16xf32>
    %cst_181 = arith.constant dense<0.000000e+00> : vector<512x16xf32>
    %121 = tpu.matmul %118, %120, %cst_181 {dimension_numbers = #tpu.dot_dimension_numbers<[1], [0], [0], [1], [0, 0, 1, 1], [], []>} : vector<512x8xf32>, vector<8x16xf32>, vector<512x16xf32> -> vector<512x16xf32>
    %122 = arith.addf %116, %121 : vector<512x16xf32>
    %c0_182 = arith.constant 0 : index
    %c0_183 = arith.constant 0 : index
    %123 = vector.load %arg4[%c0_182, %c0_183] : memref<1x16xf32, #tpu.memory_space<vmem>>, vector<1x16xf32>
    %124 = vector.broadcast %123 : vector<1x16xf32> to vector<512x16xf32>
    %125 = arith.addf %122, %124 : vector<512x16xf32>
    %cst_184 = arith.constant 0.000000e+00 : f32
    %126 = vector.broadcast %cst_184 : f32 to vector<512x16xf32>
    %127 = arith.maximumf %125, %126 : vector<512x16xf32>
    %128 = tpu.iota {dimensions = array<i32: 0>} : vector<2x512xi32>
    %129 = tpu.iota {dimensions = array<i32: 1>} : vector<2x512xi32>
    %c256_i32 = arith.constant 256 : i32
    %130 = vector.broadcast %c256_i32 : i32 to vector<2x512xi32>
    %131 = arith.muli %128, %130 : vector<2x512xi32>
    %132 = arith.subi %129, %131 : vector<2x512xi32>
    %c0_i32 = arith.constant 0 : i32
    %133 = vector.broadcast %c0_i32 : i32 to vector<2x512xi32>
    %134 = arith.cmpi sge, %132, %133 : vector<2x512xi32>
    %c256_i32_185 = arith.constant 256 : i32
    %135 = vector.broadcast %c256_i32_185 : i32 to vector<2x512xi32>
    %136 = arith.cmpi slt, %132, %135 : vector<2x512xi32>
    %137 = arith.andi %134, %136 : vector<2x512xi1>
    %cst_186 = arith.constant 3.906250e-03 : f32
    %cst_187 = arith.constant 0.000000e+00 : f32
    %138 = vector.broadcast %cst_186 : f32 to vector<2x512xf32>
    %139 = vector.broadcast %cst_187 : f32 to vector<2x512xf32>
    %140 = arith.select %137, %138, %139 : vector<2x512xi1>, vector<2x512xf32>
    %cst_188 = arith.constant dense<0.000000e+00> : vector<2x16xf32>
    %141 = tpu.matmul %140, %127, %cst_188 {dimension_numbers = #tpu.dot_dimension_numbers<[1], [0], [0], [1], [0, 0, 1, 1], [], []>} : vector<2x512xf32>, vector<512x16xf32>, vector<2x16xf32> -> vector<2x16xf32>
    %c0_189 = arith.constant 0 : index
    %c0_190 = arith.constant 0 : index
    %142 = vector.load %arg5[%c0_189, %c0_190] : memref<16x128xf32, #tpu.memory_space<vmem>>, vector<16x128xf32>
    %cst_191 = arith.constant dense<0.000000e+00> : vector<2x128xf32>
    %143 = tpu.matmul %141, %142, %cst_191 {dimension_numbers = #tpu.dot_dimension_numbers<[1], [0], [0], [1], [0, 0, 1, 1], [], []>} : vector<2x16xf32>, vector<16x128xf32>, vector<2x128xf32> -> vector<2x128xf32>
    %c0_192 = arith.constant 0 : index
    %c0_193 = arith.constant 0 : index
    %144 = vector.load %arg6[%c0_192, %c0_193] : memref<1x128xf32, #tpu.memory_space<vmem>>, vector<1x128xf32>
    %145 = vector.broadcast %144 : vector<1x128xf32> to vector<2x128xf32>
    %146 = arith.addf %143, %145 : vector<2x128xf32>
    %c0_194 = arith.constant 0 : index
    %c0_195 = arith.constant 0 : index
    %147 = vector.load %arg7[%c0_194, %c0_195] : memref<2x128xf32, #tpu.memory_space<vmem>>, vector<2x128xf32>
    tpu.vector_store %arg7[%c0_194, %c0_195], %146 {strides = array<i32>} : memref<2x128xf32, #tpu.memory_space<vmem>>, vector<2x128xf32>,
    return
  }
}

</mosaic_0001>

<llo_original>
// kernel: modified_model_forward.1
$region0: #{modified_model_forward.1}
  #allocation0 [shape = 'u32[]', space=smem, size = 0x4, offset = 0x4, fixed_abs, tag = 'smem constant byte address 0x4 - core index']
  #allocation1 [shape = 'u32[144,128]{1,0:T(1,128)}', space=vmem, size = 0x12000, scoped, tag = 'internal scratch']
  #allocation2 [shape = 'f32[2,18,32,4]{3,2,1,0:T(8,128)}', space=vmem, size = 0x90000, scoped, tag = 'scratch operand']
  #allocation3 [shape = 'f32[2,18,32,8]{3,2,1,0:T(8,128)}', space=vmem, size = 0x90000, scoped, tag = 'scratch operand']
  %s0 = inlined_call_operand.vmem [shape: f32[2,16,16,4], index: 0, kind: input, shape index: {}]
  %s1 = inlined_call_operand.vmem [shape: f32[3,3,4,8], index: 1, kind: input, shape index: {}]
  %s2 = inlined_call_operand.vmem [shape: f32[1,8], index: 2, kind: input, shape index: {}]
  %s3 = inlined_call_operand.vmem [shape: f32[3,3,8,16], index: 3, kind: input, shape index: {}]
  %s4 = inlined_call_operand.vmem [shape: f32[1,16], index: 4, kind: input, shape index: {}]
  %s5 = inlined_call_operand.vmem [shape: f32[16,128], index: 5, kind: input, shape index: {}]
  %s6 = inlined_call_operand.vmem [shape: f32[1,128], index: 6, kind: input, shape index: {}]
  %s7 = inlined_call_operand.hbm [shape: f32[2,128], index: 7, kind: output, shape index: {}]
  %s8 = sld [smem:[#allocation0]]
  $region38: #{modified_model_forward.1} parent=0
    _
  %s10 = ssub.s32 1, %s8
  %s11 = scalar_select 0, %s10, %s8
  $region1: #{modified_model_forward.1} parent=0
    #allocation4 [shape = 'u8[1024]{0}', space=vmem, size = 0x400, scoped, tag = 'output window, operand 0, single buffered']
    #allocation5 [shape = 's32[1]{0}', space=sflag, size = 0x4, scoped, tag = 'scoped memory for modified_model_forward.1']
    %12 = vsyncpa [#allocation5], 0
    // Predicated region
    $region2: #{modified_model_forward.1} parent=1 // pred_check
      _
    $region3: #{modified_model_forward.1} parent=1 // pred_check_branch
      %14 = sbr.rel (0) target = $region5
    $region4: #{modified_model_forward.1} parent=1 // pred_region
      _
    $region5: #{modified_model_forward.1} parent=1 // pred_fallthru
      _
    // Predicated region
    $region6: #{modified_model_forward.1} parent=1 // pred_check
      _
    $region7: #{modified_model_forward.1} parent=1 // pred_check_branch
      %16 = sbr.rel (0) target = $region9
    $region8: #{modified_model_forward.1} parent=1 // pred_region
      _
    $region9: #{modified_model_forward.1} parent=1 // pred_fallthru
      _
    // Predicated region
    $region10: #{modified_model_forward.1} parent=1 // pred_check
      _
    $region11: #{modified_model_forward.1} parent=1 // pred_check_branch
      %18 = sbr.rel (0) target = $region13
    $region12: #{modified_model_forward.1} parent=1 // pred_region
      _
    $region13: #{modified_model_forward.1} parent=1 // pred_fallthru
      _
    // Predicated region
    $region14: #{modified_model_forward.1} parent=1 // pred_check
      _
    $region15: #{modified_model_forward.1} parent=1 // pred_check_branch
      %20 = sbr.rel (0) target = $region17
    $region16: #{modified_model_forward.1} parent=1 // pred_region
      _
    $region17: #{modified_model_forward.1} parent=1 // pred_fallthru
      _
    // Predicated region
    $region18: #{modified_model_forward.1} parent=1 // pred_check
      _
    $region19: #{modified_model_forward.1} parent=1 // pred_check_branch
      %22 = sbr.rel (0) target = $region21
    $region20: #{modified_model_forward.1} parent=1 // pred_region
      _
    $region21: #{modified_model_forward.1} parent=1 // pred_fallthru
      _
    // Predicated region
    $region22: #{modified_model_forward.1} parent=1 // pred_check
      _
    $region23: #{modified_model_forward.1} parent=1 // pred_check_branch
      %24 = sbr.rel (0) target = $region25
    $region24: #{modified_model_forward.1} parent=1 // pred_region
      _
    $region25: #{modified_model_forward.1} parent=1 // pred_fallthru
      _
    // Predicated region
    $region26: #{modified_model_forward.1} parent=1 // pred_check
      _
    $region27: #{modified_model_forward.1} parent=1 // pred_check_branch
      %26 = sbr.rel (0) target = $region29
    $region28: #{modified_model_forward.1} parent=1 // pred_region
      _
    $region29: #{modified_model_forward.1} parent=1 // pred_fallthru
      _
    %vm27 = vcmask 31744
    %28 = vst.msk [vmem:[#allocation2] sm:$0xff] %vm27, 0.0
    %29 = vst.msk [vmem:[#allocation2 + $0x8] sm:$0xff] %vm27, 0.0
    %30 = vst.msk [vmem:[#allocation2 + $0x10] sm:$0xff] %vm27, 0.0
    %31 = vst.msk [vmem:[#allocation2 + $0x18] sm:$0xff] %vm27, 0.0
    %32 = vst.msk [vmem:[#allocation2 + $0x20] sm:$0xff] %vm27, 0.0
    %33 = vst.msk [vmem:[#allocation2 + $0x28] sm:$0xff] %vm27, 0.0
    %34 = vst.msk [vmem:[#allocation2 + $0x30] sm:$0xff] %vm27, 0.0
    %35 = vst.msk [vmem:[#allocation2 + $0x38] sm:$0xff] %vm27, 0.0
    %36 = vst.msk [vmem:[#allocation2 + $0x40] sm:$0xff] %vm27, 0.0
    %37 = vst.msk [vmem:[#allocation2 + $0x48] sm:$0xff] %vm27, 0.0
    %38 = vst.msk [vmem:[#allocation2 + $0x50] sm:$0xff] %vm27, 0.0
    %39 = vst.msk [vmem:[#allocation2 + $0x58] sm:$0xff] %vm27, 0.0
    %40 = vst.msk [vmem:[#allocation2 + $0x60] sm:$0xff] %vm27, 0.0
    %41 = vst.msk [vmem:[#allocation2 + $0x68] sm:$0xff] %vm27, 0.0
    %42 = vst.msk [vmem:[#allocation2 + $0x70] sm:$0xff] %vm27, 0.0
    %43 = vst.msk [vmem:[#allocation2 + $0x78] sm:$0xff] %vm27, 0.0
    %44 = vst.msk [vmem:[#allocation2 + $0x80] sm:$0xff] %vm27, 0.0
    %45 = vst.msk [vmem:[#allocation2 + $0x88] sm:$0xff] %vm27, 0.0
    %46 = vst.msk [vmem:[#allocation2 + $0x90] sm:$0xff] %vm27, 0.0
    %47 = vst.msk [vmem:[#allocation2 + $0x98] sm:$0xff] %vm27, 0.0
    %48 = vst.msk [vmem:[#allocation2 + $0xa0] sm:$0xff] %vm27, 0.0
    %49 = vst.msk [vmem:[#allocation2 + $0xa8] sm:$0xff] %vm27, 0.0
    %50 = vst.msk [vmem:[#allocation2 + $0xb0] sm:$0xff] %vm27, 0.0
    %51 = vst.msk [vmem:[#allocation2 + $0xb8] sm:$0xff] %vm27, 0.0
    %52 = vst.msk [vmem:[#allocation2 + $0xc0] sm:$0xff] %vm27, 0.0
    %53 = vst.msk [vmem:[#allocation2 + $0xc8] sm:$0xff] %vm27, 0.0
    %54 = vst.msk [vmem:[#allocation2 + $0xd0] sm:$0xff] %vm27, 0.0
    %55 = vst.msk [vmem:[#allocation2 + $0xd8] sm:$0xff] %vm27, 0.0
    %56 = vst.msk [vmem:[#allocation2 + $0xe0] sm:$0xff] %vm27, 0.0
    %57 = vst.msk [vmem:[#allocation2 + $0xe8] sm:$0xff] %vm27, 0.0
    %58 = vst.msk [vmem:[#allocation2 + $0xf0] sm:$0xff] %vm27, 0.0
    %59 = vst.msk [vmem:[#allocation2 + $0xf8] sm:$0xff] %vm27, 0.0
    %60 = vst.msk [vmem:[#allocation2 + $0x100] sm:$0xff] %vm27, 0.0
    %61 = vst.msk [vmem:[#allocation2 + $0x108] sm:$0xff] %vm27, 0.0
    %62 = vst.msk [vmem:[#allocation2 + $0x110] sm:$0xff] %vm27, 0.0
    %63 = vst.msk [vmem:[#allocation2 + $0x118] sm:$0xff] %vm27, 0.0
    %64 = vst.msk [vmem:[#allocation2 + $0x120] sm:$0xff] %vm27, 0.0
    %65 = vst.msk [vmem:[#allocation2 + $0x128] sm:$0xff] %vm27, 0.0
    %66 = vst.msk [vmem:[#allocation2 + $0x130] sm:$0xff] %vm27, 0.0
    %67 = vst.msk [vmem:[#allocation2 + $0x138] sm:$0xff] %vm27, 0.0
    %68 = vst.msk [vmem:[#allocation2 + $0x140] sm:$0xff] %vm27, 0.0
    %69 = vst.msk [vmem:[#allocation2 + $0x148] sm:$0xff] %vm27, 0.0
    %70 = vst.msk [vmem:[#allocation2 + $0x150] sm:$0xff] %vm27, 0.0
    %71 = vst.msk [vmem:[#allocation2 + $0x158] sm:$0xff] %vm27, 0.0
    %72 = vst.msk [vmem:[#allocation2 + $0x160] sm:$0xff] %vm27, 0.0
    %73 = vst.msk [vmem:[#allocation2 + $0x168] sm:$0xff] %vm27, 0.0
    %74 = vst.msk [vmem:[#allocation2 + $0x170] sm:$0xff] %vm27, 0.0
    %75 = vst.msk [vmem:[#allocation2 + $0x178] sm:$0xff] %vm27, 0.0
    %76 = vst.msk [vmem:[#allocation2 + $0x180] sm:$0xff] %vm27, 0.0
    %77 = vst.msk [vmem:[#allocation2 + $0x188] sm:$0xff] %vm27, 0.0
    %78 = vst.msk [vmem:[#allocation2 + $0x190] sm:$0xff] %vm27, 0.0
    %79 = vst.msk [vmem:[#allocation2 + $0x198] sm:$0xff] %vm27, 0.0
    %80 = vst.msk [vmem:[#allocation2 + $0x1a0] sm:$0xff] %vm27, 0.0
    %81 = vst.msk [vmem:[#allocation2 + $0x1a8] sm:$0xff] %vm27, 0.0
    %82 = vst.msk [vmem:[#allocation2 + $0x1b0] sm:$0xff] %vm27, 0.0
    %83 = vst.msk [vmem:[#allocation2 + $0x1b8] sm:$0xff] %vm27, 0.0
    %84 = vst.msk [vmem:[#allocation2 + $0x1c0] sm:$0xff] %vm27, 0.0
    %85 = vst.msk [vmem:[#allocation2 + $0x1c8] sm:$0xff] %vm27, 0.0
    %86 = vst.msk [vmem:[#allocation2 + $0x1d0] sm:$0xff] %vm27, 0.0
    %87 = vst.msk [vmem:[#allocation2 + $0x1d8] sm:$0xff] %vm27, 0.0
    %88 = vst.msk [vmem:[#allocation2 + $0x1e0] sm:$0xff] %vm27, 0.0
    %89 = vst.msk [vmem:[#allocation2 + $0x1e8] sm:$0xff] %vm27, 0.0
    %90 = vst.msk [vmem:[#allocation2 + $0x1f0] sm:$0xff] %vm27, 0.0
    %91 = vst.msk [vmem:[#allocation2 + $0x1f8] sm:$0xff] %vm27, 0.0
    %92 = vst.msk [vmem:[#allocation2 + $0x200] sm:$0xff] %vm27, 0.0
    %93 = vst.msk [vmem:[#allocation2 + $0x208] sm:$0xff] %vm27, 0.0
    %94 = vst.msk [vmem:[#allocation2 + $0x210] sm:$0xff] %vm27, 0.0
    %95 = vst.msk [vmem:[#allocation2 + $0x218] sm:$0xff] %vm27, 0.0
    %96 = vst.msk [vmem:[#allocation2 + $0x220] sm:$0xff] %vm27, 0.0
    %97 = vst.msk [vmem:[#allocation2 + $0x228] sm:$0xff] %vm27, 0.0
    %98 = vst.msk [vmem:[#allocation2 + $0x230] sm:$0xff] %vm27, 0.0
    %99 = vst.msk [vmem:[#allocation2 + $0x238] sm:$0xff] %vm27, 0.0
    %100 = vst.msk [vmem:[#allocation2 + $0x240] sm:$0xff] %vm27, 0.0
    %101 = vst.msk [vmem:[#allocation2 + $0x248] sm:$0xff] %vm27, 0.0
    %102 = vst.msk [vmem:[#allocation2 + $0x250] sm:$0xff] %vm27, 0.0
    %103 = vst.msk [vmem:[#allocation2 + $0x258] sm:$0xff] %vm27, 0.0
    %104 = vst.msk [vmem:[#allocation2 + $0x260] sm:$0xff] %vm27, 0.0
    %105 = vst.msk [vmem:[#allocation2 + $0x268] sm:$0xff] %vm27, 0.0
    %106 = vst.msk [vmem:[#allocation2 + $0x270] sm:$0xff] %vm27, 0.0
    %107 = vst.msk [vmem:[#allocation2 + $0x278] sm:$0xff] %vm27, 0.0
    %108 = vst.msk [vmem:[#allocation2 + $0x280] sm:$0xff] %vm27, 0.0
    %109 = vst.msk [vmem:[#allocation2 + $0x288] sm:$0xff] %vm27, 0.0
    %110 = vst.msk [vmem:[#allocation2 + $0x290] sm:$0xff] %vm27, 0.0
    %111 = vst.msk [vmem:[#allocation2 + $0x298] sm:$0xff] %vm27, 0.0
    %112 = vst.msk [vmem:[#allocation2 + $0x2a0] sm:$0xff] %vm27, 0.0
    %113 = vst.msk [vmem:[#allocation2 + $0x2a8] sm:$0xff] %vm27, 0.0
    %114 = vst.msk [vmem:[#allocation2 + $0x2b0] sm:$0xff] %vm27, 0.0
    %115 = vst.msk [vmem:[#allocation2 + $0x2b8] sm:$0xff] %vm27, 0.0
    %116 = vst.msk [vmem:[#allocation2 + $0x2c0] sm:$0xff] %vm27, 0.0
    %117 = vst.msk [vmem:[#allocation2 + $0x2c8] sm:$0xff] %vm27, 0.0
    %118 = vst.msk [vmem:[#allocation2 + $0x2d0] sm:$0xff] %vm27, 0.0
    %119 = vst.msk [vmem:[#allocation2 + $0x2d8] sm:$0xff] %vm27, 0.0
    %120 = vst.msk [vmem:[#allocation2 + $0x2e0] sm:$0xff] %vm27, 0.0
    %121 = vst.msk [vmem:[#allocation2 + $0x2e8] sm:$0xff] %vm27, 0.0
    %122 = vst.msk [vmem:[#allocation2 + $0x2f0] sm:$0xff] %vm27, 0.0
    %123 = vst.msk [vmem:[#allocation2 + $0x2f8] sm:$0xff] %vm27, 0.0
    %124 = vst.msk [vmem:[#allocation2 + $0x300] sm:$0xff] %vm27, 0.0
    %125 = vst.msk [vmem:[#allocation2 + $0x308] sm:$0xff] %vm27, 0.0
    %126 = vst.msk [vmem:[#allocation2 + $0x310] sm:$0xff] %vm27, 0.0
    %127 = vst.msk [vmem:[#allocation2 + $0x318] sm:$0xff] %vm27, 0.0
    %128 = vst.msk [vmem:[#allocation2 + $0x320] sm:$0xff] %vm27, 0.0
    %129 = vst.msk [vmem:[#allocation2 + $0x328] sm:$0xff] %vm27, 0.0
    %130 = vst.msk [vmem:[#allocation2 + $0x330] sm:$0xff] %vm27, 0.0
    %131 = vst.msk [vmem:[#allocation2 + $0x338] sm:$0xff] %vm27, 0.0
    %132 = vst.msk [vmem:[#allocation2 + $0x340] sm:$0xff] %vm27, 0.0
    %133 = vst.msk [vmem:[#allocation2 + $0x348] sm:$0xff] %vm27, 0.0
    %134 = vst.msk [vmem:[#allocation2 + $0x350] sm:$0xff] %vm27, 0.0
    %135 = vst.msk [vmem:[#allocation2 + $0x358] sm:$0xff] %vm27, 0.0
    %136 = vst.msk [vmem:[#allocation2 + $0x360] sm:$0xff] %vm27, 0.0
    %137 = vst.msk [vmem:[#allocation2 + $0x368] sm:$0xff] %vm27, 0.0
    %138 = vst.msk [vmem:[#allocation2 + $0x370] sm:$0xff] %vm27, 0.0
    %139 = vst.msk [vmem:[#allocation2 + $0x378] sm:$0xff] %vm27, 0.0
    %140 = vst.msk [vmem:[#allocation2 + $0x380] sm:$0xff] %vm27, 0.0
    %141 = vst.msk [vmem:[#allocation2 + $0x388] sm:$0xff] %vm27, 0.0
    %142 = vst.msk [vmem:[#allocation2 + $0x390] sm:$0xff] %vm27, 0.0
    %143 = vst.msk [vmem:[#allocation2 + $0x398] sm:$0xff] %vm27, 0.0
    %144 = vst.msk [vmem:[#allocation2 + $0x3a0] sm:$0xff] %vm27, 0.0
    %145 = vst.msk [vmem:[#allocation2 + $0x3a8] sm:$0xff] %vm27, 0.0
    %146 = vst.msk [vmem:[#allocation2 + $0x3b0] sm:$0xff] %vm27, 0.0
    %147 = vst.msk [vmem:[#allocation2 + $0x3b8] sm:$0xff] %vm27, 0.0
    %148 = vst.msk [vmem:[#allocation2 + $0x3c0] sm:$0xff] %vm27, 0.0
    %149 = vst.msk [vmem:[#allocation2 + $0x3c8] sm:$0xff] %vm27, 0.0
    %150 = vst.msk [vmem:[#allocation2 + $0x3d0] sm:$0xff] %vm27, 0.0
    %151 = vst.msk [vmem:[#allocation2 + $0x3d8] sm:$0xff] %vm27, 0.0
    %152 = vst.msk [vmem:[#allocation2 + $0x3e0] sm:$0xff] %vm27, 0.0
    %153 = vst.msk [vmem:[#allocation2 + $0x3e8] sm:$0xff] %vm27, 0.0
    %154 = vst.msk [vmem:[#allocation2 + $0x3f0] sm:$0xff] %vm27, 0.0
    %155 = vst.msk [vmem:[#allocation2 + $0x3f8] sm:$0xff] %vm27, 0.0
    %156 = vst.msk [vmem:[#allocation2 + $0x400] sm:$0xff] %vm27, 0.0
    %157 = vst.msk [vmem:[#allocation2 + $0x408] sm:$0xff] %vm27, 0.0
    %158 = vst.msk [vmem:[#allocation2 + $0x410] sm:$0xff] %vm27, 0.0
    %159 = vst.msk [vmem:[#allocation2 + $0x418] sm:$0xff] %vm27, 0.0
    %160 = vst.msk [vmem:[#allocation2 + $0x420] sm:$0xff] %vm27, 0.0
    %161 = vst.msk [vmem:[#allocation2 + $0x428] sm:$0xff] %vm27, 0.0
    %162 = vst.msk [vmem:[#allocation2 + $0x430] sm:$0xff] %vm27, 0.0
    %163 = vst.msk [vmem:[#allocation2 + $0x438] sm:$0xff] %vm27, 0.0
    %164 = vst.msk [vmem:[#allocation2 + $0x440] sm:$0xff] %vm27, 0.0
    %165 = vst.msk [vmem:[#allocation2 + $0x448] sm:$0xff] %vm27, 0.0
    %166 = vst.msk [vmem:[#allocation2 + $0x450] sm:$0xff] %vm27, 0.0
    %167 = vst.msk [vmem:[#allocation2 + $0x458] sm:$0xff] %vm27, 0.0
    %168 = vst.msk [vmem:[#allocation2 + $0x460] sm:$0xff] %vm27, 0.0
    %169 = vst.msk [vmem:[#allocation2 + $0x468] sm:$0xff] %vm27, 0.0
    %170 = vst.msk [vmem:[#allocation2 + $0x470] sm:$0xff] %vm27, 0.0
    %171 = vst.msk [vmem:[#allocation2 + $0x478] sm:$0xff] %vm27, 0.0
    %v172 = vld [vmem:[%s0] sm:$0xff]
    %v173 = vld [vmem:[%s0 + $0x8] sm:$0xff]
    %v174 = vld [vmem:[%s0 + $0x10] sm:$0xff]
    %v175 = vld [vmem:[%s0 + $0x18] sm:$0xff]
    %v176 = vld [vmem:[%s0 + $0x20] sm:$0xff]
    %v177 = vld [vmem:[%s0 + $0x28] sm:$0xff]
    %v178 = vld [vmem:[%s0 + $0x30] sm:$0xff]
    %v179 = vld [vmem:[%s0 + $0x38] sm:$0xff]
    %v180 = vld [vmem:[%s0 + $0x40] sm:$0xff]
    %v181 = vld [vmem:[%s0 + $0x48] sm:$0xff]
    %v182 = vld [vmem:[%s0 + $0x50] sm:$0xff]
    %v183 = vld [vmem:[%s0 + $0x58] sm:$0xff]
    %v184 = vld [vmem:[%s0 + $0x60] sm:$0xff]
    %v185 = vld [vmem:[%s0 + $0x68] sm:$0xff]
    %v186 = vld [vmem:[%s0 + $0x70] sm:$0xff]
    %v187 = vld [vmem:[%s0 + $0x78] sm:$0xff]
    %v188 = vld [vmem:[%s0 + $0x80] sm:$0xff]
    %v189 = vld [vmem:[%s0 + $0x88] sm:$0xff]
    %v190 = vld [vmem:[%s0 + $0x90] sm:$0xff]
    %v191 = vld [vmem:[%s0 + $0x98] sm:$0xff]
    %v192 = vld [vmem:[%s0 + $0xa0] sm:$0xff]
    %v193 = vld [vmem:[%s0 + $0xa8] sm:$0xff]
    %v194 = vld [vmem:[%s0 + $0xb0] sm:$0xff]
    %v195 = vld [vmem:[%s0 + $0xb8] sm:$0xff]
    %v196 = vld [vmem:[%s0 + $0xc0] sm:$0xff]
    %v197 = vld [vmem:[%s0 + $0xc8] sm:$0xff]
    %v198 = vld [vmem:[%s0 + $0xd0] sm:$0xff]
    %v199 = vld [vmem:[%s0 + $0xd8] sm:$0xff]
    %v200 = vld [vmem:[%s0 + $0xe0] sm:$0xff]
    %v201 = vld [vmem:[%s0 + $0xe8] sm:$0xff]
    %v202 = vld [vmem:[%s0 + $0xf0] sm:$0xff]
    %v203 = vld [vmem:[%s0 + $0xf8] sm:$0xff]
    %v204 = vld [vmem:[%s0 + $0x100] sm:$0xff]
    %v205 = vld [vmem:[%s0 + $0x108] sm:$0xff]
    %v206 = vld [vmem:[%s0 + $0x110] sm:$0xff]
    %v207 = vld [vmem:[%s0 + $0x118] sm:$0xff]
    %v208 = vld [vmem:[%s0 + $0x120] sm:$0xff]
    %v209 = vld [vmem:[%s0 + $0x128] sm:$0xff]
    %v210 = vld [vmem:[%s0 + $0x130] sm:$0xff]
    %v211 = vld [vmem:[%s0 + $0x138] sm:$0xff]
    %v212 = vld [vmem:[%s0 + $0x140] sm:$0xff]
    %v213 = vld [vmem:[%s0 + $0x148] sm:$0xff]
    %v214 = vld [vmem:[%s0 + $0x150] sm:$0xff]
    %v215 = vld [vmem:[%s0 + $0x158] sm:$0xff]
    %v216 = vld [vmem:[%s0 + $0x160] sm:$0xff]
    %v217 = vld [vmem:[%s0 + $0x168] sm:$0xff]
    %v218 = vld [vmem:[%s0 + $0x170] sm:$0xff]
    %v219 = vld [vmem:[%s0 + $0x178] sm:$0xff]
    %v220 = vld [vmem:[%s0 + $0x180] sm:$0xff]
    %v221 = vld [vmem:[%s0 + $0x188] sm:$0xff]
    %v222 = vld [vmem:[%s0 + $0x190] sm:$0xff]
    %v223 = vld [vmem:[%s0 + $0x198] sm:$0xff]
    %v224 = vld [vmem:[%s0 + $0x1a0] sm:$0xff]
    %v225 = vld [vmem:[%s0 + $0x1a8] sm:$0xff]
    %v226 = vld [vmem:[%s0 + $0x1b0] sm:$0xff]
    %v227 = vld [vmem:[%s0 + $0x1b8] sm:$0xff]
    %v228 = vld [vmem:[%s0 + $0x1c0] sm:$0xff]
    %v229 = vld [vmem:[%s0 + $0x1c8] sm:$0xff]
    %v230 = vld [vmem:[%s0 + $0x1d0] sm:$0xff]
    %v231 = vld [vmem:[%s0 + $0x1d8] sm:$0xff]
    %v232 = vld [vmem:[%s0 + $0x1e0] sm:$0xff]
    %v233 = vld [vmem:[%s0 + $0x1e8] sm:$0xff]
    %v234 = vld [vmem:[%s0 + $0x1f0] sm:$0xff]
    %v235 = vld [vmem:[%s0 + $0x1f8] sm:$0xff]
    %s236 = scalar_lea.vmem [#allocation2], 32
    %237 = vst.msk [vmem:[%s236 + $0x8] sm:$0xff] %vm27, %v172
    %238 = vst.msk [vmem:[%s236 + $0x10] sm:$0xff] %vm27, %v173
    %239 = vst.msk [vmem:[%s236 + $0x28] sm:$0xff] %vm27, %v174
    %240 = vst.msk [vmem:[%s236 + $0x30] sm:$0xff] %vm27, %v175
    %241 = vst.msk [vmem:[%s236 + $0x48] sm:$0xff] %vm27, %v176
    %242 = vst.msk [vmem:[%s236 + $0x50] sm:$0xff] %vm27, %v177
    %243 = vst.msk [vmem:[%s236 + $0x68] sm:$0xff] %vm27, %v178
    %244 = vst.msk [vmem:[%s236 + $0x70] sm:$0xff] %vm27, %v179
    %245 = vst.msk [vmem:[%s236 + $0x88] sm:$0xff] %vm27, %v180
    %246 = vst.msk [vmem:[%s236 + $0x90] sm:$0xff] %vm27, %v181
    %247 = vst.msk [vmem:[%s236 + $0xa8] sm:$0xff] %vm27, %v182
    %248 = vst.msk [vmem:[%s236 + $0xb0] sm:$0xff] %vm27, %v183
    %249 = vst.msk [vmem:[%s236 + $0xc8] sm:$0xff] %vm27, %v184
    %250 = vst.msk [vmem:[%s236 + $0xd0] sm:$0xff] %vm27, %v185
    %251 = vst.msk [vmem:[%s236 + $0xe8] sm:$0xff] %vm27, %v186
    %252 = vst.msk [vmem:[%s236 + $0xf0] sm:$0xff] %vm27, %v187
    %253 = vst.msk [vmem:[%s236 + $0x108] sm:$0xff] %vm27, %v188
    %254 = vst.msk [vmem:[%s236 + $0x110] sm:$0xff] %vm27, %v189
    %255 = vst.msk [vmem:[%s236 + $0x128] sm:$0xff] %vm27, %v190
    %256 = vst.msk [vmem:[%s236 + $0x130] sm:$0xff] %vm27, %v191
    %257 = vst.msk [vmem:[%s236 + $0x148] sm:$0xff] %vm27, %v192
    %258 = vst.msk [vmem:[%s236 + $0x150] sm:$0xff] %vm27, %v193
    %259 = vst.msk [vmem:[%s236 + $0x168] sm:$0xff] %vm27, %v194
    %260 = vst.msk [vmem:[%s236 + $0x170] sm:$0xff] %vm27, %v195
    %261 = vst.msk [vmem:[%s236 + $0x188] sm:$0xff] %vm27, %v196
    %262 = vst.msk [vmem:[%s236 + $0x190] sm:$0xff] %vm27, %v197
    %263 = vst.msk [vmem:[%s236 + $0x1a8] sm:$0xff] %vm27, %v198
    %264 = vst.msk [vmem:[%s236 + $0x1b0] sm:$0xff] %vm27, %v199
    %265 = vst.msk [vmem:[%s236 + $0x1c8] sm:$0xff] %vm27, %v200
    %266 = vst.msk [vmem:[%s236 + $0x1d0] sm:$0xff] %vm27, %v201
    %267 = vst.msk [vmem:[%s236 + $0x1e8] sm:$0xff] %vm27, %v202
    %268 = vst.msk [vmem:[%s236 + $0x1f0] sm:$0xff] %vm27, %v203
    %269 = vst.msk [vmem:[%s236 + $0x248] sm:$0xff] %vm27, %v204
    %270 = vst.msk [vmem:[%s236 + $0x250] sm:$0xff] %vm27, %v205
    %271 = vst.msk [vmem:[%s236 + $0x268] sm:$0xff] %vm27, %v206
    %272 = vst.msk [vmem:[%s236 + $0x270] sm:$0xff] %vm27, %v207
    %273 = vst.msk [vmem:[%s236 + $0x288] sm:$0xff] %vm27, %v208
    %274 = vst.msk [vmem:[%s236 + $0x290] sm:$0xff] %vm27, %v209
    %275 = vst.msk [vmem:[%s236 + $0x2a8] sm:$0xff] %vm27, %v210
    %276 = vst.msk [vmem:[%s236 + $0x2b0] sm:$0xff] %vm27, %v211
    %277 = vst.msk [vmem:[%s236 + $0x2c8] sm:$0xff] %vm27, %v212
    %278 = vst.msk [vmem:[%s236 + $0x2d0] sm:$0xff] %vm27, %v213
    %279 = vst.msk [vmem:[%s236 + $0x2e8] sm:$0xff] %vm27, %v214
    %280 = vst.msk [vmem:[%s236 + $0x2f0] sm:$0xff] %vm27, %v215
    %281 = vst.msk [vmem:[%s236 + $0x308] sm:$0xff] %vm27, %v216
    %282 = vst.msk [vmem:[%s236 + $0x310] sm:$0xff] %vm27, %v217
    %283 = vst.msk [vmem:[%s236 + $0x328] sm:$0xff] %vm27, %v218
    %284 = vst.msk [vmem:[%s236 + $0x330] sm:$0xff] %vm27, %v219
    %285 = vst.msk [vmem:[%s236 + $0x348] sm:$0xff] %vm27, %v220
    %286 = vst.msk [vmem:[%s236 + $0x350] sm:$0xff] %vm27, %v221
    %287 = vst.msk [vmem:[%s236 + $0x368] sm:$0xff] %vm27, %v222
    %288 = vst.msk [vmem:[%s236 + $0x370] sm:$0xff] %vm27, %v223
    %289 = vst.msk [vmem:[%s236 + $0x388] sm:$0xff] %vm27, %v224
    %290 = vst.msk [vmem:[%s236 + $0x390] sm:$0xff] %vm27, %v225
    %291 = vst.msk [vmem:[%s236 + $0x3a8] sm:$0xff] %vm27, %v226
    %292 = vst.msk [vmem:[%s236 + $0x3b0] sm:$0xff] %vm27, %v227
    %293 = vst.msk [vmem:[%s236 + $0x3c8] sm:$0xff] %vm27, %v228
    %294 = vst.msk [vmem:[%s236 + $0x3d0] sm:$0xff] %vm27, %v229
    %295 = vst.msk [vmem:[%s236 + $0x3e8] sm:$0xff] %vm27, %v230
    %296 = vst.msk [vmem:[%s236 + $0x3f0] sm:$0xff] %vm27, %v231
    %297 = vst.msk [vmem:[%s236 + $0x408] sm:$0xff] %vm27, %v232
    %298 = vst.msk [vmem:[%s236 + $0x410] sm:$0xff] %vm27, %v233
    %299 = vst.msk [vmem:[%s236 + $0x428] sm:$0xff] %vm27, %v234
    %300 = vst.msk [vmem:[%s236 + $0x430] sm:$0xff] %vm27, %v235
    %v301 = vld [vmem:[#allocation2 + $0x7] sm:$0xff]
    %v302 = vld [vmem:[#allocation2 + $0xf] sm:$0xff]
    %v303 = vld [vmem:[#allocation2 + $0x27] sm:$0xff]
    %v304 = vld [vmem:[#allocation2 + $0x2f] sm:$0xff]
    %v305 = vld [vmem:[#allocation2 + $0x47] sm:$0xff]
    %v306 = vld [vmem:[#allocation2 + $0x4f] sm:$0xff]
    %v307 = vld [vmem:[#allocation2 + $0x67] sm:$0xff]
    %v308 = vld [vmem:[#allocation2 + $0x6f] sm:$0xff]
    %v309 = vld [vmem:[#allocation2 + $0x87] sm:$0xff]
    %v310 = vld [vmem:[#allocation2 + $0x8f] sm:$0xff]
    %v311 = vld [vmem:[#allocation2 + $0xa7] sm:$0xff]
    %v312 = vld [vmem:[#allocation2 + $0xaf] sm:$0xff]
    %v313 = vld [vmem:[#allocation2 + $0xc7] sm:$0xff]
    %v314 = vld [vmem:[#allocation2 + $0xcf] sm:$0xff]
    %v315 = vld [vmem:[#allocation2 + $0xe7] sm:$0xff]
    %v316 = vld [vmem:[#allocation2 + $0xef] sm:$0xff]
    %v317 = vld [vmem:[#allocation2 + $0x107] sm:$0xff]
    %v318 = vld [vmem:[#allocation2 + $0x10f] sm:$0xff]
    %v319 = vld [vmem:[#allocation2 + $0x127] sm:$0xff]
    %v320 = vld [vmem:[#allocation2 + $0x12f] sm:$0xff]
    %v321 = vld [vmem:[#allocation2 + $0x147] sm:$0xff]
    %v322 = vld [vmem:[#allocation2 + $0x14f] sm:$0xff]
    %v323 = vld [vmem:[#allocation2 + $0x167] sm:$0xff]
    %v324 = vld [vmem:[#allocation2 + $0x16f] sm:$0xff]
    %v325 = vld [vmem:[#allocation2 + $0x187] sm:$0xff]
    %v326 = vld [vmem:[#allocation2 + $0x18f] sm:$0xff]
    %v327 = vld [vmem:[#allocation2 + $0x1a7] sm:$0xff]
    %v328 = vld [vmem:[#allocation2 + $0x1af] sm:$0xff]
    %v329 = vld [vmem:[#allocation2 + $0x1c7] sm:$0xff]
    %v330 = vld [vmem:[#allocation2 + $0x1cf] sm:$0xff]
    %v331 = vld [vmem:[#allocation2 + $0x1e7] sm:$0xff]
    %v332 = vld [vmem:[#allocation2 + $0x1ef] sm:$0xff]
    %v333 = vld [vmem:[#allocation2 + $0x247] sm:$0xff]
    %v334 = vld [vmem:[#allocation2 + $0x24f] sm:$0xff]
    %v335 = vld [vmem:[#allocation2 + $0x267] sm:$0xff]
    %v336 = vld [vmem:[#allocation2 + $0x26f] sm:$0xff]
    %v337 = vld [vmem:[#allocation2 + $0x287] sm:$0xff]
    %v338 = vld [vmem:[#allocation2 + $0x28f] sm:$0xff]
    %v339 = vld [vmem:[#allocation2 + $0x2a7] sm:$0xff]
    %v340 = vld [vmem:[#allocation2 + $0x2af] sm:$0xff]
    %v341 = vld [vmem:[#allocation2 + $0x2c7] sm:$0xff]
    %v342 = vld [vmem:[#allocation2 + $0x2cf] sm:$0xff]
    %v343 = vld [vmem:[#allocation2 + $0x2e7] sm:$0xff]
    %v344 = vld [vmem:[#allocation2 + $0x2ef] sm:$0xff]
    %v345 = vld [vmem:[#allocation2 + $0x307] sm:$0xff]
    %v346 = vld [vmem:[#allocation2 + $0x30f] sm:$0xff]
    %v347 = vld [vmem:[#allocation2 + $0x327] sm:$0xff]
    %v348 = vld [vmem:[#allocation2 + $0x32f] sm:$0xff]
    %v349 = vld [vmem:[#allocation2 + $0x347] sm:$0xff]
    %v350 = vld [vmem:[#allocation2 + $0x34f] sm:$0xff]
    %v351 = vld [vmem:[#allocation2 + $0x367] sm:$0xff]
    %v352 = vld [vmem:[#allocation2 + $0x36f] sm:$0xff]
    %v353 = vld [vmem:[#allocation2 + $0x387] sm:$0xff]
    %v354 = vld [vmem:[#allocation2 + $0x38f] sm:$0xff]
    %v355 = vld [vmem:[#allocation2 + $0x3a7] sm:$0xff]
    %v356 = vld [vmem:[#allocation2 + $0x3af] sm:$0xff]
    %v357 = vld [vmem:[#allocation2 + $0x3c7] sm:$0xff]
    %v358 = vld [vmem:[#allocation2 + $0x3cf] sm:$0xff]
    %v359 = vld [vmem:[#allocation2 + $0x3e7] sm:$0xff]
    %v360 = vld [vmem:[#allocation2 + $0x3ef] sm:$0xff]
    %v361 = vld [vmem:[#allocation2 + $0x407] sm:$0xff]
    %v362 = vld [vmem:[#allocation2 + $0x40f] sm:$0xff]
    %v363 = vld [vmem:[#allocation2 + $0x427] sm:$0xff]
    %v364 = vld [vmem:[#allocation2 + $0x42f] sm:$0xff]
    %v365 = vld [vmem:[%s1] sm:$0xf]
    %v366 = vld [vmem:[#allocation2 + $0x8] sm:$0xff]
    %v367 = vld [vmem:[#allocation2 + $0x10] sm:$0xff]
    %v368 = vld [vmem:[#allocation2 + $0x28] sm:$0xff]
    %v369 = vld [vmem:[#allocation2 + $0x30] sm:$0xff]
    %v370 = vld [vmem:[#allocation2 + $0x48] sm:$0xff]
    %v371 = vld [vmem:[#allocation2 + $0x50] sm:$0xff]
    %v372 = vld [vmem:[#allocation2 + $0x68] sm:$0xff]
    %v373 = vld [vmem:[#allocation2 + $0x70] sm:$0xff]
    %v374 = vld [vmem:[#allocation2 + $0x88] sm:$0xff]
    %v375 = vld [vmem:[#allocation2 + $0x90] sm:$0xff]
    %v376 = vld [vmem:[#allocation2 + $0xa8] sm:$0xff]
    %v377 = vld [vmem:[#allocation2 + $0xb0] sm:$0xff]
    %v378 = vld [vmem:[#allocation2 + $0xc8] sm:$0xff]
    %v379 = vld [vmem:[#allocation2 + $0xd0] sm:$0xff]
    %v380 = vld [vmem:[#allocation2 + $0xe8] sm:$0xff]
    %v381 = vld [vmem:[#allocation2 + $0xf0] sm:$0xff]
    %v382 = vld [vmem:[#allocation2 + $0x108] sm:$0xff]
    %v383 = vld [vmem:[#allocation2 + $0x110] sm:$0xff]
    %v384 = vld [vmem:[#allocation2 + $0x128] sm:$0xff]
    %v385 = vld [vmem:[#allocation2 + $0x130] sm:$0xff]
    %v386 = vld [vmem:[#allocation2 + $0x148] sm:$0xff]
    %v387 = vld [vmem:[#allocation2 + $0x150] sm:$0xff]
    %v388 = vld [vmem:[#allocation2 + $0x168] sm:$0xff]
    %v389 = vld [vmem:[#allocation2 + $0x170] sm:$0xff]
    %v390 = vld [vmem:[#allocation2 + $0x188] sm:$0xff]
    %v391 = vld [vmem:[#allocation2 + $0x190] sm:$0xff]
    %v392 = vld [vmem:[#allocation2 + $0x1a8] sm:$0xff]
    %v393 = vld [vmem:[#allocation2 + $0x1b0] sm:$0xff]
    %v394 = vld [vmem:[#allocation2 + $0x1c8] sm:$0xff]
    %v395 = vld [vmem:[#allocation2 + $0x1d0] sm:$0xff]
    %v396 = vld [vmem:[#allocation2 + $0x1e8] sm:$0xff]
    %v397 = vld [vmem:[#allocation2 + $0x1f0] sm:$0xff]
    %v398 = vld [vmem:[#allocation2 + $0x248] sm:$0xff]
    %v399 = vld [vmem:[#allocation2 + $0x250] sm:$0xff]
    %v400 = vld [vmem:[#allocation2 + $0x268] sm:$0xff]
    %v401 = vld [vmem:[#allocation2 + $0x270] sm:$0xff]
    %v402 = vld [vmem:[#allocation2 + $0x288] sm:$0xff]
    %v403 = vld [vmem:[#allocation2 + $0x290] sm:$0xff]
    %v404 = vld [vmem:[#allocation2 + $0x2a8] sm:$0xff]
    %v405 = vld [vmem:[#allocation2 + $0x2b0] sm:$0xff]
    %v406 = vld [vmem:[#allocation2 + $0x2c8] sm:$0xff]
    %v407 = vld [vmem:[#allocation2 + $0x2d0] sm:$0xff]
    %v408 = vld [vmem:[#allocation2 + $0x2e8] sm:$0xff]
    %v409 = vld [vmem:[#allocation2 + $0x2f0] sm:$0xff]
    %v410 = vld [vmem:[#allocation2 + $0x308] sm:$0xff]
    %v411 = vld [vmem:[#allocation2 + $0x310] sm:$0xff]
    %v412 = vld [vmem:[#allocation2 + $0x328] sm:$0xff]
    %v413 = vld [vmem:[#allocation2 + $0x330] sm:$0xff]
    %v414 = vld [vmem:[#allocation2 + $0x348] sm:$0xff]
    %v415 = vld [vmem:[#allocation2 + $0x350] sm:$0xff]
    %v416 = vld [vmem:[#allocation2 + $0x368] sm:$0xff]
    %v417 = vld [vmem:[#allocation2 + $0x370] sm:$0xff]
    %v418 = vld [vmem:[#allocation2 + $0x388] sm:$0xff]
    %v419 = vld [vmem:[#allocation2 + $0x390] sm:$0xff]
    %v420 = vld [vmem:[#allocation2 + $0x3a8] sm:$0xff]
    %v421 = vld [vmem:[#allocation2 + $0x3b0] sm:$0xff]
    %v422 = vld [vmem:[#allocation2 + $0x3c8] sm:$0xff]
    %v423 = vld [vmem:[#allocation2 + $0x3d0] sm:$0xff]
    %v424 = vld [vmem:[#allocation2 + $0x3e8] sm:$0xff]
    %v425 = vld [vmem:[#allocation2 + $0x3f0] sm:$0xff]
    %v426 = vld [vmem:[#allocation2 + $0x408] sm:$0xff]
    %v427 = vld [vmem:[#allocation2 + $0x410] sm:$0xff]
    %v428 = vld [vmem:[#allocation2 + $0x428] sm:$0xff]
    %v429 = vld [vmem:[#allocation2 + $0x430] sm:$0xff]
    %s430 = scalar_lea.vmem %s1, 4
    %v431 = vld [vmem:[%s430] sm:$0xf]
    %v433 = vsel %vm27, %v366, 0
    %v436 = vsel %vm27, %v367, 0
    %v439 = vsel %vm27, %v368, 0
    %v442 = vsel %vm27, %v369, 0
    %v445 = vsel %vm27, %v370, 0
    %v448 = vsel %vm27, %v371, 0
    %v451 = vsel %vm27, %v372, 0
    %v454 = vsel %vm27, %v373, 0
    %v457 = vsel %vm27, %v374, 0
    %v460 = vsel %vm27, %v375, 0
    %v463 = vsel %vm27, %v376, 0
    %v466 = vsel %vm27, %v377, 0
    %v469 = vsel %vm27, %v378, 0
    %v472 = vsel %vm27, %v379, 0
    %v475 = vsel %vm27, %v380, 0
    %v478 = vsel %vm27, %v381, 0
    %v481 = vsel %vm27, %v382, 0
    %v484 = vsel %vm27, %v383, 0
    %v487 = vsel %vm27, %v384, 0
    %v490 = vsel %vm27, %v385, 0
    %v493 = vsel %vm27, %v386, 0
    %v496 = vsel %vm27, %v387, 0
    %v499 = vsel %vm27, %v388, 0
    %v502 = vsel %vm27, %v389, 0
    %v505 = vsel %vm27, %v390, 0
    %v508 = vsel %vm27, %v391, 0
    %v511 = vsel %vm27, %v392, 0
    %v514 = vsel %vm27, %v393, 0
    %v517 = vsel %vm27, %v394, 0
    %v520 = vsel %vm27, %v395, 0
    %v523 = vsel %vm27, %v396, 0
    %v526 = vsel %vm27, %v397, 0
    %v529 = vsel %vm27, %v398, 0
    %v532 = vsel %vm27, %v399, 0
    %v535 = vsel %vm27, %v400, 0
    %v538 = vsel %vm27, %v401, 0
    %v541 = vsel %vm27, %v402, 0
    %v544 = vsel %vm27, %v403, 0
    %v547 = vsel %vm27, %v404, 0
    %v550 = vsel %vm27, %v405, 0
    %v553 = vsel %vm27, %v406, 0
    %v556 = vsel %vm27, %v407, 0
    %v559 = vsel %vm27, %v408, 0
    %v562 = vsel %vm27, %v409, 0
    %v565 = vsel %vm27, %v410, 0
    %v568 = vsel %vm27, %v411, 0
    %v571 = vsel %vm27, %v412, 0
    %v574 = vsel %vm27, %v413, 0
    %v577 = vsel %vm27, %v414, 0
    %v580 = vsel %vm27, %v415, 0
    %v583 = vsel %vm27, %v416, 0
    %v586 = vsel %vm27, %v417, 0
    %v589 = vsel %vm27, %v418, 0
    %v592 = vsel %vm27, %v419, 0
    %v595 = vsel %vm27, %v420, 0
    %v598 = vsel %vm27, %v421, 0
    %v601 = vsel %vm27, %v422, 0
    %v604 = vsel %vm27, %v423, 0
    %v607 = vsel %vm27, %v424, 0
    %v610 = vsel %vm27, %v425, 0
    %v613 = vsel %vm27, %v426, 0
    %v616 = vsel %vm27, %v427, 0
    %v619 = vsel %vm27, %v428, 0
    %v622 = vsel %vm27, %v429, 0
    %vm624 = vcmask 1043456
    %v626 = vsel %vm624, %v431, 0
    %628 = vmatprep.subr.mxu0 0.0
    %629 = vmatpush1.msra.mxu0 0.0
    %630 = vmatprep.subr.mxu0 0.0
    %631 = vmatpush1.msra.mxu0 0.0
    %632 = vmatprep.subr.mxu0 0.0
    %633 = vmatpush1.msra.mxu0 0.0
    %634 = vmatprep.subr.mxu0 0.0
    %635 = vmatpush1.msra.mxu0 0.0
    %636 = vmatprep.subr.mxu0 0.0
    %637 = vmatpush1.msra.mxu0 0.0
    %638 = vmatprep.subr.mxu0 0.0
    %639 = vmatpush1.msra.mxu0 0.0
    %640 = vmatprep.subr.mxu0 0.0
    %641 = vmatpush1.msra.mxu0 0.0
    %642 = vmatprep.subr.mxu0 0.0
    %643 = vmatpush1.msra.mxu0 0.0
    %644 = vmatprep.subr.mxu0 0.0
    %645 = vmatpush1.msra.mxu0 0.0
    %646 = vmatprep.subr.mxu0 0.0
    %647 = vmatpush1.msra.mxu0 0.0
    %648 = vmatprep.subr.mxu0 0.0
    %649 = vmatpush1.msra.mxu0 0.0
    %650 = vmatprep.subr.mxu0 0.0
    %651 = vmatpush1.msra.mxu0 0.0
    %652 = vmatprep.subr.mxu0 0.0
    %653 = vmatpush1.msra.mxu0 0.0
    %654 = vmatprep.subr.mxu0 0.0
    %655 = vmatpush1.msra.mxu0 0.0
    %656 = vmatprep.subr.mxu0 0.0
    %657 = vmatpush1.msra.mxu0 0.0
    %658 = vmatprep.subr.mxu0 0.0
    %659 = vmatpush1.msra.mxu0 %v626
    %660 = vmatprep.subr.mxu0 0.0
    %661 = vmatpush2.msra.mxu0 0.0
    %662 = vmatprep.subr.mxu0 0.0
    %663 = vmatpush2.msra.mxu0 0.0
    %664 = vmatprep.subr.mxu0 0.0
    %665 = vmatpush2.msra.mxu0 0.0
    %666 = vmatprep.subr.mxu0 0.0
    %667 = vmatpush2.msra.mxu0 0.0
    %668 = vmatprep.subr.mxu0 0.0
    %669 = vmatpush2.msra.mxu0 0.0
    %670 = vmatprep.subr.mxu0 0.0
    %671 = vmatpush2.msra.mxu0 0.0
    %672 = vmatprep.subr.mxu0 0.0
    %673 = vmatpush2.msra.mxu0 0.0
    %674 = vmatprep.subr.mxu0 0.0
    %675 = vmatpush2.msra.mxu0 0.0
    %676 = vmatprep.subr.mxu0 0.0
    %677 = vmatpush2.msra.mxu0 0.0
    %678 = vmatprep.subr.mxu0 0.0
    %679 = vmatpush2.msra.mxu0 0.0
    %680 = vmatprep.subr.mxu0 0.0
    %681 = vmatpush2.msra.mxu0 0.0
    %682 = vmatprep.subr.mxu0 0.0
    %683 = vmatpush2.msra.mxu0 0.0
    %684 = vmatprep.subr.mxu0 0.0
    %685 = vmatpush2.msra.mxu0 0.0
    %686 = vmatprep.subr.mxu0 0.0
    %687 = vmatpush2.msra.mxu0 0.0
    %688 = vmatprep.subr.mxu0 0.0
    %689 = vmatpush2.msra.mxu0 0.0
    %690 = vmatprep.subr.mxu0 0.0
    %691 = vmatpush2.msra.mxu0 0.0
    %692 = vmatprep.mubr.f32.mxu0 0.0
    %693 = vmatmul.mubr.f32.gmra.mxu0 %v433
    %v694 = vpop.f32.mrf.mxu0
    %v695 = vadd.f32 0.0, %v694
    %v696 = vpop.f32.mrf.mxu0
    %697 = vmatprep.mubr.f32.mxu0 0.0
    %698 = vmatmul.mubr.f32.gmra.mxu0 %v436
    %v699 = vpop.f32.mrf.mxu0
    %v700 = vadd.f32 0.0, %v699
    %v701 = vpop.f32.mrf.mxu0
    %702 = vmatprep.mubr.f32.mxu0 0.0
    %703 = vmatmul.mubr.f32.gmra.mxu0 %v439
    %v704 = vpop.f32.mrf.mxu0
    %v705 = vadd.f32 0.0, %v704
    %v706 = vpop.f32.mrf.mxu0
    %707 = vmatprep.mubr.f32.mxu0 0.0
    %708 = vmatmul.mubr.f32.gmra.mxu0 %v442
    %v709 = vpop.f32.mrf.mxu0
    %v710 = vadd.f32 0.0, %v709
    %v711 = vpop.f32.mrf.mxu0
    %712 = vmatprep.mubr.f32.mxu0 0.0
    %713 = vmatmul.mubr.f32.gmra.mxu0 %v445
    %v714 = vpop.f32.mrf.mxu0
    %v715 = vadd.f32 0.0, %v714
    %v716 = vpop.f32.mrf.mxu0
    %717 = vmatprep.mubr.f32.mxu0 0.0
    %718 = vmatmul.mubr.f32.gmra.mxu0 %v448
    %v719 = vpop.f32.mrf.mxu0
    %v720 = vadd.f32 0.0, %v719
    %v721 = vpop.f32.mrf.mxu0
    %722 = vmatprep.mubr.f32.mxu0 0.0
    %723 = vmatmul.mubr.f32.gmra.mxu0 %v451
    %v724 = vpop.f32.mrf.mxu0
    %v725 = vadd.f32 0.0, %v724
    %v726 = vpop.f32.mrf.mxu0
    %727 = vmatprep.mubr.f32.mxu0 0.0
    %728 = vmatmul.mubr.f32.gmra.mxu0 %v454
    %v729 = vpop.f32.mrf.mxu0
    %v730 = vadd.f32 0.0, %v729
    %v731 = vpop.f32.mrf.mxu0
    %732 = vmatprep.mubr.f32.mxu0 0.0
    %733 = vmatmul.mubr.f32.gmra.mxu0 %v457
    %v734 = vpop.f32.mrf.mxu0
    %v735 = vadd.f32 0.0, %v734
    %v736 = vpop.f32.mrf.mxu0
    %737 = vmatprep.mubr.f32.mxu0 0.0
    %738 = vmatmul.mubr.f32.gmra.mxu0 %v460
    %v739 = vpop.f32.mrf.mxu0
    %v740 = vadd.f32 0.0, %v739
    %v741 = vpop.f32.mrf.mxu0
    %742 = vmatprep.mubr.f32.mxu0 0.0
    %743 = vmatmul.mubr.f32.gmra.mxu0 %v463
    %v744 = vpop.f32.mrf.mxu0
    %v745 = vadd.f32 0.0, %v744
    %v746 = vpop.f32.mrf.mxu0
    %747 = vmatprep.mubr.f32.mxu0 0.0
    %748 = vmatmul.mubr.f32.gmra.mxu0 %v466
    %v749 = vpop.f32.mrf.mxu0
    %v750 = vadd.f32 0.0, %v749
    %v751 = vpop.f32.mrf.mxu0
    %752 = vmatprep.mubr.f32.mxu0 0.0
    %753 = vmatmul.mubr.f32.gmra.mxu0 %v469
    %v754 = vpop.f32.mrf.mxu0
    %v755 = vadd.f32 0.0, %v754
    %v756 = vpop.f32.mrf.mxu0
    %757 = vmatprep.mubr.f32.mxu0 0.0
    %758 = vmatmul.mubr.f32.gmra.mxu0 %v472
    %v759 = vpop.f32.mrf.mxu0
    %v760 = vadd.f32 0.0, %v759
    %v761 = vpop.f32.mrf.mxu0
    %762 = vmatprep.mubr.f32.mxu0 0.0
    %763 = vmatmul.mubr.f32.gmra.mxu0 %v475
    %v764 = vpop.f32.mrf.mxu0
    %v765 = vadd.f32 0.0, %v764
    %v766 = vpop.f32.mrf.mxu0
    %767 = vmatprep.mubr.f32.mxu0 0.0
    %768 = vmatmul.mubr.f32.gmra.mxu0 %v478
    %v769 = vpop.f32.mrf.mxu0
    %v770 = vadd.f32 0.0, %v769
    %v771 = vpop.f32.mrf.mxu0
    %772 = vmatprep.mubr.f32.mxu0 0.0
    %773 = vmatmul.mubr.f32.gmra.mxu0 %v481
    %v774 = vpop.f32.mrf.mxu0
    %v775 = vadd.f32 0.0, %v774
    %v776 = vpop.f32.mrf.mxu0
    %777 = vmatprep.mubr.f32.mxu0 0.0
    %778 = vmatmul.mubr.f32.gmra.mxu0 %v484
    %v779 = vpop.f32.mrf.mxu0
    %v780 = vadd.f32 0.0, %v779
    %v781 = vpop.f32.mrf.mxu0
    %782 = vmatprep.mubr.f32.mxu0 0.0
    %783 = vmatmul.mubr.f32.gmra.mxu0 %v487
    %v784 = vpop.f32.mrf.mxu0
    %v785 = vadd.f32 0.0, %v784
    %v786 = vpop.f32.mrf.mxu0
    %787 = vmatprep.mubr.f32.mxu0 0.0
    %788 = vmatmul.mubr.f32.gmra.mxu0 %v490
    %v789 = vpop.f32.mrf.mxu0
    %v790 = vadd.f32 0.0, %v789
    %v791 = vpop.f32.mrf.mxu0
    %792 = vmatprep.mubr.f32.mxu0 0.0
    %793 = vmatmul.mubr.f32.gmra.mxu0 %v493
    %v794 = vpop.f32.mrf.mxu0
    %v795 = vadd.f32 0.0, %v794
    %v796 = vpop.f32.mrf.mxu0
    %797 = vmatprep.mubr.f32.mxu0 0.0
    %798 = vmatmul.mubr.f32.gmra.mxu0 %v496
    %v799 = vpop.f32.mrf.mxu0
    %v800 = vadd.f32 0.0, %v799
    %v801 = vpop.f32.mrf.mxu0
    %802 = vmatprep.mubr.f32.mxu0 0.0
    %803 = vmatmul.mubr.f32.gmra.mxu0 %v499
    %v804 = vpop.f32.mrf.mxu0
    %v805 = vadd.f32 0.0, %v804
    %v806 = vpop.f32.mrf.mxu0
    %807 = vmatprep.mubr.f32.mxu0 0.0
    %808 = vmatmul.mubr.f32.gmra.mxu0 %v502
    %v809 = vpop.f32.mrf.mxu0
    %v810 = vadd.f32 0.0, %v809
    %v811 = vpop.f32.mrf.mxu0
    %812 = vmatprep.mubr.f32.mxu0 0.0
    %813 = vmatmul.mubr.f32.gmra.mxu0 %v505
    %v814 = vpop.f32.mrf.mxu0
    %v815 = vadd.f32 0.0, %v814
    %v816 = vpop.f32.mrf.mxu0
    %817 = vmatprep.mubr.f32.mxu0 0.0
    %818 = vmatmul.mubr.f32.gmra.mxu0 %v508
    %v819 = vpop.f32.mrf.mxu0
    %v820 = vadd.f32 0.0, %v819
    %v821 = vpop.f32.mrf.mxu0
    %822 = vmatprep.mubr.f32.mxu0 0.0
    %823 = vmatmul.mubr.f32.gmra.mxu0 %v511
    %v824 = vpop.f32.mrf.mxu0
    %v825 = vadd.f32 0.0, %v824
    %v826 = vpop.f32.mrf.mxu0
    %827 = vmatprep.mubr.f32.mxu0 0.0
    %828 = vmatmul.mubr.f32.gmra.mxu0 %v514
    %v829 = vpop.f32.mrf.mxu0
    %v830 = vadd.f32 0.0, %v829
    %v831 = vpop.f32.mrf.mxu0
    %832 = vmatprep.mubr.f32.mxu0 0.0
    %833 = vmatmul.mubr.f32.gmra.mxu0 %v517
    %v834 = vpop.f32.mrf.mxu0
    %v835 = vadd.f32 0.0, %v834
    %v836 = vpop.f32.mrf.mxu0
    %837 = vmatprep.mubr.f32.mxu0 0.0
    %838 = vmatmul.mubr.f32.gmra.mxu0 %v520
    %v839 = vpop.f32.mrf.mxu0
    %v840 = vadd.f32 0.0, %v839
    %v841 = vpop.f32.mrf.mxu0
    %842 = vmatprep.mubr.f32.mxu0 0.0
    %843 = vmatmul.mubr.f32.gmra.mxu0 %v523
    %v844 = vpop.f32.mrf.mxu0
    %v845 = vadd.f32 0.0, %v844
    %v846 = vpop.f32.mrf.mxu0
    %847 = vmatprep.mubr.f32.mxu0 0.0
    %848 = vmatmul.mubr.f32.gmra.mxu0 %v526
    %v849 = vpop.f32.mrf.mxu0
    %v850 = vadd.f32 0.0, %v849
    %v851 = vpop.f32.mrf.mxu0
    %852 = vmatprep.mubr.f32.mxu0 0.0
    %853 = vmatmul.mubr.f32.gmra.mxu0 %v529
    %v854 = vpop.f32.mrf.mxu0
    %v855 = vadd.f32 0.0, %v854
    %v856 = vpop.f32.mrf.mxu0
    %857 = vmatprep.mubr.f32.mxu0 0.0
    %858 = vmatmul.mubr.f32.gmra.mxu0 %v532
    %v859 = vpop.f32.mrf.mxu0
    %v860 = vadd.f32 0.0, %v859
    %v861 = vpop.f32.mrf.mxu0
    %862 = vmatprep.mubr.f32.mxu0 0.0
    %863 = vmatmul.mubr.f32.gmra.mxu0 %v535
    %v864 = vpop.f32.mrf.mxu0
    %v865 = vadd.f32 0.0, %v864
    %v866 = vpop.f32.mrf.mxu0
    %867 = vmatprep.mubr.f32.mxu0 0.0
    %868 = vmatmul.mubr.f32.gmra.mxu0 %v538
    %v869 = vpop.f32.mrf.mxu0
    %v870 = vadd.f32 0.0, %v869
    %v871 = vpop.f32.mrf.mxu0
    %872 = vmatprep.mubr.f32.mxu0 0.0
    %873 = vmatmul.mubr.f32.gmra.mxu0 %v541
    %v874 = vpop.f32.mrf.mxu0
    %v875 = vadd.f32 0.0, %v874
    %v876 = vpop.f32.mrf.mxu0
    %877 = vmatprep.mubr.f32.mxu0 0.0
    %878 = vmatmul.mubr.f32.gmra.mxu0 %v544
    %v879 = vpop.f32.mrf.mxu0
    %v880 = vadd.f32 0.0, %v879
    %v881 = vpop.f32.mrf.mxu0
    %882 = vmatprep.mubr.f32.mxu0 0.0
    %883 = vmatmul.mubr.f32.gmra.mxu0 %v547
    %v884 = vpop.f32.mrf.mxu0
    %v885 = vadd.f32 0.0, %v884
    %v886 = vpop.f32.mrf.mxu0
    %887 = vmatprep.mubr.f32.mxu0 0.0
    %888 = vmatmul.mubr.f32.gmra.mxu0 %v550
    %v889 = vpop.f32.mrf.mxu0
    %v890 = vadd.f32 0.0, %v889
    %v891 = vpop.f32.mrf.mxu0
    %892 = vmatprep.mubr.f32.mxu0 0.0
    %893 = vmatmul.mubr.f32.gmra.mxu0 %v553
    %v894 = vpop.f32.mrf.mxu0
    %v895 = vadd.f32 0.0, %v894
    %v896 = vpop.f32.mrf.mxu0
    %897 = vmatprep.mubr.f32.mxu0 0.0
    %898 = vmatmul.mubr.f32.gmra.mxu0 %v556
    %v899 = vpop.f32.mrf.mxu0
    %v900 = vadd.f32 0.0, %v899
    %v901 = vpop.f32.mrf.mxu0
    %902 = vmatprep.mubr.f32.mxu0 0.0
    %903 = vmatmul.mubr.f32.gmra.mxu0 %v559
    %v904 = vpop.f32.mrf.mxu0
    %v905 = vadd.f32 0.0, %v904
    %v906 = vpop.f32.mrf.mxu0
    %907 = vmatprep.mubr.f32.mxu0 0.0
    %908 = vmatmul.mubr.f32.gmra.mxu0 %v562
    %v909 = vpop.f32.mrf.mxu0
    %v910 = vadd.f32 0.0, %v909
    %v911 = vpop.f32.mrf.mxu0
    %912 = vmatprep.mubr.f32.mxu0 0.0
    %913 = vmatmul.mubr.f32.gmra.mxu0 %v565
    %v914 = vpop.f32.mrf.mxu0
    %v915 = vadd.f32 0.0, %v914
    %v916 = vpop.f32.mrf.mxu0
    %917 = vmatprep.mubr.f32.mxu0 0.0
    %918 = vmatmul.mubr.f32.gmra.mxu0 %v568
    %v919 = vpop.f32.mrf.mxu0
    %v920 = vadd.f32 0.0, %v919
    %v921 = vpop.f32.mrf.mxu0
    %922 = vmatprep.mubr.f32.mxu0 0.0
    %923 = vmatmul.mubr.f32.gmra.mxu0 %v571
    %v924 = vpop.f32.mrf.mxu0
    %v925 = vadd.f32 0.0, %v924
    %v926 = vpop.f32.mrf.mxu0
    %927 = vmatprep.mubr.f32.mxu0 0.0
    %928 = vmatmul.mubr.f32.gmra.mxu0 %v574
    %v929 = vpop.f32.mrf.mxu0
    %v930 = vadd.f32 0.0, %v929
    %v931 = vpop.f32.mrf.mxu0
    %932 = vmatprep.mubr.f32.mxu0 0.0
    %933 = vmatmul.mubr.f32.gmra.mxu0 %v577
    %v934 = vpop.f32.mrf.mxu0
    %v935 = vadd.f32 0.0, %v934
    %v936 = vpop.f32.mrf.mxu0
    %937 = vmatprep.mubr.f32.mxu0 0.0
    %938 = vmatmul.mubr.f32.gmra.mxu0 %v580
    %v939 = vpop.f32.mrf.mxu0
    %v940 = vadd.f32 0.0, %v939
    %v941 = vpop.f32.mrf.mxu0
    %942 = vmatprep.mubr.f32.mxu0 0.0
    %943 = vmatmul.mubr.f32.gmra.mxu0 %v583
    %v944 = vpop.f32.mrf.mxu0
    %v945 = vadd.f32 0.0, %v944
    %v946 = vpop.f32.mrf.mxu0
    %947 = vmatprep.mubr.f32.mxu0 0.0
    %948 = vmatmul.mubr.f32.gmra.mxu0 %v586
    %v949 = vpop.f32.mrf.mxu0
    %v950 = vadd.f32 0.0, %v949
    %v951 = vpop.f32.mrf.mxu0
    %952 = vmatprep.mubr.f32.mxu0 0.0
    %953 = vmatmul.mubr.f32.gmra.mxu0 %v589
    %v954 = vpop.f32.mrf.mxu0
    %v955 = vadd.f32 0.0, %v954
    %v956 = vpop.f32.mrf.mxu0
    %957 = vmatprep.mubr.f32.mxu0 0.0
    %958 = vmatmul.mubr.f32.gmra.mxu0 %v592
    %v959 = vpop.f32.mrf.mxu0
    %v960 = vadd.f32 0.0, %v959
    %v961 = vpop.f32.mrf.mxu0
    %962 = vmatprep.mubr.f32.mxu0 0.0
    %963 = vmatmul.mubr.f32.gmra.mxu0 %v595
    %v964 = vpop.f32.mrf.mxu0
    %v965 = vadd.f32 0.0, %v964
    %v966 = vpop.f32.mrf.mxu0
    %967 = vmatprep.mubr.f32.mxu0 0.0
    %968 = vmatmul.mubr.f32.gmra.mxu0 %v598
    %v969 = vpop.f32.mrf.mxu0
    %v970 = vadd.f32 0.0, %v969
    %v971 = vpop.f32.mrf.mxu0
    %972 = vmatprep.mubr.f32.mxu0 0.0
    %973 = vmatmul.mubr.f32.gmra.mxu0 %v601
    %v974 = vpop.f32.mrf.mxu0
    %v975 = vadd.f32 0.0, %v974
    %v976 = vpop.f32.mrf.mxu0
    %977 = vmatprep.mubr.f32.mxu0 0.0
    %978 = vmatmul.mubr.f32.gmra.mxu0 %v604
    %v979 = vpop.f32.mrf.mxu0
    %v980 = vadd.f32 0.0, %v979
    %v981 = vpop.f32.mrf.mxu0
    %982 = vmatprep.mubr.f32.mxu0 0.0
    %983 = vmatmul.mubr.f32.gmra.mxu0 %v607
    %v984 = vpop.f32.mrf.mxu0
    %v985 = vadd.f32 0.0, %v984
    %v986 = vpop.f32.mrf.mxu0
    %987 = vmatprep.mubr.f32.mxu0 0.0
    %988 = vmatmul.mubr.f32.gmra.mxu0 %v610
    %v989 = vpop.f32.mrf.mxu0
    %v990 = vadd.f32 0.0, %v989
    %v991 = vpop.f32.mrf.mxu0
    %992 = vmatprep.mubr.f32.mxu0 0.0
    %993 = vmatmul.mubr.f32.gmra.mxu0 %v613
    %v994 = vpop.f32.mrf.mxu0
    %v995 = vadd.f32 0.0, %v994
    %v996 = vpop.f32.mrf.mxu0
    %997 = vmatprep.mubr.f32.mxu0 0.0
    %998 = vmatmul.mubr.f32.gmra.mxu0 %v616
    %v999 = vpop.f32.mrf.mxu0
    %v1000 = vadd.f32 0.0, %v999
    %v1001 = vpop.f32.mrf.mxu0
    %1002 = vmatprep.mubr.f32.mxu0 0.0
    %1003 = vmatmul.mubr.f32.gmra.mxu0 %v619
    %v1004 = vpop.f32.mrf.mxu0
    %v1005 = vadd.f32 0.0, %v1004
    %v1006 = vpop.f32.mrf.mxu0
    %1007 = vmatprep.mubr.f32.mxu0 0.0
    %1008 = vmatmul.mubr.f32.gmra.mxu0 %v622
    %v1009 = vpop.f32.mrf.mxu0
    %v1010 = vadd.f32 0.0, %v1009
    %v1011 = vpop.f32.mrf.mxu0
    %1012 = vdwg.mxu0
    %v1014 = vsel %vm27, %v301, 0
    %v1017 = vsel %vm27, %v302, 0
    %v1020 = vsel %vm27, %v303, 0
    %v1023 = vsel %vm27, %v304, 0
    %v1026 = vsel %vm27, %v305, 0
    %v1029 = vsel %vm27, %v306, 0
    %v1032 = vsel %vm27, %v307, 0
    %v1035 = vsel %vm27, %v308, 0
    %v1038 = vsel %vm27, %v309, 0
    %v1041 = vsel %vm27, %v310, 0
    %v1044 = vsel %vm27, %v311, 0
    %v1047 = vsel %vm27, %v312, 0
    %v1050 = vsel %vm27, %v313, 0
    %v1053 = vsel %vm27, %v314, 0
    %v1056 = vsel %vm27, %v315, 0
    %v1059 = vsel %vm27, %v316, 0
    %v1062 = vsel %vm27, %v317, 0
    %v1065 = vsel %vm27, %v318, 0
    %v1068 = vsel %vm27, %v319, 0
    %v1071 = vsel %vm27, %v320, 0
    %v1074 = vsel %vm27, %v321, 0
    %v1077 = vsel %vm27, %v322, 0
    %v1080 = vsel %vm27, %v323, 0
    %v1083 = vsel %vm27, %v324, 0
    %v1086 = vsel %vm27, %v325, 0
    %v1089 = vsel %vm27, %v326, 0
    %v1092 = vsel %vm27, %v327, 0
    %v1095 = vsel %vm27, %v328, 0
    %v1098 = vsel %vm27, %v329, 0
    %v1101 = vsel %vm27, %v330, 0
    %v1104 = vsel %vm27, %v331, 0
    %v1107 = vsel %vm27, %v332, 0
    %v1110 = vsel %vm27, %v333, 0
    %v1113 = vsel %vm27, %v334, 0
    %v1116 = vsel %vm27, %v335, 0
    %v1119 = vsel %vm27, %v336, 0
    %v1122 = vsel %vm27, %v337, 0
    %v1125 = vsel %vm27, %v338, 0
    %v1128 = vsel %vm27, %v339, 0
    %v1131 = vsel %vm27, %v340, 0
    %v1134 = vsel %vm27, %v341, 0
    %v1137 = vsel %vm27, %v342, 0
    %v1140 = vsel %vm27, %v343, 0
    %v1143 = vsel %vm27, %v344, 0
    %v1146 = vsel %vm27, %v345, 0
    %v1149 = vsel %vm27, %v346, 0
    %v1152 = vsel %vm27, %v347, 0
    %v1155 = vsel %vm27, %v348, 0
    %v1158 = vsel %vm27, %v349, 0
    %v1161 = vsel %vm27, %v350, 0
    %v1164 = vsel %vm27, %v351, 0
    %v1167 = vsel %vm27, %v352, 0
    %v1170 = vsel %vm27, %v353, 0
    %v1173 = vsel %vm27, %v354, 0
    %v1176 = vsel %vm27, %v355, 0
    %v1179 = vsel %vm27, %v356, 0
    %v1182 = vsel %vm27, %v357, 0
    %v1185 = vsel %vm27, %v358, 0
    %v1188 = vsel %vm27, %v359, 0
    %v1191 = vsel %vm27, %v360, 0
    %v1194 = vsel %vm27, %v361, 0
    %v1197 = vsel %vm27, %v362, 0
    %v1200 = vsel %vm27, %v363, 0
    %v1203 = vsel %vm27, %v364, 0
    %v1206 = vsel %vm624, %v365, 0
    %1208 = vmatprep.subr.mxu0 0.0
    %1209 = vmatpush1.msra.mxu0 0.0
    %1210 = vmatprep.subr.mxu0 0.0
    %1211 = vmatpush1.msra.mxu0 0.0
    %1212 = vmatprep.subr.mxu0 0.0
    %1213 = vmatpush1.msra.mxu0 0.0
    %1214 = vmatprep.subr.mxu0 0.0
    %1215 = vmatpush1.msra.mxu0 0.0
    %1216 = vmatprep.subr.mxu0 0.0
    %1217 = vmatpush1.msra.mxu0 0.0
    %1218 = vmatprep.subr.mxu0 0.0
    %1219 = vmatpush1.msra.mxu0 0.0
    %1220 = vmatprep.subr.mxu0 0.0
    %1221 = vmatpush1.msra.mxu0 0.0
    %1222 = vmatprep.subr.mxu0 0.0
    %1223 = vmatpush1.msra.mxu0 0.0
    %1224 = vmatprep.subr.mxu0 0.0
    %1225 = vmatpush1.msra.mxu0 0.0
    %1226 = vmatprep.subr.mxu0 0.0
    %1227 = vmatpush1.msra.mxu0 0.0
    %1228 = vmatprep.subr.mxu0 0.0
    %1229 = vmatpush1.msra.mxu0 0.0
    %1230 = vmatprep.subr.mxu0 0.0
    %1231 = vmatpush1.msra.mxu0 0.0
    %1232 = vmatprep.subr.mxu0 0.0
    %1233 = vmatpush1.msra.mxu0 0.0
    %1234 = vmatprep.subr.mxu0 0.0
    %1235 = vmatpush1.msra.mxu0 0.0
    %1236 = vmatprep.subr.mxu0 0.0
    %1237 = vmatpush1.msra.mxu0 0.0
    %1238 = vmatprep.subr.mxu0 0.0
    %1239 = vmatpush1.msra.mxu0 %v1206
    %1240 = vmatprep.subr.mxu0 0.0
    %1241 = vmatpush2.msra.mxu0 0.0
    %1242 = vmatprep.subr.mxu0 0.0
    %1243 = vmatpush2.msra.mxu0 0.0
    %1244 = vmatprep.subr.mxu0 0.0
    %1245 = vmatpush2.msra.mxu0 0.0
    %1246 = vmatprep.subr.mxu0 0.0
    %1247 = vmatpush2.msra.mxu0 0.0
    %1248 = vmatprep.subr.mxu0 0.0
    %1249 = vmatpush2.msra.mxu0 0.0
    %1250 = vmatprep.subr.mxu0 0.0
    %1251 = vmatpush2.msra.mxu0 0.0
    %1252 = vmatprep.subr.mxu0 0.0
    %1253 = vmatpush2.msra.mxu0 0.0
    %1254 = vmatprep.subr.mxu0 0.0
    %1255 = vmatpush2.msra.mxu0 0.0
    %1256 = vmatprep.subr.mxu0 0.0
    %1257 = vmatpush2.msra.mxu0 0.0
    %1258 = vmatprep.subr.mxu0 0.0
    %1259 = vmatpush2.msra.mxu0 0.0
    %1260 = vmatprep.subr.mxu0 0.0
    %1261 = vmatpush2.msra.mxu0 0.0
    %1262 = vmatprep.subr.mxu0 0.0
    %1263 = vmatpush2.msra.mxu0 0.0
    %1264 = vmatprep.subr.mxu0 0.0
    %1265 = vmatpush2.msra.mxu0 0.0
    %1266 = vmatprep.subr.mxu0 0.0
    %1267 = vmatpush2.msra.mxu0 0.0
    %1268 = vmatprep.subr.mxu0 0.0
    %1269 = vmatpush2.msra.mxu0 0.0
    %1270 = vmatprep.subr.mxu0 0.0
    %1271 = vmatpush2.msra.mxu0 0.0
    %1272 = vmatprep.mubr.f32.mxu0 0.0
    %1273 = vmatmul.mubr.f32.gmra.mxu0 %v1014
    %v1274 = vpop.f32.mrf.mxu0
    %v1275 = vadd.f32 %v695, %v1274
    %v1276 = vpop.f32.mrf.mxu0
    %1277 = vmatprep.mubr.f32.mxu0 0.0
    %1278 = vmatmul.mubr.f32.gmra.mxu0 %v1017
    %v1279 = vpop.f32.mrf.mxu0
    %v1280 = vadd.f32 %v700, %v1279
    %v1281 = vpop.f32.mrf.mxu0
    %1282 = vmatprep.mubr.f32.mxu0 0.0
    %1283 = vmatmul.mubr.f32.gmra.mxu0 %v1020
    %v1284 = vpop.f32.mrf.mxu0
    %v1285 = vadd.f32 %v705, %v1284
    %v1286 = vpop.f32.mrf.mxu0
    %1287 = vmatprep.mubr.f32.mxu0 0.0
    %1288 = vmatmul.mubr.f32.gmra.mxu0 %v1023
    %v1289 = vpop.f32.mrf.mxu0
    %v1290 = vadd.f32 %v710, %v1289
    %v1291 = vpop.f32.mrf.mxu0
    %1292 = vmatprep.mubr.f32.mxu0 0.0
    %1293 = vmatmul.mubr.f32.gmra.mxu0 %v1026
    %v1294 = vpop.f32.mrf.mxu0
    %v1295 = vadd.f32 %v715, %v1294
    %v1296 = vpop.f32.mrf.mxu0
    %1297 = vmatprep.mubr.f32.mxu0 0.0
    %1298 = vmatmul.mubr.f32.gmra.mxu0 %v1029
    %v1299 = vpop.f32.mrf.mxu0
    %v1300 = vadd.f32 %v720, %v1299
    %v1301 = vpop.f32.mrf.mxu0
    %1302 = vmatprep.mubr.f32.mxu0 0.0
    %1303 = vmatmul.mubr.f32.gmra.mxu0 %v1032
    %v1304 = vpop.f32.mrf.mxu0
    %v1305 = vadd.f32 %v725, %v1304
    %v1306 = vpop.f32.mrf.mxu0
    %1307 = vmatprep.mubr.f32.mxu0 0.0
    %1308 = vmatmul.mubr.f32.gmra.mxu0 %v1035
    %v1309 = vpop.f32.mrf.mxu0
    %v1310 = vadd.f32 %v730, %v1309
    %v1311 = vpop.f32.mrf.mxu0
    %1312 = vmatprep.mubr.f32.mxu0 0.0
    %1313 = vmatmul.mubr.f32.gmra.mxu0 %v1038
    %v1314 = vpop.f32.mrf.mxu0
    %v1315 = vadd.f32 %v735, %v1314
    %v1316 = vpop.f32.mrf.mxu0
    %1317 = vmatprep.mubr.f32.mxu0 0.0
    %1318 = vmatmul.mubr.f32.gmra.mxu0 %v1041
    %v1319 = vpop.f32.mrf.mxu0
    %v1320 = vadd.f32 %v740, %v1319
    %v1321 = vpop.f32.mrf.mxu0
    %1322 = vmatprep.mubr.f32.mxu0 0.0
    %1323 = vmatmul.mubr.f32.gmra.mxu0 %v1044
    %v1324 = vpop.f32.mrf.mxu0
    %v1325 = vadd.f32 %v745, %v1324
    %v1326 = vpop.f32.mrf.mxu0
    %1327 = vmatprep.mubr.f32.mxu0 0.0
    %1328 = vmatmul.mubr.f32.gmra.mxu0 %v1047
    %v1329 = vpop.f32.mrf.mxu0
    %v1330 = vadd.f32 %v750, %v1329
    %v1331 = vpop.f32.mrf.mxu0
    %1332 = vmatprep.mubr.f32.mxu0 0.0
    %1333 = vmatmul.mubr.f32.gmra.mxu0 %v1050
    %v1334 = vpop.f32.mrf.mxu0
    %v1335 = vadd.f32 %v755, %v1334
    %v1336 = vpop.f32.mrf.mxu0
    %1337 = vmatprep.mubr.f32.mxu0 0.0
    %1338 = vmatmul.mubr.f32.gmra.mxu0 %v1053
    %v1339 = vpop.f32.mrf.mxu0
    %v1340 = vadd.f32 %v760, %v1339
    %v1341 = vpop.f32.mrf.mxu0
    %1342 = vmatprep.mubr.f32.mxu0 0.0
    %1343 = vmatmul.mubr.f32.gmra.mxu0 %v1056
    %v1344 = vpop.f32.mrf.mxu0
    %v1345 = vadd.f32 %v765, %v1344
    %v1346 = vpop.f32.mrf.mxu0
    %1347 = vmatprep.mubr.f32.mxu0 0.0
    %1348 = vmatmul.mubr.f32.gmra.mxu0 %v1059
    %v1349 = vpop.f32.mrf.mxu0
    %v1350 = vadd.f32 %v770, %v1349
    %v1351 = vpop.f32.mrf.mxu0
    %1352 = vmatprep.mubr.f32.mxu0 0.0
    %1353 = vmatmul.mubr.f32.gmra.mxu0 %v1062
    %v1354 = vpop.f32.mrf.mxu0
    %v1355 = vadd.f32 %v775, %v1354
    %v1356 = vpop.f32.mrf.mxu0
    %1357 = vmatprep.mubr.f32.mxu0 0.0
    %1358 = vmatmul.mubr.f32.gmra.mxu0 %v1065
    %v1359 = vpop.f32.mrf.mxu0
    %v1360 = vadd.f32 %v780, %v1359
    %v1361 = vpop.f32.mrf.mxu0
    %1362 = vmatprep.mubr.f32.mxu0 0.0
    %1363 = vmatmul.mubr.f32.gmra.mxu0 %v1068
    %v1364 = vpop.f32.mrf.mxu0
    %v1365 = vadd.f32 %v785, %v1364
    %v1366 = vpop.f32.mrf.mxu0
    %1367 = vmatprep.mubr.f32.mxu0 0.0
    %1368 = vmatmul.mubr.f32.gmra.mxu0 %v1071
    %v1369 = vpop.f32.mrf.mxu0
    %v1370 = vadd.f32 %v790, %v1369
    %v1371 = vpop.f32.mrf.mxu0
    %1372 = vmatprep.mubr.f32.mxu0 0.0
    %1373 = vmatmul.mubr.f32.gmra.mxu0 %v1074
    %v1374 = vpop.f32.mrf.mxu0
    %v1375 = vadd.f32 %v795, %v1374
    %v1376 = vpop.f32.mrf.mxu0
    %1377 = vmatprep.mubr.f32.mxu0 0.0
    %1378 = vmatmul.mubr.f32.gmra.mxu0 %v1077
    %v1379 = vpop.f32.mrf.mxu0
    %v1380 = vadd.f32 %v800, %v1379
    %v1381 = vpop.f32.mrf.mxu0
    %1382 = vmatprep.mubr.f32.mxu0 0.0
    %1383 = vmatmul.mubr.f32.gmra.mxu0 %v1080
    %v1384 = vpop.f32.mrf.mxu0
    %v1385 = vadd.f32 %v805, %v1384
    %v1386 = vpop.f32.mrf.mxu0
    %1387 = vmatprep.mubr.f32.mxu0 0.0
    %1388 = vmatmul.mubr.f32.gmra.mxu0 %v1083
    %v1389 = vpop.f32.mrf.mxu0
    %v1390 = vadd.f32 %v810, %v1389
    %v1391 = vpop.f32.mrf.mxu0
    %1392 = vmatprep.mubr.f32.mxu0 0.0
    %1393 = vmatmul.mubr.f32.gmra.mxu0 %v1086
    %v1394 = vpop.f32.mrf.mxu0
    %v1395 = vadd.f32 %v815, %v1394
    %v1396 = vpop.f32.mrf.mxu0
    %1397 = vmatprep.mubr.f32.mxu0 0.0
    %1398 = vmatmul.mubr.f32.gmra.mxu0 %v1089
    %v1399 = vpop.f32.mrf.mxu0
    %v1400 = vadd.f32 %v820, %v1399
    %v1401 = vpop.f32.mrf.mxu0
    %1402 = vmatprep.mubr.f32.mxu0 0.0
    %1403 = vmatmul.mubr.f32.gmra.mxu0 %v1092
    %v1404 = vpop.f32.mrf.mxu0
    %v1405 = vadd.f32 %v825, %v1404
    %v1406 = vpop.f32.mrf.mxu0
    %1407 = vmatprep.mubr.f32.mxu0 0.0
    %1408 = vmatmul.mubr.f32.gmra.mxu0 %v1095
    %v1409 = vpop.f32.mrf.mxu0
    %v1410 = vadd.f32 %v830, %v1409
    %v1411 = vpop.f32.mrf.mxu0
    %1412 = vmatprep.mubr.f32.mxu0 0.0
    %1413 = vmatmul.mubr.f32.gmra.mxu0 %v1098
    %v1414 = vpop.f32.mrf.mxu0
    %v1415 = vadd.f32 %v835, %v1414
    %v1416 = vpop.f32.mrf.mxu0
    %1417 = vmatprep.mubr.f32.mxu0 0.0
    %1418 = vmatmul.mubr.f32.gmra.mxu0 %v1101
    %v1419 = vpop.f32.mrf.mxu0
    %v1420 = vadd.f32 %v840, %v1419
    %v1421 = vpop.f32.mrf.mxu0
    %1422 = vmatprep.mubr.f32.mxu0 0.0
    %1423 = vmatmul.mubr.f32.gmra.mxu0 %v1104
    %v1424 = vpop.f32.mrf.mxu0
    %v1425 = vadd.f32 %v845, %v1424
    %v1426 = vpop.f32.mrf.mxu0
    %1427 = vmatprep.mubr.f32.mxu0 0.0
    %1428 = vmatmul.mubr.f32.gmra.mxu0 %v1107
    %v1429 = vpop.f32.mrf.mxu0
    %v1430 = vadd.f32 %v850, %v1429
    %v1431 = vpop.f32.mrf.mxu0
    %1432 = vmatprep.mubr.f32.mxu0 0.0
    %1433 = vmatmul.mubr.f32.gmra.mxu0 %v1110
    %v1434 = vpop.f32.mrf.mxu0
    %v1435 = vadd.f32 %v855, %v1434
    %v1436 = vpop.f32.mrf.mxu0
    %1437 = vmatprep.mubr.f32.mxu0 0.0
    %1438 = vmatmul.mubr.f32.gmra.mxu0 %v1113
    %v1439 = vpop.f32.mrf.mxu0
    %v1440 = vadd.f32 %v860, %v1439
    %v1441 = vpop.f32.mrf.mxu0
    %1442 = vmatprep.mubr.f32.mxu0 0.0
    %1443 = vmatmul.mubr.f32.gmra.mxu0 %v1116
    %v1444 = vpop.f32.mrf.mxu0
    %v1445 = vadd.f32 %v865, %v1444
    %v1446 = vpop.f32.mrf.mxu0
    %1447 = vmatprep.mubr.f32.mxu0 0.0
    %1448 = vmatmul.mubr.f32.gmra.mxu0 %v1119
    %v1449 = vpop.f32.mrf.mxu0
    %v1450 = vadd.f32 %v870, %v1449
    %v1451 = vpop.f32.mrf.mxu0
    %1452 = vmatprep.mubr.f32.mxu0 0.0
    %1453 = vmatmul.mubr.f32.gmra.mxu0 %v1122
    %v1454 = vpop.f32.mrf.mxu0
    %v1455 = vadd.f32 %v875, %v1454
    %v1456 = vpop.f32.mrf.mxu0
    %1457 = vmatprep.mubr.f32.mxu0 0.0
    %1458 = vmatmul.mubr.f32.gmra.mxu0 %v1125
    %v1459 = vpop.f32.mrf.mxu0
    %v1460 = vadd.f32 %v880, %v1459
    %v1461 = vpop.f32.mrf.mxu0
    %1462 = vmatprep.mubr.f32.mxu0 0.0
    %1463 = vmatmul.mubr.f32.gmra.mxu0 %v1128
    %v1464 = vpop.f32.mrf.mxu0
    %v1465 = vadd.f32 %v885, %v1464
    %v1466 = vpop.f32.mrf.mxu0
    %1467 = vmatprep.mubr.f32.mxu0 0.0
    %1468 = vmatmul.mubr.f32.gmra.mxu0 %v1131
    %v1469 = vpop.f32.mrf.mxu0
    %v1470 = vadd.f32 %v890, %v1469
    %v1471 = vpop.f32.mrf.mxu0
    %1472 = vmatprep.mubr.f32.mxu0 0.0
    %1473 = vmatmul.mubr.f32.gmra.mxu0 %v1134
    %v1474 = vpop.f32.mrf.mxu0
    %v1475 = vadd.f32 %v895, %v1474
    %v1476 = vpop.f32.mrf.mxu0
    %1477 = vmatprep.mubr.f32.mxu0 0.0
    %1478 = vmatmul.mubr.f32.gmra.mxu0 %v1137
    %v1479 = vpop.f32.mrf.mxu0
    %v1480 = vadd.f32 %v900, %v1479
    %v1481 = vpop.f32.mrf.mxu0
    %1482 = vmatprep.mubr.f32.mxu0 0.0
    %1483 = vmatmul.mubr.f32.gmra.mxu0 %v1140
    %v1484 = vpop.f32.mrf.mxu0
    %v1485 = vadd.f32 %v905, %v1484
    %v1486 = vpop.f32.mrf.mxu0
    %1487 = vmatprep.mubr.f32.mxu0 0.0
    %1488 = vmatmul.mubr.f32.gmra.mxu0 %v1143
    %v1489 = vpop.f32.mrf.mxu0
    %v1490 = vadd.f32 %v910, %v1489
    %v1491 = vpop.f32.mrf.mxu0
    %1492 = vmatprep.mubr.f32.mxu0 0.0
    %1493 = vmatmul.mubr.f32.gmra.mxu0 %v1146
    %v1494 = vpop.f32.mrf.mxu0
    %v1495 = vadd.f32 %v915, %v1494
    %v1496 = vpop.f32.mrf.mxu0
    %1497 = vmatprep.mubr.f32.mxu0 0.0
    %1498 = vmatmul.mubr.f32.gmra.mxu0 %v1149
    %v1499 = vpop.f32.mrf.mxu0
    %v1500 = vadd.f32 %v920, %v1499
    %v1501 = vpop.f32.mrf.mxu0
    %1502 = vmatprep.mubr.f32.mxu0 0.0
    %1503 = vmatmul.mubr.f32.gmra.mxu0 %v1152
    %v1504 = vpop.f32.mrf.mxu0
    %v1505 = vadd.f32 %v925, %v1504
    %v1506 = vpop.f32.mrf.mxu0
    %1507 = vmatprep.mubr.f32.mxu0 0.0
    %1508 = vmatmul.mubr.f32.gmra.mxu0 %v1155
    %v1509 = vpop.f32.mrf.mxu0
    %v1510 = vadd.f32 %v930, %v1509
    %v1511 = vpop.f32.mrf.mxu0
    %1512 = vmatprep.mubr.f32.mxu0 0.0
    %1513 = vmatmul.mubr.f32.gmra.mxu0 %v1158
    %v1514 = vpop.f32.mrf.mxu0
    %v1515 = vadd.f32 %v935, %v1514
    %v1516 = vpop.f32.mrf.mxu0
    %1517 = vmatprep.mubr.f32.mxu0 0.0
    %1518 = vmatmul.mubr.f32.gmra.mxu0 %v1161
    %v1519 = vpop.f32.mrf.mxu0
    %v1520 = vadd.f32 %v940, %v1519
    %v1521 = vpop.f32.mrf.mxu0
    %1522 = vmatprep.mubr.f32.mxu0 0.0
    %1523 = vmatmul.mubr.f32.gmra.mxu0 %v1164
    %v1524 = vpop.f32.mrf.mxu0
    %v1525 = vadd.f32 %v945, %v1524
    %v1526 = vpop.f32.mrf.mxu0
    %1527 = vmatprep.mubr.f32.mxu0 0.0
    %1528 = vmatmul.mubr.f32.gmra.mxu0 %v1167
    %v1529 = vpop.f32.mrf.mxu0
    %v1530 = vadd.f32 %v950, %v1529
    %v1531 = vpop.f32.mrf.mxu0
    %1532 = vmatprep.mubr.f32.mxu0 0.0
    %1533 = vmatmul.mubr.f32.gmra.mxu0 %v1170
    %v1534 = vpop.f32.mrf.mxu0
    %v1535 = vadd.f32 %v955, %v1534
    %v1536 = vpop.f32.mrf.mxu0
    %1537 = vmatprep.mubr.f32.mxu0 0.0
    %1538 = vmatmul.mubr.f32.gmra.mxu0 %v1173
    %v1539 = vpop.f32.mrf.mxu0
    %v1540 = vadd.f32 %v960, %v1539
    %v1541 = vpop.f32.mrf.mxu0
    %1542 = vmatprep.mubr.f32.mxu0 0.0
    %1543 = vmatmul.mubr.f32.gmra.mxu0 %v1176
    %v1544 = vpop.f32.mrf.mxu0
    %v1545 = vadd.f32 %v965, %v1544
    %v1546 = vpop.f32.mrf.mxu0
    %1547 = vmatprep.mubr.f32.mxu0 0.0
    %1548 = vmatmul.mubr.f32.gmra.mxu0 %v1179
    %v1549 = vpop.f32.mrf.mxu0
    %v1550 = vadd.f32 %v970, %v1549
    %v1551 = vpop.f32.mrf.mxu0
    %1552 = vmatprep.mubr.f32.mxu0 0.0
    %1553 = vmatmul.mubr.f32.gmra.mxu0 %v1182
    %v1554 = vpop.f32.mrf.mxu0
    %v1555 = vadd.f32 %v975, %v1554
    %v1556 = vpop.f32.mrf.mxu0
    %1557 = vmatprep.mubr.f32.mxu0 0.0
    %1558 = vmatmul.mubr.f32.gmra.mxu0 %v1185
    %v1559 = vpop.f32.mrf.mxu0
    %v1560 = vadd.f32 %v980, %v1559
    %v1561 = vpop.f32.mrf.mxu0
    %1562 = vmatprep.mubr.f32.mxu0 0.0
    %1563 = vmatmul.mubr.f32.gmra.mxu0 %v1188
    %v1564 = vpop.f32.mrf.mxu0
    %v1565 = vadd.f32 %v985, %v1564
    %v1566 = vpop.f32.mrf.mxu0
    %1567 = vmatprep.mubr.f32.mxu0 0.0
    %1568 = vmatmul.mubr.f32.gmra.mxu0 %v1191
    %v1569 = vpop.f32.mrf.mxu0
    %v1570 = vadd.f32 %v990, %v1569
    %v1571 = vpop.f32.mrf.mxu0
    %1572 = vmatprep.mubr.f32.mxu0 0.0
    %1573 = vmatmul.mubr.f32.gmra.mxu0 %v1194
    %v1574 = vpop.f32.mrf.mxu0
    %v1575 = vadd.f32 %v995, %v1574
    %v1576 = vpop.f32.mrf.mxu0
    %1577 = vmatprep.mubr.f32.mxu0 0.0
    %1578 = vmatmul.mubr.f32.gmra.mxu0 %v1197
    %v1579 = vpop.f32.mrf.mxu0
    %v1580 = vadd.f32 %v1000, %v1579
    %v1581 = vpop.f32.mrf.mxu0
    %1582 = vmatprep.mubr.f32.mxu0 0.0
    %1583 = vmatmul.mubr.f32.gmra.mxu0 %v1200
    %v1584 = vpop.f32.mrf.mxu0
    %v1585 = vadd.f32 %v1005, %v1584
    %v1586 = vpop.f32.mrf.mxu0
    %1587 = vmatprep.mubr.f32.mxu0 0.0
    %1588 = vmatmul.mubr.f32.gmra.mxu0 %v1203
    %v1589 = vpop.f32.mrf.mxu0
    %v1590 = vadd.f32 %v1010, %v1589
    %v1591 = vpop.f32.mrf.mxu0
    %1592 = vdwg.mxu0
    %v1593 = vld [vmem:[#allocation2 + $0x9] sm:$0xff]
    %v1594 = vld [vmem:[#allocation2 + $0x11] sm:$0xff]
    %v1595 = vld [vmem:[#allocation2 + $0x29] sm:$0xff]
    %v1596 = vld [vmem:[#allocation2 + $0x31] sm:$0xff]
    %v1597 = vld [vmem:[#allocation2 + $0x49] sm:$0xff]
    %v1598 = vld [vmem:[#allocation2 + $0x51] sm:$0xff]
    %v1599 = vld [vmem:[#allocation2 + $0x69] sm:$0xff]
    %v1600 = vld [vmem:[#allocation2 + $0x71] sm:$0xff]
    %v1601 = vld [vmem:[#allocation2 + $0x89] sm:$0xff]
    %v1602 = vld [vmem:[#allocation2 + $0x91] sm:$0xff]
    %v1603 = vld [vmem:[#allocation2 + $0xa9] sm:$0xff]
    %v1604 = vld [vmem:[#allocation2 + $0xb1] sm:$0xff]
    %v1605 = vld [vmem:[#allocation2 + $0xc9] sm:$0xff]
    %v1606 = vld [vmem:[#allocation2 + $0xd1] sm:$0xff]
    %v1607 = vld [vmem:[#allocation2 + $0xe9] sm:$0xff]
    %v1608 = vld [vmem:[#allocation2 + $0xf1] sm:$0xff]
    %v1609 = vld [vmem:[#allocation2 + $0x109] sm:$0xff]
    %v1610 = vld [vmem:[#allocation2 + $0x111] sm:$0xff]
    %v1611 = vld [vmem:[#allocation2 + $0x129] sm:$0xff]
    %v1612 = vld [vmem:[#allocation2 + $0x131] sm:$0xff]
    %v1613 = vld [vmem:[#allocation2 + $0x149] sm:$0xff]
    %v1614 = vld [vmem:[#allocation2 + $0x151] sm:$0xff]
    %v1615 = vld [vmem:[#allocation2 + $0x169] sm:$0xff]
    %v1616 = vld [vmem:[#allocation2 + $0x171] sm:$0xff]
    %v1617 = vld [vmem:[#allocation2 + $0x189] sm:$0xff]
    %v1618 = vld [vmem:[#allocation2 + $0x191] sm:$0xff]
    %v1619 = vld [vmem:[#allocation2 + $0x1a9] sm:$0xff]
    %v1620 = vld [vmem:[#allocation2 + $0x1b1] sm:$0xff]
    %v1621 = vld [vmem:[#allocation2 + $0x1c9] sm:$0xff]
    %v1622 = vld [vmem:[#allocation2 + $0x1d1] sm:$0xff]
    %v1623 = vld [vmem:[#allocation2 + $0x1e9] sm:$0xff]
    %v1624 = vld [vmem:[#allocation2 + $0x1f1] sm:$0xff]
    %v1625 = vld [vmem:[#allocation2 + $0x249] sm:$0xff]
    %v1626 = vld [vmem:[#allocation2 + $0x251] sm:$0xff]
    %v1627 = vld [vmem:[#allocation2 + $0x269] sm:$0xff]
    %v1628 = vld [vmem:[#allocation2 + $0x271] sm:$0xff]
    %v1629 = vld [vmem:[#allocation2 + $0x289] sm:$0xff]
    %v1630 = vld [vmem:[#allocation2 + $0x291] sm:$0xff]
    %v1631 = vld [vmem:[#allocation2 + $0x2a9] sm:$0xff]
    %v1632 = vld [vmem:[#allocation2 + $0x2b1] sm:$0xff]
    %v1633 = vld [vmem:[#allocation2 + $0x2c9] sm:$0xff]
    %v1634 = vld [vmem:[#allocation2 + $0x2d1] sm:$0xff]
    %v1635 = vld [vmem:[#allocation2 + $0x2e9] sm:$0xff]
    %v1636 = vld [vmem:[#allocation2 + $0x2f1] sm:$0xff]
    %v1637 = vld [vmem:[#allocation2 + $0x309] sm:$0xff]
    %v1638 = vld [vmem:[#allocation2 + $0x311] sm:$0xff]
    %v1639 = vld [vmem:[#allocation2 + $0x329] sm:$0xff]
    %v1640 = vld [vmem:[#allocation2 + $0x331] sm:$0xff]
    %v1641 = vld [vmem:[#allocation2 + $0x349] sm:$0xff]
    %v1642 = vld [vmem:[#allocation2 + $0x351] sm:$0xff]
    %v1643 = vld [vmem:[#allocation2 + $0x369] sm:$0xff]
    %v1644 = vld [vmem:[#allocation2 + $0x371] sm:$0xff]
    %v1645 = vld [vmem:[#allocation2 + $0x389] sm:$0xff]
    %v1646 = vld [vmem:[#allocation2 + $0x391] sm:$0xff]
    %v1647 = vld [vmem:[#allocation2 + $0x3a9] sm:$0xff]
    %v1648 = vld [vmem:[#allocation2 + $0x3b1] sm:$0xff]
    %v1649 = vld [vmem:[#allocation2 + $0x3c9] sm:$0xff]
    %v1650 = vld [vmem:[#allocation2 + $0x3d1] sm:$0xff]
    %v1651 = vld [vmem:[#allocation2 + $0x3e9] sm:$0xff]
    %v1652 = vld [vmem:[#allocation2 + $0x3f1] sm:$0xff]
    %v1653 = vld [vmem:[#allocation2 + $0x409] sm:$0xff]
    %v1654 = vld [vmem:[#allocation2 + $0x411] sm:$0xff]
    %v1655 = vld [vmem:[#allocation2 + $0x429] sm:$0xff]
    %v1656 = vld [vmem:[#allocation2 + $0x431] sm:$0xff]
    %s1657 = scalar_lea.vmem %s1, 8
    %v1658 = vld [vmem:[%s1657] sm:$0xf]
    %v1660 = vsel %vm27, %v1593, 0
    %v1663 = vsel %vm27, %v1594, 0
    %v1666 = vsel %vm27, %v1595, 0
    %v1669 = vsel %vm27, %v1596, 0
    %v1672 = vsel %vm27, %v1597, 0
    %v1675 = vsel %vm27, %v1598, 0
    %v1678 = vsel %vm27, %v1599, 0
    %v1681 = vsel %vm27, %v1600, 0
    %v1684 = vsel %vm27, %v1601, 0
    %v1687 = vsel %vm27, %v1602, 0
    %v1690 = vsel %vm27, %v1603, 0
    %v1693 = vsel %vm27, %v1604, 0
    %v1696 = vsel %vm27, %v1605, 0
    %v1699 = vsel %vm27, %v1606, 0
    %v1702 = vsel %vm27, %v1607, 0
    %v1705 = vsel %vm27, %v1608, 0
    %v1708 = vsel %vm27, %v1609, 0
    %v1711 = vsel %vm27, %v1610, 0
    %v1714 = vsel %vm27, %v1611, 0
    %v1717 = vsel %vm27, %v1612, 0
    %v1720 = vsel %vm27, %v1613, 0
    %v1723 = vsel %vm27, %v1614, 0
    %v1726 = vsel %vm27, %v1615, 0
    %v1729 = vsel %vm27, %v1616, 0
    %v1732 = vsel %vm27, %v1617, 0
    %v1735 = vsel %vm27, %v1618, 0
    %v1738 = vsel %vm27, %v1619, 0
    %v1741 = vsel %vm27, %v1620, 0
    %v1744 = vsel %vm27, %v1621, 0
    %v1747 = vsel %vm27, %v1622, 0
    %v1750 = vsel %vm27, %v1623, 0
    %v1753 = vsel %vm27, %v1624, 0
    %v1756 = vsel %vm27, %v1625, 0
    %v1759 = vsel %vm27, %v1626, 0
    %v1762 = vsel %vm27, %v1627, 0
    %v1765 = vsel %vm27, %v1628, 0
    %v1768 = vsel %vm27, %v1629, 0
    %v1771 = vsel %vm27, %v1630, 0
    %v1774 = vsel %vm27, %v1631, 0
    %v1777 = vsel %vm27, %v1632, 0
    %v1780 = vsel %vm27, %v1633, 0
    %v1783 = vsel %vm27, %v1634, 0
    %v1786 = vsel %vm27, %v1635, 0
    %v1789 = vsel %vm27, %v1636, 0
    %v1792 = vsel %vm27, %v1637, 0
    %v1795 = vsel %vm27, %v1638, 0
    %v1798 = vsel %vm27, %v1639, 0
    %v1801 = vsel %vm27, %v1640, 0
    %v1804 = vsel %vm27, %v1641, 0
    %v1807 = vsel %vm27, %v1642, 0
    %v1810 = vsel %vm27, %v1643, 0
    %v1813 = vsel %vm27, %v1644, 0
    %v1816 = vsel %vm27, %v1645, 0
    %v1819 = vsel %vm27, %v1646, 0
    %v1822 = vsel %vm27, %v1647, 0
    %v1825 = vsel %vm27, %v1648, 0
    %v1828 = vsel %vm27, %v1649, 0
    %v1831 = vsel %vm27, %v1650, 0
    %v1834 = vsel %vm27, %v1651, 0
    %v1837 = vsel %vm27, %v1652, 0
    %v1840 = vsel %vm27, %v1653, 0
    %v1843 = vsel %vm27, %v1654, 0
    %v1846 = vsel %vm27, %v1655, 0
    %v1849 = vsel %vm27, %v1656, 0
    %v1852 = vsel %vm624, %v1658, 0
    %1854 = vmatprep.subr.mxu0 0.0
    %1855 = vmatpush1.msra.mxu0 0.0
    %1856 = vmatprep.subr.mxu0 0.0
    %1857 = vmatpush1.msra.mxu0 0.0
    %1858 = vmatprep.subr.mxu0 0.0
    %1859 = vmatpush1.msra.mxu0 0.0
    %1860 = vmatprep.subr.mxu0 0.0
    %1861 = vmatpush1.msra.mxu0 0.0
    %1862 = vmatprep.subr.mxu0 0.0
    %1863 = vmatpush1.msra.mxu0 0.0
    %1864 = vmatprep.subr.mxu0 0.0
    %1865 = vmatpush1.msra.mxu0 0.0
    %1866 = vmatprep.subr.mxu0 0.0
    %1867 = vmatpush1.msra.mxu0 0.0
    %1868 = vmatprep.subr.mxu0 0.0
    %1869 = vmatpush1.msra.mxu0 0.0
    %1870 = vmatprep.subr.mxu0 0.0
    %1871 = vmatpush1.msra.mxu0 0.0
    %1872 = vmatprep.subr.mxu0 0.0
    %1873 = vmatpush1.msra.mxu0 0.0
    %1874 = vmatprep.subr.mxu0 0.0
    %1875 = vmatpush1.msra.mxu0 0.0
    %1876 = vmatprep.subr.mxu0 0.0
    %1877 = vmatpush1.msra.mxu0 0.0
    %1878 = vmatprep.subr.mxu0 0.0
    %1879 = vmatpush1.msra.mxu0 0.0
    %1880 = vmatprep.subr.mxu0 0.0
    %1881 = vmatpush1.msra.mxu0 0.0
    %1882 = vmatprep.subr.mxu0 0.0
    %1883 = vmatpush1.msra.mxu0 0.0
    %1884 = vmatprep.subr.mxu0 0.0
    %1885 = vmatpush1.msra.mxu0 %v1852
    %1886 = vmatprep.subr.mxu0 0.0
    %1887 = vmatpush2.msra.mxu0 0.0
    %1888 = vmatprep.subr.mxu0 0.0
    %1889 = vmatpush2.msra.mxu0 0.0
    %1890 = vmatprep.subr.mxu0 0.0
    %1891 = vmatpush2.msra.mxu0 0.0
    %1892 = vmatprep.subr.mxu0 0.0
    %1893 = vmatpush2.msra.mxu0 0.0
    %1894 = vmatprep.subr.mxu0 0.0
    %1895 = vmatpush2.msra.mxu0 0.0
    %1896 = vmatprep.subr.mxu0 0.0
    %1897 = vmatpush2.msra.mxu0 0.0
    %1898 = vmatprep.subr.mxu0 0.0
    %1899 = vmatpush2.msra.mxu0 0.0
    %1900 = vmatprep.subr.mxu0 0.0
    %1901 = vmatpush2.msra.mxu0 0.0
    %1902 = vmatprep.subr.mxu0 0.0
    %1903 = vmatpush2.msra.mxu0 0.0
    %1904 = vmatprep.subr.mxu0 0.0
    %1905 = vmatpush2.msra.mxu0 0.0
    %1906 = vmatprep.subr.mxu0 0.0
    %1907 = vmatpush2.msra.mxu0 0.0
    %1908 = vmatprep.subr.mxu0 0.0
    %1909 = vmatpush2.msra.mxu0 0.0
    %1910 = vmatprep.subr.mxu0 0.0
    %1911 = vmatpush2.msra.mxu0 0.0
    %1912 = vmatprep.subr.mxu0 0.0
    %1913 = vmatpush2.msra.mxu0 0.0
    %1914 = vmatprep.subr.mxu0 0.0
    %1915 = vmatpush2.msra.mxu0 0.0
    %1916 = vmatprep.subr.mxu0 0.0
    %1917 = vmatpush2.msra.mxu0 0.0
    %1918 = vmatprep.mubr.f32.mxu0 0.0
    %1919 = vmatmul.mubr.f32.gmra.mxu0 %v1660
    %v1920 = vpop.f32.mrf.mxu0
    %v1921 = vadd.f32 0.0, %v1920
    %v1922 = vpop.f32.mrf.mxu0
    %1923 = vmatprep.mubr.f32.mxu0 0.0
    %1924 = vmatmul.mubr.f32.gmra.mxu0 %v1663
    %v1925 = vpop.f32.mrf.mxu0
    %v1926 = vadd.f32 0.0, %v1925
    %v1927 = vpop.f32.mrf.mxu0
    %1928 = vmatprep.mubr.f32.mxu0 0.0
    %1929 = vmatmul.mubr.f32.gmra.mxu0 %v1666
    %v1930 = vpop.f32.mrf.mxu0
    %v1931 = vadd.f32 0.0, %v1930
    %v1932 = vpop.f32.mrf.mxu0
    %1933 = vmatprep.mubr.f32.mxu0 0.0
    %1934 = vmatmul.mubr.f32.gmra.mxu0 %v1669
    %v1935 = vpop.f32.mrf.mxu0
    %v1936 = vadd.f32 0.0, %v1935
    %v1937 = vpop.f32.mrf.mxu0
    %1938 = vmatprep.mubr.f32.mxu0 0.0
    %1939 = vmatmul.mubr.f32.gmra.mxu0 %v1672
    %v1940 = vpop.f32.mrf.mxu0
    %v1941 = vadd.f32 0.0, %v1940
    %v1942 = vpop.f32.mrf.mxu0
    %1943 = vmatprep.mubr.f32.mxu0 0.0
    %1944 = vmatmul.mubr.f32.gmra.mxu0 %v1675
    %v1945 = vpop.f32.mrf.mxu0
    %v1946 = vadd.f32 0.0, %v1945
    %v1947 = vpop.f32.mrf.mxu0
    %1948 = vmatprep.mubr.f32.mxu0 0.0
    %1949 = vmatmul.mubr.f32.gmra.mxu0 %v1678
    %v1950 = vpop.f32.mrf.mxu0
    %v1951 = vadd.f32 0.0, %v1950
    %v1952 = vpop.f32.mrf.mxu0
    %1953 = vmatprep.mubr.f32.mxu0 0.0
    %1954 = vmatmul.mubr.f32.gmra.mxu0 %v1681
    %v1955 = vpop.f32.mrf.mxu0
    %v1956 = vadd.f32 0.0, %v1955
    %v1957 = vpop.f32.mrf.mxu0
    %1958 = vmatprep.mubr.f32.mxu0 0.0
    %1959 = vmatmul.mubr.f32.gmra.mxu0 %v1684
    %v1960 = vpop.f32.mrf.mxu0
    %v1961 = vadd.f32 0.0, %v1960
    %v1962 = vpop.f32.mrf.mxu0
    %1963 = vmatprep.mubr.f32.mxu0 0.0
    %1964 = vmatmul.mubr.f32.gmra.mxu0 %v1687
    %v1965 = vpop.f32.mrf.mxu0
    %v1966 = vadd.f32 0.0, %v1965
    %v1967 = vpop.f32.mrf.mxu0
    %1968 = vmatprep.mubr.f32.mxu0 0.0
    %1969 = vmatmul.mubr.f32.gmra.mxu0 %v1690
    %v1970 = vpop.f32.mrf.mxu0
    %v1971 = vadd.f32 0.0, %v1970
    %v1972 = vpop.f32.mrf.mxu0
    %1973 = vmatprep.mubr.f32.mxu0 0.0
    %1974 = vmatmul.mubr.f32.gmra.mxu0 %v1693
    %v1975 = vpop.f32.mrf.mxu0
    %v1976 = vadd.f32 0.0, %v1975
    %v1977 = vpop.f32.mrf.mxu0
    %1978 = vmatprep.mubr.f32.mxu0 0.0
    %1979 = vmatmul.mubr.f32.gmra.mxu0 %v1696
    %v1980 = vpop.f32.mrf.mxu0
    %v1981 = vadd.f32 0.0, %v1980
    %v1982 = vpop.f32.mrf.mxu0
    %1983 = vmatprep.mubr.f32.mxu0 0.0
    %1984 = vmatmul.mubr.f32.gmra.mxu0 %v1699
    %v1985 = vpop.f32.mrf.mxu0
    %v1986 = vadd.f32 0.0, %v1985
    %v1987 = vpop.f32.mrf.mxu0
    %1988 = vmatprep.mubr.f32.mxu0 0.0
    %1989 = vmatmul.mubr.f32.gmra.mxu0 %v1702
    %v1990 = vpop.f32.mrf.mxu0
    %v1991 = vadd.f32 0.0, %v1990
    %v1992 = vpop.f32.mrf.mxu0
    %1993 = vmatprep.mubr.f32.mxu0 0.0
    %1994 = vmatmul.mubr.f32.gmra.mxu0 %v1705
    %v1995 = vpop.f32.mrf.mxu0
    %v1996 = vadd.f32 0.0, %v1995
    %v1997 = vpop.f32.mrf.mxu0
    %1998 = vmatprep.mubr.f32.mxu0 0.0
    %1999 = vmatmul.mubr.f32.gmra.mxu0 %v1708
    %v2000 = vpop.f32.mrf.mxu0
    %v2001 = vadd.f32 0.0, %v2000
    %v2002 = vpop.f32.mrf.mxu0
    %2003 = vmatprep.mubr.f32.mxu0 0.0
    %2004 = vmatmul.mubr.f32.gmra.mxu0 %v1711
    %v2005 = vpop.f32.mrf.mxu0
    %v2006 = vadd.f32 0.0, %v2005
    %v2007 = vpop.f32.mrf.mxu0
    %2008 = vmatprep.mubr.f32.mxu0 0.0
    %2009 = vmatmul.mubr.f32.gmra.mxu0 %v1714
    %v2010 = vpop.f32.mrf.mxu0
    %v2011 = vadd.f32 0.0, %v2010
    %v2012 = vpop.f32.mrf.mxu0
    %2013 = vmatprep.mubr.f32.mxu0 0.0
    %2014 = vmatmul.mubr.f32.gmra.mxu0 %v1717
    %v2015 = vpop.f32.mrf.mxu0
    %v2016 = vadd.f32 0.0, %v2015
    %v2017 = vpop.f32.mrf.mxu0
    %2018 = vmatprep.mubr.f32.mxu0 0.0
    %2019 = vmatmul.mubr.f32.gmra.mxu0 %v1720
    %v2020 = vpop.f32.mrf.mxu0
    %v2021 = vadd.f32 0.0, %v2020
    %v2022 = vpop.f32.mrf.mxu0
    %2023 = vmatprep.mubr.f32.mxu0 0.0
    %2024 = vmatmul.mubr.f32.gmra.mxu0 %v1723
    %v2025 = vpop.f32.mrf.mxu0
    %v2026 = vadd.f32 0.0, %v2025
    %v2027 = vpop.f32.mrf.mxu0
    %2028 = vmatprep.mubr.f32.mxu0 0.0
    %2029 = vmatmul.mubr.f32.gmra.mxu0 %v1726
    %v2030 = vpop.f32.mrf.mxu0
    %v2031 = vadd.f32 0.0, %v2030
    %v2032 = vpop.f32.mrf.mxu0
    %2033 = vmatprep.mubr.f32.mxu0 0.0
    %2034 = vmatmul.mubr.f32.gmra.mxu0 %v1729
    %v2035 = vpop.f32.mrf.mxu0
    %v2036 = vadd.f32 0.0, %v2035
    %v2037 = vpop.f32.mrf.mxu0
    %2038 = vmatprep.mubr.f32.mxu0 0.0
    %2039 = vmatmul.mubr.f32.gmra.mxu0 %v1732
    %v2040 = vpop.f32.mrf.mxu0
    %v2041 = vadd.f32 0.0, %v2040
    %v2042 = vpop.f32.mrf.mxu0
    %2043 = vmatprep.mubr.f32.mxu0 0.0
    %2044 = vmatmul.mubr.f32.gmra.mxu0 %v1735
    %v2045 = vpop.f32.mrf.mxu0
    %v2046 = vadd.f32 0.0, %v2045
    %v2047 = vpop.f32.mrf.mxu0
    %2048 = vmatprep.mubr.f32.mxu0 0.0
    %2049 = vmatmul.mubr.f32.gmra.mxu0 %v1738
    %v2050 = vpop.f32.mrf.mxu0
    %v2051 = vadd.f32 0.0, %v2050
    %v2052 = vpop.f32.mrf.mxu0
    %2053 = vmatprep.mubr.f32.mxu0 0.0
    %2054 = vmatmul.mubr.f32.gmra.mxu0 %v1741
    %v2055 = vpop.f32.mrf.mxu0
    %v2056 = vadd.f32 0.0, %v2055
    %v2057 = vpop.f32.mrf.mxu0
    %2058 = vmatprep.mubr.f32.mxu0 0.0
    %2059 = vmatmul.mubr.f32.gmra.mxu0 %v1744
    %v2060 = vpop.f32.mrf.mxu0
    %v2061 = vadd.f32 0.0, %v2060
    %v2062 = vpop.f32.mrf.mxu0
    %2063 = vmatprep.mubr.f32.mxu0 0.0
    %2064 = vmatmul.mubr.f32.gmra.mxu0 %v1747
    %v2065 = vpop.f32.mrf.mxu0
    %v2066 = vadd.f32 0.0, %v2065
    %v2067 = vpop.f32.mrf.mxu0
    %2068 = vmatprep.mubr.f32.mxu0 0.0
    %2069 = vmatmul.mubr.f32.gmra.mxu0 %v1750
    %v2070 = vpop.f32.mrf.mxu0
    %v2071 = vadd.f32 0.0, %v2070
    %v2072 = vpop.f32.mrf.mxu0
    %2073 = vmatprep.mubr.f32.mxu0 0.0
    %2074 = vmatmul.mubr.f32.gmra.mxu0 %v1753
    %v2075 = vpop.f32.mrf.mxu0
    %v2076 = vadd.f32 0.0, %v2075
    %v2077 = vpop.f32.mrf.mxu0
    %2078 = vmatprep.mubr.f32.mxu0 0.0
    %2079 = vmatmul.mubr.f32.gmra.mxu0 %v1756
    %v2080 = vpop.f32.mrf.mxu0
    %v2081 = vadd.f32 0.0, %v2080
    %v2082 = vpop.f32.mrf.mxu0
    %2083 = vmatprep.mubr.f32.mxu0 0.0
    %2084 = vmatmul.mubr.f32.gmra.mxu0 %v1759
    %v2085 = vpop.f32.mrf.mxu0
    %v2086 = vadd.f32 0.0, %v2085
    %v2087 = vpop.f32.mrf.mxu0
    %2088 = vmatprep.mubr.f32.mxu0 0.0
    %2089 = vmatmul.mubr.f32.gmra.mxu0 %v1762
    %v2090 = vpop.f32.mrf.mxu0
    %v2091 = vadd.f32 0.0, %v2090
    %v2092 = vpop.f32.mrf.mxu0
    %2093 = vmatprep.mubr.f32.mxu0 0.0
    %2094 = vmatmul.mubr.f32.gmra.mxu0 %v1765
    %v2095 = vpop.f32.mrf.mxu0
    %v2096 = vadd.f32 0.0, %v2095
    %v2097 = vpop.f32.mrf.mxu0
    %2098 = vmatprep.mubr.f32.mxu0 0.0
    %2099 = vmatmul.mubr.f32.gmra.mxu0 %v1768
    %v2100 = vpop.f32.mrf.mxu0
    %v2101 = vadd.f32 0.0, %v2100
    %v2102 = vpop.f32.mrf.mxu0
    %2103 = vmatprep.mubr.f32.mxu0 0.0
    %2104 = vmatmul.mubr.f32.gmra.mxu0 %v1771
    %v2105 = vpop.f32.mrf.mxu0
    %v2106 = vadd.f32 0.0, %v2105
    %v2107 = vpop.f32.mrf.mxu0
    %2108 = vmatprep.mubr.f32.mxu0 0.0
    %2109 = vmatmul.mubr.f32.gmra.mxu0 %v1774
    %v2110 = vpop.f32.mrf.mxu0
    %v2111 = vadd.f32 0.0, %v2110
    %v2112 = vpop.f32.mrf.mxu0
    %2113 = vmatprep.mubr.f32.mxu0 0.0
    %2114 = vmatmul.mubr.f32.gmra.mxu0 %v1777
    %v2115 = vpop.f32.mrf.mxu0
    %v2116 = vadd.f32 0.0, %v2115
    %v2117 = vpop.f32.mrf.mxu0
    %2118 = vmatprep.mubr.f32.mxu0 0.0
    %2119 = vmatmul.mubr.f32.gmra.mxu0 %v1780
    %v2120 = vpop.f32.mrf.mxu0
    %v2121 = vadd.f32 0.0, %v2120
    %v2122 = vpop.f32.mrf.mxu0
    %2123 = vmatprep.mubr.f32.mxu0 0.0
    %2124 = vmatmul.mubr.f32.gmra.mxu0 %v1783
    %v2125 = vpop.f32.mrf.mxu0
    %v2126 = vadd.f32 0.0, %v2125
    %v2127 = vpop.f32.mrf.mxu0
    %2128 = vmatprep.mubr.f32.mxu0 0.0
    %2129 = vmatmul.mubr.f32.gmra.mxu0 %v1786
    %v2130 = vpop.f32.mrf.mxu0
    %v2131 = vadd.f32 0.0, %v2130
    %v2132 = vpop.f32.mrf.mxu0
    %2133 = vmatprep.mubr.f32.mxu0 0.0
    %2134 = vmatmul.mubr.f32.gmra.mxu0 %v1789
    %v2135 = vpop.f32.mrf.mxu0
    %v2136 = vadd.f32 0.0, %v2135
    %v2137 = vpop.f32.mrf.mxu0
    %2138 = vmatprep.mubr.f32.mxu0 0.0
    %2139 = vmatmul.mubr.f32.gmra.mxu0 %v1792
    %v2140 = vpop.f32.mrf.mxu0
    %v2141 = vadd.f32 0.0, %v2140
    %v2142 = vpop.f32.mrf.mxu0
    %2143 = vmatprep.mubr.f32.mxu0 0.0
    %2144 = vmatmul.mubr.f32.gmra.mxu0 %v1795
    %v2145 = vpop.f32.mrf.mxu0
    %v2146 = vadd.f32 0.0, %v2145
    %v2147 = vpop.f32.mrf.mxu0
    %2148 = vmatprep.mubr.f32.mxu0 0.0
    %2149 = vmatmul.mubr.f32.gmra.mxu0 %v1798
    %v2150 = vpop.f32.mrf.mxu0
    %v2151 = vadd.f32 0.0, %v2150
    %v2152 = vpop.f32.mrf.mxu0
    %2153 = vmatprep.mubr.f32.mxu0 0.0
    %2154 = vmatmul.mubr.f32.gmra.mxu0 %v1801
    %v2155 = vpop.f32.mrf.mxu0
    %v2156 = vadd.f32 0.0, %v2155
    %v2157 = vpop.f32.mrf.mxu0
    %2158 = vmatprep.mubr.f32.mxu0 0.0
    %2159 = vmatmul.mubr.f32.gmra.mxu0 %v1804
    %v2160 = vpop.f32.mrf.mxu0
    %v2161 = vadd.f32 0.0, %v2160
    %v2162 = vpop.f32.mrf.mxu0
    %2163 = vmatprep.mubr.f32.mxu0 0.0
    %2164 = vmatmul.mubr.f32.gmra.mxu0 %v1807
    %v2165 = vpop.f32.mrf.mxu0
    %v2166 = vadd.f32 0.0, %v2165
    %v2167 = vpop.f32.mrf.mxu0
    %2168 = vmatprep.mubr.f32.mxu0 0.0
    %2169 = vmatmul.mubr.f32.gmra.mxu0 %v1810
    %v2170 = vpop.f32.mrf.mxu0
    %v2171 = vadd.f32 0.0, %v2170
    %v2172 = vpop.f32.mrf.mxu0
    %2173 = vmatprep.mubr.f32.mxu0 0.0
    %2174 = vmatmul.mubr.f32.gmra.mxu0 %v1813
    %v2175 = vpop.f32.mrf.mxu0
    %v2176 = vadd.f32 0.0, %v2175
    %v2177 = vpop.f32.mrf.mxu0
    %2178 = vmatprep.mubr.f32.mxu0 0.0
    %2179 = vmatmul.mubr.f32.gmra.mxu0 %v1816
    %v2180 = vpop.f32.mrf.mxu0
    %v2181 = vadd.f32 0.0, %v2180
    %v2182 = vpop.f32.mrf.mxu0
    %2183 = vmatprep.mubr.f32.mxu0 0.0
    %2184 = vmatmul.mubr.f32.gmra.mxu0 %v1819
    %v2185 = vpop.f32.mrf.mxu0
    %v2186 = vadd.f32 0.0, %v2185
    %v2187 = vpop.f32.mrf.mxu0
    %2188 = vmatprep.mubr.f32.mxu0 0.0
    %2189 = vmatmul.mubr.f32.gmra.mxu0 %v1822
    %v2190 = vpop.f32.mrf.mxu0
    %v2191 = vadd.f32 0.0, %v2190
    %v2192 = vpop.f32.mrf.mxu0
    %2193 = vmatprep.mubr.f32.mxu0 0.0
    %2194 = vmatmul.mubr.f32.gmra.mxu0 %v1825
    %v2195 = vpop.f32.mrf.mxu0
    %v2196 = vadd.f32 0.0, %v2195
    %v2197 = vpop.f32.mrf.mxu0
    %2198 = vmatprep.mubr.f32.mxu0 0.0
    %2199 = vmatmul.mubr.f32.gmra.mxu0 %v1828
    %v2200 = vpop.f32.mrf.mxu0
    %v2201 = vadd.f32 0.0, %v2200
    %v2202 = vpop.f32.mrf.mxu0
    %2203 = vmatprep.mubr.f32.mxu0 0.0
    %2204 = vmatmul.mubr.f32.gmra.mxu0 %v1831
    %v2205 = vpop.f32.mrf.mxu0
    %v2206 = vadd.f32 0.0, %v2205
    %v2207 = vpop.f32.mrf.mxu0
    %2208 = vmatprep.mubr.f32.mxu0 0.0
    %2209 = vmatmul.mubr.f32.gmra.mxu0 %v1834
    %v2210 = vpop.f32.mrf.mxu0
    %v2211 = vadd.f32 0.0, %v2210
    %v2212 = vpop.f32.mrf.mxu0
    %2213 = vmatprep.mubr.f32.mxu0 0.0
    %2214 = vmatmul.mubr.f32.gmra.mxu0 %v1837
    %v2215 = vpop.f32.mrf.mxu0
    %v2216 = vadd.f32 0.0, %v2215
    %v2217 = vpop.f32.mrf.mxu0
    %2218 = vmatprep.mubr.f32.mxu0 0.0
    %2219 = vmatmul.mubr.f32.gmra.mxu0 %v1840
    %v2220 = vpop.f32.mrf.mxu0
    %v2221 = vadd.f32 0.0, %v2220
    %v2222 = vpop.f32.mrf.mxu0
    %2223 = vmatprep.mubr.f32.mxu0 0.0
    %2224 = vmatmul.mubr.f32.gmra.mxu0 %v1843
    %v2225 = vpop.f32.mrf.mxu0
    %v2226 = vadd.f32 0.0, %v2225
    %v2227 = vpop.f32.mrf.mxu0
    %2228 = vmatprep.mubr.f32.mxu0 0.0
    %2229 = vmatmul.mubr.f32.gmra.mxu0 %v1846
    %v2230 = vpop.f32.mrf.mxu0
    %v2231 = vadd.f32 0.0, %v2230
    %v2232 = vpop.f32.mrf.mxu0
    %2233 = vmatprep.mubr.f32.mxu0 0.0
    %2234 = vmatmul.mubr.f32.gmra.mxu0 %v1849
    %v2235 = vpop.f32.mrf.mxu0
    %v2236 = vadd.f32 0.0, %v2235
    %v2237 = vpop.f32.mrf.mxu0
    %2238 = vdwg.mxu0
    %v2239 = vadd.f32 %v1275, %v1921
    %v2240 = vadd.f32 %v1280, %v1926
    %v2241 = vadd.f32 %v1285, %v1931
    %v2242 = vadd.f32 %v1290, %v1936
    %v2243 = vadd.f32 %v1295, %v1941
    %v2244 = vadd.f32 %v1300, %v1946
    %v2245 = vadd.f32 %v1305, %v1951
    %v2246 = vadd.f32 %v1310, %v1956
    %v2247 = vadd.f32 %v1315, %v1961
    %v2248 = vadd.f32 %v1320, %v1966
    %v2249 = vadd.f32 %v1325, %v1971
    %v2250 = vadd.f32 %v1330, %v1976
    %v2251 = vadd.f32 %v1335, %v1981
    %v2252 = vadd.f32 %v1340, %v1986
    %v2253 = vadd.f32 %v1345, %v1991
    %v2254 = vadd.f32 %v1350, %v1996
    %v2255 = vadd.f32 %v1355, %v2001
    %v2256 = vadd.f32 %v1360, %v2006
    %v2257 = vadd.f32 %v1365, %v2011
    %v2258 = vadd.f32 %v1370, %v2016
    %v2259 = vadd.f32 %v1375, %v2021
    %v2260 = vadd.f32 %v1380, %v2026
    %v2261 = vadd.f32 %v1385, %v2031
    %v2262 = vadd.f32 %v1390, %v2036
    %v2263 = vadd.f32 %v1395, %v2041
    %v2264 = vadd.f32 %v1400, %v2046
    %v2265 = vadd.f32 %v1405, %v2051
    %v2266 = vadd.f32 %v1410, %v2056
    %v2267 = vadd.f32 %v1415, %v2061
    %v2268 = vadd.f32 %v1420, %v2066
    %v2269 = vadd.f32 %v1425, %v2071
    %v2270 = vadd.f32 %v1430, %v2076
    %v2271 = vadd.f32 %v1435, %v2081
    %v2272 = vadd.f32 %v1440, %v2086
    %v2273 = vadd.f32 %v1445, %v2091
    %v2274 = vadd.f32 %v1450, %v2096
    %v2275 = vadd.f32 %v1455, %v2101
    %v2276 = vadd.f32 %v1460, %v2106
    %v2277 = vadd.f32 %v1465, %v2111
    %v2278 = vadd.f32 %v1470, %v2116
    %v2279 = vadd.f32 %v1475, %v2121
    %v2280 = vadd.f32 %v1480, %v2126
    %v2281 = vadd.f32 %v1485, %v2131
    %v2282 = vadd.f32 %v1490, %v2136
    %v2283 = vadd.f32 %v1495, %v2141
    %v2284 = vadd.f32 %v1500, %v2146
    %v2285 = vadd.f32 %v1505, %v2151
    %v2286 = vadd.f32 %v1510, %v2156
    %v2287 = vadd.f32 %v1515, %v2161
    %v2288 = vadd.f32 %v1520, %v2166
    %v2289 = vadd.f32 %v1525, %v2171
    %v2290 = vadd.f32 %v1530, %v2176
    %v2291 = vadd.f32 %v1535, %v2181
    %v2292 = vadd.f32 %v1540, %v2186
    %v2293 = vadd.f32 %v1545, %v2191
    %v2294 = vadd.f32 %v1550, %v2196
    %v2295 = vadd.f32 %v1555, %v2201
    %v2296 = vadd.f32 %v1560, %v2206
    %v2297 = vadd.f32 %v1565, %v2211
    %v2298 = vadd.f32 %v1570, %v2216
    %v2299 = vadd.f32 %v1575, %v2221
    %v2300 = vadd.f32 %v1580, %v2226
    %v2301 = vadd.f32 %v1585, %v2231
    %v2302 = vadd.f32 %v1590, %v2236
    %v2303 = vld [vmem:[%s236 + $0x7] sm:$0xff]
    %v2304 = vld [vmem:[%s236 + $0xf] sm:$0xff]
    %v2305 = vld [vmem:[%s236 + $0x27] sm:$0xff]
    %v2306 = vld [vmem:[%s236 + $0x2f] sm:$0xff]
    %v2307 = vld [vmem:[%s236 + $0x47] sm:$0xff]
    %v2308 = vld [vmem:[%s236 + $0x4f] sm:$0xff]
    %v2309 = vld [vmem:[%s236 + $0x67] sm:$0xff]
    %v2310 = vld [vmem:[%s236 + $0x6f] sm:$0xff]
    %v2311 = vld [vmem:[%s236 + $0x87] sm:$0xff]
    %v2312 = vld [vmem:[%s236 + $0x8f] sm:$0xff]
    %v2313 = vld [vmem:[%s236 + $0xa7] sm:$0xff]
    %v2314 = vld [vmem:[%s236 + $0xaf] sm:$0xff]
    %v2315 = vld [vmem:[%s236 + $0xc7] sm:$0xff]
    %v2316 = vld [vmem:[%s236 + $0xcf] sm:$0xff]
    %v2317 = vld [vmem:[%s236 + $0xe7] sm:$0xff]
    %v2318 = vld [vmem:[%s236 + $0xef] sm:$0xff]
    %v2319 = vld [vmem:[%s236 + $0x107] sm:$0xff]
    %v2320 = vld [vmem:[%s236 + $0x10f] sm:$0xff]
    %v2321 = vld [vmem:[%s236 + $0x127] sm:$0xff]
    %v2322 = vld [vmem:[%s236 + $0x12f] sm:$0xff]
    %v2323 = vld [vmem:[%s236 + $0x147] sm:$0xff]
    %v2324 = vld [vmem:[%s236 + $0x14f] sm:$0xff]
    %v2325 = vld [vmem:[%s236 + $0x167] sm:$0xff]
    %v2326 = vld [vmem:[%s236 + $0x16f] sm:$0xff]
    %v2327 = vld [vmem:[%s236 + $0x187] sm:$0xff]
    %v2328 = vld [vmem:[%s236 + $0x18f] sm:$0xff]
    %v2329 = vld [vmem:[%s236 + $0x1a7] sm:$0xff]
    %v2330 = vld [vmem:[%s236 + $0x1af] sm:$0xff]
    %v2331 = vld [vmem:[%s236 + $0x1c7] sm:$0xff]
    %v2332 = vld [vmem:[%s236 + $0x1cf] sm:$0xff]
    %v2333 = vld [vmem:[%s236 + $0x1e7] sm:$0xff]
    %v2334 = vld [vmem:[%s236 + $0x1ef] sm:$0xff]
    %v2335 = vld [vmem:[%s236 + $0x247] sm:$0xff]
    %v2336 = vld [vmem:[%s236 + $0x24f] sm:$0xff]
    %v2337 = vld [vmem:[%s236 + $0x267] sm:$0xff]
    %v2338 = vld [vmem:[%s236 + $0x26f] sm:$0xff]
    %v2339 = vld [vmem:[%s236 + $0x287] sm:$0xff]
    %v2340 = vld [vmem:[%s236 + $0x28f] sm:$0xff]
    %v2341 = vld [vmem:[%s236 + $0x2a7] sm:$0xff]
    %v2342 = vld [vmem:[%s236 + $0x2af] sm:$0xff]
    %v2343 = vld [vmem:[%s236 + $0x2c7] sm:$0xff]
    %v2344 = vld [vmem:[%s236 + $0x2cf] sm:$0xff]
    %v2345 = vld [vmem:[%s236 + $0x2e7] sm:$0xff]
    %v2346 = vld [vmem:[%s236 + $0x2ef] sm:$0xff]
    %v2347 = vld [vmem:[%s236 + $0x307] sm:$0xff]
    %v2348 = vld [vmem:[%s236 + $0x30f] sm:$0xff]
    %v2349 = vld [vmem:[%s236 + $0x327] sm:$0xff]
    %v2350 = vld [vmem:[%s236 + $0x32f] sm:$0xff]
    %v2351 = vld [vmem:[%s236 + $0x347] sm:$0xff]
    %v2352 = vld [vmem:[%s236 + $0x34f] sm:$0xff]
    %v2353 = vld [vmem:[%s236 + $0x367] sm:$0xff]
    %v2354 = vld [vmem:[%s236 + $0x36f] sm:$0xff]
    %v2355 = vld [vmem:[%s236 + $0x387] sm:$0xff]
    %v2356 = vld [vmem:[%s236 + $0x38f] sm:$0xff]
    %v2357 = vld [vmem:[%s236 + $0x3a7] sm:$0xff]
    %v2358 = vld [vmem:[%s236 + $0x3af] sm:$0xff]
    %v2359 = vld [vmem:[%s236 + $0x3c7] sm:$0xff]
    %v2360 = vld [vmem:[%s236 + $0x3cf] sm:$0xff]
    %v2361 = vld [vmem:[%s236 + $0x3e7] sm:$0xff]
    %v2362 = vld [vmem:[%s236 + $0x3ef] sm:$0xff]
    %v2363 = vld [vmem:[%s236 + $0x407] sm:$0xff]
    %v2364 = vld [vmem:[%s236 + $0x40f] sm:$0xff]
    %v2365 = vld [vmem:[%s236 + $0x427] sm:$0xff]
    %v2366 = vld [vmem:[%s236 + $0x42f] sm:$0xff]
    %s2367 = scalar_lea.vmem %s1, 12
    %v2368 = vld [vmem:[%s2367] sm:$0xf]
    %v2370 = vsel %vm27, %v2303, 0
    %v2373 = vsel %vm27, %v2304, 0
    %v2376 = vsel %vm27, %v2305, 0
    %v2379 = vsel %vm27, %v2306, 0
    %v2382 = vsel %vm27, %v2307, 0
    %v2385 = vsel %vm27, %v2308, 0
    %v2388 = vsel %vm27, %v2309, 0
    %v2391 = vsel %vm27, %v2310, 0
    %v2394 = vsel %vm27, %v2311, 0
    %v2397 = vsel %vm27, %v2312, 0
    %v2400 = vsel %vm27, %v2313, 0
    %v2403 = vsel %vm27, %v2314, 0
    %v2406 = vsel %vm27, %v2315, 0
    %v2409 = vsel %vm27, %v2316, 0
    %v2412 = vsel %vm27, %v2317, 0
    %v2415 = vsel %vm27, %v2318, 0
    %v2418 = vsel %vm27, %v2319, 0
    %v2421 = vsel %vm27, %v2320, 0
    %v2424 = vsel %vm27, %v2321, 0
    %v2427 = vsel %vm27, %v2322, 0
    %v2430 = vsel %vm27, %v2323, 0
    %v2433 = vsel %vm27, %v2324, 0
    %v2436 = vsel %vm27, %v2325, 0
    %v2439 = vsel %vm27, %v2326, 0
    %v2442 = vsel %vm27, %v2327, 0
    %v2445 = vsel %vm27, %v2328, 0
    %v2448 = vsel %vm27, %v2329, 0
    %v2451 = vsel %vm27, %v2330, 0
    %v2454 = vsel %vm27, %v2331, 0
    %v2457 = vsel %vm27, %v2332, 0
    %v2460 = vsel %vm27, %v2333, 0
    %v2463 = vsel %vm27, %v2334, 0
    %v2466 = vsel %vm27, %v2335, 0
    %v2469 = vsel %vm27, %v2336, 0
    %v2472 = vsel %vm27, %v2337, 0
    %v2475 = vsel %vm27, %v2338, 0
    %v2478 = vsel %vm27, %v2339, 0
    %v2481 = vsel %vm27, %v2340, 0
    %v2484 = vsel %vm27, %v2341, 0
    %v2487 = vsel %vm27, %v2342, 0
    %v2490 = vsel %vm27, %v2343, 0
    %v2493 = vsel %vm27, %v2344, 0
    %v2496 = vsel %vm27, %v2345, 0
    %v2499 = vsel %vm27, %v2346, 0
    %v2502 = vsel %vm27, %v2347, 0
    %v2505 = vsel %vm27, %v2348, 0
    %v2508 = vsel %vm27, %v2349, 0
    %v2511 = vsel %vm27, %v2350, 0
    %v2514 = vsel %vm27, %v2351, 0
    %v2517 = vsel %vm27, %v2352, 0
    %v2520 = vsel %vm27, %v2353, 0
    %v2523 = vsel %vm27, %v2354, 0
    %v2526 = vsel %vm27, %v2355, 0
    %v2529 = vsel %vm27, %v2356, 0
    %v2532 = vsel %vm27, %v2357, 0
    %v2535 = vsel %vm27, %v2358, 0
    %v2538 = vsel %vm27, %v2359, 0
    %v2541 = vsel %vm27, %v2360, 0
    %v2544 = vsel %vm27, %v2361, 0
    %v2547 = vsel %vm27, %v2362, 0
    %v2550 = vsel %vm27, %v2363, 0
    %v2553 = vsel %vm27, %v2364, 0
    %v2556 = vsel %vm27, %v2365, 0
    %v2559 = vsel %vm27, %v2366, 0
    %v2562 = vsel %vm624, %v2368, 0
    %2564 = vmatprep.subr.mxu0 0.0
    %2565 = vmatpush1.msra.mxu0 0.0
    %2566 = vmatprep.subr.mxu0 0.0
    %2567 = vmatpush1.msra.mxu0 0.0
    %2568 = vmatprep.subr.mxu0 0.0
    %2569 = vmatpush1.msra.mxu0 0.0
    %2570 = vmatprep.subr.mxu0 0.0
    %2571 = vmatpush1.msra.mxu0 0.0
    %2572 = vmatprep.subr.mxu0 0.0
    %2573 = vmatpush1.msra.mxu0 0.0
    %2574 = vmatprep.subr.mxu0 0.0
    %2575 = vmatpush1.msra.mxu0 0.0
    %2576 = vmatprep.subr.mxu0 0.0
    %2577 = vmatpush1.msra.mxu0 0.0
    %2578 = vmatprep.subr.mxu0 0.0
    %2579 = vmatpush1.msra.mxu0 0.0
    %2580 = vmatprep.subr.mxu0 0.0
    %2581 = vmatpush1.msra.mxu0 0.0
    %2582 = vmatprep.subr.mxu0 0.0
    %2583 = vmatpush1.msra.mxu0 0.0
    %2584 = vmatprep.subr.mxu0 0.0
    %2585 = vmatpush1.msra.mxu0 0.0
    %2586 = vmatprep.subr.mxu0 0.0
    %2587 = vmatpush1.msra.mxu0 0.0
    %2588 = vmatprep.subr.mxu0 0.0
    %2589 = vmatpush1.msra.mxu0 0.0
    %2590 = vmatprep.subr.mxu0 0.0
    %2591 = vmatpush1.msra.mxu0 0.0
    %2592 = vmatprep.subr.mxu0 0.0
    %2593 = vmatpush1.msra.mxu0 0.0
    %2594 = vmatprep.subr.mxu0 0.0
    %2595 = vmatpush1.msra.mxu0 %v2562
    %2596 = vmatprep.subr.mxu0 0.0
    %2597 = vmatpush2.msra.mxu0 0.0
    %2598 = vmatprep.subr.mxu0 0.0
    %2599 = vmatpush2.msra.mxu0 0.0
    %2600 = vmatprep.subr.mxu0 0.0
    %2601 = vmatpush2.msra.mxu0 0.0
    %2602 = vmatprep.subr.mxu0 0.0
    %2603 = vmatpush2.msra.mxu0 0.0
    %2604 = vmatprep.subr.mxu0 0.0
    %2605 = vmatpush2.msra.mxu0 0.0
    %2606 = vmatprep.subr.mxu0 0.0
    %2607 = vmatpush2.msra.mxu0 0.0
    %2608 = vmatprep.subr.mxu0 0.0
    %2609 = vmatpush2.msra.mxu0 0.0
    %2610 = vmatprep.subr.mxu0 0.0
    %2611 = vmatpush2.msra.mxu0 0.0
    %2612 = vmatprep.subr.mxu0 0.0
    %2613 = vmatpush2.msra.mxu0 0.0
    %2614 = vmatprep.subr.mxu0 0.0
    %2615 = vmatpush2.msra.mxu0 0.0
    %2616 = vmatprep.subr.mxu0 0.0
    %2617 = vmatpush2.msra.mxu0 0.0
    %2618 = vmatprep.subr.mxu0 0.0
    %2619 = vmatpush2.msra.mxu0 0.0
    %2620 = vmatprep.subr.mxu0 0.0
    %2621 = vmatpush2.msra.mxu0 0.0
    %2622 = vmatprep.subr.mxu0 0.0
    %2623 = vmatpush2.msra.mxu0 0.0
    %2624 = vmatprep.subr.mxu0 0.0
    %2625 = vmatpush2.msra.mxu0 0.0
    %2626 = vmatprep.subr.mxu0 0.0
    %2627 = vmatpush2.msra.mxu0 0.0
    %2628 = vmatprep.mubr.f32.mxu0 0.0
    %2629 = vmatmul.mubr.f32.gmra.mxu0 %v2370
    %v2630 = vpop.f32.mrf.mxu0
    %v2631 = vadd.f32 0.0, %v2630
    %v2632 = vpop.f32.mrf.mxu0
    %2633 = vmatprep.mubr.f32.mxu0 0.0
    %2634 = vmatmul.mubr.f32.gmra.mxu0 %v2373
    %v2635 = vpop.f32.mrf.mxu0
    %v2636 = vadd.f32 0.0, %v2635
    %v2637 = vpop.f32.mrf.mxu0
    %2638 = vmatprep.mubr.f32.mxu0 0.0
    %2639 = vmatmul.mubr.f32.gmra.mxu0 %v2376
    %v2640 = vpop.f32.mrf.mxu0
    %v2641 = vadd.f32 0.0, %v2640
    %v2642 = vpop.f32.mrf.mxu0
    %2643 = vmatprep.mubr.f32.mxu0 0.0
    %2644 = vmatmul.mubr.f32.gmra.mxu0 %v2379
    %v2645 = vpop.f32.mrf.mxu0
    %v2646 = vadd.f32 0.0, %v2645
    %v2647 = vpop.f32.mrf.mxu0
    %2648 = vmatprep.mubr.f32.mxu0 0.0
    %2649 = vmatmul.mubr.f32.gmra.mxu0 %v2382
    %v2650 = vpop.f32.mrf.mxu0
    %v2651 = vadd.f32 0.0, %v2650
    %v2652 = vpop.f32.mrf.mxu0
    %2653 = vmatprep.mubr.f32.mxu0 0.0
    %2654 = vmatmul.mubr.f32.gmra.mxu0 %v2385
    %v2655 = vpop.f32.mrf.mxu0
    %v2656 = vadd.f32 0.0, %v2655
    %v2657 = vpop.f32.mrf.mxu0
    %2658 = vmatprep.mubr.f32.mxu0 0.0
    %2659 = vmatmul.mubr.f32.gmra.mxu0 %v2388
    %v2660 = vpop.f32.mrf.mxu0
    %v2661 = vadd.f32 0.0, %v2660
    %v2662 = vpop.f32.mrf.mxu0
    %2663 = vmatprep.mubr.f32.mxu0 0.0
    %2664 = vmatmul.mubr.f32.gmra.mxu0 %v2391
    %v2665 = vpop.f32.mrf.mxu0
    %v2666 = vadd.f32 0.0, %v2665
    %v2667 = vpop.f32.mrf.mxu0
    %2668 = vmatprep.mubr.f32.mxu0 0.0
    %2669 = vmatmul.mubr.f32.gmra.mxu0 %v2394
    %v2670 = vpop.f32.mrf.mxu0
    %v2671 = vadd.f32 0.0, %v2670
    %v2672 = vpop.f32.mrf.mxu0
    %2673 = vmatprep.mubr.f32.mxu0 0.0
    %2674 = vmatmul.mubr.f32.gmra.mxu0 %v2397
    %v2675 = vpop.f32.mrf.mxu0
    %v2676 = vadd.f32 0.0, %v2675
    %v2677 = vpop.f32.mrf.mxu0
    %2678 = vmatprep.mubr.f32.mxu0 0.0
    %2679 = vmatmul.mubr.f32.gmra.mxu0 %v2400
    %v2680 = vpop.f32.mrf.mxu0
    %v2681 = vadd.f32 0.0, %v2680
    %v2682 = vpop.f32.mrf.mxu0
    %2683 = vmatprep.mubr.f32.mxu0 0.0
    %2684 = vmatmul.mubr.f32.gmra.mxu0 %v2403
    %v2685 = vpop.f32.mrf.mxu0
    %v2686 = vadd.f32 0.0, %v2685
    %v2687 = vpop.f32.mrf.mxu0
    %2688 = vmatprep.mubr.f32.mxu0 0.0
    %2689 = vmatmul.mubr.f32.gmra.mxu0 %v2406
    %v2690 = vpop.f32.mrf.mxu0
    %v2691 = vadd.f32 0.0, %v2690
    %v2692 = vpop.f32.mrf.mxu0
    %2693 = vmatprep.mubr.f32.mxu0 0.0
    %2694 = vmatmul.mubr.f32.gmra.mxu0 %v2409
    %v2695 = vpop.f32.mrf.mxu0
    %v2696 = vadd.f32 0.0, %v2695
    %v2697 = vpop.f32.mrf.mxu0
    %2698 = vmatprep.mubr.f32.mxu0 0.0
    %2699 = vmatmul.mubr.f32.gmra.mxu0 %v2412
    %v2700 = vpop.f32.mrf.mxu0
    %v2701 = vadd.f32 0.0, %v2700
    %v2702 = vpop.f32.mrf.mxu0
    %2703 = vmatprep.mubr.f32.mxu0 0.0
    %2704 = vmatmul.mubr.f32.gmra.mxu0 %v2415
    %v2705 = vpop.f32.mrf.mxu0
    %v2706 = vadd.f32 0.0, %v2705
    %v2707 = vpop.f32.mrf.mxu0
    %2708 = vmatprep.mubr.f32.mxu0 0.0
    %2709 = vmatmul.mubr.f32.gmra.mxu0 %v2418
    %v2710 = vpop.f32.mrf.mxu0
    %v2711 = vadd.f32 0.0, %v2710
    %v2712 = vpop.f32.mrf.mxu0
    %2713 = vmatprep.mubr.f32.mxu0 0.0
    %2714 = vmatmul.mubr.f32.gmra.mxu0 %v2421
    %v2715 = vpop.f32.mrf.mxu0
    %v2716 = vadd.f32 0.0, %v2715
    %v2717 = vpop.f32.mrf.mxu0
    %2718 = vmatprep.mubr.f32.mxu0 0.0
    %2719 = vmatmul.mubr.f32.gmra.mxu0 %v2424
    %v2720 = vpop.f32.mrf.mxu0
    %v2721 = vadd.f32 0.0, %v2720
    %v2722 = vpop.f32.mrf.mxu0
    %2723 = vmatprep.mubr.f32.mxu0 0.0
    %2724 = vmatmul.mubr.f32.gmra.mxu0 %v2427
    %v2725 = vpop.f32.mrf.mxu0
    %v2726 = vadd.f32 0.0, %v2725
    %v2727 = vpop.f32.mrf.mxu0
    %2728 = vmatprep.mubr.f32.mxu0 0.0
    %2729 = vmatmul.mubr.f32.gmra.mxu0 %v2430
    %v2730 = vpop.f32.mrf.mxu0
    %v2731 = vadd.f32 0.0, %v2730
    %v2732 = vpop.f32.mrf.mxu0
    %2733 = vmatprep.mubr.f32.mxu0 0.0
    %2734 = vmatmul.mubr.f32.gmra.mxu0 %v2433
    %v2735 = vpop.f32.mrf.mxu0
    %v2736 = vadd.f32 0.0, %v2735
    %v2737 = vpop.f32.mrf.mxu0
    %2738 = vmatprep.mubr.f32.mxu0 0.0
    %2739 = vmatmul.mubr.f32.gmra.mxu0 %v2436
    %v2740 = vpop.f32.mrf.mxu0
    %v2741 = vadd.f32 0.0, %v2740
    %v2742 = vpop.f32.mrf.mxu0
    %2743 = vmatprep.mubr.f32.mxu0 0.0
    %2744 = vmatmul.mubr.f32.gmra.mxu0 %v2439
    %v2745 = vpop.f32.mrf.mxu0
    %v2746 = vadd.f32 0.0, %v2745
    %v2747 = vpop.f32.mrf.mxu0
    %2748 = vmatprep.mubr.f32.mxu0 0.0
    %2749 = vmatmul.mubr.f32.gmra.mxu0 %v2442
    %v2750 = vpop.f32.mrf.mxu0
    %v2751 = vadd.f32 0.0, %v2750
    %v2752 = vpop.f32.mrf.mxu0
    %2753 = vmatprep.mubr.f32.mxu0 0.0
    %2754 = vmatmul.mubr.f32.gmra.mxu0 %v2445
    %v2755 = vpop.f32.mrf.mxu0
    %v2756 = vadd.f32 0.0, %v2755
    %v2757 = vpop.f32.mrf.mxu0
    %2758 = vmatprep.mubr.f32.mxu0 0.0
    %2759 = vmatmul.mubr.f32.gmra.mxu0 %v2448
    %v2760 = vpop.f32.mrf.mxu0
    %v2761 = vadd.f32 0.0, %v2760
    %v2762 = vpop.f32.mrf.mxu0
    %2763 = vmatprep.mubr.f32.mxu0 0.0
    %2764 = vmatmul.mubr.f32.gmra.mxu0 %v2451
    %v2765 = vpop.f32.mrf.mxu0
    %v2766 = vadd.f32 0.0, %v2765
    %v2767 = vpop.f32.mrf.mxu0
    %2768 = vmatprep.mubr.f32.mxu0 0.0
    %2769 = vmatmul.mubr.f32.gmra.mxu0 %v2454
    %v2770 = vpop.f32.mrf.mxu0
    %v2771 = vadd.f32 0.0, %v2770
    %v2772 = vpop.f32.mrf.mxu0
    %2773 = vmatprep.mubr.f32.mxu0 0.0
    %2774 = vmatmul.mubr.f32.gmra.mxu0 %v2457
    %v2775 = vpop.f32.mrf.mxu0
    %v2776 = vadd.f32 0.0, %v2775
    %v2777 = vpop.f32.mrf.mxu0
    %2778 = vmatprep.mubr.f32.mxu0 0.0
    %2779 = vmatmul.mubr.f32.gmra.mxu0 %v2460
    %v2780 = vpop.f32.mrf.mxu0
    %v2781 = vadd.f32 0.0, %v2780
    %v2782 = vpop.f32.mrf.mxu0
    %2783 = vmatprep.mubr.f32.mxu0 0.0
    %2784 = vmatmul.mubr.f32.gmra.mxu0 %v2463
    %v2785 = vpop.f32.mrf.mxu0
    %v2786 = vadd.f32 0.0, %v2785
    %v2787 = vpop.f32.mrf.mxu0
    %2788 = vmatprep.mubr.f32.mxu0 0.0
    %2789 = vmatmul.mubr.f32.gmra.mxu0 %v2466
    %v2790 = vpop.f32.mrf.mxu0
    %v2791 = vadd.f32 0.0, %v2790
    %v2792 = vpop.f32.mrf.mxu0
    %2793 = vmatprep.mubr.f32.mxu0 0.0
    %2794 = vmatmul.mubr.f32.gmra.mxu0 %v2469
    %v2795 = vpop.f32.mrf.mxu0
    %v2796 = vadd.f32 0.0, %v2795
    %v2797 = vpop.f32.mrf.mxu0
    %2798 = vmatprep.mubr.f32.mxu0 0.0
    %2799 = vmatmul.mubr.f32.gmra.mxu0 %v2472
    %v2800 = vpop.f32.mrf.mxu0
    %v2801 = vadd.f32 0.0, %v2800
    %v2802 = vpop.f32.mrf.mxu0
    %2803 = vmatprep.mubr.f32.mxu0 0.0
    %2804 = vmatmul.mubr.f32.gmra.mxu0 %v2475
    %v2805 = vpop.f32.mrf.mxu0
    %v2806 = vadd.f32 0.0, %v2805
    %v2807 = vpop.f32.mrf.mxu0
    %2808 = vmatprep.mubr.f32.mxu0 0.0
    %2809 = vmatmul.mubr.f32.gmra.mxu0 %v2478
    %v2810 = vpop.f32.mrf.mxu0
    %v2811 = vadd.f32 0.0, %v2810
    %v2812 = vpop.f32.mrf.mxu0
    %2813 = vmatprep.mubr.f32.mxu0 0.0
    %2814 = vmatmul.mubr.f32.gmra.mxu0 %v2481
    %v2815 = vpop.f32.mrf.mxu0
    %v2816 = vadd.f32 0.0, %v2815
    %v2817 = vpop.f32.mrf.mxu0
    %2818 = vmatprep.mubr.f32.mxu0 0.0
    %2819 = vmatmul.mubr.f32.gmra.mxu0 %v2484
    %v2820 = vpop.f32.mrf.mxu0
    %v2821 = vadd.f32 0.0, %v2820
    %v2822 = vpop.f32.mrf.mxu0
    %2823 = vmatprep.mubr.f32.mxu0 0.0
    %2824 = vmatmul.mubr.f32.gmra.mxu0 %v2487
    %v2825 = vpop.f32.mrf.mxu0
    %v2826 = vadd.f32 0.0, %v2825
    %v2827 = vpop.f32.mrf.mxu0
    %2828 = vmatprep.mubr.f32.mxu0 0.0
    %2829 = vmatmul.mubr.f32.gmra.mxu0 %v2490
    %v2830 = vpop.f32.mrf.mxu0
    %v2831 = vadd.f32 0.0, %v2830
    %v2832 = vpop.f32.mrf.mxu0
    %2833 = vmatprep.mubr.f32.mxu0 0.0
    %2834 = vmatmul.mubr.f32.gmra.mxu0 %v2493
    %v2835 = vpop.f32.mrf.mxu0
    %v2836 = vadd.f32 0.0, %v2835
    %v2837 = vpop.f32.mrf.mxu0
    %2838 = vmatprep.mubr.f32.mxu0 0.0
    %2839 = vmatmul.mubr.f32.gmra.mxu0 %v2496
    %v2840 = vpop.f32.mrf.mxu0
    %v2841 = vadd.f32 0.0, %v2840
    %v2842 = vpop.f32.mrf.mxu0
    %2843 = vmatprep.mubr.f32.mxu0 0.0
    %2844 = vmatmul.mubr.f32.gmra.mxu0 %v2499
    %v2845 = vpop.f32.mrf.mxu0
    %v2846 = vadd.f32 0.0, %v2845
    %v2847 = vpop.f32.mrf.mxu0
    %2848 = vmatprep.mubr.f32.mxu0 0.0
    %2849 = vmatmul.mubr.f32.gmra.mxu0 %v2502
    %v2850 = vpop.f32.mrf.mxu0
    %v2851 = vadd.f32 0.0, %v2850
    %v2852 = vpop.f32.mrf.mxu0
    %2853 = vmatprep.mubr.f32.mxu0 0.0
    %2854 = vmatmul.mubr.f32.gmra.mxu0 %v2505
    %v2855 = vpop.f32.mrf.mxu0
    %v2856 = vadd.f32 0.0, %v2855
    %v2857 = vpop.f32.mrf.mxu0
    %2858 = vmatprep.mubr.f32.mxu0 0.0
    %2859 = vmatmul.mubr.f32.gmra.mxu0 %v2508
    %v2860 = vpop.f32.mrf.mxu0
    %v2861 = vadd.f32 0.0, %v2860
    %v2862 = vpop.f32.mrf.mxu0
    %2863 = vmatprep.mubr.f32.mxu0 0.0
    %2864 = vmatmul.mubr.f32.gmra.mxu0 %v2511
    %v2865 = vpop.f32.mrf.mxu0
    %v2866 = vadd.f32 0.0, %v2865
    %v2867 = vpop.f32.mrf.mxu0
    %2868 = vmatprep.mubr.f32.mxu0 0.0
    %2869 = vmatmul.mubr.f32.gmra.mxu0 %v2514
    %v2870 = vpop.f32.mrf.mxu0
    %v2871 = vadd.f32 0.0, %v2870
    %v2872 = vpop.f32.mrf.mxu0
    %2873 = vmatprep.mubr.f32.mxu0 0.0
    %2874 = vmatmul.mubr.f32.gmra.mxu0 %v2517
    %v2875 = vpop.f32.mrf.mxu0
    %v2876 = vadd.f32 0.0, %v2875
    %v2877 = vpop.f32.mrf.mxu0
    %2878 = vmatprep.mubr.f32.mxu0 0.0
    %2879 = vmatmul.mubr.f32.gmra.mxu0 %v2520
    %v2880 = vpop.f32.mrf.mxu0
    %v2881 = vadd.f32 0.0, %v2880
    %v2882 = vpop.f32.mrf.mxu0
    %2883 = vmatprep.mubr.f32.mxu0 0.0
    %2884 = vmatmul.mubr.f32.gmra.mxu0 %v2523
    %v2885 = vpop.f32.mrf.mxu0
    %v2886 = vadd.f32 0.0, %v2885
    %v2887 = vpop.f32.mrf.mxu0
    %2888 = vmatprep.mubr.f32.mxu0 0.0
    %2889 = vmatmul.mubr.f32.gmra.mxu0 %v2526
    %v2890 = vpop.f32.mrf.mxu0
    %v2891 = vadd.f32 0.0, %v2890
    %v2892 = vpop.f32.mrf.mxu0
    %2893 = vmatprep.mubr.f32.mxu0 0.0
    %2894 = vmatmul.mubr.f32.gmra.mxu0 %v2529
    %v2895 = vpop.f32.mrf.mxu0
    %v2896 = vadd.f32 0.0, %v2895
    %v2897 = vpop.f32.mrf.mxu0
    %2898 = vmatprep.mubr.f32.mxu0 0.0
    %2899 = vmatmul.mubr.f32.gmra.mxu0 %v2532
    %v2900 = vpop.f32.mrf.mxu0
    %v2901 = vadd.f32 0.0, %v2900
    %v2902 = vpop.f32.mrf.mxu0
    %2903 = vmatprep.mubr.f32.mxu0 0.0
    %2904 = vmatmul.mubr.f32.gmra.mxu0 %v2535
    %v2905 = vpop.f32.mrf.mxu0
    %v2906 = vadd.f32 0.0, %v2905
    %v2907 = vpop.f32.mrf.mxu0
    %2908 = vmatprep.mubr.f32.mxu0 0.0
    %2909 = vmatmul.mubr.f32.gmra.mxu0 %v2538
    %v2910 = vpop.f32.mrf.mxu0
    %v2911 = vadd.f32 0.0, %v2910
    %v2912 = vpop.f32.mrf.mxu0
    %2913 = vmatprep.mubr.f32.mxu0 0.0
    %2914 = vmatmul.mubr.f32.gmra.mxu0 %v2541
    %v2915 = vpop.f32.mrf.mxu0
    %v2916 = vadd.f32 0.0, %v2915
    %v2917 = vpop.f32.mrf.mxu0
    %2918 = vmatprep.mubr.f32.mxu0 0.0
    %2919 = vmatmul.mubr.f32.gmra.mxu0 %v2544
    %v2920 = vpop.f32.mrf.mxu0
    %v2921 = vadd.f32 0.0, %v2920
    %v2922 = vpop.f32.mrf.mxu0
    %2923 = vmatprep.mubr.f32.mxu0 0.0
    %2924 = vmatmul.mubr.f32.gmra.mxu0 %v2547
    %v2925 = vpop.f32.mrf.mxu0
    %v2926 = vadd.f32 0.0, %v2925
    %v2927 = vpop.f32.mrf.mxu0
    %2928 = vmatprep.mubr.f32.mxu0 0.0
    %2929 = vmatmul.mubr.f32.gmra.mxu0 %v2550
    %v2930 = vpop.f32.mrf.mxu0
    %v2931 = vadd.f32 0.0, %v2930
    %v2932 = vpop.f32.mrf.mxu0
    %2933 = vmatprep.mubr.f32.mxu0 0.0
    %2934 = vmatmul.mubr.f32.gmra.mxu0 %v2553
    %v2935 = vpop.f32.mrf.mxu0
    %v2936 = vadd.f32 0.0, %v2935
    %v2937 = vpop.f32.mrf.mxu0
    %2938 = vmatprep.mubr.f32.mxu0 0.0
    %2939 = vmatmul.mubr.f32.gmra.mxu0 %v2556
    %v2940 = vpop.f32.mrf.mxu0
    %v2941 = vadd.f32 0.0, %v2940
    %v2942 = vpop.f32.mrf.mxu0
    %2943 = vmatprep.mubr.f32.mxu0 0.0
    %2944 = vmatmul.mubr.f32.gmra.mxu0 %v2559
    %v2945 = vpop.f32.mrf.mxu0
    %v2946 = vadd.f32 0.0, %v2945
    %v2947 = vpop.f32.mrf.mxu0
    %2948 = vdwg.mxu0
    %v2949 = vadd.f32 %v2239, %v2631
    %v2950 = vadd.f32 %v2240, %v2636
    %v2951 = vadd.f32 %v2241, %v2641
    %v2952 = vadd.f32 %v2242, %v2646
    %v2953 = vadd.f32 %v2243, %v2651
    %v2954 = vadd.f32 %v2244, %v2656
    %v2955 = vadd.f32 %v2245, %v2661
    %v2956 = vadd.f32 %v2246, %v2666
    %v2957 = vadd.f32 %v2247, %v2671
    %v2958 = vadd.f32 %v2248, %v2676
    %v2959 = vadd.f32 %v2249, %v2681
    %v2960 = vadd.f32 %v2250, %v2686
    %v2961 = vadd.f32 %v2251, %v2691
    %v2962 = vadd.f32 %v2252, %v2696
    %v2963 = vadd.f32 %v2253, %v2701
    %v2964 = vadd.f32 %v2254, %v2706
    %v2965 = vadd.f32 %v2255, %v2711
    %v2966 = vadd.f32 %v2256, %v2716
    %v2967 = vadd.f32 %v2257, %v2721
    %v2968 = vadd.f32 %v2258, %v2726
    %v2969 = vadd.f32 %v2259, %v2731
    %v2970 = vadd.f32 %v2260, %v2736
    %v2971 = vadd.f32 %v2261, %v2741
    %v2972 = vadd.f32 %v2262, %v2746
    %v2973 = vadd.f32 %v2263, %v2751
    %v2974 = vadd.f32 %v2264, %v2756
    %v2975 = vadd.f32 %v2265, %v2761
    %v2976 = vadd.f32 %v2266, %v2766
    %v2977 = vadd.f32 %v2267, %v2771
    %v2978 = vadd.f32 %v2268, %v2776
    %v2979 = vadd.f32 %v2269, %v2781
    %v2980 = vadd.f32 %v2270, %v2786
    %v2981 = vadd.f32 %v2271, %v2791
    %v2982 = vadd.f32 %v2272, %v2796
    %v2983 = vadd.f32 %v2273, %v2801
    %v2984 = vadd.f32 %v2274, %v2806
    %v2985 = vadd.f32 %v2275, %v2811
    %v2986 = vadd.f32 %v2276, %v2816
    %v2987 = vadd.f32 %v2277, %v2821
    %v2988 = vadd.f32 %v2278, %v2826
    %v2989 = vadd.f32 %v2279, %v2831
    %v2990 = vadd.f32 %v2280, %v2836
    %v2991 = vadd.f32 %v2281, %v2841
    %v2992 = vadd.f32 %v2282, %v2846
    %v2993 = vadd.f32 %v2283, %v2851
    %v2994 = vadd.f32 %v2284, %v2856
    %v2995 = vadd.f32 %v2285, %v2861
    %v2996 = vadd.f32 %v2286, %v2866
    %v2997 = vadd.f32 %v2287, %v2871
    %v2998 = vadd.f32 %v2288, %v2876
    %v2999 = vadd.f32 %v2289, %v2881
    %v3000 = vadd.f32 %v2290, %v2886
    %v3001 = vadd.f32 %v2291, %v2891
    %v3002 = vadd.f32 %v2292, %v2896
    %v3003 = vadd.f32 %v2293, %v2901
    %v3004 = vadd.f32 %v2294, %v2906
    %v3005 = vadd.f32 %v2295, %v2911
    %v3006 = vadd.f32 %v2296, %v2916
    %v3007 = vadd.f32 %v2297, %v2921
    %v3008 = vadd.f32 %v2298, %v2926
    %v3009 = vadd.f32 %v2299, %v2931
    %v3010 = vadd.f32 %v2300, %v2936
    %v3011 = vadd.f32 %v2301, %v2941
    %v3012 = vadd.f32 %v2302, %v2946
    %v3013 = vld [vmem:[%s236 + $0x8] sm:$0xff]
    %v3014 = vld [vmem:[%s236 + $0x10] sm:$0xff]
    %v3015 = vld [vmem:[%s236 + $0x28] sm:$0xff]
    %v3016 = vld [vmem:[%s236 + $0x30] sm:$0xff]
    %v3017 = vld [vmem:[%s236 + $0x48] sm:$0xff]
    %v3018 = vld [vmem:[%s236 + $0x50] sm:$0xff]
    %v3019 = vld [vmem:[%s236 + $0x68] sm:$0xff]
    %v3020 = vld [vmem:[%s236 + $0x70] sm:$0xff]
    %v3021 = vld [vmem:[%s236 + $0x88] sm:$0xff]
    %v3022 = vld [vmem:[%s236 + $0x90] sm:$0xff]
    %v3023 = vld [vmem:[%s236 + $0xa8] sm:$0xff]
    %v3024 = vld [vmem:[%s236 + $0xb0] sm:$0xff]
    %v3025 = vld [vmem:[%s236 + $0xc8] sm:$0xff]
    %v3026 = vld [vmem:[%s236 + $0xd0] sm:$0xff]
    %v3027 = vld [vmem:[%s236 + $0xe8] sm:$0xff]
    %v3028 = vld [vmem:[%s236 + $0xf0] sm:$0xff]
    %v3029 = vld [vmem:[%s236 + $0x108] sm:$0xff]
    %v3030 = vld [vmem:[%s236 + $0x110] sm:$0xff]
    %v3031 = vld [vmem:[%s236 + $0x128] sm:$0xff]
    %v3032 = vld [vmem:[%s236 + $0x130] sm:$0xff]
    %v3033 = vld [vmem:[%s236 + $0x148] sm:$0xff]
    %v3034 = vld [vmem:[%s236 + $0x150] sm:$0xff]
    %v3035 = vld [vmem:[%s236 + $0x168] sm:$0xff]
    %v3036 = vld [vmem:[%s236 + $0x170] sm:$0xff]
    %v3037 = vld [vmem:[%s236 + $0x188] sm:$0xff]
    %v3038 = vld [vmem:[%s236 + $0x190] sm:$0xff]
    %v3039 = vld [vmem:[%s236 + $0x1a8] sm:$0xff]
    %v3040 = vld [vmem:[%s236 + $0x1b0] sm:$0xff]
    %v3041 = vld [vmem:[%s236 + $0x1c8] sm:$0xff]
    %v3042 = vld [vmem:[%s236 + $0x1d0] sm:$0xff]
    %v3043 = vld [vmem:[%s236 + $0x1e8] sm:$0xff]
    %v3044 = vld [vmem:[%s236 + $0x1f0] sm:$0xff]
    %v3045 = vld [vmem:[%s236 + $0x248] sm:$0xff]
    %v3046 = vld [vmem:[%s236 + $0x250] sm:$0xff]
    %v3047 = vld [vmem:[%s236 + $0x268] sm:$0xff]
    %v3048 = vld [vmem:[%s236 + $0x270] sm:$0xff]
    %v3049 = vld [vmem:[%s236 + $0x288] sm:$0xff]
    %v3050 = vld [vmem:[%s236 + $0x290] sm:$0xff]
    %v3051 = vld [vmem:[%s236 + $0x2a8] sm:$0xff]
    %v3052 = vld [vmem:[%s236 + $0x2b0] sm:$0xff]
    %v3053 = vld [vmem:[%s236 + $0x2c8] sm:$0xff]
    %v3054 = vld [vmem:[%s236 + $0x2d0] sm:$0xff]
    %v3055 = vld [vmem:[%s236 + $0x2e8] sm:$0xff]
    %v3056 = vld [vmem:[%s236 + $0x2f0] sm:$0xff]
    %v3057 = vld [vmem:[%s236 + $0x308] sm:$0xff]
    %v3058 = vld [vmem:[%s236 + $0x310] sm:$0xff]
    %v3059 = vld [vmem:[%s236 + $0x328] sm:$0xff]
    %v3060 = vld [vmem:[%s236 + $0x330] sm:$0xff]
    %v3061 = vld [vmem:[%s236 + $0x348] sm:$0xff]
    %v3062 = vld [vmem:[%s236 + $0x350] sm:$0xff]
    %v3063 = vld [vmem:[%s236 + $0x368] sm:$0xff]
    %v3064 = vld [vmem:[%s236 + $0x370] sm:$0xff]
    %v3065 = vld [vmem:[%s236 + $0x388] sm:$0xff]
    %v3066 = vld [vmem:[%s236 + $0x390] sm:$0xff]
    %v3067 = vld [vmem:[%s236 + $0x3a8] sm:$0xff]
    %v3068 = vld [vmem:[%s236 + $0x3b0] sm:$0xff]
    %v3069 = vld [vmem:[%s236 + $0x3c8] sm:$0xff]
    %v3070 = vld [vmem:[%s236 + $0x3d0] sm:$0xff]
    %v3071 = vld [vmem:[%s236 + $0x3e8] sm:$0xff]
    %v3072 = vld [vmem:[%s236 + $0x3f0] sm:$0xff]
    %v3073 = vld [vmem:[%s236 + $0x408] sm:$0xff]
    %v3074 = vld [vmem:[%s236 + $0x410] sm:$0xff]
    %v3075 = vld [vmem:[%s236 + $0x428] sm:$0xff]
    %v3076 = vld [vmem:[%s236 + $0x430] sm:$0xff]
    %s3077 = scalar_lea.vmem %s1, 16
    %v3078 = vld [vmem:[%s3077] sm:$0xf]
    %v3080 = vsel %vm27, %v3013, 0
    %v3083 = vsel %vm27, %v3014, 0
    %v3086 = vsel %vm27, %v3015, 0
    %v3089 = vsel %vm27, %v3016, 0
    %v3092 = vsel %vm27, %v3017, 0
    %v3095 = vsel %vm27, %v3018, 0
    %v3098 = vsel %vm27, %v3019, 0
    %v3101 = vsel %vm27, %v3020, 0
    %v3104 = vsel %vm27, %v3021, 0
    %v3107 = vsel %vm27, %v3022, 0
    %v3110 = vsel %vm27, %v3023, 0
    %v3113 = vsel %vm27, %v3024, 0
    %v3116 = vsel %vm27, %v3025, 0
    %v3119 = vsel %vm27, %v3026, 0
    %v3122 = vsel %vm27, %v3027, 0
    %v3125 = vsel %vm27, %v3028, 0
    %v3128 = vsel %vm27, %v3029, 0
    %v3131 = vsel %vm27, %v3030, 0
    %v3134 = vsel %vm27, %v3031, 0
    %v3137 = vsel %vm27, %v3032, 0
    %v3140 = vsel %vm27, %v3033, 0
    %v3143 = vsel %vm27, %v3034, 0
    %v3146 = vsel %vm27, %v3035, 0
    %v3149 = vsel %vm27, %v3036, 0
    %v3152 = vsel %vm27, %v3037, 0
    %v3155 = vsel %vm27, %v3038, 0
    %v3158 = vsel %vm27, %v3039, 0
    %v3161 = vsel %vm27, %v3040, 0
    %v3164 = vsel %vm27, %v3041, 0
    %v3167 = vsel %vm27, %v3042, 0
    %v3170 = vsel %vm27, %v3043, 0
    %v3173 = vsel %vm27, %v3044, 0
    %v3176 = vsel %vm27, %v3045, 0
    %v3179 = vsel %vm27, %v3046, 0
    %v3182 = vsel %vm27, %v3047, 0
    %v3185 = vsel %vm27, %v3048, 0
    %v3188 = vsel %vm27, %v3049, 0
    %v3191 = vsel %vm27, %v3050, 0
    %v3194 = vsel %vm27, %v3051, 0
    %v3197 = vsel %vm27, %v3052, 0
    %v3200 = vsel %vm27, %v3053, 0
    %v3203 = vsel %vm27, %v3054, 0
    %v3206 = vsel %vm27, %v3055, 0
    %v3209 = vsel %vm27, %v3056, 0
    %v3212 = vsel %vm27, %v3057, 0
    %v3215 = vsel %vm27, %v3058, 0
    %v3218 = vsel %vm27, %v3059, 0
    %v3221 = vsel %vm27, %v3060, 0
    %v3224 = vsel %vm27, %v3061, 0
    %v3227 = vsel %vm27, %v3062, 0
    %v3230 = vsel %vm27, %v3063, 0
    %v3233 = vsel %vm27, %v3064, 0
    %v3236 = vsel %vm27, %v3065, 0
    %v3239 = vsel %vm27, %v3066, 0
    %v3242 = vsel %vm27, %v3067, 0
    %v3245 = vsel %vm27, %v3068, 0
    %v3248 = vsel %vm27, %v3069, 0
    %v3251 = vsel %vm27, %v3070, 0
    %v3254 = vsel %vm27, %v3071, 0
    %v3257 = vsel %vm27, %v3072, 0
    %v3260 = vsel %vm27, %v3073, 0
    %v3263 = vsel %vm27, %v3074, 0
    %v3266 = vsel %vm27, %v3075, 0
    %v3269 = vsel %vm27, %v3076, 0
    %v3272 = vsel %vm624, %v3078, 0
    %3274 = vmatprep.subr.mxu0 0.0
    %3275 = vmatpush1.msra.mxu0 0.0
    %3276 = vmatprep.subr.mxu0 0.0
    %3277 = vmatpush1.msra.mxu0 0.0
    %3278 = vmatprep.subr.mxu0 0.0
    %3279 = vmatpush1.msra.mxu0 0.0
    %3280 = vmatprep.subr.mxu0 0.0
    %3281 = vmatpush1.msra.mxu0 0.0
    %3282 = vmatprep.subr.mxu0 0.0
    %3283 = vmatpush1.msra.mxu0 0.0
    %3284 = vmatprep.subr.mxu0 0.0
    %3285 = vmatpush1.msra.mxu0 0.0
    %3286 = vmatprep.subr.mxu0 0.0
    %3287 = vmatpush1.msra.mxu0 0.0
    %3288 = vmatprep.subr.mxu0 0.0
    %3289 = vmatpush1.msra.mxu0 0.0
    %3290 = vmatprep.subr.mxu0 0.0
    %3291 = vmatpush1.msra.mxu0 0.0
    %3292 = vmatprep.subr.mxu0 0.0
    %3293 = vmatpush1.msra.mxu0 0.0
    %3294 = vmatprep.subr.mxu0 0.0
    %3295 = vmatpush1.msra.mxu0 0.0
    %3296 = vmatprep.subr.mxu0 0.0
    %3297 = vmatpush1.msra.mxu0 0.0
    %3298 = vmatprep.subr.mxu0 0.0
    %3299 = vmatpush1.msra.mxu0 0.0
    %3300 = vmatprep.subr.mxu0 0.0
    %3301 = vmatpush1.msra.mxu0 0.0
    %3302 = vmatprep.subr.mxu0 0.0
    %3303 = vmatpush1.msra.mxu0 0.0
    %3304 = vmatprep.subr.mxu0 0.0
    %3305 = vmatpush1.msra.mxu0 %v3272
    %3306 = vmatprep.subr.mxu0 0.0
    %3307 = vmatpush2.msra.mxu0 0.0
    %3308 = vmatprep.subr.mxu0 0.0
    %3309 = vmatpush2.msra.mxu0 0.0
    %3310 = vmatprep.subr.mxu0 0.0
    %3311 = vmatpush2.msra.mxu0 0.0
    %3312 = vmatprep.subr.mxu0 0.0
    %3313 = vmatpush2.msra.mxu0 0.0
    %3314 = vmatprep.subr.mxu0 0.0
    %3315 = vmatpush2.msra.mxu0 0.0
    %3316 = vmatprep.subr.mxu0 0.0
    %3317 = vmatpush2.msra.mxu0 0.0
    %3318 = vmatprep.subr.mxu0 0.0
    %3319 = vmatpush2.msra.mxu0 0.0
    %3320 = vmatprep.subr.mxu0 0.0
    %3321 = vmatpush2.msra.mxu0 0.0
    %3322 = vmatprep.subr.mxu0 0.0
    %3323 = vmatpush2.msra.mxu0 0.0
    %3324 = vmatprep.subr.mxu0 0.0
    %3325 = vmatpush2.msra.mxu0 0.0
    %3326 = vmatprep.subr.mxu0 0.0
    %3327 = vmatpush2.msra.mxu0 0.0
    %3328 = vmatprep.subr.mxu0 0.0
    %3329 = vmatpush2.msra.mxu0 0.0
    %3330 = vmatprep.subr.mxu0 0.0
    %3331 = vmatpush2.msra.mxu0 0.0
    %3332 = vmatprep.subr.mxu0 0.0
    %3333 = vmatpush2.msra.mxu0 0.0
    %3334 = vmatprep.subr.mxu0 0.0
    %3335 = vmatpush2.msra.mxu0 0.0
    %3336 = vmatprep.subr.mxu0 0.0
    %3337 = vmatpush2.msra.mxu0 0.0
    %3338 = vmatprep.mubr.f32.mxu0 0.0
    %3339 = vmatmul.mubr.f32.gmra.mxu0 %v3080
    %v3340 = vpop.f32.mrf.mxu0
    %v3341 = vadd.f32 0.0, %v3340
    %v3342 = vpop.f32.mrf.mxu0
    %3343 = vmatprep.mubr.f32.mxu0 0.0
    %3344 = vmatmul.mubr.f32.gmra.mxu0 %v3083
    %v3345 = vpop.f32.mrf.mxu0
    %v3346 = vadd.f32 0.0, %v3345
    %v3347 = vpop.f32.mrf.mxu0
    %3348 = vmatprep.mubr.f32.mxu0 0.0
    %3349 = vmatmul.mubr.f32.gmra.mxu0 %v3086
    %v3350 = vpop.f32.mrf.mxu0
    %v3351 = vadd.f32 0.0, %v3350
    %v3352 = vpop.f32.mrf.mxu0
    %3353 = vmatprep.mubr.f32.mxu0 0.0
    %3354 = vmatmul.mubr.f32.gmra.mxu0 %v3089
    %v3355 = vpop.f32.mrf.mxu0
    %v3356 = vadd.f32 0.0, %v3355
    %v3357 = vpop.f32.mrf.mxu0
    %3358 = vmatprep.mubr.f32.mxu0 0.0
    %3359 = vmatmul.mubr.f32.gmra.mxu0 %v3092
    %v3360 = vpop.f32.mrf.mxu0
    %v3361 = vadd.f32 0.0, %v3360
    %v3362 = vpop.f32.mrf.mxu0
    %3363 = vmatprep.mubr.f32.mxu0 0.0
    %3364 = vmatmul.mubr.f32.gmra.mxu0 %v3095
    %v3365 = vpop.f32.mrf.mxu0
    %v3366 = vadd.f32 0.0, %v3365
    %v3367 = vpop.f32.mrf.mxu0
    %3368 = vmatprep.mubr.f32.mxu0 0.0
    %3369 = vmatmul.mubr.f32.gmra.mxu0 %v3098
    %v3370 = vpop.f32.mrf.mxu0
    %v3371 = vadd.f32 0.0, %v3370
    %v3372 = vpop.f32.mrf.mxu0
    %3373 = vmatprep.mubr.f32.mxu0 0.0
    %3374 = vmatmul.mubr.f32.gmra.mxu0 %v3101
    %v3375 = vpop.f32.mrf.mxu0
    %v3376 = vadd.f32 0.0, %v3375
    %v3377 = vpop.f32.mrf.mxu0
    %3378 = vmatprep.mubr.f32.mxu0 0.0
    %3379 = vmatmul.mubr.f32.gmra.mxu0 %v3104
    %v3380 = vpop.f32.mrf.mxu0
    %v3381 = vadd.f32 0.0, %v3380
    %v3382 = vpop.f32.mrf.mxu0
    %3383 = vmatprep.mubr.f32.mxu0 0.0
    %3384 = vmatmul.mubr.f32.gmra.mxu0 %v3107
    %v3385 = vpop.f32.mrf.mxu0
    %v3386 = vadd.f32 0.0, %v3385
    %v3387 = vpop.f32.mrf.mxu0
    %3388 = vmatprep.mubr.f32.mxu0 0.0
    %3389 = vmatmul.mubr.f32.gmra.mxu0 %v3110
    %v3390 = vpop.f32.mrf.mxu0
    %v3391 = vadd.f32 0.0, %v3390
    %v3392 = vpop.f32.mrf.mxu0
    %3393 = vmatprep.mubr.f32.mxu0 0.0
    %3394 = vmatmul.mubr.f32.gmra.mxu0 %v3113
    %v3395 = vpop.f32.mrf.mxu0
    %v3396 = vadd.f32 0.0, %v3395
    %v3397 = vpop.f32.mrf.mxu0
    %3398 = vmatprep.mubr.f32.mxu0 0.0
    %3399 = vmatmul.mubr.f32.gmra.mxu0 %v3116
    %v3400 = vpop.f32.mrf.mxu0
    %v3401 = vadd.f32 0.0, %v3400
    %v3402 = vpop.f32.mrf.mxu0
    %3403 = vmatprep.mubr.f32.mxu0 0.0
    %3404 = vmatmul.mubr.f32.gmra.mxu0 %v3119
    %v3405 = vpop.f32.mrf.mxu0
    %v3406 = vadd.f32 0.0, %v3405
    %v3407 = vpop.f32.mrf.mxu0
    %3408 = vmatprep.mubr.f32.mxu0 0.0
    %3409 = vmatmul.mubr.f32.gmra.mxu0 %v3122
    %v3410 = vpop.f32.mrf.mxu0
    %v3411 = vadd.f32 0.0, %v3410
    %v3412 = vpop.f32.mrf.mxu0
    %3413 = vmatprep.mubr.f32.mxu0 0.0
    %3414 = vmatmul.mubr.f32.gmra.mxu0 %v3125
    %v3415 = vpop.f32.mrf.mxu0
    %v3416 = vadd.f32 0.0, %v3415
    %v3417 = vpop.f32.mrf.mxu0
    %3418 = vmatprep.mubr.f32.mxu0 0.0
    %3419 = vmatmul.mubr.f32.gmra.mxu0 %v3128
    %v3420 = vpop.f32.mrf.mxu0
    %v3421 = vadd.f32 0.0, %v3420
    %v3422 = vpop.f32.mrf.mxu0
    %3423 = vmatprep.mubr.f32.mxu0 0.0
    %3424 = vmatmul.mubr.f32.gmra.mxu0 %v3131
    %v3425 = vpop.f32.mrf.mxu0
    %v3426 = vadd.f32 0.0, %v3425
    %v3427 = vpop.f32.mrf.mxu0
    %3428 = vmatprep.mubr.f32.mxu0 0.0
    %3429 = vmatmul.mubr.f32.gmra.mxu0 %v3134
    %v3430 = vpop.f32.mrf.mxu0
    %v3431 = vadd.f32 0.0, %v3430
    %v3432 = vpop.f32.mrf.mxu0
    %3433 = vmatprep.mubr.f32.mxu0 0.0
    %3434 = vmatmul.mubr.f32.gmra.mxu0 %v3137
    %v3435 = vpop.f32.mrf.mxu0
    %v3436 = vadd.f32 0.0, %v3435
    %v3437 = vpop.f32.mrf.mxu0
    %3438 = vmatprep.mubr.f32.mxu0 0.0
    %3439 = vmatmul.mubr.f32.gmra.mxu0 %v3140
    %v3440 = vpop.f32.mrf.mxu0
    %v3441 = vadd.f32 0.0, %v3440
    %v3442 = vpop.f32.mrf.mxu0
    %3443 = vmatprep.mubr.f32.mxu0 0.0
    %3444 = vmatmul.mubr.f32.gmra.mxu0 %v3143
    %v3445 = vpop.f32.mrf.mxu0
    %v3446 = vadd.f32 0.0, %v3445
    %v3447 = vpop.f32.mrf.mxu0
    %3448 = vmatprep.mubr.f32.mxu0 0.0
    %3449 = vmatmul.mubr.f32.gmra.mxu0 %v3146
    %v3450 = vpop.f32.mrf.mxu0
    %v3451 = vadd.f32 0.0, %v3450
    %v3452 = vpop.f32.mrf.mxu0
    %3453 = vmatprep.mubr.f32.mxu0 0.0
    %3454 = vmatmul.mubr.f32.gmra.mxu0 %v3149
    %v3455 = vpop.f32.mrf.mxu0
    %v3456 = vadd.f32 0.0, %v3455
    %v3457 = vpop.f32.mrf.mxu0
    %3458 = vmatprep.mubr.f32.mxu0 0.0
    %3459 = vmatmul.mubr.f32.gmra.mxu0 %v3152
    %v3460 = vpop.f32.mrf.mxu0
    %v3461 = vadd.f32 0.0, %v3460
    %v3462 = vpop.f32.mrf.mxu0
    %3463 = vmatprep.mubr.f32.mxu0 0.0
    %3464 = vmatmul.mubr.f32.gmra.mxu0 %v3155
    %v3465 = vpop.f32.mrf.mxu0
    %v3466 = vadd.f32 0.0, %v3465
    %v3467 = vpop.f32.mrf.mxu0
    %3468 = vmatprep.mubr.f32.mxu0 0.0
    %3469 = vmatmul.mubr.f32.gmra.mxu0 %v3158
    %v3470 = vpop.f32.mrf.mxu0
    %v3471 = vadd.f32 0.0, %v3470
    %v3472 = vpop.f32.mrf.mxu0
    %3473 = vmatprep.mubr.f32.mxu0 0.0
    %3474 = vmatmul.mubr.f32.gmra.mxu0 %v3161
    %v3475 = vpop.f32.mrf.mxu0
    %v3476 = vadd.f32 0.0, %v3475
    %v3477 = vpop.f32.mrf.mxu0
    %3478 = vmatprep.mubr.f32.mxu0 0.0
    %3479 = vmatmul.mubr.f32.gmra.mxu0 %v3164
    %v3480 = vpop.f32.mrf.mxu0
    %v3481 = vadd.f32 0.0, %v3480
    %v3482 = vpop.f32.mrf.mxu0
    %3483 = vmatprep.mubr.f32.mxu0 0.0
    %3484 = vmatmul.mubr.f32.gmra.mxu0 %v3167
    %v3485 = vpop.f32.mrf.mxu0
    %v3486 = vadd.f32 0.0, %v3485
    %v3487 = vpop.f32.mrf.mxu0
    %3488 = vmatprep.mubr.f32.mxu0 0.0
    %3489 = vmatmul.mubr.f32.gmra.mxu0 %v3170
    %v3490 = vpop.f32.mrf.mxu0
    %v3491 = vadd.f32 0.0, %v3490
    %v3492 = vpop.f32.mrf.mxu0
    %3493 = vmatprep.mubr.f32.mxu0 0.0
    %3494 = vmatmul.mubr.f32.gmra.mxu0 %v3173
    %v3495 = vpop.f32.mrf.mxu0
    %v3496 = vadd.f32 0.0, %v3495
    %v3497 = vpop.f32.mrf.mxu0
    %3498 = vmatprep.mubr.f32.mxu0 0.0
    %3499 = vmatmul.mubr.f32.gmra.mxu0 %v3176
    %v3500 = vpop.f32.mrf.mxu0
    %v3501 = vadd.f32 0.0, %v3500
    %v3502 = vpop.f32.mrf.mxu0
    %3503 = vmatprep.mubr.f32.mxu0 0.0
    %3504 = vmatmul.mubr.f32.gmra.mxu0 %v3179
    %v3505 = vpop.f32.mrf.mxu0
    %v3506 = vadd.f32 0.0, %v3505
    %v3507 = vpop.f32.mrf.mxu0
    %3508 = vmatprep.mubr.f32.mxu0 0.0
    %3509 = vmatmul.mubr.f32.gmra.mxu0 %v3182
    %v3510 = vpop.f32.mrf.mxu0
    %v3511 = vadd.f32 0.0, %v3510
    %v3512 = vpop.f32.mrf.mxu0
    %3513 = vmatprep.mubr.f32.mxu0 0.0
    %3514 = vmatmul.mubr.f32.gmra.mxu0 %v3185
    %v3515 = vpop.f32.mrf.mxu0
    %v3516 = vadd.f32 0.0, %v3515
    %v3517 = vpop.f32.mrf.mxu0
    %3518 = vmatprep.mubr.f32.mxu0 0.0
    %3519 = vmatmul.mubr.f32.gmra.mxu0 %v3188
    %v3520 = vpop.f32.mrf.mxu0
    %v3521 = vadd.f32 0.0, %v3520
    %v3522 = vpop.f32.mrf.mxu0
    %3523 = vmatprep.mubr.f32.mxu0 0.0
    %3524 = vmatmul.mubr.f32.gmra.mxu0 %v3191
    %v3525 = vpop.f32.mrf.mxu0
    %v3526 = vadd.f32 0.0, %v3525
    %v3527 = vpop.f32.mrf.mxu0
    %3528 = vmatprep.mubr.f32.mxu0 0.0
    %3529 = vmatmul.mubr.f32.gmra.mxu0 %v3194
    %v3530 = vpop.f32.mrf.mxu0
    %v3531 = vadd.f32 0.0, %v3530
    %v3532 = vpop.f32.mrf.mxu0
    %3533 = vmatprep.mubr.f32.mxu0 0.0
    %3534 = vmatmul.mubr.f32.gmra.mxu0 %v3197
    %v3535 = vpop.f32.mrf.mxu0
    %v3536 = vadd.f32 0.0, %v3535
    %v3537 = vpop.f32.mrf.mxu0
    %3538 = vmatprep.mubr.f32.mxu0 0.0
    %3539 = vmatmul.mubr.f32.gmra.mxu0 %v3200
    %v3540 = vpop.f32.mrf.mxu0
    %v3541 = vadd.f32 0.0, %v3540
    %v3542 = vpop.f32.mrf.mxu0
    %3543 = vmatprep.mubr.f32.mxu0 0.0
    %3544 = vmatmul.mubr.f32.gmra.mxu0 %v3203
    %v3545 = vpop.f32.mrf.mxu0
    %v3546 = vadd.f32 0.0, %v3545
    %v3547 = vpop.f32.mrf.mxu0
    %3548 = vmatprep.mubr.f32.mxu0 0.0
    %3549 = vmatmul.mubr.f32.gmra.mxu0 %v3206
    %v3550 = vpop.f32.mrf.mxu0
    %v3551 = vadd.f32 0.0, %v3550
    %v3552 = vpop.f32.mrf.mxu0
    %3553 = vmatprep.mubr.f32.mxu0 0.0
    %3554 = vmatmul.mubr.f32.gmra.mxu0 %v3209
    %v3555 = vpop.f32.mrf.mxu0
    %v3556 = vadd.f32 0.0, %v3555
    %v3557 = vpop.f32.mrf.mxu0
    %3558 = vmatprep.mubr.f32.mxu0 0.0
    %3559 = vmatmul.mubr.f32.gmra.mxu0 %v3212
    %v3560 = vpop.f32.mrf.mxu0
    %v3561 = vadd.f32 0.0, %v3560
    %v3562 = vpop.f32.mrf.mxu0
    %3563 = vmatprep.mubr.f32.mxu0 0.0
    %3564 = vmatmul.mubr.f32.gmra.mxu0 %v3215
    %v3565 = vpop.f32.mrf.mxu0
    %v3566 = vadd.f32 0.0, %v3565
    %v3567 = vpop.f32.mrf.mxu0
    %3568 = vmatprep.mubr.f32.mxu0 0.0
    %3569 = vmatmul.mubr.f32.gmra.mxu0 %v3218
    %v3570 = vpop.f32.mrf.mxu0
    %v3571 = vadd.f32 0.0, %v3570
    %v3572 = vpop.f32.mrf.mxu0
    %3573 = vmatprep.mubr.f32.mxu0 0.0
    %3574 = vmatmul.mubr.f32.gmra.mxu0 %v3221
    %v3575 = vpop.f32.mrf.mxu0
    %v3576 = vadd.f32 0.0, %v3575
    %v3577 = vpop.f32.mrf.mxu0
    %3578 = vmatprep.mubr.f32.mxu0 0.0
    %3579 = vmatmul.mubr.f32.gmra.mxu0 %v3224
    %v3580 = vpop.f32.mrf.mxu0
    %v3581 = vadd.f32 0.0, %v3580
    %v3582 = vpop.f32.mrf.mxu0
    %3583 = vmatprep.mubr.f32.mxu0 0.0
    %3584 = vmatmul.mubr.f32.gmra.mxu0 %v3227
    %v3585 = vpop.f32.mrf.mxu0
    %v3586 = vadd.f32 0.0, %v3585
    %v3587 = vpop.f32.mrf.mxu0
    %3588 = vmatprep.mubr.f32.mxu0 0.0
    %3589 = vmatmul.mubr.f32.gmra.mxu0 %v3230
    %v3590 = vpop.f32.mrf.mxu0
    %v3591 = vadd.f32 0.0, %v3590
    %v3592 = vpop.f32.mrf.mxu0
    %3593 = vmatprep.mubr.f32.mxu0 0.0
    %3594 = vmatmul.mubr.f32.gmra.mxu0 %v3233
    %v3595 = vpop.f32.mrf.mxu0
    %v3596 = vadd.f32 0.0, %v3595
    %v3597 = vpop.f32.mrf.mxu0
    %3598 = vmatprep.mubr.f32.mxu0 0.0
    %3599 = vmatmul.mubr.f32.gmra.mxu0 %v3236
    %v3600 = vpop.f32.mrf.mxu0
    %v3601 = vadd.f32 0.0, %v3600
    %v3602 = vpop.f32.mrf.mxu0
    %3603 = vmatprep.mubr.f32.mxu0 0.0
    %3604 = vmatmul.mubr.f32.gmra.mxu0 %v3239
    %v3605 = vpop.f32.mrf.mxu0
    %v3606 = vadd.f32 0.0, %v3605
    %v3607 = vpop.f32.mrf.mxu0
    %3608 = vmatprep.mubr.f32.mxu0 0.0
    %3609 = vmatmul.mubr.f32.gmra.mxu0 %v3242
    %v3610 = vpop.f32.mrf.mxu0
    %v3611 = vadd.f32 0.0, %v3610
    %v3612 = vpop.f32.mrf.mxu0
    %3613 = vmatprep.mubr.f32.mxu0 0.0
    %3614 = vmatmul.mubr.f32.gmra.mxu0 %v3245
    %v3615 = vpop.f32.mrf.mxu0
    %v3616 = vadd.f32 0.0, %v3615
    %v3617 = vpop.f32.mrf.mxu0
    %3618 = vmatprep.mubr.f32.mxu0 0.0
    %3619 = vmatmul.mubr.f32.gmra.mxu0 %v3248
    %v3620 = vpop.f32.mrf.mxu0
    %v3621 = vadd.f32 0.0, %v3620
    %v3622 = vpop.f32.mrf.mxu0
    %3623 = vmatprep.mubr.f32.mxu0 0.0
    %3624 = vmatmul.mubr.f32.gmra.mxu0 %v3251
    %v3625 = vpop.f32.mrf.mxu0
    %v3626 = vadd.f32 0.0, %v3625
    %v3627 = vpop.f32.mrf.mxu0
    %3628 = vmatprep.mubr.f32.mxu0 0.0
    %3629 = vmatmul.mubr.f32.gmra.mxu0 %v3254
    %v3630 = vpop.f32.mrf.mxu0
    %v3631 = vadd.f32 0.0, %v3630
    %v3632 = vpop.f32.mrf.mxu0
    %3633 = vmatprep.mubr.f32.mxu0 0.0
    %3634 = vmatmul.mubr.f32.gmra.mxu0 %v3257
    %v3635 = vpop.f32.mrf.mxu0
    %v3636 = vadd.f32 0.0, %v3635
    %v3637 = vpop.f32.mrf.mxu0
    %3638 = vmatprep.mubr.f32.mxu0 0.0
    %3639 = vmatmul.mubr.f32.gmra.mxu0 %v3260
    %v3640 = vpop.f32.mrf.mxu0
    %v3641 = vadd.f32 0.0, %v3640
    %v3642 = vpop.f32.mrf.mxu0
    %3643 = vmatprep.mubr.f32.mxu0 0.0
    %3644 = vmatmul.mubr.f32.gmra.mxu0 %v3263
    %v3645 = vpop.f32.mrf.mxu0
    %v3646 = vadd.f32 0.0, %v3645
    %v3647 = vpop.f32.mrf.mxu0
    %3648 = vmatprep.mubr.f32.mxu0 0.0
    %3649 = vmatmul.mubr.f32.gmra.mxu0 %v3266
    %v3650 = vpop.f32.mrf.mxu0
    %v3651 = vadd.f32 0.0, %v3650
    %v3652 = vpop.f32.mrf.mxu0
    %3653 = vmatprep.mubr.f32.mxu0 0.0
    %3654 = vmatmul.mubr.f32.gmra.mxu0 %v3269
    %v3655 = vpop.f32.mrf.mxu0
    %v3656 = vadd.f32 0.0, %v3655
    %v3657 = vpop.f32.mrf.mxu0
    %3658 = vdwg.mxu0
    %v3659 = vadd.f32 %v2949, %v3341
    %v3660 = vadd.f32 %v2950, %v3346
    %v3661 = vadd.f32 %v2951, %v3351
    %v3662 = vadd.f32 %v2952, %v3356
    %v3663 = vadd.f32 %v2953, %v3361
    %v3664 = vadd.f32 %v2954, %v3366
    %v3665 = vadd.f32 %v2955, %v3371
    %v3666 = vadd.f32 %v2956, %v3376
    %v3667 = vadd.f32 %v2957, %v3381
    %v3668 = vadd.f32 %v2958, %v3386
    %v3669 = vadd.f32 %v2959, %v3391
    %v3670 = vadd.f32 %v2960, %v3396
    %v3671 = vadd.f32 %v2961, %v3401
    %v3672 = vadd.f32 %v2962, %v3406
    %v3673 = vadd.f32 %v2963, %v3411
    %v3674 = vadd.f32 %v2964, %v3416
    %v3675 = vadd.f32 %v2965, %v3421
    %v3676 = vadd.f32 %v2966, %v3426
    %v3677 = vadd.f32 %v2967, %v3431
    %v3678 = vadd.f32 %v2968, %v3436
    %v3679 = vadd.f32 %v2969, %v3441
    %v3680 = vadd.f32 %v2970, %v3446
    %v3681 = vadd.f32 %v2971, %v3451
    %v3682 = vadd.f32 %v2972, %v3456
    %v3683 = vadd.f32 %v2973, %v3461
    %v3684 = vadd.f32 %v2974, %v3466
    %v3685 = vadd.f32 %v2975, %v3471
    %v3686 = vadd.f32 %v2976, %v3476
    %v3687 = vadd.f32 %v2977, %v3481
    %v3688 = vadd.f32 %v2978, %v3486
    %v3689 = vadd.f32 %v2979, %v3491
    %v3690 = vadd.f32 %v2980, %v3496
    %v3691 = vadd.f32 %v2981, %v3501
    %v3692 = vadd.f32 %v2982, %v3506
    %v3693 = vadd.f32 %v2983, %v3511
    %v3694 = vadd.f32 %v2984, %v3516
    %v3695 = vadd.f32 %v2985, %v3521
    %v3696 = vadd.f32 %v2986, %v3526
    %v3697 = vadd.f32 %v2987, %v3531
    %v3698 = vadd.f32 %v2988, %v3536
    %v3699 = vadd.f32 %v2989, %v3541
    %v3700 = vadd.f32 %v2990, %v3546
    %v3701 = vadd.f32 %v2991, %v3551
    %v3702 = vadd.f32 %v2992, %v3556
    %v3703 = vadd.f32 %v2993, %v3561
    %v3704 = vadd.f32 %v2994, %v3566
    %v3705 = vadd.f32 %v2995, %v3571
    %v3706 = vadd.f32 %v2996, %v3576
    %v3707 = vadd.f32 %v2997, %v3581
    %v3708 = vadd.f32 %v2998, %v3586
    %v3709 = vadd.f32 %v2999, %v3591
    %v3710 = vadd.f32 %v3000, %v3596
    %v3711 = vadd.f32 %v3001, %v3601
    %v3712 = vadd.f32 %v3002, %v3606
    %v3713 = vadd.f32 %v3003, %v3611
    %v3714 = vadd.f32 %v3004, %v3616
    %v3715 = vadd.f32 %v3005, %v3621
    %v3716 = vadd.f32 %v3006, %v3626
    %v3717 = vadd.f32 %v3007, %v3631
    %v3718 = vadd.f32 %v3008, %v3636
    %v3719 = vadd.f32 %v3009, %v3641
    %v3720 = vadd.f32 %v3010, %v3646
    %v3721 = vadd.f32 %v3011, %v3651
    %v3722 = vadd.f32 %v3012, %v3656
    %v3723 = vld [vmem:[%s236 + $0x9] sm:$0xff]
    %v3724 = vld [vmem:[%s236 + $0x11] sm:$0xff]
    %v3725 = vld [vmem:[%s236 + $0x29] sm:$0xff]
    %v3726 = vld [vmem:[%s236 + $0x31] sm:$0xff]
    %v3727 = vld [vmem:[%s236 + $0x49] sm:$0xff]
    %v3728 = vld [vmem:[%s236 + $0x51] sm:$0xff]
    %v3729 = vld [vmem:[%s236 + $0x69] sm:$0xff]
    %v3730 = vld [vmem:[%s236 + $0x71] sm:$0xff]
    %v3731 = vld [vmem:[%s236 + $0x89] sm:$0xff]
    %v3732 = vld [vmem:[%s236 + $0x91] sm:$0xff]
    %v3733 = vld [vmem:[%s236 + $0xa9] sm:$0xff]
    %v3734 = vld [vmem:[%s236 + $0xb1] sm:$0xff]
    %v3735 = vld [vmem:[%s236 + $0xc9] sm:$0xff]
    %v3736 = vld [vmem:[%s236 + $0xd1] sm:$0xff]
    %v3737 = vld [vmem:[%s236 + $0xe9] sm:$0xff]
    %v3738 = vld [vmem:[%s236 + $0xf1] sm:$0xff]
    %v3739 = vld [vmem:[%s236 + $0x109] sm:$0xff]
    %v3740 = vld [vmem:[%s236 + $0x111] sm:$0xff]
    %v3741 = vld [vmem:[%s236 + $0x129] sm:$0xff]
    %v3742 = vld [vmem:[%s236 + $0x131] sm:$0xff]
    %v3743 = vld [vmem:[%s236 + $0x149] sm:$0xff]
    %v3744 = vld [vmem:[%s236 + $0x151] sm:$0xff]
    %v3745 = vld [vmem:[%s236 + $0x169] sm:$0xff]
    %v3746 = vld [vmem:[%s236 + $0x171] sm:$0xff]
    %v3747 = vld [vmem:[%s236 + $0x189] sm:$0xff]
    %v3748 = vld [vmem:[%s236 + $0x191] sm:$0xff]
    %v3749 = vld [vmem:[%s236 + $0x1a9] sm:$0xff]
    %v3750 = vld [vmem:[%s236 + $0x1b1] sm:$0xff]
    %v3751 = vld [vmem:[%s236 + $0x1c9] sm:$0xff]
    %v3752 = vld [vmem:[%s236 + $0x1d1] sm:$0xff]
    %v3753 = vld [vmem:[%s236 + $0x1e9] sm:$0xff]
    %v3754 = vld [vmem:[%s236 + $0x1f1] sm:$0xff]
    %v3755 = vld [vmem:[%s236 + $0x249] sm:$0xff]
    %v3756 = vld [vmem:[%s236 + $0x251] sm:$0xff]
    %v3757 = vld [vmem:[%s236 + $0x269] sm:$0xff]
    %v3758 = vld [vmem:[%s236 + $0x271] sm:$0xff]
    %v3759 = vld [vmem:[%s236 + $0x289] sm:$0xff]
    %v3760 = vld [vmem:[%s236 + $0x291] sm:$0xff]
    %v3761 = vld [vmem:[%s236 + $0x2a9] sm:$0xff]
    %v3762 = vld [vmem:[%s236 + $0x2b1] sm:$0xff]
    %v3763 = vld [vmem:[%s236 + $0x2c9] sm:$0xff]
    %v3764 = vld [vmem:[%s236 + $0x2d1] sm:$0xff]
    %v3765 = vld [vmem:[%s236 + $0x2e9] sm:$0xff]
    %v3766 = vld [vmem:[%s236 + $0x2f1] sm:$0xff]
    %v3767 = vld [vmem:[%s236 + $0x309] sm:$0xff]
    %v3768 = vld [vmem:[%s236 + $0x311] sm:$0xff]
    %v3769 = vld [vmem:[%s236 + $0x329] sm:$0xff]
    %v3770 = vld [vmem:[%s236 + $0x331] sm:$0xff]
    %v3771 = vld [vmem:[%s236 + $0x349] sm:$0xff]
    %v3772 = vld [vmem:[%s236 + $0x351] sm:$0xff]
    %v3773 = vld [vmem:[%s236 + $0x369] sm:$0xff]
    %v3774 = vld [vmem:[%s236 + $0x371] sm:$0xff]
    %v3775 = vld [vmem:[%s236 + $0x389] sm:$0xff]
    %v3776 = vld [vmem:[%s236 + $0x391] sm:$0xff]
    %v3777 = vld [vmem:[%s236 + $0x3a9] sm:$0xff]
    %v3778 = vld [vmem:[%s236 + $0x3b1] sm:$0xff]
    %v3779 = vld [vmem:[%s236 + $0x3c9] sm:$0xff]
    %v3780 = vld [vmem:[%s236 + $0x3d1] sm:$0xff]
    %v3781 = vld [vmem:[%s236 + $0x3e9] sm:$0xff]
    %v3782 = vld [vmem:[%s236 + $0x3f1] sm:$0xff]
    %v3783 = vld [vmem:[%s236 + $0x409] sm:$0xff]
    %v3784 = vld [vmem:[%s236 + $0x411] sm:$0xff]
    %v3785 = vld [vmem:[%s236 + $0x429] sm:$0xff]
    %v3786 = vld [vmem:[%s236 + $0x431] sm:$0xff]
    %s3787 = scalar_lea.vmem %s1, 20
    %v3788 = vld [vmem:[%s3787] sm:$0xf]
    %v3790 = vsel %vm27, %v3723, 0
    %v3793 = vsel %vm27, %v3724, 0
    %v3796 = vsel %vm27, %v3725, 0
    %v3799 = vsel %vm27, %v3726, 0
    %v3802 = vsel %vm27, %v3727, 0
    %v3805 = vsel %vm27, %v3728, 0
    %v3808 = vsel %vm27, %v3729, 0
    %v3811 = vsel %vm27, %v3730, 0
    %v3814 = vsel %vm27, %v3731, 0
    %v3817 = vsel %vm27, %v3732, 0
    %v3820 = vsel %vm27, %v3733, 0
    %v3823 = vsel %vm27, %v3734, 0
    %v3826 = vsel %vm27, %v3735, 0
    %v3829 = vsel %vm27, %v3736, 0
    %v3832 = vsel %vm27, %v3737, 0
    %v3835 = vsel %vm27, %v3738, 0
    %v3838 = vsel %vm27, %v3739, 0
    %v3841 = vsel %vm27, %v3740, 0
    %v3844 = vsel %vm27, %v3741, 0
    %v3847 = vsel %vm27, %v3742, 0
    %v3850 = vsel %vm27, %v3743, 0
    %v3853 = vsel %vm27, %v3744, 0
    %v3856 = vsel %vm27, %v3745, 0
    %v3859 = vsel %vm27, %v3746, 0
    %v3862 = vsel %vm27, %v3747, 0
    %v3865 = vsel %vm27, %v3748, 0
    %v3868 = vsel %vm27, %v3749, 0
    %v3871 = vsel %vm27, %v3750, 0
    %v3874 = vsel %vm27, %v3751, 0
    %v3877 = vsel %vm27, %v3752, 0
    %v3880 = vsel %vm27, %v3753, 0
    %v3883 = vsel %vm27, %v3754, 0
    %v3886 = vsel %vm27, %v3755, 0
    %v3889 = vsel %vm27, %v3756, 0
    %v3892 = vsel %vm27, %v3757, 0
    %v3895 = vsel %vm27, %v3758, 0
    %v3898 = vsel %vm27, %v3759, 0
    %v3901 = vsel %vm27, %v3760, 0
    %v3904 = vsel %vm27, %v3761, 0
    %v3907 = vsel %vm27, %v3762, 0
    %v3910 = vsel %vm27, %v3763, 0
    %v3913 = vsel %vm27, %v3764, 0
    %v3916 = vsel %vm27, %v3765, 0
    %v3919 = vsel %vm27, %v3766, 0
    %v3922 = vsel %vm27, %v3767, 0
    %v3925 = vsel %vm27, %v3768, 0
    %v3928 = vsel %vm27, %v3769, 0
    %v3931 = vsel %vm27, %v3770, 0
    %v3934 = vsel %vm27, %v3771, 0
    %v3937 = vsel %vm27, %v3772, 0
    %v3940 = vsel %vm27, %v3773, 0
    %v3943 = vsel %vm27, %v3774, 0
    %v3946 = vsel %vm27, %v3775, 0
    %v3949 = vsel %vm27, %v3776, 0
    %v3952 = vsel %vm27, %v3777, 0
    %v3955 = vsel %vm27, %v3778, 0
    %v3958 = vsel %vm27, %v3779, 0
    %v3961 = vsel %vm27, %v3780, 0
    %v3964 = vsel %vm27, %v3781, 0
    %v3967 = vsel %vm27, %v3782, 0
    %v3970 = vsel %vm27, %v3783, 0
    %v3973 = vsel %vm27, %v3784, 0
    %v3976 = vsel %vm27, %v3785, 0
    %v3979 = vsel %vm27, %v3786, 0
    %v3982 = vsel %vm624, %v3788, 0
    %3984 = vmatprep.subr.mxu0 0.0
    %3985 = vmatpush1.msra.mxu0 0.0
    %3986 = vmatprep.subr.mxu0 0.0
    %3987 = vmatpush1.msra.mxu0 0.0
    %3988 = vmatprep.subr.mxu0 0.0
    %3989 = vmatpush1.msra.mxu0 0.0
    %3990 = vmatprep.subr.mxu0 0.0
    %3991 = vmatpush1.msra.mxu0 0.0
    %3992 = vmatprep.subr.mxu0 0.0
    %3993 = vmatpush1.msra.mxu0 0.0
    %3994 = vmatprep.subr.mxu0 0.0
    %3995 = vmatpush1.msra.mxu0 0.0
    %3996 = vmatprep.subr.mxu0 0.0
    %3997 = vmatpush1.msra.mxu0 0.0
    %3998 = vmatprep.subr.mxu0 0.0
    %3999 = vmatpush1.msra.mxu0 0.0
    %4000 = vmatprep.subr.mxu0 0.0
    %4001 = vmatpush1.msra.mxu0 0.0
    %4002 = vmatprep.subr.mxu0 0.0
    %4003 = vmatpush1.msra.mxu0 0.0
    %4004 = vmatprep.subr.mxu0 0.0
    %4005 = vmatpush1.msra.mxu0 0.0
    %4006 = vmatprep.subr.mxu0 0.0
    %4007 = vmatpush1.msra.mxu0 0.0
    %4008 = vmatprep.subr.mxu0 0.0
    %4009 = vmatpush1.msra.mxu0 0.0
    %4010 = vmatprep.subr.mxu0 0.0
    %4011 = vmatpush1.msra.mxu0 0.0
    %4012 = vmatprep.subr.mxu0 0.0
    %4013 = vmatpush1.msra.mxu0 0.0
    %4014 = vmatprep.subr.mxu0 0.0
    %4015 = vmatpush1.msra.mxu0 %v3982
    %4016 = vmatprep.subr.mxu0 0.0
    %4017 = vmatpush2.msra.mxu0 0.0
    %4018 = vmatprep.subr.mxu0 0.0
    %4019 = vmatpush2.msra.mxu0 0.0
    %4020 = vmatprep.subr.mxu0 0.0
    %4021 = vmatpush2.msra.mxu0 0.0
    %4022 = vmatprep.subr.mxu0 0.0
    %4023 = vmatpush2.msra.mxu0 0.0
    %4024 = vmatprep.subr.mxu0 0.0
    %4025 = vmatpush2.msra.mxu0 0.0
    %4026 = vmatprep.subr.mxu0 0.0
    %4027 = vmatpush2.msra.mxu0 0.0
    %4028 = vmatprep.subr.mxu0 0.0
    %4029 = vmatpush2.msra.mxu0 0.0
    %4030 = vmatprep.subr.mxu0 0.0
    %4031 = vmatpush2.msra.mxu0 0.0
    %4032 = vmatprep.subr.mxu0 0.0
    %4033 = vmatpush2.msra.mxu0 0.0
    %4034 = vmatprep.subr.mxu0 0.0
    %4035 = vmatpush2.msra.mxu0 0.0
    %4036 = vmatprep.subr.mxu0 0.0
    %4037 = vmatpush2.msra.mxu0 0.0
    %4038 = vmatprep.subr.mxu0 0.0
    %4039 = vmatpush2.msra.mxu0 0.0
    %4040 = vmatprep.subr.mxu0 0.0
    %4041 = vmatpush2.msra.mxu0 0.0
    %4042 = vmatprep.subr.mxu0 0.0
    %4043 = vmatpush2.msra.mxu0 0.0
    %4044 = vmatprep.subr.mxu0 0.0
    %4045 = vmatpush2.msra.mxu0 0.0
    %4046 = vmatprep.subr.mxu0 0.0
    %4047 = vmatpush2.msra.mxu0 0.0
    %4048 = vmatprep.mubr.f32.mxu0 0.0
    %4049 = vmatmul.mubr.f32.gmra.mxu0 %v3790
    %v4050 = vpop.f32.mrf.mxu0
    %v4051 = vadd.f32 0.0, %v4050
    %v4052 = vpop.f32.mrf.mxu0
    %4053 = vmatprep.mubr.f32.mxu0 0.0
    %4054 = vmatmul.mubr.f32.gmra.mxu0 %v3793
    %v4055 = vpop.f32.mrf.mxu0
    %v4056 = vadd.f32 0.0, %v4055
    %v4057 = vpop.f32.mrf.mxu0
    %4058 = vmatprep.mubr.f32.mxu0 0.0
    %4059 = vmatmul.mubr.f32.gmra.mxu0 %v3796
    %v4060 = vpop.f32.mrf.mxu0
    %v4061 = vadd.f32 0.0, %v4060
    %v4062 = vpop.f32.mrf.mxu0
    %4063 = vmatprep.mubr.f32.mxu0 0.0
    %4064 = vmatmul.mubr.f32.gmra.mxu0 %v3799
    %v4065 = vpop.f32.mrf.mxu0
    %v4066 = vadd.f32 0.0, %v4065
    %v4067 = vpop.f32.mrf.mxu0
    %4068 = vmatprep.mubr.f32.mxu0 0.0
    %4069 = vmatmul.mubr.f32.gmra.mxu0 %v3802
    %v4070 = vpop.f32.mrf.mxu0
    %v4071 = vadd.f32 0.0, %v4070
    %v4072 = vpop.f32.mrf.mxu0
    %4073 = vmatprep.mubr.f32.mxu0 0.0
    %4074 = vmatmul.mubr.f32.gmra.mxu0 %v3805
    %v4075 = vpop.f32.mrf.mxu0
    %v4076 = vadd.f32 0.0, %v4075
    %v4077 = vpop.f32.mrf.mxu0
    %4078 = vmatprep.mubr.f32.mxu0 0.0
    %4079 = vmatmul.mubr.f32.gmra.mxu0 %v3808
    %v4080 = vpop.f32.mrf.mxu0
    %v4081 = vadd.f32 0.0, %v4080
    %v4082 = vpop.f32.mrf.mxu0
    %4083 = vmatprep.mubr.f32.mxu0 0.0
    %4084 = vmatmul.mubr.f32.gmra.mxu0 %v3811
    %v4085 = vpop.f32.mrf.mxu0
    %v4086 = vadd.f32 0.0, %v4085
    %v4087 = vpop.f32.mrf.mxu0
    %4088 = vmatprep.mubr.f32.mxu0 0.0
    %4089 = vmatmul.mubr.f32.gmra.mxu0 %v3814
    %v4090 = vpop.f32.mrf.mxu0
    %v4091 = vadd.f32 0.0, %v4090
    %v4092 = vpop.f32.mrf.mxu0
    %4093 = vmatprep.mubr.f32.mxu0 0.0
    %4094 = vmatmul.mubr.f32.gmra.mxu0 %v3817
    %v4095 = vpop.f32.mrf.mxu0
    %v4096 = vadd.f32 0.0, %v4095
    %v4097 = vpop.f32.mrf.mxu0
    %4098 = vmatprep.mubr.f32.mxu0 0.0
    %4099 = vmatmul.mubr.f32.gmra.mxu0 %v3820
    %v4100 = vpop.f32.mrf.mxu0
    %v4101 = vadd.f32 0.0, %v4100
    %v4102 = vpop.f32.mrf.mxu0
    %4103 = vmatprep.mubr.f32.mxu0 0.0
    %4104 = vmatmul.mubr.f32.gmra.mxu0 %v3823
    %v4105 = vpop.f32.mrf.mxu0
    %v4106 = vadd.f32 0.0, %v4105
    %v4107 = vpop.f32.mrf.mxu0
    %4108 = vmatprep.mubr.f32.mxu0 0.0
    %4109 = vmatmul.mubr.f32.gmra.mxu0 %v3826
    %v4110 = vpop.f32.mrf.mxu0
    %v4111 = vadd.f32 0.0, %v4110
    %v4112 = vpop.f32.mrf.mxu0
    %4113 = vmatprep.mubr.f32.mxu0 0.0
    %4114 = vmatmul.mubr.f32.gmra.mxu0 %v3829
    %v4115 = vpop.f32.mrf.mxu0
    %v4116 = vadd.f32 0.0, %v4115
    %v4117 = vpop.f32.mrf.mxu0
    %4118 = vmatprep.mubr.f32.mxu0 0.0
    %4119 = vmatmul.mubr.f32.gmra.mxu0 %v3832
    %v4120 = vpop.f32.mrf.mxu0
    %v4121 = vadd.f32 0.0, %v4120
    %v4122 = vpop.f32.mrf.mxu0
    %4123 = vmatprep.mubr.f32.mxu0 0.0
    %4124 = vmatmul.mubr.f32.gmra.mxu0 %v3835
    %v4125 = vpop.f32.mrf.mxu0
    %v4126 = vadd.f32 0.0, %v4125
    %v4127 = vpop.f32.mrf.mxu0
    %4128 = vmatprep.mubr.f32.mxu0 0.0
    %4129 = vmatmul.mubr.f32.gmra.mxu0 %v3838
    %v4130 = vpop.f32.mrf.mxu0
    %v4131 = vadd.f32 0.0, %v4130
    %v4132 = vpop.f32.mrf.mxu0
    %4133 = vmatprep.mubr.f32.mxu0 0.0
    %4134 = vmatmul.mubr.f32.gmra.mxu0 %v3841
    %v4135 = vpop.f32.mrf.mxu0
    %v4136 = vadd.f32 0.0, %v4135
    %v4137 = vpop.f32.mrf.mxu0
    %4138 = vmatprep.mubr.f32.mxu0 0.0
    %4139 = vmatmul.mubr.f32.gmra.mxu0 %v3844
    %v4140 = vpop.f32.mrf.mxu0
    %v4141 = vadd.f32 0.0, %v4140
    %v4142 = vpop.f32.mrf.mxu0
    %4143 = vmatprep.mubr.f32.mxu0 0.0
    %4144 = vmatmul.mubr.f32.gmra.mxu0 %v3847
    %v4145 = vpop.f32.mrf.mxu0
    %v4146 = vadd.f32 0.0, %v4145
    %v4147 = vpop.f32.mrf.mxu0
    %4148 = vmatprep.mubr.f32.mxu0 0.0
    %4149 = vmatmul.mubr.f32.gmra.mxu0 %v3850
    %v4150 = vpop.f32.mrf.mxu0
    %v4151 = vadd.f32 0.0, %v4150
    %v4152 = vpop.f32.mrf.mxu0
    %4153 = vmatprep.mubr.f32.mxu0 0.0
    %4154 = vmatmul.mubr.f32.gmra.mxu0 %v3853
    %v4155 = vpop.f32.mrf.mxu0
    %v4156 = vadd.f32 0.0, %v4155
    %v4157 = vpop.f32.mrf.mxu0
    %4158 = vmatprep.mubr.f32.mxu0 0.0
    %4159 = vmatmul.mubr.f32.gmra.mxu0 %v3856
    %v4160 = vpop.f32.mrf.mxu0
    %v4161 = vadd.f32 0.0, %v4160
    %v4162 = vpop.f32.mrf.mxu0
    %4163 = vmatprep.mubr.f32.mxu0 0.0
    %4164 = vmatmul.mubr.f32.gmra.mxu0 %v3859
    %v4165 = vpop.f32.mrf.mxu0
    %v4166 = vadd.f32 0.0, %v4165
    %v4167 = vpop.f32.mrf.mxu0
    %4168 = vmatprep.mubr.f32.mxu0 0.0
    %4169 = vmatmul.mubr.f32.gmra.mxu0 %v3862
    %v4170 = vpop.f32.mrf.mxu0
    %v4171 = vadd.f32 0.0, %v4170
    %v4172 = vpop.f32.mrf.mxu0
    %4173 = vmatprep.mubr.f32.mxu0 0.0
    %4174 = vmatmul.mubr.f32.gmra.mxu0 %v3865
    %v4175 = vpop.f32.mrf.mxu0
    %v4176 = vadd.f32 0.0, %v4175
    %v4177 = vpop.f32.mrf.mxu0
    %4178 = vmatprep.mubr.f32.mxu0 0.0
    %4179 = vmatmul.mubr.f32.gmra.mxu0 %v3868
    %v4180 = vpop.f32.mrf.mxu0
    %v4181 = vadd.f32 0.0, %v4180
    %v4182 = vpop.f32.mrf.mxu0
    %4183 = vmatprep.mubr.f32.mxu0 0.0
    %4184 = vmatmul.mubr.f32.gmra.mxu0 %v3871
    %v4185 = vpop.f32.mrf.mxu0
    %v4186 = vadd.f32 0.0, %v4185
    %v4187 = vpop.f32.mrf.mxu0
    %4188 = vmatprep.mubr.f32.mxu0 0.0
    %4189 = vmatmul.mubr.f32.gmra.mxu0 %v3874
    %v4190 = vpop.f32.mrf.mxu0
    %v4191 = vadd.f32 0.0, %v4190
    %v4192 = vpop.f32.mrf.mxu0
    %4193 = vmatprep.mubr.f32.mxu0 0.0
    %4194 = vmatmul.mubr.f32.gmra.mxu0 %v3877
    %v4195 = vpop.f32.mrf.mxu0
    %v4196 = vadd.f32 0.0, %v4195
    %v4197 = vpop.f32.mrf.mxu0
    %4198 = vmatprep.mubr.f32.mxu0 0.0
    %4199 = vmatmul.mubr.f32.gmra.mxu0 %v3880
    %v4200 = vpop.f32.mrf.mxu0
    %v4201 = vadd.f32 0.0, %v4200
    %v4202 = vpop.f32.mrf.mxu0
    %4203 = vmatprep.mubr.f32.mxu0 0.0
    %4204 = vmatmul.mubr.f32.gmra.mxu0 %v3883
    %v4205 = vpop.f32.mrf.mxu0
    %v4206 = vadd.f32 0.0, %v4205
    %v4207 = vpop.f32.mrf.mxu0
    %4208 = vmatprep.mubr.f32.mxu0 0.0
    %4209 = vmatmul.mubr.f32.gmra.mxu0 %v3886
    %v4210 = vpop.f32.mrf.mxu0
    %v4211 = vadd.f32 0.0, %v4210
    %v4212 = vpop.f32.mrf.mxu0
    %4213 = vmatprep.mubr.f32.mxu0 0.0
    %4214 = vmatmul.mubr.f32.gmra.mxu0 %v3889
    %v4215 = vpop.f32.mrf.mxu0
    %v4216 = vadd.f32 0.0, %v4215
    %v4217 = vpop.f32.mrf.mxu0
    %4218 = vmatprep.mubr.f32.mxu0 0.0
    %4219 = vmatmul.mubr.f32.gmra.mxu0 %v3892
    %v4220 = vpop.f32.mrf.mxu0
    %v4221 = vadd.f32 0.0, %v4220
    %v4222 = vpop.f32.mrf.mxu0
    %4223 = vmatprep.mubr.f32.mxu0 0.0
    %4224 = vmatmul.mubr.f32.gmra.mxu0 %v3895
    %v4225 = vpop.f32.mrf.mxu0
    %v4226 = vadd.f32 0.0, %v4225
    %v4227 = vpop.f32.mrf.mxu0
    %4228 = vmatprep.mubr.f32.mxu0 0.0
    %4229 = vmatmul.mubr.f32.gmra.mxu0 %v3898
    %v4230 = vpop.f32.mrf.mxu0
    %v4231 = vadd.f32 0.0, %v4230
    %v4232 = vpop.f32.mrf.mxu0
    %4233 = vmatprep.mubr.f32.mxu0 0.0
    %4234 = vmatmul.mubr.f32.gmra.mxu0 %v3901
    %v4235 = vpop.f32.mrf.mxu0
    %v4236 = vadd.f32 0.0, %v4235
    %v4237 = vpop.f32.mrf.mxu0
    %4238 = vmatprep.mubr.f32.mxu0 0.0
    %4239 = vmatmul.mubr.f32.gmra.mxu0 %v3904
    %v4240 = vpop.f32.mrf.mxu0
    %v4241 = vadd.f32 0.0, %v4240
    %v4242 = vpop.f32.mrf.mxu0
    %4243 = vmatprep.mubr.f32.mxu0 0.0
    %4244 = vmatmul.mubr.f32.gmra.mxu0 %v3907
    %v4245 = vpop.f32.mrf.mxu0
    %v4246 = vadd.f32 0.0, %v4245
    %v4247 = vpop.f32.mrf.mxu0
    %4248 = vmatprep.mubr.f32.mxu0 0.0
    %4249 = vmatmul.mubr.f32.gmra.mxu0 %v3910
    %v4250 = vpop.f32.mrf.mxu0
    %v4251 = vadd.f32 0.0, %v4250
    %v4252 = vpop.f32.mrf.mxu0
    %4253 = vmatprep.mubr.f32.mxu0 0.0
    %4254 = vmatmul.mubr.f32.gmra.mxu0 %v3913
    %v4255 = vpop.f32.mrf.mxu0
    %v4256 = vadd.f32 0.0, %v4255
    %v4257 = vpop.f32.mrf.mxu0
    %4258 = vmatprep.mubr.f32.mxu0 0.0
    %4259 = vmatmul.mubr.f32.gmra.mxu0 %v3916
    %v4260 = vpop.f32.mrf.mxu0
    %v4261 = vadd.f32 0.0, %v4260
    %v4262 = vpop.f32.mrf.mxu0
    %4263 = vmatprep.mubr.f32.mxu0 0.0
    %4264 = vmatmul.mubr.f32.gmra.mxu0 %v3919
    %v4265 = vpop.f32.mrf.mxu0
    %v4266 = vadd.f32 0.0, %v4265
    %v4267 = vpop.f32.mrf.mxu0
    %4268 = vmatprep.mubr.f32.mxu0 0.0
    %4269 = vmatmul.mubr.f32.gmra.mxu0 %v3922
    %v4270 = vpop.f32.mrf.mxu0
    %v4271 = vadd.f32 0.0, %v4270
    %v4272 = vpop.f32.mrf.mxu0
    %4273 = vmatprep.mubr.f32.mxu0 0.0
    %4274 = vmatmul.mubr.f32.gmra.mxu0 %v3925
    %v4275 = vpop.f32.mrf.mxu0
    %v4276 = vadd.f32 0.0, %v4275
    %v4277 = vpop.f32.mrf.mxu0
    %4278 = vmatprep.mubr.f32.mxu0 0.0
    %4279 = vmatmul.mubr.f32.gmra.mxu0 %v3928
    %v4280 = vpop.f32.mrf.mxu0
    %v4281 = vadd.f32 0.0, %v4280
    %v4282 = vpop.f32.mrf.mxu0
    %4283 = vmatprep.mubr.f32.mxu0 0.0
    %4284 = vmatmul.mubr.f32.gmra.mxu0 %v3931
    %v4285 = vpop.f32.mrf.mxu0
    %v4286 = vadd.f32 0.0, %v4285
    %v4287 = vpop.f32.mrf.mxu0
    %4288 = vmatprep.mubr.f32.mxu0 0.0
    %4289 = vmatmul.mubr.f32.gmra.mxu0 %v3934
    %v4290 = vpop.f32.mrf.mxu0
    %v4291 = vadd.f32 0.0, %v4290
    %v4292 = vpop.f32.mrf.mxu0
    %4293 = vmatprep.mubr.f32.mxu0 0.0
    %4294 = vmatmul.mubr.f32.gmra.mxu0 %v3937
    %v4295 = vpop.f32.mrf.mxu0
    %v4296 = vadd.f32 0.0, %v4295
    %v4297 = vpop.f32.mrf.mxu0
    %4298 = vmatprep.mubr.f32.mxu0 0.0
    %4299 = vmatmul.mubr.f32.gmra.mxu0 %v3940
    %v4300 = vpop.f32.mrf.mxu0
    %v4301 = vadd.f32 0.0, %v4300
    %v4302 = vpop.f32.mrf.mxu0
    %4303 = vmatprep.mubr.f32.mxu0 0.0
    %4304 = vmatmul.mubr.f32.gmra.mxu0 %v3943
    %v4305 = vpop.f32.mrf.mxu0
    %v4306 = vadd.f32 0.0, %v4305
    %v4307 = vpop.f32.mrf.mxu0
    %4308 = vmatprep.mubr.f32.mxu0 0.0
    %4309 = vmatmul.mubr.f32.gmra.mxu0 %v3946
    %v4310 = vpop.f32.mrf.mxu0
    %v4311 = vadd.f32 0.0, %v4310
    %v4312 = vpop.f32.mrf.mxu0
    %4313 = vmatprep.mubr.f32.mxu0 0.0
    %4314 = vmatmul.mubr.f32.gmra.mxu0 %v3949
    %v4315 = vpop.f32.mrf.mxu0
    %v4316 = vadd.f32 0.0, %v4315
    %v4317 = vpop.f32.mrf.mxu0
    %4318 = vmatprep.mubr.f32.mxu0 0.0
    %4319 = vmatmul.mubr.f32.gmra.mxu0 %v3952
    %v4320 = vpop.f32.mrf.mxu0
    %v4321 = vadd.f32 0.0, %v4320
    %v4322 = vpop.f32.mrf.mxu0
    %4323 = vmatprep.mubr.f32.mxu0 0.0
    %4324 = vmatmul.mubr.f32.gmra.mxu0 %v3955
    %v4325 = vpop.f32.mrf.mxu0
    %v4326 = vadd.f32 0.0, %v4325
    %v4327 = vpop.f32.mrf.mxu0
    %4328 = vmatprep.mubr.f32.mxu0 0.0
    %4329 = vmatmul.mubr.f32.gmra.mxu0 %v3958
    %v4330 = vpop.f32.mrf.mxu0
    %v4331 = vadd.f32 0.0, %v4330
    %v4332 = vpop.f32.mrf.mxu0
    %4333 = vmatprep.mubr.f32.mxu0 0.0
    %4334 = vmatmul.mubr.f32.gmra.mxu0 %v3961
    %v4335 = vpop.f32.mrf.mxu0
    %v4336 = vadd.f32 0.0, %v4335
    %v4337 = vpop.f32.mrf.mxu0
    %4338 = vmatprep.mubr.f32.mxu0 0.0
    %4339 = vmatmul.mubr.f32.gmra.mxu0 %v3964
    %v4340 = vpop.f32.mrf.mxu0
    %v4341 = vadd.f32 0.0, %v4340
    %v4342 = vpop.f32.mrf.mxu0
    %4343 = vmatprep.mubr.f32.mxu0 0.0
    %4344 = vmatmul.mubr.f32.gmra.mxu0 %v3967
    %v4345 = vpop.f32.mrf.mxu0
    %v4346 = vadd.f32 0.0, %v4345
    %v4347 = vpop.f32.mrf.mxu0
    %4348 = vmatprep.mubr.f32.mxu0 0.0
    %4349 = vmatmul.mubr.f32.gmra.mxu0 %v3970
    %v4350 = vpop.f32.mrf.mxu0
    %v4351 = vadd.f32 0.0, %v4350
    %v4352 = vpop.f32.mrf.mxu0
    %4353 = vmatprep.mubr.f32.mxu0 0.0
    %4354 = vmatmul.mubr.f32.gmra.mxu0 %v3973
    %v4355 = vpop.f32.mrf.mxu0
    %v4356 = vadd.f32 0.0, %v4355
    %v4357 = vpop.f32.mrf.mxu0
    %4358 = vmatprep.mubr.f32.mxu0 0.0
    %4359 = vmatmul.mubr.f32.gmra.mxu0 %v3976
    %v4360 = vpop.f32.mrf.mxu0
    %v4361 = vadd.f32 0.0, %v4360
    %v4362 = vpop.f32.mrf.mxu0
    %4363 = vmatprep.mubr.f32.mxu0 0.0
    %4364 = vmatmul.mubr.f32.gmra.mxu0 %v3979
    %v4365 = vpop.f32.mrf.mxu0
    %v4366 = vadd.f32 0.0, %v4365
    %v4367 = vpop.f32.mrf.mxu0
    %4368 = vdwg.mxu0
    %v4369 = vadd.f32 %v3659, %v4051
    %v4370 = vadd.f32 %v3660, %v4056
    %v4371 = vadd.f32 %v3661, %v4061
    %v4372 = vadd.f32 %v3662, %v4066
    %v4373 = vadd.f32 %v3663, %v4071
    %v4374 = vadd.f32 %v3664, %v4076
    %v4375 = vadd.f32 %v3665, %v4081
    %v4376 = vadd.f32 %v3666, %v4086
    %v4377 = vadd.f32 %v3667, %v4091
    %v4378 = vadd.f32 %v3668, %v4096
    %v4379 = vadd.f32 %v3669, %v4101
    %v4380 = vadd.f32 %v3670, %v4106
    %v4381 = vadd.f32 %v3671, %v4111
    %v4382 = vadd.f32 %v3672, %v4116
    %v4383 = vadd.f32 %v3673, %v4121
    %v4384 = vadd.f32 %v3674, %v4126
    %v4385 = vadd.f32 %v3675, %v4131
    %v4386 = vadd.f32 %v3676, %v4136
    %v4387 = vadd.f32 %v3677, %v4141
    %v4388 = vadd.f32 %v3678, %v4146
    %v4389 = vadd.f32 %v3679, %v4151
    %v4390 = vadd.f32 %v3680, %v4156
    %v4391 = vadd.f32 %v3681, %v4161
    %v4392 = vadd.f32 %v3682, %v4166
    %v4393 = vadd.f32 %v3683, %v4171
    %v4394 = vadd.f32 %v3684, %v4176
    %v4395 = vadd.f32 %v3685, %v4181
    %v4396 = vadd.f32 %v3686, %v4186
    %v4397 = vadd.f32 %v3687, %v4191
    %v4398 = vadd.f32 %v3688, %v4196
    %v4399 = vadd.f32 %v3689, %v4201
    %v4400 = vadd.f32 %v3690, %v4206
    %v4401 = vadd.f32 %v3691, %v4211
    %v4402 = vadd.f32 %v3692, %v4216
    %v4403 = vadd.f32 %v3693, %v4221
    %v4404 = vadd.f32 %v3694, %v4226
    %v4405 = vadd.f32 %v3695, %v4231
    %v4406 = vadd.f32 %v3696, %v4236
    %v4407 = vadd.f32 %v3697, %v4241
    %v4408 = vadd.f32 %v3698, %v4246
    %v4409 = vadd.f32 %v3699, %v4251
    %v4410 = vadd.f32 %v3700, %v4256
    %v4411 = vadd.f32 %v3701, %v4261
    %v4412 = vadd.f32 %v3702, %v4266
    %v4413 = vadd.f32 %v3703, %v4271
    %v4414 = vadd.f32 %v3704, %v4276
    %v4415 = vadd.f32 %v3705, %v4281
    %v4416 = vadd.f32 %v3706, %v4286
    %v4417 = vadd.f32 %v3707, %v4291
    %v4418 = vadd.f32 %v3708, %v4296
    %v4419 = vadd.f32 %v3709, %v4301
    %v4420 = vadd.f32 %v3710, %v4306
    %v4421 = vadd.f32 %v3711, %v4311
    %v4422 = vadd.f32 %v3712, %v4316
    %v4423 = vadd.f32 %v3713, %v4321
    %v4424 = vadd.f32 %v3714, %v4326
    %v4425 = vadd.f32 %v3715, %v4331
    %v4426 = vadd.f32 %v3716, %v4336
    %v4427 = vadd.f32 %v3717, %v4341
    %v4428 = vadd.f32 %v3718, %v4346
    %v4429 = vadd.f32 %v3719, %v4351
    %v4430 = vadd.f32 %v3720, %v4356
    %v4431 = vadd.f32 %v3721, %v4361
    %v4432 = vadd.f32 %v3722, %v4366
    %s4433 = scalar_lea.vmem [#allocation2], 64
    %v4434 = vld [vmem:[%s4433 + $0x7] sm:$0xff]
    %v4435 = vld [vmem:[%s4433 + $0xf] sm:$0xff]
    %v4436 = vld [vmem:[%s4433 + $0x27] sm:$0xff]
    %v4437 = vld [vmem:[%s4433 + $0x2f] sm:$0xff]
    %v4438 = vld [vmem:[%s4433 + $0x47] sm:$0xff]
    %v4439 = vld [vmem:[%s4433 + $0x4f] sm:$0xff]
    %v4440 = vld [vmem:[%s4433 + $0x67] sm:$0xff]
    %v4441 = vld [vmem:[%s4433 + $0x6f] sm:$0xff]
    %v4442 = vld [vmem:[%s4433 + $0x87] sm:$0xff]
    %v4443 = vld [vmem:[%s4433 + $0x8f] sm:$0xff]
    %v4444 = vld [vmem:[%s4433 + $0xa7] sm:$0xff]
    %v4445 = vld [vmem:[%s4433 + $0xaf] sm:$0xff]
    %v4446 = vld [vmem:[%s4433 + $0xc7] sm:$0xff]
    %v4447 = vld [vmem:[%s4433 + $0xcf] sm:$0xff]
    %v4448 = vld [vmem:[%s4433 + $0xe7] sm:$0xff]
    %v4449 = vld [vmem:[%s4433 + $0xef] sm:$0xff]
    %v4450 = vld [vmem:[%s4433 + $0x107] sm:$0xff]
    %v4451 = vld [vmem:[%s4433 + $0x10f] sm:$0xff]
    %v4452 = vld [vmem:[%s4433 + $0x127] sm:$0xff]
    %v4453 = vld [vmem:[%s4433 + $0x12f] sm:$0xff]
    %v4454 = vld [vmem:[%s4433 + $0x147] sm:$0xff]
    %v4455 = vld [vmem:[%s4433 + $0x14f] sm:$0xff]
    %v4456 = vld [vmem:[%s4433 + $0x167] sm:$0xff]
    %v4457 = vld [vmem:[%s4433 + $0x16f] sm:$0xff]
    %v4458 = vld [vmem:[%s4433 + $0x187] sm:$0xff]
    %v4459 = vld [vmem:[%s4433 + $0x18f] sm:$0xff]
    %v4460 = vld [vmem:[%s4433 + $0x1a7] sm:$0xff]
    %v4461 = vld [vmem:[%s4433 + $0x1af] sm:$0xff]
    %v4462 = vld [vmem:[%s4433 + $0x1c7] sm:$0xff]
    %v4463 = vld [vmem:[%s4433 + $0x1cf] sm:$0xff]
    %v4464 = vld [vmem:[%s4433 + $0x1e7] sm:$0xff]
    %v4465 = vld [vmem:[%s4433 + $0x1ef] sm:$0xff]
    %v4466 = vld [vmem:[%s4433 + $0x247] sm:$0xff]
    %v4467 = vld [vmem:[%s4433 + $0x24f] sm:$0xff]
    %v4468 = vld [vmem:[%s4433 + $0x267] sm:$0xff]
    %v4469 = vld [vmem:[%s4433 + $0x26f] sm:$0xff]
    %v4470 = vld [vmem:[%s4433 + $0x287] sm:$0xff]
    %v4471 = vld [vmem:[%s4433 + $0x28f] sm:$0xff]
    %v4472 = vld [vmem:[%s4433 + $0x2a7] sm:$0xff]
    %v4473 = vld [vmem:[%s4433 + $0x2af] sm:$0xff]
    %v4474 = vld [vmem:[%s4433 + $0x2c7] sm:$0xff]
    %v4475 = vld [vmem:[%s4433 + $0x2cf] sm:$0xff]
    %v4476 = vld [vmem:[%s4433 + $0x2e7] sm:$0xff]
    %v4477 = vld [vmem:[%s4433 + $0x2ef] sm:$0xff]
    %v4478 = vld [vmem:[%s4433 + $0x307] sm:$0xff]
    %v4479 = vld [vmem:[%s4433 + $0x30f] sm:$0xff]
    %v4480 = vld [vmem:[%s4433 + $0x327] sm:$0xff]
    %v4481 = vld [vmem:[%s4433 + $0x32f] sm:$0xff]
    %v4482 = vld [vmem:[%s4433 + $0x347] sm:$0xff]
    %v4483 = vld [vmem:[%s4433 + $0x34f] sm:$0xff]
    %v4484 = vld [vmem:[%s4433 + $0x367] sm:$0xff]
    %v4485 = vld [vmem:[%s4433 + $0x36f] sm:$0xff]
    %v4486 = vld [vmem:[%s4433 + $0x387] sm:$0xff]
    %v4487 = vld [vmem:[%s4433 + $0x38f] sm:$0xff]
    %v4488 = vld [vmem:[%s4433 + $0x3a7] sm:$0xff]
    %v4489 = vld [vmem:[%s4433 + $0x3af] sm:$0xff]
    %v4490 = vld [vmem:[%s4433 + $0x3c7] sm:$0xff]
    %v4491 = vld [vmem:[%s4433 + $0x3cf] sm:$0xff]
    %v4492 = vld [vmem:[%s4433 + $0x3e7] sm:$0xff]
    %v4493 = vld [vmem:[%s4433 + $0x3ef] sm:$0xff]
    %v4494 = vld [vmem:[%s4433 + $0x407] sm:$0xff]
    %v4495 = vld [vmem:[%s4433 + $0x40f] sm:$0xff]
    %v4496 = vld [vmem:[%s4433 + $0x427] sm:$0xff]
    %v4497 = vld [vmem:[%s4433 + $0x42f] sm:$0xff]
    %s4498 = scalar_lea.vmem %s1, 24
    %v4499 = vld [vmem:[%s4498] sm:$0xf]
    %v4501 = vsel %vm27, %v4434, 0
    %v4504 = vsel %vm27, %v4435, 0
    %v4507 = vsel %vm27, %v4436, 0
    %v4510 = vsel %vm27, %v4437, 0
    %v4513 = vsel %vm27, %v4438, 0
    %v4516 = vsel %vm27, %v4439, 0
    %v4519 = vsel %vm27, %v4440, 0
    %v4522 = vsel %vm27, %v4441, 0
    %v4525 = vsel %vm27, %v4442, 0
    %v4528 = vsel %vm27, %v4443, 0
    %v4531 = vsel %vm27, %v4444, 0
    %v4534 = vsel %vm27, %v4445, 0
    %v4537 = vsel %vm27, %v4446, 0
    %v4540 = vsel %vm27, %v4447, 0
    %v4543 = vsel %vm27, %v4448, 0
    %v4546 = vsel %vm27, %v4449, 0
    %v4549 = vsel %vm27, %v4450, 0
    %v4552 = vsel %vm27, %v4451, 0
    %v4555 = vsel %vm27, %v4452, 0
    %v4558 = vsel %vm27, %v4453, 0
    %v4561 = vsel %vm27, %v4454, 0
    %v4564 = vsel %vm27, %v4455, 0
    %v4567 = vsel %vm27, %v4456, 0
    %v4570 = vsel %vm27, %v4457, 0
    %v4573 = vsel %vm27, %v4458, 0
    %v4576 = vsel %vm27, %v4459, 0
    %v4579 = vsel %vm27, %v4460, 0
    %v4582 = vsel %vm27, %v4461, 0
    %v4585 = vsel %vm27, %v4462, 0
    %v4588 = vsel %vm27, %v4463, 0
    %v4591 = vsel %vm27, %v4464, 0
    %v4594 = vsel %vm27, %v4465, 0
    %v4597 = vsel %vm27, %v4466, 0
    %v4600 = vsel %vm27, %v4467, 0
    %v4603 = vsel %vm27, %v4468, 0
    %v4606 = vsel %vm27, %v4469, 0
    %v4609 = vsel %vm27, %v4470, 0
    %v4612 = vsel %vm27, %v4471, 0
    %v4615 = vsel %vm27, %v4472, 0
    %v4618 = vsel %vm27, %v4473, 0
    %v4621 = vsel %vm27, %v4474, 0
    %v4624 = vsel %vm27, %v4475, 0
    %v4627 = vsel %vm27, %v4476, 0
    %v4630 = vsel %vm27, %v4477, 0
    %v4633 = vsel %vm27, %v4478, 0
    %v4636 = vsel %vm27, %v4479, 0
    %v4639 = vsel %vm27, %v4480, 0
    %v4642 = vsel %vm27, %v4481, 0
    %v4645 = vsel %vm27, %v4482, 0
    %v4648 = vsel %vm27, %v4483, 0
    %v4651 = vsel %vm27, %v4484, 0
    %v4654 = vsel %vm27, %v4485, 0
    %v4657 = vsel %vm27, %v4486, 0
    %v4660 = vsel %vm27, %v4487, 0
    %v4663 = vsel %vm27, %v4488, 0
    %v4666 = vsel %vm27, %v4489, 0
    %v4669 = vsel %vm27, %v4490, 0
    %v4672 = vsel %vm27, %v4491, 0
    %v4675 = vsel %vm27, %v4492, 0
    %v4678 = vsel %vm27, %v4493, 0
    %v4681 = vsel %vm27, %v4494, 0
    %v4684 = vsel %vm27, %v4495, 0
    %v4687 = vsel %vm27, %v4496, 0
    %v4690 = vsel %vm27, %v4497, 0
    %v4693 = vsel %vm624, %v4499, 0
    %4695 = vmatprep.subr.mxu0 0.0
    %4696 = vmatpush1.msra.mxu0 0.0
    %4697 = vmatprep.subr.mxu0 0.0
    %4698 = vmatpush1.msra.mxu0 0.0
    %4699 = vmatprep.subr.mxu0 0.0
    %4700 = vmatpush1.msra.mxu0 0.0
    %4701 = vmatprep.subr.mxu0 0.0
    %4702 = vmatpush1.msra.mxu0 0.0
    %4703 = vmatprep.subr.mxu0 0.0
    %4704 = vmatpush1.msra.mxu0 0.0
    %4705 = vmatprep.subr.mxu0 0.0
    %4706 = vmatpush1.msra.mxu0 0.0
    %4707 = vmatprep.subr.mxu0 0.0
    %4708 = vmatpush1.msra.mxu0 0.0
    %4709 = vmatprep.subr.mxu0 0.0
    %4710 = vmatpush1.msra.mxu0 0.0
    %4711 = vmatprep.subr.mxu0 0.0
    %4712 = vmatpush1.msra.mxu0 0.0
    %4713 = vmatprep.subr.mxu0 0.0
    %4714 = vmatpush1.msra.mxu0 0.0
    %4715 = vmatprep.subr.mxu0 0.0
    %4716 = vmatpush1.msra.mxu0 0.0
    %4717 = vmatprep.subr.mxu0 0.0
    %4718 = vmatpush1.msra.mxu0 0.0
    %4719 = vmatprep.subr.mxu0 0.0
    %4720 = vmatpush1.msra.mxu0 0.0
    %4721 = vmatprep.subr.mxu0 0.0
    %4722 = vmatpush1.msra.mxu0 0.0
    %4723 = vmatprep.subr.mxu0 0.0
    %4724 = vmatpush1.msra.mxu0 0.0
    %4725 = vmatprep.subr.mxu0 0.0
    %4726 = vmatpush1.msra.mxu0 %v4693
    %4727 = vmatprep.subr.mxu0 0.0
    %4728 = vmatpush2.msra.mxu0 0.0
    %4729 = vmatprep.subr.mxu0 0.0
    %4730 = vmatpush2.msra.mxu0 0.0
    %4731 = vmatprep.subr.mxu0 0.0
    %4732 = vmatpush2.msra.mxu0 0.0
    %4733 = vmatprep.subr.mxu0 0.0
    %4734 = vmatpush2.msra.mxu0 0.0
    %4735 = vmatprep.subr.mxu0 0.0
    %4736 = vmatpush2.msra.mxu0 0.0
    %4737 = vmatprep.subr.mxu0 0.0
    %4738 = vmatpush2.msra.mxu0 0.0
    %4739 = vmatprep.subr.mxu0 0.0
    %4740 = vmatpush2.msra.mxu0 0.0
    %4741 = vmatprep.subr.mxu0 0.0
    %4742 = vmatpush2.msra.mxu0 0.0
    %4743 = vmatprep.subr.mxu0 0.0
    %4744 = vmatpush2.msra.mxu0 0.0
    %4745 = vmatprep.subr.mxu0 0.0
    %4746 = vmatpush2.msra.mxu0 0.0
    %4747 = vmatprep.subr.mxu0 0.0
    %4748 = vmatpush2.msra.mxu0 0.0
    %4749 = vmatprep.subr.mxu0 0.0
    %4750 = vmatpush2.msra.mxu0 0.0
    %4751 = vmatprep.subr.mxu0 0.0
    %4752 = vmatpush2.msra.mxu0 0.0
    %4753 = vmatprep.subr.mxu0 0.0
    %4754 = vmatpush2.msra.mxu0 0.0
    %4755 = vmatprep.subr.mxu0 0.0
    %4756 = vmatpush2.msra.mxu0 0.0
    %4757 = vmatprep.subr.mxu0 0.0
    %4758 = vmatpush2.msra.mxu0 0.0
    %4759 = vmatprep.mubr.f32.mxu0 0.0
    %4760 = vmatmul.mubr.f32.gmra.mxu0 %v4501
    %v4761 = vpop.f32.mrf.mxu0
    %v4762 = vadd.f32 0.0, %v4761
    %v4763 = vpop.f32.mrf.mxu0
    %4764 = vmatprep.mubr.f32.mxu0 0.0
    %4765 = vmatmul.mubr.f32.gmra.mxu0 %v4504
    %v4766 = vpop.f32.mrf.mxu0
    %v4767 = vadd.f32 0.0, %v4766
    %v4768 = vpop.f32.mrf.mxu0
    %4769 = vmatprep.mubr.f32.mxu0 0.0
    %4770 = vmatmul.mubr.f32.gmra.mxu0 %v4507
    %v4771 = vpop.f32.mrf.mxu0
    %v4772 = vadd.f32 0.0, %v4771
    %v4773 = vpop.f32.mrf.mxu0
    %4774 = vmatprep.mubr.f32.mxu0 0.0
    %4775 = vmatmul.mubr.f32.gmra.mxu0 %v4510
    %v4776 = vpop.f32.mrf.mxu0
    %v4777 = vadd.f32 0.0, %v4776
    %v4778 = vpop.f32.mrf.mxu0
    %4779 = vmatprep.mubr.f32.mxu0 0.0
    %4780 = vmatmul.mubr.f32.gmra.mxu0 %v4513
    %v4781 = vpop.f32.mrf.mxu0
    %v4782 = vadd.f32 0.0, %v4781
    %v4783 = vpop.f32.mrf.mxu0
    %4784 = vmatprep.mubr.f32.mxu0 0.0
    %4785 = vmatmul.mubr.f32.gmra.mxu0 %v4516
    %v4786 = vpop.f32.mrf.mxu0
    %v4787 = vadd.f32 0.0, %v4786
    %v4788 = vpop.f32.mrf.mxu0
    %4789 = vmatprep.mubr.f32.mxu0 0.0
    %4790 = vmatmul.mubr.f32.gmra.mxu0 %v4519
    %v4791 = vpop.f32.mrf.mxu0
    %v4792 = vadd.f32 0.0, %v4791
    %v4793 = vpop.f32.mrf.mxu0
    %4794 = vmatprep.mubr.f32.mxu0 0.0
    %4795 = vmatmul.mubr.f32.gmra.mxu0 %v4522
    %v4796 = vpop.f32.mrf.mxu0
    %v4797 = vadd.f32 0.0, %v4796
    %v4798 = vpop.f32.mrf.mxu0
    %4799 = vmatprep.mubr.f32.mxu0 0.0
    %4800 = vmatmul.mubr.f32.gmra.mxu0 %v4525
    %v4801 = vpop.f32.mrf.mxu0
    %v4802 = vadd.f32 0.0, %v4801
    %v4803 = vpop.f32.mrf.mxu0
    %4804 = vmatprep.mubr.f32.mxu0 0.0
    %4805 = vmatmul.mubr.f32.gmra.mxu0 %v4528
    %v4806 = vpop.f32.mrf.mxu0
    %v4807 = vadd.f32 0.0, %v4806
    %v4808 = vpop.f32.mrf.mxu0
    %4809 = vmatprep.mubr.f32.mxu0 0.0
    %4810 = vmatmul.mubr.f32.gmra.mxu0 %v4531
    %v4811 = vpop.f32.mrf.mxu0
    %v4812 = vadd.f32 0.0, %v4811
    %v4813 = vpop.f32.mrf.mxu0
    %4814 = vmatprep.mubr.f32.mxu0 0.0
    %4815 = vmatmul.mubr.f32.gmra.mxu0 %v4534
    %v4816 = vpop.f32.mrf.mxu0
    %v4817 = vadd.f32 0.0, %v4816
    %v4818 = vpop.f32.mrf.mxu0
    %4819 = vmatprep.mubr.f32.mxu0 0.0
    %4820 = vmatmul.mubr.f32.gmra.mxu0 %v4537
    %v4821 = vpop.f32.mrf.mxu0
    %v4822 = vadd.f32 0.0, %v4821
    %v4823 = vpop.f32.mrf.mxu0
    %4824 = vmatprep.mubr.f32.mxu0 0.0
    %4825 = vmatmul.mubr.f32.gmra.mxu0 %v4540
    %v4826 = vpop.f32.mrf.mxu0
    %v4827 = vadd.f32 0.0, %v4826
    %v4828 = vpop.f32.mrf.mxu0
    %4829 = vmatprep.mubr.f32.mxu0 0.0
    %4830 = vmatmul.mubr.f32.gmra.mxu0 %v4543
    %v4831 = vpop.f32.mrf.mxu0
    %v4832 = vadd.f32 0.0, %v4831
    %v4833 = vpop.f32.mrf.mxu0
    %4834 = vmatprep.mubr.f32.mxu0 0.0
    %4835 = vmatmul.mubr.f32.gmra.mxu0 %v4546
    %v4836 = vpop.f32.mrf.mxu0
    %v4837 = vadd.f32 0.0, %v4836
    %v4838 = vpop.f32.mrf.mxu0
    %4839 = vmatprep.mubr.f32.mxu0 0.0
    %4840 = vmatmul.mubr.f32.gmra.mxu0 %v4549
    %v4841 = vpop.f32.mrf.mxu0
    %v4842 = vadd.f32 0.0, %v4841
    %v4843 = vpop.f32.mrf.mxu0
    %4844 = vmatprep.mubr.f32.mxu0 0.0
    %4845 = vmatmul.mubr.f32.gmra.mxu0 %v4552
    %v4846 = vpop.f32.mrf.mxu0
    %v4847 = vadd.f32 0.0, %v4846
    %v4848 = vpop.f32.mrf.mxu0
    %4849 = vmatprep.mubr.f32.mxu0 0.0
    %4850 = vmatmul.mubr.f32.gmra.mxu0 %v4555
    %v4851 = vpop.f32.mrf.mxu0
    %v4852 = vadd.f32 0.0, %v4851
    %v4853 = vpop.f32.mrf.mxu0
    %4854 = vmatprep.mubr.f32.mxu0 0.0
    %4855 = vmatmul.mubr.f32.gmra.mxu0 %v4558
    %v4856 = vpop.f32.mrf.mxu0
    %v4857 = vadd.f32 0.0, %v4856
    %v4858 = vpop.f32.mrf.mxu0
    %4859 = vmatprep.mubr.f32.mxu0 0.0
    %4860 = vmatmul.mubr.f32.gmra.mxu0 %v4561
    %v4861 = vpop.f32.mrf.mxu0
    %v4862 = vadd.f32 0.0, %v4861
    %v4863 = vpop.f32.mrf.mxu0
    %4864 = vmatprep.mubr.f32.mxu0 0.0
    %4865 = vmatmul.mubr.f32.gmra.mxu0 %v4564
    %v4866 = vpop.f32.mrf.mxu0
    %v4867 = vadd.f32 0.0, %v4866
    %v4868 = vpop.f32.mrf.mxu0
    %4869 = vmatprep.mubr.f32.mxu0 0.0
    %4870 = vmatmul.mubr.f32.gmra.mxu0 %v4567
    %v4871 = vpop.f32.mrf.mxu0
    %v4872 = vadd.f32 0.0, %v4871
    %v4873 = vpop.f32.mrf.mxu0
    %4874 = vmatprep.mubr.f32.mxu0 0.0
    %4875 = vmatmul.mubr.f32.gmra.mxu0 %v4570
    %v4876 = vpop.f32.mrf.mxu0
    %v4877 = vadd.f32 0.0, %v4876
    %v4878 = vpop.f32.mrf.mxu0
    %4879 = vmatprep.mubr.f32.mxu0 0.0
    %4880 = vmatmul.mubr.f32.gmra.mxu0 %v4573
    %v4881 = vpop.f32.mrf.mxu0
    %v4882 = vadd.f32 0.0, %v4881
    %v4883 = vpop.f32.mrf.mxu0
    %4884 = vmatprep.mubr.f32.mxu0 0.0
    %4885 = vmatmul.mubr.f32.gmra.mxu0 %v4576
    %v4886 = vpop.f32.mrf.mxu0
    %v4887 = vadd.f32 0.0, %v4886
    %v4888 = vpop.f32.mrf.mxu0
    %4889 = vmatprep.mubr.f32.mxu0 0.0
    %4890 = vmatmul.mubr.f32.gmra.mxu0 %v4579
    %v4891 = vpop.f32.mrf.mxu0
    %v4892 = vadd.f32 0.0, %v4891
    %v4893 = vpop.f32.mrf.mxu0
    %4894 = vmatprep.mubr.f32.mxu0 0.0
    %4895 = vmatmul.mubr.f32.gmra.mxu0 %v4582
    %v4896 = vpop.f32.mrf.mxu0
    %v4897 = vadd.f32 0.0, %v4896
    %v4898 = vpop.f32.mrf.mxu0
    %4899 = vmatprep.mubr.f32.mxu0 0.0
    %4900 = vmatmul.mubr.f32.gmra.mxu0 %v4585
    %v4901 = vpop.f32.mrf.mxu0
    %v4902 = vadd.f32 0.0, %v4901
    %v4903 = vpop.f32.mrf.mxu0
    %4904 = vmatprep.mubr.f32.mxu0 0.0
    %4905 = vmatmul.mubr.f32.gmra.mxu0 %v4588
    %v4906 = vpop.f32.mrf.mxu0
    %v4907 = vadd.f32 0.0, %v4906
    %v4908 = vpop.f32.mrf.mxu0
    %4909 = vmatprep.mubr.f32.mxu0 0.0
    %4910 = vmatmul.mubr.f32.gmra.mxu0 %v4591
    %v4911 = vpop.f32.mrf.mxu0
    %v4912 = vadd.f32 0.0, %v4911
    %v4913 = vpop.f32.mrf.mxu0
    %4914 = vmatprep.mubr.f32.mxu0 0.0
    %4915 = vmatmul.mubr.f32.gmra.mxu0 %v4594
    %v4916 = vpop.f32.mrf.mxu0
    %v4917 = vadd.f32 0.0, %v4916
    %v4918 = vpop.f32.mrf.mxu0
    %4919 = vmatprep.mubr.f32.mxu0 0.0
    %4920 = vmatmul.mubr.f32.gmra.mxu0 %v4597
    %v4921 = vpop.f32.mrf.mxu0
    %v4922 = vadd.f32 0.0, %v4921
    %v4923 = vpop.f32.mrf.mxu0
    %4924 = vmatprep.mubr.f32.mxu0 0.0
    %4925 = vmatmul.mubr.f32.gmra.mxu0 %v4600
    %v4926 = vpop.f32.mrf.mxu0
    %v4927 = vadd.f32 0.0, %v4926
    %v4928 = vpop.f32.mrf.mxu0
    %4929 = vmatprep.mubr.f32.mxu0 0.0
    %4930 = vmatmul.mubr.f32.gmra.mxu0 %v4603
    %v4931 = vpop.f32.mrf.mxu0
    %v4932 = vadd.f32 0.0, %v4931
    %v4933 = vpop.f32.mrf.mxu0
    %4934 = vmatprep.mubr.f32.mxu0 0.0
    %4935 = vmatmul.mubr.f32.gmra.mxu0 %v4606
    %v4936 = vpop.f32.mrf.mxu0
    %v4937 = vadd.f32 0.0, %v4936
    %v4938 = vpop.f32.mrf.mxu0
    %4939 = vmatprep.mubr.f32.mxu0 0.0
    %4940 = vmatmul.mubr.f32.gmra.mxu0 %v4609
    %v4941 = vpop.f32.mrf.mxu0
    %v4942 = vadd.f32 0.0, %v4941
    %v4943 = vpop.f32.mrf.mxu0
    %4944 = vmatprep.mubr.f32.mxu0 0.0
    %4945 = vmatmul.mubr.f32.gmra.mxu0 %v4612
    %v4946 = vpop.f32.mrf.mxu0
    %v4947 = vadd.f32 0.0, %v4946
    %v4948 = vpop.f32.mrf.mxu0
    %4949 = vmatprep.mubr.f32.mxu0 0.0
    %4950 = vmatmul.mubr.f32.gmra.mxu0 %v4615
    %v4951 = vpop.f32.mrf.mxu0
    %v4952 = vadd.f32 0.0, %v4951
    %v4953 = vpop.f32.mrf.mxu0
    %4954 = vmatprep.mubr.f32.mxu0 0.0
    %4955 = vmatmul.mubr.f32.gmra.mxu0 %v4618
    %v4956 = vpop.f32.mrf.mxu0
    %v4957 = vadd.f32 0.0, %v4956
    %v4958 = vpop.f32.mrf.mxu0
    %4959 = vmatprep.mubr.f32.mxu0 0.0
    %4960 = vmatmul.mubr.f32.gmra.mxu0 %v4621
    %v4961 = vpop.f32.mrf.mxu0
    %v4962 = vadd.f32 0.0, %v4961
    %v4963 = vpop.f32.mrf.mxu0
    %4964 = vmatprep.mubr.f32.mxu0 0.0
    %4965 = vmatmul.mubr.f32.gmra.mxu0 %v4624
    %v4966 = vpop.f32.mrf.mxu0
    %v4967 = vadd.f32 0.0, %v4966
    %v4968 = vpop.f32.mrf.mxu0
    %4969 = vmatprep.mubr.f32.mxu0 0.0
    %4970 = vmatmul.mubr.f32.gmra.mxu0 %v4627
    %v4971 = vpop.f32.mrf.mxu0
    %v4972 = vadd.f32 0.0, %v4971
    %v4973 = vpop.f32.mrf.mxu0
    %4974 = vmatprep.mubr.f32.mxu0 0.0
    %4975 = vmatmul.mubr.f32.gmra.mxu0 %v4630
    %v4976 = vpop.f32.mrf.mxu0
    %v4977 = vadd.f32 0.0, %v4976
    %v4978 = vpop.f32.mrf.mxu0
    %4979 = vmatprep.mubr.f32.mxu0 0.0
    %4980 = vmatmul.mubr.f32.gmra.mxu0 %v4633
    %v4981 = vpop.f32.mrf.mxu0
    %v4982 = vadd.f32 0.0, %v4981
    %v4983 = vpop.f32.mrf.mxu0
    %4984 = vmatprep.mubr.f32.mxu0 0.0
    %4985 = vmatmul.mubr.f32.gmra.mxu0 %v4636
    %v4986 = vpop.f32.mrf.mxu0
    %v4987 = vadd.f32 0.0, %v4986
    %v4988 = vpop.f32.mrf.mxu0
    %4989 = vmatprep.mubr.f32.mxu0 0.0
    %4990 = vmatmul.mubr.f32.gmra.mxu0 %v4639
    %v4991 = vpop.f32.mrf.mxu0
    %v4992 = vadd.f32 0.0, %v4991
    %v4993 = vpop.f32.mrf.mxu0
    %4994 = vmatprep.mubr.f32.mxu0 0.0
    %4995 = vmatmul.mubr.f32.gmra.mxu0 %v4642
    %v4996 = vpop.f32.mrf.mxu0
    %v4997 = vadd.f32 0.0, %v4996
    %v4998 = vpop.f32.mrf.mxu0
    %4999 = vmatprep.mubr.f32.mxu0 0.0
    %5000 = vmatmul.mubr.f32.gmra.mxu0 %v4645
    %v5001 = vpop.f32.mrf.mxu0
    %v5002 = vadd.f32 0.0, %v5001
    %v5003 = vpop.f32.mrf.mxu0
    %5004 = vmatprep.mubr.f32.mxu0 0.0
    %5005 = vmatmul.mubr.f32.gmra.mxu0 %v4648
    %v5006 = vpop.f32.mrf.mxu0
    %v5007 = vadd.f32 0.0, %v5006
    %v5008 = vpop.f32.mrf.mxu0
    %5009 = vmatprep.mubr.f32.mxu0 0.0
    %5010 = vmatmul.mubr.f32.gmra.mxu0 %v4651
    %v5011 = vpop.f32.mrf.mxu0
    %v5012 = vadd.f32 0.0, %v5011
    %v5013 = vpop.f32.mrf.mxu0
    %5014 = vmatprep.mubr.f32.mxu0 0.0
    %5015 = vmatmul.mubr.f32.gmra.mxu0 %v4654
    %v5016 = vpop.f32.mrf.mxu0
    %v5017 = vadd.f32 0.0, %v5016
    %v5018 = vpop.f32.mrf.mxu0
    %5019 = vmatprep.mubr.f32.mxu0 0.0
    %5020 = vmatmul.mubr.f32.gmra.mxu0 %v4657
    %v5021 = vpop.f32.mrf.mxu0
    %v5022 = vadd.f32 0.0, %v5021
    %v5023 = vpop.f32.mrf.mxu0
    %5024 = vmatprep.mubr.f32.mxu0 0.0
    %5025 = vmatmul.mubr.f32.gmra.mxu0 %v4660
    %v5026 = vpop.f32.mrf.mxu0
    %v5027 = vadd.f32 0.0, %v5026
    %v5028 = vpop.f32.mrf.mxu0
    %5029 = vmatprep.mubr.f32.mxu0 0.0
    %5030 = vmatmul.mubr.f32.gmra.mxu0 %v4663
    %v5031 = vpop.f32.mrf.mxu0
    %v5032 = vadd.f32 0.0, %v5031
    %v5033 = vpop.f32.mrf.mxu0
    %5034 = vmatprep.mubr.f32.mxu0 0.0
    %5035 = vmatmul.mubr.f32.gmra.mxu0 %v4666
    %v5036 = vpop.f32.mrf.mxu0
    %v5037 = vadd.f32 0.0, %v5036
    %v5038 = vpop.f32.mrf.mxu0
    %5039 = vmatprep.mubr.f32.mxu0 0.0
    %5040 = vmatmul.mubr.f32.gmra.mxu0 %v4669
    %v5041 = vpop.f32.mrf.mxu0
    %v5042 = vadd.f32 0.0, %v5041
    %v5043 = vpop.f32.mrf.mxu0
    %5044 = vmatprep.mubr.f32.mxu0 0.0
    %5045 = vmatmul.mubr.f32.gmra.mxu0 %v4672
    %v5046 = vpop.f32.mrf.mxu0
    %v5047 = vadd.f32 0.0, %v5046
    %v5048 = vpop.f32.mrf.mxu0
    %5049 = vmatprep.mubr.f32.mxu0 0.0
    %5050 = vmatmul.mubr.f32.gmra.mxu0 %v4675
    %v5051 = vpop.f32.mrf.mxu0
    %v5052 = vadd.f32 0.0, %v5051
    %v5053 = vpop.f32.mrf.mxu0
    %5054 = vmatprep.mubr.f32.mxu0 0.0
    %5055 = vmatmul.mubr.f32.gmra.mxu0 %v4678
    %v5056 = vpop.f32.mrf.mxu0
    %v5057 = vadd.f32 0.0, %v5056
    %v5058 = vpop.f32.mrf.mxu0
    %5059 = vmatprep.mubr.f32.mxu0 0.0
    %5060 = vmatmul.mubr.f32.gmra.mxu0 %v4681
    %v5061 = vpop.f32.mrf.mxu0
    %v5062 = vadd.f32 0.0, %v5061
    %v5063 = vpop.f32.mrf.mxu0
    %5064 = vmatprep.mubr.f32.mxu0 0.0
    %5065 = vmatmul.mubr.f32.gmra.mxu0 %v4684
    %v5066 = vpop.f32.mrf.mxu0
    %v5067 = vadd.f32 0.0, %v5066
    %v5068 = vpop.f32.mrf.mxu0
    %5069 = vmatprep.mubr.f32.mxu0 0.0
    %5070 = vmatmul.mubr.f32.gmra.mxu0 %v4687
    %v5071 = vpop.f32.mrf.mxu0
    %v5072 = vadd.f32 0.0, %v5071
    %v5073 = vpop.f32.mrf.mxu0
    %5074 = vmatprep.mubr.f32.mxu0 0.0
    %5075 = vmatmul.mubr.f32.gmra.mxu0 %v4690
    %v5076 = vpop.f32.mrf.mxu0
    %v5077 = vadd.f32 0.0, %v5076
    %v5078 = vpop.f32.mrf.mxu0
    %5079 = vdwg.mxu0
    %v5080 = vadd.f32 %v4369, %v4762
    %v5081 = vadd.f32 %v4370, %v4767
    %v5082 = vadd.f32 %v4371, %v4772
    %v5083 = vadd.f32 %v4372, %v4777
    %v5084 = vadd.f32 %v4373, %v4782
    %v5085 = vadd.f32 %v4374, %v4787
    %v5086 = vadd.f32 %v4375, %v4792
    %v5087 = vadd.f32 %v4376, %v4797
    %v5088 = vadd.f32 %v4377, %v4802
    %v5089 = vadd.f32 %v4378, %v4807
    %v5090 = vadd.f32 %v4379, %v4812
    %v5091 = vadd.f32 %v4380, %v4817
    %v5092 = vadd.f32 %v4381, %v4822
    %v5093 = vadd.f32 %v4382, %v4827
    %v5094 = vadd.f32 %v4383, %v4832
    %v5095 = vadd.f32 %v4384, %v4837
    %v5096 = vadd.f32 %v4385, %v4842
    %v5097 = vadd.f32 %v4386, %v4847
    %v5098 = vadd.f32 %v4387, %v4852
    %v5099 = vadd.f32 %v4388, %v4857
    %v5100 = vadd.f32 %v4389, %v4862
    %v5101 = vadd.f32 %v4390, %v4867
    %v5102 = vadd.f32 %v4391, %v4872
    %v5103 = vadd.f32 %v4392, %v4877
    %v5104 = vadd.f32 %v4393, %v4882
    %v5105 = vadd.f32 %v4394, %v4887
    %v5106 = vadd.f32 %v4395, %v4892
    %v5107 = vadd.f32 %v4396, %v4897
    %v5108 = vadd.f32 %v4397, %v4902
    %v5109 = vadd.f32 %v4398, %v4907
    %v5110 = vadd.f32 %v4399, %v4912
    %v5111 = vadd.f32 %v4400, %v4917
    %v5112 = vadd.f32 %v4401, %v4922
    %v5113 = vadd.f32 %v4402, %v4927
    %v5114 = vadd.f32 %v4403, %v4932
    %v5115 = vadd.f32 %v4404, %v4937
    %v5116 = vadd.f32 %v4405, %v4942
    %v5117 = vadd.f32 %v4406, %v4947
    %v5118 = vadd.f32 %v4407, %v4952
    %v5119 = vadd.f32 %v4408, %v4957
    %v5120 = vadd.f32 %v4409, %v4962
    %v5121 = vadd.f32 %v4410, %v4967
    %v5122 = vadd.f32 %v4411, %v4972
    %v5123 = vadd.f32 %v4412, %v4977
    %v5124 = vadd.f32 %v4413, %v4982
    %v5125 = vadd.f32 %v4414, %v4987
    %v5126 = vadd.f32 %v4415, %v4992
    %v5127 = vadd.f32 %v4416, %v4997
    %v5128 = vadd.f32 %v4417, %v5002
    %v5129 = vadd.f32 %v4418, %v5007
    %v5130 = vadd.f32 %v4419, %v5012
    %v5131 = vadd.f32 %v4420, %v5017
    %v5132 = vadd.f32 %v4421, %v5022
    %v5133 = vadd.f32 %v4422, %v5027
    %v5134 = vadd.f32 %v4423, %v5032
    %v5135 = vadd.f32 %v4424, %v5037
    %v5136 = vadd.f32 %v4425, %v5042
    %v5137 = vadd.f32 %v4426, %v5047
    %v5138 = vadd.f32 %v4427, %v5052
    %v5139 = vadd.f32 %v4428, %v5057
    %v5140 = vadd.f32 %v4429, %v5062
    %v5141 = vadd.f32 %v4430, %v5067
    %v5142 = vadd.f32 %v4431, %v5072
    %v5143 = vadd.f32 %v4432, %v5077
    %v5144 = vld [vmem:[%s4433 + $0x8] sm:$0xff]
    %v5145 = vld [vmem:[%s4433 + $0x10] sm:$0xff]
    %v5146 = vld [vmem:[%s4433 + $0x28] sm:$0xff]
    %v5147 = vld [vmem:[%s4433 + $0x30] sm:$0xff]
    %v5148 = vld [vmem:[%s4433 + $0x48] sm:$0xff]
    %v5149 = vld [vmem:[%s4433 + $0x50] sm:$0xff]
    %v5150 = vld [vmem:[%s4433 + $0x68] sm:$0xff]
    %v5151 = vld [vmem:[%s4433 + $0x70] sm:$0xff]
    %v5152 = vld [vmem:[%s4433 + $0x88] sm:$0xff]
    %v5153 = vld [vmem:[%s4433 + $0x90] sm:$0xff]
    %v5154 = vld [vmem:[%s4433 + $0xa8] sm:$0xff]
    %v5155 = vld [vmem:[%s4433 + $0xb0] sm:$0xff]
    %v5156 = vld [vmem:[%s4433 + $0xc8] sm:$0xff]
    %v5157 = vld [vmem:[%s4433 + $0xd0] sm:$0xff]
    %v5158 = vld [vmem:[%s4433 + $0xe8] sm:$0xff]
    %v5159 = vld [vmem:[%s4433 + $0xf0] sm:$0xff]
    %v5160 = vld [vmem:[%s4433 + $0x108] sm:$0xff]
    %v5161 = vld [vmem:[%s4433 + $0x110] sm:$0xff]
    %v5162 = vld [vmem:[%s4433 + $0x128] sm:$0xff]
    %v5163 = vld [vmem:[%s4433 + $0x130] sm:$0xff]
    %v5164 = vld [vmem:[%s4433 + $0x148] sm:$0xff]
    %v5165 = vld [vmem:[%s4433 + $0x150] sm:$0xff]
    %v5166 = vld [vmem:[%s4433 + $0x168] sm:$0xff]
    %v5167 = vld [vmem:[%s4433 + $0x170] sm:$0xff]
    %v5168 = vld [vmem:[%s4433 + $0x188] sm:$0xff]
    %v5169 = vld [vmem:[%s4433 + $0x190] sm:$0xff]
    %v5170 = vld [vmem:[%s4433 + $0x1a8] sm:$0xff]
    %v5171 = vld [vmem:[%s4433 + $0x1b0] sm:$0xff]
    %v5172 = vld [vmem:[%s4433 + $0x1c8] sm:$0xff]
    %v5173 = vld [vmem:[%s4433 + $0x1d0] sm:$0xff]
    %v5174 = vld [vmem:[%s4433 + $0x1e8] sm:$0xff]
    %v5175 = vld [vmem:[%s4433 + $0x1f0] sm:$0xff]
    %v5176 = vld [vmem:[%s4433 + $0x248] sm:$0xff]
    %v5177 = vld [vmem:[%s4433 + $0x250] sm:$0xff]
    %v5178 = vld [vmem:[%s4433 + $0x268] sm:$0xff]
    %v5179 = vld [vmem:[%s4433 + $0x270] sm:$0xff]
    %v5180 = vld [vmem:[%s4433 + $0x288] sm:$0xff]
    %v5181 = vld [vmem:[%s4433 + $0x290] sm:$0xff]
    %v5182 = vld [vmem:[%s4433 + $0x2a8] sm:$0xff]
    %v5183 = vld [vmem:[%s4433 + $0x2b0] sm:$0xff]
    %v5184 = vld [vmem:[%s4433 + $0x2c8] sm:$0xff]
    %v5185 = vld [vmem:[%s4433 + $0x2d0] sm:$0xff]
    %v5186 = vld [vmem:[%s4433 + $0x2e8] sm:$0xff]
    %v5187 = vld [vmem:[%s4433 + $0x2f0] sm:$0xff]
    %v5188 = vld [vmem:[%s4433 + $0x308] sm:$0xff]
    %v5189 = vld [vmem:[%s4433 + $0x310] sm:$0xff]
    %v5190 = vld [vmem:[%s4433 + $0x328] sm:$0xff]
    %v5191 = vld [vmem:[%s4433 + $0x330] sm:$0xff]
    %v5192 = vld [vmem:[%s4433 + $0x348] sm:$0xff]
    %v5193 = vld [vmem:[%s4433 + $0x350] sm:$0xff]
    %v5194 = vld [vmem:[%s4433 + $0x368] sm:$0xff]
    %v5195 = vld [vmem:[%s4433 + $0x370] sm:$0xff]
    %v5196 = vld [vmem:[%s4433 + $0x388] sm:$0xff]
    %v5197 = vld [vmem:[%s4433 + $0x390] sm:$0xff]
    %v5198 = vld [vmem:[%s4433 + $0x3a8] sm:$0xff]
    %v5199 = vld [vmem:[%s4433 + $0x3b0] sm:$0xff]
    %v5200 = vld [vmem:[%s4433 + $0x3c8] sm:$0xff]
    %v5201 = vld [vmem:[%s4433 + $0x3d0] sm:$0xff]
    %v5202 = vld [vmem:[%s4433 + $0x3e8] sm:$0xff]
    %v5203 = vld [vmem:[%s4433 + $0x3f0] sm:$0xff]
    %v5204 = vld [vmem:[%s4433 + $0x408] sm:$0xff]
    %v5205 = vld [vmem:[%s4433 + $0x410] sm:$0xff]
    %v5206 = vld [vmem:[%s4433 + $0x428] sm:$0xff]
    %v5207 = vld [vmem:[%s4433 + $0x430] sm:$0xff]
    %s5208 = scalar_lea.vmem %s1, 28
    %v5209 = vld [vmem:[%s5208] sm:$0xf]
    %v5211 = vsel %vm27, %v5144, 0
    %v5214 = vsel %vm27, %v5145, 0
    %v5217 = vsel %vm27, %v5146, 0
    %v5220 = vsel %vm27, %v5147, 0
    %v5223 = vsel %vm27, %v5148, 0
    %v5226 = vsel %vm27, %v5149, 0
    %v5229 = vsel %vm27, %v5150, 0
    %v5232 = vsel %vm27, %v5151, 0
    %v5235 = vsel %vm27, %v5152, 0
    %v5238 = vsel %vm27, %v5153, 0
    %v5241 = vsel %vm27, %v5154, 0
    %v5244 = vsel %vm27, %v5155, 0
    %v5247 = vsel %vm27, %v5156, 0
    %v5250 = vsel %vm27, %v5157, 0
    %v5253 = vsel %vm27, %v5158, 0
    %v5256 = vsel %vm27, %v5159, 0
    %v5259 = vsel %vm27, %v5160, 0
    %v5262 = vsel %vm27, %v5161, 0
    %v5265 = vsel %vm27, %v5162, 0
    %v5268 = vsel %vm27, %v5163, 0
    %v5271 = vsel %vm27, %v5164, 0
    %v5274 = vsel %vm27, %v5165, 0
    %v5277 = vsel %vm27, %v5166, 0
    %v5280 = vsel %vm27, %v5167, 0
    %v5283 = vsel %vm27, %v5168, 0
    %v5286 = vsel %vm27, %v5169, 0
    %v5289 = vsel %vm27, %v5170, 0
    %v5292 = vsel %vm27, %v5171, 0
    %v5295 = vsel %vm27, %v5172, 0
    %v5298 = vsel %vm27, %v5173, 0
    %v5301 = vsel %vm27, %v5174, 0
    %v5304 = vsel %vm27, %v5175, 0
    %v5307 = vsel %vm27, %v5176, 0
    %v5310 = vsel %vm27, %v5177, 0
    %v5313 = vsel %vm27, %v5178, 0
    %v5316 = vsel %vm27, %v5179, 0
    %v5319 = vsel %vm27, %v5180, 0
    %v5322 = vsel %vm27, %v5181, 0
    %v5325 = vsel %vm27, %v5182, 0
    %v5328 = vsel %vm27, %v5183, 0
    %v5331 = vsel %vm27, %v5184, 0
    %v5334 = vsel %vm27, %v5185, 0
    %v5337 = vsel %vm27, %v5186, 0
    %v5340 = vsel %vm27, %v5187, 0
    %v5343 = vsel %vm27, %v5188, 0
    %v5346 = vsel %vm27, %v5189, 0
    %v5349 = vsel %vm27, %v5190, 0
    %v5352 = vsel %vm27, %v5191, 0
    %v5355 = vsel %vm27, %v5192, 0
    %v5358 = vsel %vm27, %v5193, 0
    %v5361 = vsel %vm27, %v5194, 0
    %v5364 = vsel %vm27, %v5195, 0
    %v5367 = vsel %vm27, %v5196, 0
    %v5370 = vsel %vm27, %v5197, 0
    %v5373 = vsel %vm27, %v5198, 0
    %v5376 = vsel %vm27, %v5199, 0
    %v5379 = vsel %vm27, %v5200, 0
    %v5382 = vsel %vm27, %v5201, 0
    %v5385 = vsel %vm27, %v5202, 0
    %v5388 = vsel %vm27, %v5203, 0
    %v5391 = vsel %vm27, %v5204, 0
    %v5394 = vsel %vm27, %v5205, 0
    %v5397 = vsel %vm27, %v5206, 0
    %v5400 = vsel %vm27, %v5207, 0
    %v5403 = vsel %vm624, %v5209, 0
    %5405 = vmatprep.subr.mxu0 0.0
    %5406 = vmatpush1.msra.mxu0 0.0
    %5407 = vmatprep.subr.mxu0 0.0
    %5408 = vmatpush1.msra.mxu0 0.0
    %5409 = vmatprep.subr.mxu0 0.0
    %5410 = vmatpush1.msra.mxu0 0.0
    %5411 = vmatprep.subr.mxu0 0.0
    %5412 = vmatpush1.msra.mxu0 0.0
    %5413 = vmatprep.subr.mxu0 0.0
    %5414 = vmatpush1.msra.mxu0 0.0
    %5415 = vmatprep.subr.mxu0 0.0
    %5416 = vmatpush1.msra.mxu0 0.0
    %5417 = vmatprep.subr.mxu0 0.0
    %5418 = vmatpush1.msra.mxu0 0.0
    %5419 = vmatprep.subr.mxu0 0.0
    %5420 = vmatpush1.msra.mxu0 0.0
    %5421 = vmatprep.subr.mxu0 0.0
    %5422 = vmatpush1.msra.mxu0 0.0
    %5423 = vmatprep.subr.mxu0 0.0
    %5424 = vmatpush1.msra.mxu0 0.0
    %5425 = vmatprep.subr.mxu0 0.0
    %5426 = vmatpush1.msra.mxu0 0.0
    %5427 = vmatprep.subr.mxu0 0.0
    %5428 = vmatpush1.msra.mxu0 0.0
    %5429 = vmatprep.subr.mxu0 0.0
    %5430 = vmatpush1.msra.mxu0 0.0
    %5431 = vmatprep.subr.mxu0 0.0
    %5432 = vmatpush1.msra.mxu0 0.0
    %5433 = vmatprep.subr.mxu0 0.0
    %5434 = vmatpush1.msra.mxu0 0.0
    %5435 = vmatprep.subr.mxu0 0.0
    %5436 = vmatpush1.msra.mxu0 %v5403
    %5437 = vmatprep.subr.mxu0 0.0
    %5438 = vmatpush2.msra.mxu0 0.0
    %5439 = vmatprep.subr.mxu0 0.0
    %5440 = vmatpush2.msra.mxu0 0.0
    %5441 = vmatprep.subr.mxu0 0.0
    %5442 = vmatpush2.msra.mxu0 0.0
    %5443 = vmatprep.subr.mxu0 0.0
    %5444 = vmatpush2.msra.mxu0 0.0
    %5445 = vmatprep.subr.mxu0 0.0
    %5446 = vmatpush2.msra.mxu0 0.0
    %5447 = vmatprep.subr.mxu0 0.0
    %5448 = vmatpush2.msra.mxu0 0.0
    %5449 = vmatprep.subr.mxu0 0.0
    %5450 = vmatpush2.msra.mxu0 0.0
    %5451 = vmatprep.subr.mxu0 0.0
    %5452 = vmatpush2.msra.mxu0 0.0
    %5453 = vmatprep.subr.mxu0 0.0
    %5454 = vmatpush2.msra.mxu0 0.0
    %5455 = vmatprep.subr.mxu0 0.0
    %5456 = vmatpush2.msra.mxu0 0.0
    %5457 = vmatprep.subr.mxu0 0.0
    %5458 = vmatpush2.msra.mxu0 0.0
    %5459 = vmatprep.subr.mxu0 0.0
    %5460 = vmatpush2.msra.mxu0 0.0
    %5461 = vmatprep.subr.mxu0 0.0
    %5462 = vmatpush2.msra.mxu0 0.0
    %5463 = vmatprep.subr.mxu0 0.0
    %5464 = vmatpush2.msra.mxu0 0.0
    %5465 = vmatprep.subr.mxu0 0.0
    %5466 = vmatpush2.msra.mxu0 0.0
    %5467 = vmatprep.subr.mxu0 0.0
    %5468 = vmatpush2.msra.mxu0 0.0
    %5469 = vmatprep.mubr.f32.mxu0 0.0
    %5470 = vmatmul.mubr.f32.gmra.mxu0 %v5211
    %v5471 = vpop.f32.mrf.mxu0
    %v5472 = vadd.f32 0.0, %v5471
    %v5473 = vpop.f32.mrf.mxu0
    %5474 = vmatprep.mubr.f32.mxu0 0.0
    %5475 = vmatmul.mubr.f32.gmra.mxu0 %v5214
    %v5476 = vpop.f32.mrf.mxu0
    %v5477 = vadd.f32 0.0, %v5476
    %v5478 = vpop.f32.mrf.mxu0
    %5479 = vmatprep.mubr.f32.mxu0 0.0
    %5480 = vmatmul.mubr.f32.gmra.mxu0 %v5217
    %v5481 = vpop.f32.mrf.mxu0
    %v5482 = vadd.f32 0.0, %v5481
    %v5483 = vpop.f32.mrf.mxu0
    %5484 = vmatprep.mubr.f32.mxu0 0.0
    %5485 = vmatmul.mubr.f32.gmra.mxu0 %v5220
    %v5486 = vpop.f32.mrf.mxu0
    %v5487 = vadd.f32 0.0, %v5486
    %v5488 = vpop.f32.mrf.mxu0
    %5489 = vmatprep.mubr.f32.mxu0 0.0
    %5490 = vmatmul.mubr.f32.gmra.mxu0 %v5223
    %v5491 = vpop.f32.mrf.mxu0
    %v5492 = vadd.f32 0.0, %v5491
    %v5493 = vpop.f32.mrf.mxu0
    %5494 = vmatprep.mubr.f32.mxu0 0.0
    %5495 = vmatmul.mubr.f32.gmra.mxu0 %v5226
    %v5496 = vpop.f32.mrf.mxu0
    %v5497 = vadd.f32 0.0, %v5496
    %v5498 = vpop.f32.mrf.mxu0
    %5499 = vmatprep.mubr.f32.mxu0 0.0
    %5500 = vmatmul.mubr.f32.gmra.mxu0 %v5229
    %v5501 = vpop.f32.mrf.mxu0
    %v5502 = vadd.f32 0.0, %v5501
    %v5503 = vpop.f32.mrf.mxu0
    %5504 = vmatprep.mubr.f32.mxu0 0.0
    %5505 = vmatmul.mubr.f32.gmra.mxu0 %v5232
    %v5506 = vpop.f32.mrf.mxu0
    %v5507 = vadd.f32 0.0, %v5506
    %v5508 = vpop.f32.mrf.mxu0
    %5509 = vmatprep.mubr.f32.mxu0 0.0
    %5510 = vmatmul.mubr.f32.gmra.mxu0 %v5235
    %v5511 = vpop.f32.mrf.mxu0
    %v5512 = vadd.f32 0.0, %v5511
    %v5513 = vpop.f32.mrf.mxu0
    %5514 = vmatprep.mubr.f32.mxu0 0.0
    %5515 = vmatmul.mubr.f32.gmra.mxu0 %v5238
    %v5516 = vpop.f32.mrf.mxu0
    %v5517 = vadd.f32 0.0, %v5516
    %v5518 = vpop.f32.mrf.mxu0
    %5519 = vmatprep.mubr.f32.mxu0 0.0
    %5520 = vmatmul.mubr.f32.gmra.mxu0 %v5241
    %v5521 = vpop.f32.mrf.mxu0
    %v5522 = vadd.f32 0.0, %v5521
    %v5523 = vpop.f32.mrf.mxu0
    %5524 = vmatprep.mubr.f32.mxu0 0.0
    %5525 = vmatmul.mubr.f32.gmra.mxu0 %v5244
    %v5526 = vpop.f32.mrf.mxu0
    %v5527 = vadd.f32 0.0, %v5526
    %v5528 = vpop.f32.mrf.mxu0
    %5529 = vmatprep.mubr.f32.mxu0 0.0
    %5530 = vmatmul.mubr.f32.gmra.mxu0 %v5247
    %v5531 = vpop.f32.mrf.mxu0
    %v5532 = vadd.f32 0.0, %v5531
    %v5533 = vpop.f32.mrf.mxu0
    %5534 = vmatprep.mubr.f32.mxu0 0.0
    %5535 = vmatmul.mubr.f32.gmra.mxu0 %v5250
    %v5536 = vpop.f32.mrf.mxu0
    %v5537 = vadd.f32 0.0, %v5536
    %v5538 = vpop.f32.mrf.mxu0
    %5539 = vmatprep.mubr.f32.mxu0 0.0
    %5540 = vmatmul.mubr.f32.gmra.mxu0 %v5253
    %v5541 = vpop.f32.mrf.mxu0
    %v5542 = vadd.f32 0.0, %v5541
    %v5543 = vpop.f32.mrf.mxu0
    %5544 = vmatprep.mubr.f32.mxu0 0.0
    %5545 = vmatmul.mubr.f32.gmra.mxu0 %v5256
    %v5546 = vpop.f32.mrf.mxu0
    %v5547 = vadd.f32 0.0, %v5546
    %v5548 = vpop.f32.mrf.mxu0
    %5549 = vmatprep.mubr.f32.mxu0 0.0
    %5550 = vmatmul.mubr.f32.gmra.mxu0 %v5259
    %v5551 = vpop.f32.mrf.mxu0
    %v5552 = vadd.f32 0.0, %v5551
    %v5553 = vpop.f32.mrf.mxu0
    %5554 = vmatprep.mubr.f32.mxu0 0.0
    %5555 = vmatmul.mubr.f32.gmra.mxu0 %v5262
    %v5556 = vpop.f32.mrf.mxu0
    %v5557 = vadd.f32 0.0, %v5556
    %v5558 = vpop.f32.mrf.mxu0
    %5559 = vmatprep.mubr.f32.mxu0 0.0
    %5560 = vmatmul.mubr.f32.gmra.mxu0 %v5265
    %v5561 = vpop.f32.mrf.mxu0
    %v5562 = vadd.f32 0.0, %v5561
    %v5563 = vpop.f32.mrf.mxu0
    %5564 = vmatprep.mubr.f32.mxu0 0.0
    %5565 = vmatmul.mubr.f32.gmra.mxu0 %v5268
    %v5566 = vpop.f32.mrf.mxu0
    %v5567 = vadd.f32 0.0, %v5566
    %v5568 = vpop.f32.mrf.mxu0
    %5569 = vmatprep.mubr.f32.mxu0 0.0
    %5570 = vmatmul.mubr.f32.gmra.mxu0 %v5271
    %v5571 = vpop.f32.mrf.mxu0
    %v5572 = vadd.f32 0.0, %v5571
    %v5573 = vpop.f32.mrf.mxu0
    %5574 = vmatprep.mubr.f32.mxu0 0.0
    %5575 = vmatmul.mubr.f32.gmra.mxu0 %v5274
    %v5576 = vpop.f32.mrf.mxu0
    %v5577 = vadd.f32 0.0, %v5576
    %v5578 = vpop.f32.mrf.mxu0
    %5579 = vmatprep.mubr.f32.mxu0 0.0
    %5580 = vmatmul.mubr.f32.gmra.mxu0 %v5277
    %v5581 = vpop.f32.mrf.mxu0
    %v5582 = vadd.f32 0.0, %v5581
    %v5583 = vpop.f32.mrf.mxu0
    %5584 = vmatprep.mubr.f32.mxu0 0.0
    %5585 = vmatmul.mubr.f32.gmra.mxu0 %v5280
    %v5586 = vpop.f32.mrf.mxu0
    %v5587 = vadd.f32 0.0, %v5586
    %v5588 = vpop.f32.mrf.mxu0
    %5589 = vmatprep.mubr.f32.mxu0 0.0
    %5590 = vmatmul.mubr.f32.gmra.mxu0 %v5283
    %v5591 = vpop.f32.mrf.mxu0
    %v5592 = vadd.f32 0.0, %v5591
    %v5593 = vpop.f32.mrf.mxu0
    %5594 = vmatprep.mubr.f32.mxu0 0.0
    %5595 = vmatmul.mubr.f32.gmra.mxu0 %v5286
    %v5596 = vpop.f32.mrf.mxu0
    %v5597 = vadd.f32 0.0, %v5596
    %v5598 = vpop.f32.mrf.mxu0
    %5599 = vmatprep.mubr.f32.mxu0 0.0
    %5600 = vmatmul.mubr.f32.gmra.mxu0 %v5289
    %v5601 = vpop.f32.mrf.mxu0
    %v5602 = vadd.f32 0.0, %v5601
    %v5603 = vpop.f32.mrf.mxu0
    %5604 = vmatprep.mubr.f32.mxu0 0.0
    %5605 = vmatmul.mubr.f32.gmra.mxu0 %v5292
    %v5606 = vpop.f32.mrf.mxu0
    %v5607 = vadd.f32 0.0, %v5606
    %v5608 = vpop.f32.mrf.mxu0
    %5609 = vmatprep.mubr.f32.mxu0 0.0
    %5610 = vmatmul.mubr.f32.gmra.mxu0 %v5295
    %v5611 = vpop.f32.mrf.mxu0
    %v5612 = vadd.f32 0.0, %v5611
    %v5613 = vpop.f32.mrf.mxu0
    %5614 = vmatprep.mubr.f32.mxu0 0.0
    %5615 = vmatmul.mubr.f32.gmra.mxu0 %v5298
    %v5616 = vpop.f32.mrf.mxu0
    %v5617 = vadd.f32 0.0, %v5616
    %v5618 = vpop.f32.mrf.mxu0
    %5619 = vmatprep.mubr.f32.mxu0 0.0
    %5620 = vmatmul.mubr.f32.gmra.mxu0 %v5301
    %v5621 = vpop.f32.mrf.mxu0
    %v5622 = vadd.f32 0.0, %v5621
    %v5623 = vpop.f32.mrf.mxu0
    %5624 = vmatprep.mubr.f32.mxu0 0.0
    %5625 = vmatmul.mubr.f32.gmra.mxu0 %v5304
    %v5626 = vpop.f32.mrf.mxu0
    %v5627 = vadd.f32 0.0, %v5626
    %v5628 = vpop.f32.mrf.mxu0
    %5629 = vmatprep.mubr.f32.mxu0 0.0
    %5630 = vmatmul.mubr.f32.gmra.mxu0 %v5307
    %v5631 = vpop.f32.mrf.mxu0
    %v5632 = vadd.f32 0.0, %v5631
    %v5633 = vpop.f32.mrf.mxu0
    %5634 = vmatprep.mubr.f32.mxu0 0.0
    %5635 = vmatmul.mubr.f32.gmra.mxu0 %v5310
    %v5636 = vpop.f32.mrf.mxu0
    %v5637 = vadd.f32 0.0, %v5636
    %v5638 = vpop.f32.mrf.mxu0
    %5639 = vmatprep.mubr.f32.mxu0 0.0
    %5640 = vmatmul.mubr.f32.gmra.mxu0 %v5313
    %v5641 = vpop.f32.mrf.mxu0
    %v5642 = vadd.f32 0.0, %v5641
    %v5643 = vpop.f32.mrf.mxu0
    %5644 = vmatprep.mubr.f32.mxu0 0.0
    %5645 = vmatmul.mubr.f32.gmra.mxu0 %v5316
    %v5646 = vpop.f32.mrf.mxu0
    %v5647 = vadd.f32 0.0, %v5646
    %v5648 = vpop.f32.mrf.mxu0
    %5649 = vmatprep.mubr.f32.mxu0 0.0
    %5650 = vmatmul.mubr.f32.gmra.mxu0 %v5319
    %v5651 = vpop.f32.mrf.mxu0
    %v5652 = vadd.f32 0.0, %v5651
    %v5653 = vpop.f32.mrf.mxu0
    %5654 = vmatprep.mubr.f32.mxu0 0.0
    %5655 = vmatmul.mubr.f32.gmra.mxu0 %v5322
    %v5656 = vpop.f32.mrf.mxu0
    %v5657 = vadd.f32 0.0, %v5656
    %v5658 = vpop.f32.mrf.mxu0
    %5659 = vmatprep.mubr.f32.mxu0 0.0
    %5660 = vmatmul.mubr.f32.gmra.mxu0 %v5325
    %v5661 = vpop.f32.mrf.mxu0
    %v5662 = vadd.f32 0.0, %v5661
    %v5663 = vpop.f32.mrf.mxu0
    %5664 = vmatprep.mubr.f32.mxu0 0.0
    %5665 = vmatmul.mubr.f32.gmra.mxu0 %v5328
    %v5666 = vpop.f32.mrf.mxu0
    %v5667 = vadd.f32 0.0, %v5666
    %v5668 = vpop.f32.mrf.mxu0
    %5669 = vmatprep.mubr.f32.mxu0 0.0
    %5670 = vmatmul.mubr.f32.gmra.mxu0 %v5331
    %v5671 = vpop.f32.mrf.mxu0
    %v5672 = vadd.f32 0.0, %v5671
    %v5673 = vpop.f32.mrf.mxu0
    %5674 = vmatprep.mubr.f32.mxu0 0.0
    %5675 = vmatmul.mubr.f32.gmra.mxu0 %v5334
    %v5676 = vpop.f32.mrf.mxu0
    %v5677 = vadd.f32 0.0, %v5676
    %v5678 = vpop.f32.mrf.mxu0
    %5679 = vmatprep.mubr.f32.mxu0 0.0
    %5680 = vmatmul.mubr.f32.gmra.mxu0 %v5337
    %v5681 = vpop.f32.mrf.mxu0
    %v5682 = vadd.f32 0.0, %v5681
    %v5683 = vpop.f32.mrf.mxu0
    %5684 = vmatprep.mubr.f32.mxu0 0.0
    %5685 = vmatmul.mubr.f32.gmra.mxu0 %v5340
    %v5686 = vpop.f32.mrf.mxu0
    %v5687 = vadd.f32 0.0, %v5686
    %v5688 = vpop.f32.mrf.mxu0
    %5689 = vmatprep.mubr.f32.mxu0 0.0
    %5690 = vmatmul.mubr.f32.gmra.mxu0 %v5343
    %v5691 = vpop.f32.mrf.mxu0
    %v5692 = vadd.f32 0.0, %v5691
    %v5693 = vpop.f32.mrf.mxu0
    %5694 = vmatprep.mubr.f32.mxu0 0.0
    %5695 = vmatmul.mubr.f32.gmra.mxu0 %v5346
    %v5696 = vpop.f32.mrf.mxu0
    %v5697 = vadd.f32 0.0, %v5696
    %v5698 = vpop.f32.mrf.mxu0
    %5699 = vmatprep.mubr.f32.mxu0 0.0
    %5700 = vmatmul.mubr.f32.gmra.mxu0 %v5349
    %v5701 = vpop.f32.mrf.mxu0
    %v5702 = vadd.f32 0.0, %v5701
    %v5703 = vpop.f32.mrf.mxu0
    %5704 = vmatprep.mubr.f32.mxu0 0.0
    %5705 = vmatmul.mubr.f32.gmra.mxu0 %v5352
    %v5706 = vpop.f32.mrf.mxu0
    %v5707 = vadd.f32 0.0, %v5706
    %v5708 = vpop.f32.mrf.mxu0
    %5709 = vmatprep.mubr.f32.mxu0 0.0
    %5710 = vmatmul.mubr.f32.gmra.mxu0 %v5355
    %v5711 = vpop.f32.mrf.mxu0
    %v5712 = vadd.f32 0.0, %v5711
    %v5713 = vpop.f32.mrf.mxu0
    %5714 = vmatprep.mubr.f32.mxu0 0.0
    %5715 = vmatmul.mubr.f32.gmra.mxu0 %v5358
    %v5716 = vpop.f32.mrf.mxu0
    %v5717 = vadd.f32 0.0, %v5716
    %v5718 = vpop.f32.mrf.mxu0
    %5719 = vmatprep.mubr.f32.mxu0 0.0
    %5720 = vmatmul.mubr.f32.gmra.mxu0 %v5361
    %v5721 = vpop.f32.mrf.mxu0
    %v5722 = vadd.f32 0.0, %v5721
    %v5723 = vpop.f32.mrf.mxu0
    %5724 = vmatprep.mubr.f32.mxu0 0.0
    %5725 = vmatmul.mubr.f32.gmra.mxu0 %v5364
    %v5726 = vpop.f32.mrf.mxu0
    %v5727 = vadd.f32 0.0, %v5726
    %v5728 = vpop.f32.mrf.mxu0
    %5729 = vmatprep.mubr.f32.mxu0 0.0
    %5730 = vmatmul.mubr.f32.gmra.mxu0 %v5367
    %v5731 = vpop.f32.mrf.mxu0
    %v5732 = vadd.f32 0.0, %v5731
    %v5733 = vpop.f32.mrf.mxu0
    %5734 = vmatprep.mubr.f32.mxu0 0.0
    %5735 = vmatmul.mubr.f32.gmra.mxu0 %v5370
    %v5736 = vpop.f32.mrf.mxu0
    %v5737 = vadd.f32 0.0, %v5736
    %v5738 = vpop.f32.mrf.mxu0
    %5739 = vmatprep.mubr.f32.mxu0 0.0
    %5740 = vmatmul.mubr.f32.gmra.mxu0 %v5373
    %v5741 = vpop.f32.mrf.mxu0
    %v5742 = vadd.f32 0.0, %v5741
    %v5743 = vpop.f32.mrf.mxu0
    %5744 = vmatprep.mubr.f32.mxu0 0.0
    %5745 = vmatmul.mubr.f32.gmra.mxu0 %v5376
    %v5746 = vpop.f32.mrf.mxu0
    %v5747 = vadd.f32 0.0, %v5746
    %v5748 = vpop.f32.mrf.mxu0
    %5749 = vmatprep.mubr.f32.mxu0 0.0
    %5750 = vmatmul.mubr.f32.gmra.mxu0 %v5379
    %v5751 = vpop.f32.mrf.mxu0
    %v5752 = vadd.f32 0.0, %v5751
    %v5753 = vpop.f32.mrf.mxu0
    %5754 = vmatprep.mubr.f32.mxu0 0.0
    %5755 = vmatmul.mubr.f32.gmra.mxu0 %v5382
    %v5756 = vpop.f32.mrf.mxu0
    %v5757 = vadd.f32 0.0, %v5756
    %v5758 = vpop.f32.mrf.mxu0
    %5759 = vmatprep.mubr.f32.mxu0 0.0
    %5760 = vmatmul.mubr.f32.gmra.mxu0 %v5385
    %v5761 = vpop.f32.mrf.mxu0
    %v5762 = vadd.f32 0.0, %v5761
    %v5763 = vpop.f32.mrf.mxu0
    %5764 = vmatprep.mubr.f32.mxu0 0.0
    %5765 = vmatmul.mubr.f32.gmra.mxu0 %v5388
    %v5766 = vpop.f32.mrf.mxu0
    %v5767 = vadd.f32 0.0, %v5766
    %v5768 = vpop.f32.mrf.mxu0
    %5769 = vmatprep.mubr.f32.mxu0 0.0
    %5770 = vmatmul.mubr.f32.gmra.mxu0 %v5391
    %v5771 = vpop.f32.mrf.mxu0
    %v5772 = vadd.f32 0.0, %v5771
    %v5773 = vpop.f32.mrf.mxu0
    %5774 = vmatprep.mubr.f32.mxu0 0.0
    %5775 = vmatmul.mubr.f32.gmra.mxu0 %v5394
    %v5776 = vpop.f32.mrf.mxu0
    %v5777 = vadd.f32 0.0, %v5776
    %v5778 = vpop.f32.mrf.mxu0
    %5779 = vmatprep.mubr.f32.mxu0 0.0
    %5780 = vmatmul.mubr.f32.gmra.mxu0 %v5397
    %v5781 = vpop.f32.mrf.mxu0
    %v5782 = vadd.f32 0.0, %v5781
    %v5783 = vpop.f32.mrf.mxu0
    %5784 = vmatprep.mubr.f32.mxu0 0.0
    %5785 = vmatmul.mubr.f32.gmra.mxu0 %v5400
    %v5786 = vpop.f32.mrf.mxu0
    %v5787 = vadd.f32 0.0, %v5786
    %v5788 = vpop.f32.mrf.mxu0
    %5789 = vdwg.mxu0
    %v5790 = vadd.f32 %v5080, %v5472
    %v5791 = vadd.f32 %v5081, %v5477
    %v5792 = vadd.f32 %v5082, %v5482
    %v5793 = vadd.f32 %v5083, %v5487
    %v5794 = vadd.f32 %v5084, %v5492
    %v5795 = vadd.f32 %v5085, %v5497
    %v5796 = vadd.f32 %v5086, %v5502
    %v5797 = vadd.f32 %v5087, %v5507
    %v5798 = vadd.f32 %v5088, %v5512
    %v5799 = vadd.f32 %v5089, %v5517
    %v5800 = vadd.f32 %v5090, %v5522
    %v5801 = vadd.f32 %v5091, %v5527
    %v5802 = vadd.f32 %v5092, %v5532
    %v5803 = vadd.f32 %v5093, %v5537
    %v5804 = vadd.f32 %v5094, %v5542
    %v5805 = vadd.f32 %v5095, %v5547
    %v5806 = vadd.f32 %v5096, %v5552
    %v5807 = vadd.f32 %v5097, %v5557
    %v5808 = vadd.f32 %v5098, %v5562
    %v5809 = vadd.f32 %v5099, %v5567
    %v5810 = vadd.f32 %v5100, %v5572
    %v5811 = vadd.f32 %v5101, %v5577
    %v5812 = vadd.f32 %v5102, %v5582
    %v5813 = vadd.f32 %v5103, %v5587
    %v5814 = vadd.f32 %v5104, %v5592
    %v5815 = vadd.f32 %v5105, %v5597
    %v5816 = vadd.f32 %v5106, %v5602
    %v5817 = vadd.f32 %v5107, %v5607
    %v5818 = vadd.f32 %v5108, %v5612
    %v5819 = vadd.f32 %v5109, %v5617
    %v5820 = vadd.f32 %v5110, %v5622
    %v5821 = vadd.f32 %v5111, %v5627
    %v5822 = vadd.f32 %v5112, %v5632
    %v5823 = vadd.f32 %v5113, %v5637
    %v5824 = vadd.f32 %v5114, %v5642
    %v5825 = vadd.f32 %v5115, %v5647
    %v5826 = vadd.f32 %v5116, %v5652
    %v5827 = vadd.f32 %v5117, %v5657
    %v5828 = vadd.f32 %v5118, %v5662
    %v5829 = vadd.f32 %v5119, %v5667
    %v5830 = vadd.f32 %v5120, %v5672
    %v5831 = vadd.f32 %v5121, %v5677
    %v5832 = vadd.f32 %v5122, %v5682
    %v5833 = vadd.f32 %v5123, %v5687
    %v5834 = vadd.f32 %v5124, %v5692
    %v5835 = vadd.f32 %v5125, %v5697
    %v5836 = vadd.f32 %v5126, %v5702
    %v5837 = vadd.f32 %v5127, %v5707
    %v5838 = vadd.f32 %v5128, %v5712
    %v5839 = vadd.f32 %v5129, %v5717
    %v5840 = vadd.f32 %v5130, %v5722
    %v5841 = vadd.f32 %v5131, %v5727
    %v5842 = vadd.f32 %v5132, %v5732
    %v5843 = vadd.f32 %v5133, %v5737
    %v5844 = vadd.f32 %v5134, %v5742
    %v5845 = vadd.f32 %v5135, %v5747
    %v5846 = vadd.f32 %v5136, %v5752
    %v5847 = vadd.f32 %v5137, %v5757
    %v5848 = vadd.f32 %v5138, %v5762
    %v5849 = vadd.f32 %v5139, %v5767
    %v5850 = vadd.f32 %v5140, %v5772
    %v5851 = vadd.f32 %v5141, %v5777
    %v5852 = vadd.f32 %v5142, %v5782
    %v5853 = vadd.f32 %v5143, %v5787
    %v5854 = vld [vmem:[%s4433 + $0x9] sm:$0xff]
    %v5855 = vld [vmem:[%s4433 + $0x11] sm:$0xff]
    %v5856 = vld [vmem:[%s4433 + $0x29] sm:$0xff]
    %v5857 = vld [vmem:[%s4433 + $0x31] sm:$0xff]
    %v5858 = vld [vmem:[%s4433 + $0x49] sm:$0xff]
    %v5859 = vld [vmem:[%s4433 + $0x51] sm:$0xff]
    %v5860 = vld [vmem:[%s4433 + $0x69] sm:$0xff]
    %v5861 = vld [vmem:[%s4433 + $0x71] sm:$0xff]
    %v5862 = vld [vmem:[%s4433 + $0x89] sm:$0xff]
    %v5863 = vld [vmem:[%s4433 + $0x91] sm:$0xff]
    %v5864 = vld [vmem:[%s4433 + $0xa9] sm:$0xff]
    %v5865 = vld [vmem:[%s4433 + $0xb1] sm:$0xff]
    %v5866 = vld [vmem:[%s4433 + $0xc9] sm:$0xff]
    %v5867 = vld [vmem:[%s4433 + $0xd1] sm:$0xff]
    %v5868 = vld [vmem:[%s4433 + $0xe9] sm:$0xff]
    %v5869 = vld [vmem:[%s4433 + $0xf1] sm:$0xff]
    %v5870 = vld [vmem:[%s4433 + $0x109] sm:$0xff]
    %v5871 = vld [vmem:[%s4433 + $0x111] sm:$0xff]
    %v5872 = vld [vmem:[%s4433 + $0x129] sm:$0xff]
    %v5873 = vld [vmem:[%s4433 + $0x131] sm:$0xff]
    %v5874 = vld [vmem:[%s4433 + $0x149] sm:$0xff]
    %v5875 = vld [vmem:[%s4433 + $0x151] sm:$0xff]
    %v5876 = vld [vmem:[%s4433 + $0x169] sm:$0xff]
    %v5877 = vld [vmem:[%s4433 + $0x171] sm:$0xff]
    %v5878 = vld [vmem:[%s4433 + $0x189] sm:$0xff]
    %v5879 = vld [vmem:[%s4433 + $0x191] sm:$0xff]
    %v5880 = vld [vmem:[%s4433 + $0x1a9] sm:$0xff]
    %v5881 = vld [vmem:[%s4433 + $0x1b1] sm:$0xff]
    %v5882 = vld [vmem:[%s4433 + $0x1c9] sm:$0xff]
    %v5883 = vld [vmem:[%s4433 + $0x1d1] sm:$0xff]
    %v5884 = vld [vmem:[%s4433 + $0x1e9] sm:$0xff]
    %v5885 = vld [vmem:[%s4433 + $0x1f1] sm:$0xff]
    %v5886 = vld [vmem:[%s4433 + $0x249] sm:$0xff]
    %v5887 = vld [vmem:[%s4433 + $0x251] sm:$0xff]
    %v5888 = vld [vmem:[%s4433 + $0x269] sm:$0xff]
    %v5889 = vld [vmem:[%s4433 + $0x271] sm:$0xff]
    %v5890 = vld [vmem:[%s4433 + $0x289] sm:$0xff]
    %v5891 = vld [vmem:[%s4433 + $0x291] sm:$0xff]
    %v5892 = vld [vmem:[%s4433 + $0x2a9] sm:$0xff]
    %v5893 = vld [vmem:[%s4433 + $0x2b1] sm:$0xff]
    %v5894 = vld [vmem:[%s4433 + $0x2c9] sm:$0xff]
    %v5895 = vld [vmem:[%s4433 + $0x2d1] sm:$0xff]
    %v5896 = vld [vmem:[%s4433 + $0x2e9] sm:$0xff]
    %v5897 = vld [vmem:[%s4433 + $0x2f1] sm:$0xff]
    %v5898 = vld [vmem:[%s4433 + $0x309] sm:$0xff]
    %v5899 = vld [vmem:[%s4433 + $0x311] sm:$0xff]
    %v5900 = vld [vmem:[%s4433 + $0x329] sm:$0xff]
    %v5901 = vld [vmem:[%s4433 + $0x331] sm:$0xff]
    %v5902 = vld [vmem:[%s4433 + $0x349] sm:$0xff]
    %v5903 = vld [vmem:[%s4433 + $0x351] sm:$0xff]
    %v5904 = vld [vmem:[%s4433 + $0x369] sm:$0xff]
    %v5905 = vld [vmem:[%s4433 + $0x371] sm:$0xff]
    %v5906 = vld [vmem:[%s4433 + $0x389] sm:$0xff]
    %v5907 = vld [vmem:[%s4433 + $0x391] sm:$0xff]
    %v5908 = vld [vmem:[%s4433 + $0x3a9] sm:$0xff]
    %v5909 = vld [vmem:[%s4433 + $0x3b1] sm:$0xff]
    %v5910 = vld [vmem:[%s4433 + $0x3c9] sm:$0xff]
    %v5911 = vld [vmem:[%s4433 + $0x3d1] sm:$0xff]
    %v5912 = vld [vmem:[%s4433 + $0x3e9] sm:$0xff]
    %v5913 = vld [vmem:[%s4433 + $0x3f1] sm:$0xff]
    %v5914 = vld [vmem:[%s4433 + $0x409] sm:$0xff]
    %v5915 = vld [vmem:[%s4433 + $0x411] sm:$0xff]
    %v5916 = vld [vmem:[%s4433 + $0x429] sm:$0xff]
    %v5917 = vld [vmem:[%s4433 + $0x431] sm:$0xff]
    %s5918 = scalar_lea.vmem %s1, 32
    %v5919 = vld [vmem:[%s5918] sm:$0xf]
    %v5921 = vsel %vm27, %v5854, 0
    %v5924 = vsel %vm27, %v5855, 0
    %v5927 = vsel %vm27, %v5856, 0
    %v5930 = vsel %vm27, %v5857, 0
    %v5933 = vsel %vm27, %v5858, 0
    %v5936 = vsel %vm27, %v5859, 0
    %v5939 = vsel %vm27, %v5860, 0
    %v5942 = vsel %vm27, %v5861, 0
    %v5945 = vsel %vm27, %v5862, 0
    %v5948 = vsel %vm27, %v5863, 0
    %v5951 = vsel %vm27, %v5864, 0
    %v5954 = vsel %vm27, %v5865, 0
    %v5957 = vsel %vm27, %v5866, 0
    %v5960 = vsel %vm27, %v5867, 0
    %v5963 = vsel %vm27, %v5868, 0
    %v5966 = vsel %vm27, %v5869, 0
    %v5969 = vsel %vm27, %v5870, 0
    %v5972 = vsel %vm27, %v5871, 0
    %v5975 = vsel %vm27, %v5872, 0
    %v5978 = vsel %vm27, %v5873, 0
    %v5981 = vsel %vm27, %v5874, 0
    %v5984 = vsel %vm27, %v5875, 0
    %v5987 = vsel %vm27, %v5876, 0
    %v5990 = vsel %vm27, %v5877, 0
    %v5993 = vsel %vm27, %v5878, 0
    %v5996 = vsel %vm27, %v5879, 0
    %v5999 = vsel %vm27, %v5880, 0
    %v6002 = vsel %vm27, %v5881, 0
    %v6005 = vsel %vm27, %v5882, 0
    %v6008 = vsel %vm27, %v5883, 0
    %v6011 = vsel %vm27, %v5884, 0
    %v6014 = vsel %vm27, %v5885, 0
    %v6017 = vsel %vm27, %v5886, 0
    %v6020 = vsel %vm27, %v5887, 0
    %v6023 = vsel %vm27, %v5888, 0
    %v6026 = vsel %vm27, %v5889, 0
    %v6029 = vsel %vm27, %v5890, 0
    %v6032 = vsel %vm27, %v5891, 0
    %v6035 = vsel %vm27, %v5892, 0
    %v6038 = vsel %vm27, %v5893, 0
    %v6041 = vsel %vm27, %v5894, 0
    %v6044 = vsel %vm27, %v5895, 0
    %v6047 = vsel %vm27, %v5896, 0
    %v6050 = vsel %vm27, %v5897, 0
    %v6053 = vsel %vm27, %v5898, 0
    %v6056 = vsel %vm27, %v5899, 0
    %v6059 = vsel %vm27, %v5900, 0
    %v6062 = vsel %vm27, %v5901, 0
    %v6065 = vsel %vm27, %v5902, 0
    %v6068 = vsel %vm27, %v5903, 0
    %v6071 = vsel %vm27, %v5904, 0
    %v6074 = vsel %vm27, %v5905, 0
    %v6077 = vsel %vm27, %v5906, 0
    %v6080 = vsel %vm27, %v5907, 0
    %v6083 = vsel %vm27, %v5908, 0
    %v6086 = vsel %vm27, %v5909, 0
    %v6089 = vsel %vm27, %v5910, 0
    %v6092 = vsel %vm27, %v5911, 0
    %v6095 = vsel %vm27, %v5912, 0
    %v6098 = vsel %vm27, %v5913, 0
    %v6101 = vsel %vm27, %v5914, 0
    %v6104 = vsel %vm27, %v5915, 0
    %v6107 = vsel %vm27, %v5916, 0
    %v6110 = vsel %vm27, %v5917, 0
    %v6113 = vsel %vm624, %v5919, 0
    %6115 = vmatprep.subr.mxu0 0.0
    %6116 = vmatpush1.msra.mxu0 0.0
    %6117 = vmatprep.subr.mxu0 0.0
    %6118 = vmatpush1.msra.mxu0 0.0
    %6119 = vmatprep.subr.mxu0 0.0
    %6120 = vmatpush1.msra.mxu0 0.0
    %6121 = vmatprep.subr.mxu0 0.0
    %6122 = vmatpush1.msra.mxu0 0.0
    %6123 = vmatprep.subr.mxu0 0.0
    %6124 = vmatpush1.msra.mxu0 0.0
    %6125 = vmatprep.subr.mxu0 0.0
    %6126 = vmatpush1.msra.mxu0 0.0
    %6127 = vmatprep.subr.mxu0 0.0
    %6128 = vmatpush1.msra.mxu0 0.0
    %6129 = vmatprep.subr.mxu0 0.0
    %6130 = vmatpush1.msra.mxu0 0.0
    %6131 = vmatprep.subr.mxu0 0.0
    %6132 = vmatpush1.msra.mxu0 0.0
    %6133 = vmatprep.subr.mxu0 0.0
    %6134 = vmatpush1.msra.mxu0 0.0
    %6135 = vmatprep.subr.mxu0 0.0
    %6136 = vmatpush1.msra.mxu0 0.0
    %6137 = vmatprep.subr.mxu0 0.0
    %6138 = vmatpush1.msra.mxu0 0.0
    %6139 = vmatprep.subr.mxu0 0.0
    %6140 = vmatpush1.msra.mxu0 0.0
    %6141 = vmatprep.subr.mxu0 0.0
    %6142 = vmatpush1.msra.mxu0 0.0
    %6143 = vmatprep.subr.mxu0 0.0
    %6144 = vmatpush1.msra.mxu0 0.0
    %6145 = vmatprep.subr.mxu0 0.0
    %6146 = vmatpush1.msra.mxu0 %v6113
    %6147 = vmatprep.subr.mxu0 0.0
    %6148 = vmatpush2.msra.mxu0 0.0
    %6149 = vmatprep.subr.mxu0 0.0
    %6150 = vmatpush2.msra.mxu0 0.0
    %6151 = vmatprep.subr.mxu0 0.0
    %6152 = vmatpush2.msra.mxu0 0.0
    %6153 = vmatprep.subr.mxu0 0.0
    %6154 = vmatpush2.msra.mxu0 0.0
    %6155 = vmatprep.subr.mxu0 0.0
    %6156 = vmatpush2.msra.mxu0 0.0
    %6157 = vmatprep.subr.mxu0 0.0
    %6158 = vmatpush2.msra.mxu0 0.0
    %6159 = vmatprep.subr.mxu0 0.0
    %6160 = vmatpush2.msra.mxu0 0.0
    %6161 = vmatprep.subr.mxu0 0.0
    %6162 = vmatpush2.msra.mxu0 0.0
    %6163 = vmatprep.subr.mxu0 0.0
    %6164 = vmatpush2.msra.mxu0 0.0
    %6165 = vmatprep.subr.mxu0 0.0
    %6166 = vmatpush2.msra.mxu0 0.0
    %6167 = vmatprep.subr.mxu0 0.0
    %6168 = vmatpush2.msra.mxu0 0.0
    %6169 = vmatprep.subr.mxu0 0.0
    %6170 = vmatpush2.msra.mxu0 0.0
    %6171 = vmatprep.subr.mxu0 0.0
    %6172 = vmatpush2.msra.mxu0 0.0
    %6173 = vmatprep.subr.mxu0 0.0
    %6174 = vmatpush2.msra.mxu0 0.0
    %6175 = vmatprep.subr.mxu0 0.0
    %6176 = vmatpush2.msra.mxu0 0.0
    %6177 = vmatprep.subr.mxu0 0.0
    %6178 = vmatpush2.msra.mxu0 0.0
    %6179 = vmatprep.mubr.f32.mxu0 0.0
    %6180 = vmatmul.mubr.f32.gmra.mxu0 %v5921
    %v6181 = vpop.f32.mrf.mxu0
    %v6182 = vadd.f32 0.0, %v6181
    %v6183 = vpop.f32.mrf.mxu0
    %6184 = vmatprep.mubr.f32.mxu0 0.0
    %6185 = vmatmul.mubr.f32.gmra.mxu0 %v5924
    %v6186 = vpop.f32.mrf.mxu0
    %v6187 = vadd.f32 0.0, %v6186
    %v6188 = vpop.f32.mrf.mxu0
    %6189 = vmatprep.mubr.f32.mxu0 0.0
    %6190 = vmatmul.mubr.f32.gmra.mxu0 %v5927
    %v6191 = vpop.f32.mrf.mxu0
    %v6192 = vadd.f32 0.0, %v6191
    %v6193 = vpop.f32.mrf.mxu0
    %6194 = vmatprep.mubr.f32.mxu0 0.0
    %6195 = vmatmul.mubr.f32.gmra.mxu0 %v5930
    %v6196 = vpop.f32.mrf.mxu0
    %v6197 = vadd.f32 0.0, %v6196
    %v6198 = vpop.f32.mrf.mxu0
    %6199 = vmatprep.mubr.f32.mxu0 0.0
    %6200 = vmatmul.mubr.f32.gmra.mxu0 %v5933
    %v6201 = vpop.f32.mrf.mxu0
    %v6202 = vadd.f32 0.0, %v6201
    %v6203 = vpop.f32.mrf.mxu0
    %6204 = vmatprep.mubr.f32.mxu0 0.0
    %6205 = vmatmul.mubr.f32.gmra.mxu0 %v5936
    %v6206 = vpop.f32.mrf.mxu0
    %v6207 = vadd.f32 0.0, %v6206
    %v6208 = vpop.f32.mrf.mxu0
    %6209 = vmatprep.mubr.f32.mxu0 0.0
    %6210 = vmatmul.mubr.f32.gmra.mxu0 %v5939
    %v6211 = vpop.f32.mrf.mxu0
    %v6212 = vadd.f32 0.0, %v6211
    %v6213 = vpop.f32.mrf.mxu0
    %6214 = vmatprep.mubr.f32.mxu0 0.0
    %6215 = vmatmul.mubr.f32.gmra.mxu0 %v5942
    %v6216 = vpop.f32.mrf.mxu0
    %v6217 = vadd.f32 0.0, %v6216
    %v6218 = vpop.f32.mrf.mxu0
    %6219 = vmatprep.mubr.f32.mxu0 0.0
    %6220 = vmatmul.mubr.f32.gmra.mxu0 %v5945
    %v6221 = vpop.f32.mrf.mxu0
    %v6222 = vadd.f32 0.0, %v6221
    %v6223 = vpop.f32.mrf.mxu0
    %6224 = vmatprep.mubr.f32.mxu0 0.0
    %6225 = vmatmul.mubr.f32.gmra.mxu0 %v5948
    %v6226 = vpop.f32.mrf.mxu0
    %v6227 = vadd.f32 0.0, %v6226
    %v6228 = vpop.f32.mrf.mxu0
    %6229 = vmatprep.mubr.f32.mxu0 0.0
    %6230 = vmatmul.mubr.f32.gmra.mxu0 %v5951
    %v6231 = vpop.f32.mrf.mxu0
    %v6232 = vadd.f32 0.0, %v6231
    %v6233 = vpop.f32.mrf.mxu0
    %6234 = vmatprep.mubr.f32.mxu0 0.0
    %6235 = vmatmul.mubr.f32.gmra.mxu0 %v5954
    %v6236 = vpop.f32.mrf.mxu0
    %v6237 = vadd.f32 0.0, %v6236
    %v6238 = vpop.f32.mrf.mxu0
    %6239 = vmatprep.mubr.f32.mxu0 0.0
    %6240 = vmatmul.mubr.f32.gmra.mxu0 %v5957
    %v6241 = vpop.f32.mrf.mxu0
    %v6242 = vadd.f32 0.0, %v6241
    %v6243 = vpop.f32.mrf.mxu0
    %6244 = vmatprep.mubr.f32.mxu0 0.0
    %6245 = vmatmul.mubr.f32.gmra.mxu0 %v5960
    %v6246 = vpop.f32.mrf.mxu0
    %v6247 = vadd.f32 0.0, %v6246
    %v6248 = vpop.f32.mrf.mxu0
    %6249 = vmatprep.mubr.f32.mxu0 0.0
    %6250 = vmatmul.mubr.f32.gmra.mxu0 %v5963
    %v6251 = vpop.f32.mrf.mxu0
    %v6252 = vadd.f32 0.0, %v6251
    %v6253 = vpop.f32.mrf.mxu0
    %6254 = vmatprep.mubr.f32.mxu0 0.0
    %6255 = vmatmul.mubr.f32.gmra.mxu0 %v5966
    %v6256 = vpop.f32.mrf.mxu0
    %v6257 = vadd.f32 0.0, %v6256
    %v6258 = vpop.f32.mrf.mxu0
    %6259 = vmatprep.mubr.f32.mxu0 0.0
    %6260 = vmatmul.mubr.f32.gmra.mxu0 %v5969
    %v6261 = vpop.f32.mrf.mxu0
    %v6262 = vadd.f32 0.0, %v6261
    %v6263 = vpop.f32.mrf.mxu0
    %6264 = vmatprep.mubr.f32.mxu0 0.0
    %6265 = vmatmul.mubr.f32.gmra.mxu0 %v5972
    %v6266 = vpop.f32.mrf.mxu0
    %v6267 = vadd.f32 0.0, %v6266
    %v6268 = vpop.f32.mrf.mxu0
    %6269 = vmatprep.mubr.f32.mxu0 0.0
    %6270 = vmatmul.mubr.f32.gmra.mxu0 %v5975
    %v6271 = vpop.f32.mrf.mxu0
    %v6272 = vadd.f32 0.0, %v6271
    %v6273 = vpop.f32.mrf.mxu0
    %6274 = vmatprep.mubr.f32.mxu0 0.0
    %6275 = vmatmul.mubr.f32.gmra.mxu0 %v5978
    %v6276 = vpop.f32.mrf.mxu0
    %v6277 = vadd.f32 0.0, %v6276
    %v6278 = vpop.f32.mrf.mxu0
    %6279 = vmatprep.mubr.f32.mxu0 0.0
    %6280 = vmatmul.mubr.f32.gmra.mxu0 %v5981
    %v6281 = vpop.f32.mrf.mxu0
    %v6282 = vadd.f32 0.0, %v6281
    %v6283 = vpop.f32.mrf.mxu0
    %6284 = vmatprep.mubr.f32.mxu0 0.0
    %6285 = vmatmul.mubr.f32.gmra.mxu0 %v5984
    %v6286 = vpop.f32.mrf.mxu0
    %v6287 = vadd.f32 0.0, %v6286
    %v6288 = vpop.f32.mrf.mxu0
    %6289 = vmatprep.mubr.f32.mxu0 0.0
    %6290 = vmatmul.mubr.f32.gmra.mxu0 %v5987
    %v6291 = vpop.f32.mrf.mxu0
    %v6292 = vadd.f32 0.0, %v6291
    %v6293 = vpop.f32.mrf.mxu0
    %6294 = vmatprep.mubr.f32.mxu0 0.0
    %6295 = vmatmul.mubr.f32.gmra.mxu0 %v5990
    %v6296 = vpop.f32.mrf.mxu0
    %v6297 = vadd.f32 0.0, %v6296
    %v6298 = vpop.f32.mrf.mxu0
    %6299 = vmatprep.mubr.f32.mxu0 0.0
    %6300 = vmatmul.mubr.f32.gmra.mxu0 %v5993
    %v6301 = vpop.f32.mrf.mxu0
    %v6302 = vadd.f32 0.0, %v6301
    %v6303 = vpop.f32.mrf.mxu0
    %6304 = vmatprep.mubr.f32.mxu0 0.0
    %6305 = vmatmul.mubr.f32.gmra.mxu0 %v5996
    %v6306 = vpop.f32.mrf.mxu0
    %v6307 = vadd.f32 0.0, %v6306
    %v6308 = vpop.f32.mrf.mxu0
    %6309 = vmatprep.mubr.f32.mxu0 0.0
    %6310 = vmatmul.mubr.f32.gmra.mxu0 %v5999
    %v6311 = vpop.f32.mrf.mxu0
    %v6312 = vadd.f32 0.0, %v6311
    %v6313 = vpop.f32.mrf.mxu0
    %6314 = vmatprep.mubr.f32.mxu0 0.0
    %6315 = vmatmul.mubr.f32.gmra.mxu0 %v6002
    %v6316 = vpop.f32.mrf.mxu0
    %v6317 = vadd.f32 0.0, %v6316
    %v6318 = vpop.f32.mrf.mxu0
    %6319 = vmatprep.mubr.f32.mxu0 0.0
    %6320 = vmatmul.mubr.f32.gmra.mxu0 %v6005
    %v6321 = vpop.f32.mrf.mxu0
    %v6322 = vadd.f32 0.0, %v6321
    %v6323 = vpop.f32.mrf.mxu0
    %6324 = vmatprep.mubr.f32.mxu0 0.0
    %6325 = vmatmul.mubr.f32.gmra.mxu0 %v6008
    %v6326 = vpop.f32.mrf.mxu0
    %v6327 = vadd.f32 0.0, %v6326
    %v6328 = vpop.f32.mrf.mxu0
    %6329 = vmatprep.mubr.f32.mxu0 0.0
    %6330 = vmatmul.mubr.f32.gmra.mxu0 %v6011
    %v6331 = vpop.f32.mrf.mxu0
    %v6332 = vadd.f32 0.0, %v6331
    %v6333 = vpop.f32.mrf.mxu0
    %6334 = vmatprep.mubr.f32.mxu0 0.0
    %6335 = vmatmul.mubr.f32.gmra.mxu0 %v6014
    %v6336 = vpop.f32.mrf.mxu0
    %v6337 = vadd.f32 0.0, %v6336
    %v6338 = vpop.f32.mrf.mxu0
    %6339 = vmatprep.mubr.f32.mxu0 0.0
    %6340 = vmatmul.mubr.f32.gmra.mxu0 %v6017
    %v6341 = vpop.f32.mrf.mxu0
    %v6342 = vadd.f32 0.0, %v6341
    %v6343 = vpop.f32.mrf.mxu0
    %6344 = vmatprep.mubr.f32.mxu0 0.0
    %6345 = vmatmul.mubr.f32.gmra.mxu0 %v6020
    %v6346 = vpop.f32.mrf.mxu0
    %v6347 = vadd.f32 0.0, %v6346
    %v6348 = vpop.f32.mrf.mxu0
    %6349 = vmatprep.mubr.f32.mxu0 0.0
    %6350 = vmatmul.mubr.f32.gmra.mxu0 %v6023
    %v6351 = vpop.f32.mrf.mxu0
    %v6352 = vadd.f32 0.0, %v6351
    %v6353 = vpop.f32.mrf.mxu0
    %6354 = vmatprep.mubr.f32.mxu0 0.0
    %6355 = vmatmul.mubr.f32.gmra.mxu0 %v6026
    %v6356 = vpop.f32.mrf.mxu0
    %v6357 = vadd.f32 0.0, %v6356
    %v6358 = vpop.f32.mrf.mxu0
    %6359 = vmatprep.mubr.f32.mxu0 0.0
    %6360 = vmatmul.mubr.f32.gmra.mxu0 %v6029
    %v6361 = vpop.f32.mrf.mxu0
    %v6362 = vadd.f32 0.0, %v6361
    %v6363 = vpop.f32.mrf.mxu0
    %6364 = vmatprep.mubr.f32.mxu0 0.0
    %6365 = vmatmul.mubr.f32.gmra.mxu0 %v6032
    %v6366 = vpop.f32.mrf.mxu0
    %v6367 = vadd.f32 0.0, %v6366
    %v6368 = vpop.f32.mrf.mxu0
    %6369 = vmatprep.mubr.f32.mxu0 0.0
    %6370 = vmatmul.mubr.f32.gmra.mxu0 %v6035
    %v6371 = vpop.f32.mrf.mxu0
    %v6372 = vadd.f32 0.0, %v6371
    %v6373 = vpop.f32.mrf.mxu0
    %6374 = vmatprep.mubr.f32.mxu0 0.0
    %6375 = vmatmul.mubr.f32.gmra.mxu0 %v6038
    %v6376 = vpop.f32.mrf.mxu0
    %v6377 = vadd.f32 0.0, %v6376
    %v6378 = vpop.f32.mrf.mxu0
    %6379 = vmatprep.mubr.f32.mxu0 0.0
    %6380 = vmatmul.mubr.f32.gmra.mxu0 %v6041
    %v6381 = vpop.f32.mrf.mxu0
    %v6382 = vadd.f32 0.0, %v6381
    %v6383 = vpop.f32.mrf.mxu0
    %6384 = vmatprep.mubr.f32.mxu0 0.0
    %6385 = vmatmul.mubr.f32.gmra.mxu0 %v6044
    %v6386 = vpop.f32.mrf.mxu0
    %v6387 = vadd.f32 0.0, %v6386
    %v6388 = vpop.f32.mrf.mxu0
    %6389 = vmatprep.mubr.f32.mxu0 0.0
    %6390 = vmatmul.mubr.f32.gmra.mxu0 %v6047
    %v6391 = vpop.f32.mrf.mxu0
    %v6392 = vadd.f32 0.0, %v6391
    %v6393 = vpop.f32.mrf.mxu0
    %6394 = vmatprep.mubr.f32.mxu0 0.0
    %6395 = vmatmul.mubr.f32.gmra.mxu0 %v6050
    %v6396 = vpop.f32.mrf.mxu0
    %v6397 = vadd.f32 0.0, %v6396
    %v6398 = vpop.f32.mrf.mxu0
    %6399 = vmatprep.mubr.f32.mxu0 0.0
    %6400 = vmatmul.mubr.f32.gmra.mxu0 %v6053
    %v6401 = vpop.f32.mrf.mxu0
    %v6402 = vadd.f32 0.0, %v6401
    %v6403 = vpop.f32.mrf.mxu0
    %6404 = vmatprep.mubr.f32.mxu0 0.0
    %6405 = vmatmul.mubr.f32.gmra.mxu0 %v6056
    %v6406 = vpop.f32.mrf.mxu0
    %v6407 = vadd.f32 0.0, %v6406
    %v6408 = vpop.f32.mrf.mxu0
    %6409 = vmatprep.mubr.f32.mxu0 0.0
    %6410 = vmatmul.mubr.f32.gmra.mxu0 %v6059
    %v6411 = vpop.f32.mrf.mxu0
    %v6412 = vadd.f32 0.0, %v6411
    %v6413 = vpop.f32.mrf.mxu0
    %6414 = vmatprep.mubr.f32.mxu0 0.0
    %6415 = vmatmul.mubr.f32.gmra.mxu0 %v6062
    %v6416 = vpop.f32.mrf.mxu0
    %v6417 = vadd.f32 0.0, %v6416
    %v6418 = vpop.f32.mrf.mxu0
    %6419 = vmatprep.mubr.f32.mxu0 0.0
    %6420 = vmatmul.mubr.f32.gmra.mxu0 %v6065
    %v6421 = vpop.f32.mrf.mxu0
    %v6422 = vadd.f32 0.0, %v6421
    %v6423 = vpop.f32.mrf.mxu0
    %6424 = vmatprep.mubr.f32.mxu0 0.0
    %6425 = vmatmul.mubr.f32.gmra.mxu0 %v6068
    %v6426 = vpop.f32.mrf.mxu0
    %v6427 = vadd.f32 0.0, %v6426
    %v6428 = vpop.f32.mrf.mxu0
    %6429 = vmatprep.mubr.f32.mxu0 0.0
    %6430 = vmatmul.mubr.f32.gmra.mxu0 %v6071
    %v6431 = vpop.f32.mrf.mxu0
    %v6432 = vadd.f32 0.0, %v6431
    %v6433 = vpop.f32.mrf.mxu0
    %6434 = vmatprep.mubr.f32.mxu0 0.0
    %6435 = vmatmul.mubr.f32.gmra.mxu0 %v6074
    %v6436 = vpop.f32.mrf.mxu0
    %v6437 = vadd.f32 0.0, %v6436
    %v6438 = vpop.f32.mrf.mxu0
    %6439 = vmatprep.mubr.f32.mxu0 0.0
    %6440 = vmatmul.mubr.f32.gmra.mxu0 %v6077
    %v6441 = vpop.f32.mrf.mxu0
    %v6442 = vadd.f32 0.0, %v6441
    %v6443 = vpop.f32.mrf.mxu0
    %6444 = vmatprep.mubr.f32.mxu0 0.0
    %6445 = vmatmul.mubr.f32.gmra.mxu0 %v6080
    %v6446 = vpop.f32.mrf.mxu0
    %v6447 = vadd.f32 0.0, %v6446
    %v6448 = vpop.f32.mrf.mxu0
    %6449 = vmatprep.mubr.f32.mxu0 0.0
    %6450 = vmatmul.mubr.f32.gmra.mxu0 %v6083
    %v6451 = vpop.f32.mrf.mxu0
    %v6452 = vadd.f32 0.0, %v6451
    %v6453 = vpop.f32.mrf.mxu0
    %6454 = vmatprep.mubr.f32.mxu0 0.0
    %6455 = vmatmul.mubr.f32.gmra.mxu0 %v6086
    %v6456 = vpop.f32.mrf.mxu0
    %v6457 = vadd.f32 0.0, %v6456
    %v6458 = vpop.f32.mrf.mxu0
    %6459 = vmatprep.mubr.f32.mxu0 0.0
    %6460 = vmatmul.mubr.f32.gmra.mxu0 %v6089
    %v6461 = vpop.f32.mrf.mxu0
    %v6462 = vadd.f32 0.0, %v6461
    %v6463 = vpop.f32.mrf.mxu0
    %6464 = vmatprep.mubr.f32.mxu0 0.0
    %6465 = vmatmul.mubr.f32.gmra.mxu0 %v6092
    %v6466 = vpop.f32.mrf.mxu0
    %v6467 = vadd.f32 0.0, %v6466
    %v6468 = vpop.f32.mrf.mxu0
    %6469 = vmatprep.mubr.f32.mxu0 0.0
    %6470 = vmatmul.mubr.f32.gmra.mxu0 %v6095
    %v6471 = vpop.f32.mrf.mxu0
    %v6472 = vadd.f32 0.0, %v6471
    %v6473 = vpop.f32.mrf.mxu0
    %6474 = vmatprep.mubr.f32.mxu0 0.0
    %6475 = vmatmul.mubr.f32.gmra.mxu0 %v6098
    %v6476 = vpop.f32.mrf.mxu0
    %v6477 = vadd.f32 0.0, %v6476
    %v6478 = vpop.f32.mrf.mxu0
    %6479 = vmatprep.mubr.f32.mxu0 0.0
    %6480 = vmatmul.mubr.f32.gmra.mxu0 %v6101
    %v6481 = vpop.f32.mrf.mxu0
    %v6482 = vadd.f32 0.0, %v6481
    %v6483 = vpop.f32.mrf.mxu0
    %6484 = vmatprep.mubr.f32.mxu0 0.0
    %6485 = vmatmul.mubr.f32.gmra.mxu0 %v6104
    %v6486 = vpop.f32.mrf.mxu0
    %v6487 = vadd.f32 0.0, %v6486
    %v6488 = vpop.f32.mrf.mxu0
    %6489 = vmatprep.mubr.f32.mxu0 0.0
    %6490 = vmatmul.mubr.f32.gmra.mxu0 %v6107
    %v6491 = vpop.f32.mrf.mxu0
    %v6492 = vadd.f32 0.0, %v6491
    %v6493 = vpop.f32.mrf.mxu0
    %6494 = vmatprep.mubr.f32.mxu0 0.0
    %6495 = vmatmul.mubr.f32.gmra.mxu0 %v6110
    %v6496 = vpop.f32.mrf.mxu0
    %v6497 = vadd.f32 0.0, %v6496
    %v6498 = vpop.f32.mrf.mxu0
    %6499 = vdwg.mxu0
    %v6500 = vadd.f32 %v5790, %v6182
    %v6501 = vadd.f32 %v5791, %v6187
    %v6502 = vadd.f32 %v5792, %v6192
    %v6503 = vadd.f32 %v5793, %v6197
    %v6504 = vadd.f32 %v5794, %v6202
    %v6505 = vadd.f32 %v5795, %v6207
    %v6506 = vadd.f32 %v5796, %v6212
    %v6507 = vadd.f32 %v5797, %v6217
    %v6508 = vadd.f32 %v5798, %v6222
    %v6509 = vadd.f32 %v5799, %v6227
    %v6510 = vadd.f32 %v5800, %v6232
    %v6511 = vadd.f32 %v5801, %v6237
    %v6512 = vadd.f32 %v5802, %v6242
    %v6513 = vadd.f32 %v5803, %v6247
    %v6514 = vadd.f32 %v5804, %v6252
    %v6515 = vadd.f32 %v5805, %v6257
    %v6516 = vadd.f32 %v5806, %v6262
    %v6517 = vadd.f32 %v5807, %v6267
    %v6518 = vadd.f32 %v5808, %v6272
    %v6519 = vadd.f32 %v5809, %v6277
    %v6520 = vadd.f32 %v5810, %v6282
    %v6521 = vadd.f32 %v5811, %v6287
    %v6522 = vadd.f32 %v5812, %v6292
    %v6523 = vadd.f32 %v5813, %v6297
    %v6524 = vadd.f32 %v5814, %v6302
    %v6525 = vadd.f32 %v5815, %v6307
    %v6526 = vadd.f32 %v5816, %v6312
    %v6527 = vadd.f32 %v5817, %v6317
    %v6528 = vadd.f32 %v5818, %v6322
    %v6529 = vadd.f32 %v5819, %v6327
    %v6530 = vadd.f32 %v5820, %v6332
    %v6531 = vadd.f32 %v5821, %v6337
    %v6532 = vadd.f32 %v5822, %v6342
    %v6533 = vadd.f32 %v5823, %v6347
    %v6534 = vadd.f32 %v5824, %v6352
    %v6535 = vadd.f32 %v5825, %v6357
    %v6536 = vadd.f32 %v5826, %v6362
    %v6537 = vadd.f32 %v5827, %v6367
    %v6538 = vadd.f32 %v5828, %v6372
    %v6539 = vadd.f32 %v5829, %v6377
    %v6540 = vadd.f32 %v5830, %v6382
    %v6541 = vadd.f32 %v5831, %v6387
    %v6542 = vadd.f32 %v5832, %v6392
    %v6543 = vadd.f32 %v5833, %v6397
    %v6544 = vadd.f32 %v5834, %v6402
    %v6545 = vadd.f32 %v5835, %v6407
    %v6546 = vadd.f32 %v5836, %v6412
    %v6547 = vadd.f32 %v5837, %v6417
    %v6548 = vadd.f32 %v5838, %v6422
    %v6549 = vadd.f32 %v5839, %v6427
    %v6550 = vadd.f32 %v5840, %v6432
    %v6551 = vadd.f32 %v5841, %v6437
    %v6552 = vadd.f32 %v5842, %v6442
    %v6553 = vadd.f32 %v5843, %v6447
    %v6554 = vadd.f32 %v5844, %v6452
    %v6555 = vadd.f32 %v5845, %v6457
    %v6556 = vadd.f32 %v5846, %v6462
    %v6557 = vadd.f32 %v5847, %v6467
    %v6558 = vadd.f32 %v5848, %v6472
    %v6559 = vadd.f32 %v5849, %v6477
    %v6560 = vadd.f32 %v5850, %v6482
    %v6561 = vadd.f32 %v5851, %v6487
    %v6562 = vadd.f32 %v5852, %v6492
    %v6563 = vadd.f32 %v5853, %v6497
    %v6564 = vld [vmem:[%s2] sm:$0x1]
    %v6566 = vlaneseq
    %v6567 = vshrl.u32 %v6566, 7
    %v6568 = vsub.s32 0, %v6567
    %v6569 = vrot.slane %v6564, %v6568
    %v6571 = vadd.f32 %v6500, %v6569
    %v6572 = vadd.f32 %v6501, %v6569
    %v6573 = vadd.f32 %v6502, %v6569
    %v6574 = vadd.f32 %v6503, %v6569
    %v6575 = vadd.f32 %v6504, %v6569
    %v6576 = vadd.f32 %v6505, %v6569
    %v6577 = vadd.f32 %v6506, %v6569
    %v6578 = vadd.f32 %v6507, %v6569
    %v6579 = vadd.f32 %v6508, %v6569
    %v6580 = vadd.f32 %v6509, %v6569
    %v6581 = vadd.f32 %v6510, %v6569
    %v6582 = vadd.f32 %v6511, %v6569
    %v6583 = vadd.f32 %v6512, %v6569
    %v6584 = vadd.f32 %v6513, %v6569
    %v6585 = vadd.f32 %v6514, %v6569
    %v6586 = vadd.f32 %v6515, %v6569
    %v6587 = vadd.f32 %v6516, %v6569
    %v6588 = vadd.f32 %v6517, %v6569
    %v6589 = vadd.f32 %v6518, %v6569
    %v6590 = vadd.f32 %v6519, %v6569
    %v6591 = vadd.f32 %v6520, %v6569
    %v6592 = vadd.f32 %v6521, %v6569
    %v6593 = vadd.f32 %v6522, %v6569
    %v6594 = vadd.f32 %v6523, %v6569
    %v6595 = vadd.f32 %v6524, %v6569
    %v6596 = vadd.f32 %v6525, %v6569
    %v6597 = vadd.f32 %v6526, %v6569
    %v6598 = vadd.f32 %v6527, %v6569
    %v6599 = vadd.f32 %v6528, %v6569
    %v6600 = vadd.f32 %v6529, %v6569
    %v6601 = vadd.f32 %v6530, %v6569
    %v6602 = vadd.f32 %v6531, %v6569
    %v6603 = vadd.f32 %v6532, %v6569
    %v6604 = vadd.f32 %v6533, %v6569
    %v6605 = vadd.f32 %v6534, %v6569
    %v6606 = vadd.f32 %v6535, %v6569
    %v6607 = vadd.f32 %v6536, %v6569
    %v6608 = vadd.f32 %v6537, %v6569
    %v6609 = vadd.f32 %v6538, %v6569
    %v6610 = vadd.f32 %v6539, %v6569
    %v6611 = vadd.f32 %v6540, %v6569
    %v6612 = vadd.f32 %v6541, %v6569
    %v6613 = vadd.f32 %v6542, %v6569
    %v6614 = vadd.f32 %v6543, %v6569
    %v6615 = vadd.f32 %v6544, %v6569
    %v6616 = vadd.f32 %v6545, %v6569
    %v6617 = vadd.f32 %v6546, %v6569
    %v6618 = vadd.f32 %v6547, %v6569
    %v6619 = vadd.f32 %v6548, %v6569
    %v6620 = vadd.f32 %v6549, %v6569
    %v6621 = vadd.f32 %v6550, %v6569
    %v6622 = vadd.f32 %v6551, %v6569
    %v6623 = vadd.f32 %v6552, %v6569
    %v6624 = vadd.f32 %v6553, %v6569
    %v6625 = vadd.f32 %v6554, %v6569
    %v6626 = vadd.f32 %v6555, %v6569
    %v6627 = vadd.f32 %v6556, %v6569
    %v6628 = vadd.f32 %v6557, %v6569
    %v6629 = vadd.f32 %v6558, %v6569
    %v6630 = vadd.f32 %v6559, %v6569
    %v6631 = vadd.f32 %v6560, %v6569
    %v6632 = vadd.f32 %v6561, %v6569
    %v6633 = vadd.f32 %v6562, %v6569
    %v6634 = vadd.f32 %v6563, %v6569
    %v6635 = vmax.f32 %v6571, 0.0
    %v6636 = vmax.f32 %v6572, 0.0
    %v6637 = vmax.f32 %v6573, 0.0
    %v6638 = vmax.f32 %v6574, 0.0
    %v6639 = vmax.f32 %v6575, 0.0
    %v6640 = vmax.f32 %v6576, 0.0
    %v6641 = vmax.f32 %v6577, 0.0
    %v6642 = vmax.f32 %v6578, 0.0
    %v6643 = vmax.f32 %v6579, 0.0
    %v6644 = vmax.f32 %v6580, 0.0
    %v6645 = vmax.f32 %v6581, 0.0
    %v6646 = vmax.f32 %v6582, 0.0
    %v6647 = vmax.f32 %v6583, 0.0
    %v6648 = vmax.f32 %v6584, 0.0
    %v6649 = vmax.f32 %v6585, 0.0
    %v6650 = vmax.f32 %v6586, 0.0
    %v6651 = vmax.f32 %v6587, 0.0
    %v6652 = vmax.f32 %v6588, 0.0
    %v6653 = vmax.f32 %v6589, 0.0
    %v6654 = vmax.f32 %v6590, 0.0
    %v6655 = vmax.f32 %v6591, 0.0
    %v6656 = vmax.f32 %v6592, 0.0
    %v6657 = vmax.f32 %v6593, 0.0
    %v6658 = vmax.f32 %v6594, 0.0
    %v6659 = vmax.f32 %v6595, 0.0
    %v6660 = vmax.f32 %v6596, 0.0
    %v6661 = vmax.f32 %v6597, 0.0
    %v6662 = vmax.f32 %v6598, 0.0
    %v6663 = vmax.f32 %v6599, 0.0
    %v6664 = vmax.f32 %v6600, 0.0
    %v6665 = vmax.f32 %v6601, 0.0
    %v6666 = vmax.f32 %v6602, 0.0
    %v6667 = vmax.f32 %v6603, 0.0
    %v6668 = vmax.f32 %v6604, 0.0
    %v6669 = vmax.f32 %v6605, 0.0
    %v6670 = vmax.f32 %v6606, 0.0
    %v6671 = vmax.f32 %v6607, 0.0
    %v6672 = vmax.f32 %v6608, 0.0
    %v6673 = vmax.f32 %v6609, 0.0
    %v6674 = vmax.f32 %v6610, 0.0
    %v6675 = vmax.f32 %v6611, 0.0
    %v6676 = vmax.f32 %v6612, 0.0
    %v6677 = vmax.f32 %v6613, 0.0
    %v6678 = vmax.f32 %v6614, 0.0
    %v6679 = vmax.f32 %v6615, 0.0
    %v6680 = vmax.f32 %v6616, 0.0
    %v6681 = vmax.f32 %v6617, 0.0
    %v6682 = vmax.f32 %v6618, 0.0
    %v6683 = vmax.f32 %v6619, 0.0
    %v6684 = vmax.f32 %v6620, 0.0
    %v6685 = vmax.f32 %v6621, 0.0
    %v6686 = vmax.f32 %v6622, 0.0
    %v6687 = vmax.f32 %v6623, 0.0
    %v6688 = vmax.f32 %v6624, 0.0
    %v6689 = vmax.f32 %v6625, 0.0
    %v6690 = vmax.f32 %v6626, 0.0
    %v6691 = vmax.f32 %v6627, 0.0
    %v6692 = vmax.f32 %v6628, 0.0
    %v6693 = vmax.f32 %v6629, 0.0
    %v6694 = vmax.f32 %v6630, 0.0
    %v6695 = vmax.f32 %v6631, 0.0
    %v6696 = vmax.f32 %v6632, 0.0
    %v6697 = vmax.f32 %v6633, 0.0
    %v6698 = vmax.f32 %v6634, 0.0
    %vm6699 = vcmask 64512
    %6700 = vst.msk [vmem:[#allocation3] sm:$0xff] %vm6699, 0.0
    %6701 = vst.msk [vmem:[#allocation3 + $0x8] sm:$0xff] %vm6699, 0.0
    %6702 = vst.msk [vmem:[#allocation3 + $0x10] sm:$0xff] %vm6699, 0.0
    %6703 = vst.msk [vmem:[#allocation3 + $0x18] sm:$0xff] %vm6699, 0.0
    %6704 = vst.msk [vmem:[#allocation3 + $0x20] sm:$0xff] %vm6699, 0.0
    %6705 = vst.msk [vmem:[#allocation3 + $0x28] sm:$0xff] %vm6699, 0.0
    %6706 = vst.msk [vmem:[#allocation3 + $0x30] sm:$0xff] %vm6699, 0.0
    %6707 = vst.msk [vmem:[#allocation3 + $0x38] sm:$0xff] %vm6699, 0.0
    %6708 = vst.msk [vmem:[#allocation3 + $0x40] sm:$0xff] %vm6699, 0.0
    %6709 = vst.msk [vmem:[#allocation3 + $0x48] sm:$0xff] %vm6699, 0.0
    %6710 = vst.msk [vmem:[#allocation3 + $0x50] sm:$0xff] %vm6699, 0.0
    %6711 = vst.msk [vmem:[#allocation3 + $0x58] sm:$0xff] %vm6699, 0.0
    %6712 = vst.msk [vmem:[#allocation3 + $0x60] sm:$0xff] %vm6699, 0.0
    %6713 = vst.msk [vmem:[#allocation3 + $0x68] sm:$0xff] %vm6699, 0.0
    %6714 = vst.msk [vmem:[#allocation3 + $0x70] sm:$0xff] %vm6699, 0.0
    %6715 = vst.msk [vmem:[#allocation3 + $0x78] sm:$0xff] %vm6699, 0.0
    %6716 = vst.msk [vmem:[#allocation3 + $0x80] sm:$0xff] %vm6699, 0.0
    %6717 = vst.msk [vmem:[#allocation3 + $0x88] sm:$0xff] %vm6699, 0.0
    %6718 = vst.msk [vmem:[#allocation3 + $0x90] sm:$0xff] %vm6699, 0.0
    %6719 = vst.msk [vmem:[#allocation3 + $0x98] sm:$0xff] %vm6699, 0.0
    %6720 = vst.msk [vmem:[#allocation3 + $0xa0] sm:$0xff] %vm6699, 0.0
    %6721 = vst.msk [vmem:[#allocation3 + $0xa8] sm:$0xff] %vm6699, 0.0
    %6722 = vst.msk [vmem:[#allocation3 + $0xb0] sm:$0xff] %vm6699, 0.0
    %6723 = vst.msk [vmem:[#allocation3 + $0xb8] sm:$0xff] %vm6699, 0.0
    %6724 = vst.msk [vmem:[#allocation3 + $0xc0] sm:$0xff] %vm6699, 0.0
    %6725 = vst.msk [vmem:[#allocation3 + $0xc8] sm:$0xff] %vm6699, 0.0
    %6726 = vst.msk [vmem:[#allocation3 + $0xd0] sm:$0xff] %vm6699, 0.0
    %6727 = vst.msk [vmem:[#allocation3 + $0xd8] sm:$0xff] %vm6699, 0.0
    %6728 = vst.msk [vmem:[#allocation3 + $0xe0] sm:$0xff] %vm6699, 0.0
    %6729 = vst.msk [vmem:[#allocation3 + $0xe8] sm:$0xff] %vm6699, 0.0
    %6730 = vst.msk [vmem:[#allocation3 + $0xf0] sm:$0xff] %vm6699, 0.0
    %6731 = vst.msk [vmem:[#allocation3 + $0xf8] sm:$0xff] %vm6699, 0.0
    %6732 = vst.msk [vmem:[#allocation3 + $0x100] sm:$0xff] %vm6699, 0.0
    %6733 = vst.msk [vmem:[#allocation3 + $0x108] sm:$0xff] %vm6699, 0.0
    %6734 = vst.msk [vmem:[#allocation3 + $0x110] sm:$0xff] %vm6699, 0.0
    %6735 = vst.msk [vmem:[#allocation3 + $0x118] sm:$0xff] %vm6699, 0.0
    %6736 = vst.msk [vmem:[#allocation3 + $0x120] sm:$0xff] %vm6699, 0.0
    %6737 = vst.msk [vmem:[#allocation3 + $0x128] sm:$0xff] %vm6699, 0.0
    %6738 = vst.msk [vmem:[#allocation3 + $0x130] sm:$0xff] %vm6699, 0.0
    %6739 = vst.msk [vmem:[#allocation3 + $0x138] sm:$0xff] %vm6699, 0.0
    %6740 = vst.msk [vmem:[#allocation3 + $0x140] sm:$0xff] %vm6699, 0.0
    %6741 = vst.msk [vmem:[#allocation3 + $0x148] sm:$0xff] %vm6699, 0.0
    %6742 = vst.msk [vmem:[#allocation3 + $0x150] sm:$0xff] %vm6699, 0.0
    %6743 = vst.msk [vmem:[#allocation3 + $0x158] sm:$0xff] %vm6699, 0.0
    %6744 = vst.msk [vmem:[#allocation3 + $0x160] sm:$0xff] %vm6699, 0.0
    %6745 = vst.msk [vmem:[#allocation3 + $0x168] sm:$0xff] %vm6699, 0.0
    %6746 = vst.msk [vmem:[#allocation3 + $0x170] sm:$0xff] %vm6699, 0.0
    %6747 = vst.msk [vmem:[#allocation3 + $0x178] sm:$0xff] %vm6699, 0.0
    %6748 = vst.msk [vmem:[#allocation3 + $0x180] sm:$0xff] %vm6699, 0.0
    %6749 = vst.msk [vmem:[#allocation3 + $0x188] sm:$0xff] %vm6699, 0.0
    %6750 = vst.msk [vmem:[#allocation3 + $0x190] sm:$0xff] %vm6699, 0.0
    %6751 = vst.msk [vmem:[#allocation3 + $0x198] sm:$0xff] %vm6699, 0.0
    %6752 = vst.msk [vmem:[#allocation3 + $0x1a0] sm:$0xff] %vm6699, 0.0
    %6753 = vst.msk [vmem:[#allocation3 + $0x1a8] sm:$0xff] %vm6699, 0.0
    %6754 = vst.msk [vmem:[#allocation3 + $0x1b0] sm:$0xff] %vm6699, 0.0
    %6755 = vst.msk [vmem:[#allocation3 + $0x1b8] sm:$0xff] %vm6699, 0.0
    %6756 = vst.msk [vmem:[#allocation3 + $0x1c0] sm:$0xff] %vm6699, 0.0
    %6757 = vst.msk [vmem:[#allocation3 + $0x1c8] sm:$0xff] %vm6699, 0.0
    %6758 = vst.msk [vmem:[#allocation3 + $0x1d0] sm:$0xff] %vm6699, 0.0
    %6759 = vst.msk [vmem:[#allocation3 + $0x1d8] sm:$0xff] %vm6699, 0.0
    %6760 = vst.msk [vmem:[#allocation3 + $0x1e0] sm:$0xff] %vm6699, 0.0
    %6761 = vst.msk [vmem:[#allocation3 + $0x1e8] sm:$0xff] %vm6699, 0.0
    %6762 = vst.msk [vmem:[#allocation3 + $0x1f0] sm:$0xff] %vm6699, 0.0
    %6763 = vst.msk [vmem:[#allocation3 + $0x1f8] sm:$0xff] %vm6699, 0.0
    %6764 = vst.msk [vmem:[#allocation3 + $0x200] sm:$0xff] %vm6699, 0.0
    %6765 = vst.msk [vmem:[#allocation3 + $0x208] sm:$0xff] %vm6699, 0.0
    %6766 = vst.msk [vmem:[#allocation3 + $0x210] sm:$0xff] %vm6699, 0.0
    %6767 = vst.msk [vmem:[#allocation3 + $0x218] sm:$0xff] %vm6699, 0.0
    %6768 = vst.msk [vmem:[#allocation3 + $0x220] sm:$0xff] %vm6699, 0.0
    %6769 = vst.msk [vmem:[#allocation3 + $0x228] sm:$0xff] %vm6699, 0.0
    %6770 = vst.msk [vmem:[#allocation3 + $0x230] sm:$0xff] %vm6699, 0.0
    %6771 = vst.msk [vmem:[#allocation3 + $0x238] sm:$0xff] %vm6699, 0.0
    %6772 = vst.msk [vmem:[#allocation3 + $0x240] sm:$0xff] %vm6699, 0.0
    %6773 = vst.msk [vmem:[#allocation3 + $0x248] sm:$0xff] %vm6699, 0.0
    %6774 = vst.msk [vmem:[#allocation3 + $0x250] sm:$0xff] %vm6699, 0.0
    %6775 = vst.msk [vmem:[#allocation3 + $0x258] sm:$0xff] %vm6699, 0.0
    %6776 = vst.msk [vmem:[#allocation3 + $0x260] sm:$0xff] %vm6699, 0.0
    %6777 = vst.msk [vmem:[#allocation3 + $0x268] sm:$0xff] %vm6699, 0.0
    %6778 = vst.msk [vmem:[#allocation3 + $0x270] sm:$0xff] %vm6699, 0.0
    %6779 = vst.msk [vmem:[#allocation3 + $0x278] sm:$0xff] %vm6699, 0.0
    %6780 = vst.msk [vmem:[#allocation3 + $0x280] sm:$0xff] %vm6699, 0.0
    %6781 = vst.msk [vmem:[#allocation3 + $0x288] sm:$0xff] %vm6699, 0.0
    %6782 = vst.msk [vmem:[#allocation3 + $0x290] sm:$0xff] %vm6699, 0.0
    %6783 = vst.msk [vmem:[#allocation3 + $0x298] sm:$0xff] %vm6699, 0.0
    %6784 = vst.msk [vmem:[#allocation3 + $0x2a0] sm:$0xff] %vm6699, 0.0
    %6785 = vst.msk [vmem:[#allocation3 + $0x2a8] sm:$0xff] %vm6699, 0.0
    %6786 = vst.msk [vmem:[#allocation3 + $0x2b0] sm:$0xff] %vm6699, 0.0
    %6787 = vst.msk [vmem:[#allocation3 + $0x2b8] sm:$0xff] %vm6699, 0.0
    %6788 = vst.msk [vmem:[#allocation3 + $0x2c0] sm:$0xff] %vm6699, 0.0
    %6789 = vst.msk [vmem:[#allocation3 + $0x2c8] sm:$0xff] %vm6699, 0.0
    %6790 = vst.msk [vmem:[#allocation3 + $0x2d0] sm:$0xff] %vm6699, 0.0
    %6791 = vst.msk [vmem:[#allocation3 + $0x2d8] sm:$0xff] %vm6699, 0.0
    %6792 = vst.msk [vmem:[#allocation3 + $0x2e0] sm:$0xff] %vm6699, 0.0
    %6793 = vst.msk [vmem:[#allocation3 + $0x2e8] sm:$0xff] %vm6699, 0.0
    %6794 = vst.msk [vmem:[#allocation3 + $0x2f0] sm:$0xff] %vm6699, 0.0
    %6795 = vst.msk [vmem:[#allocation3 + $0x2f8] sm:$0xff] %vm6699, 0.0
    %6796 = vst.msk [vmem:[#allocation3 + $0x300] sm:$0xff] %vm6699, 0.0
    %6797 = vst.msk [vmem:[#allocation3 + $0x308] sm:$0xff] %vm6699, 0.0
    %6798 = vst.msk [vmem:[#allocation3 + $0x310] sm:$0xff] %vm6699, 0.0
    %6799 = vst.msk [vmem:[#allocation3 + $0x318] sm:$0xff] %vm6699, 0.0
    %6800 = vst.msk [vmem:[#allocation3 + $0x320] sm:$0xff] %vm6699, 0.0
    %6801 = vst.msk [vmem:[#allocation3 + $0x328] sm:$0xff] %vm6699, 0.0
    %6802 = vst.msk [vmem:[#allocation3 + $0x330] sm:$0xff] %vm6699, 0.0
    %6803 = vst.msk [vmem:[#allocation3 + $0x338] sm:$0xff] %vm6699, 0.0
    %6804 = vst.msk [vmem:[#allocation3 + $0x340] sm:$0xff] %vm6699, 0.0
    %6805 = vst.msk [vmem:[#allocation3 + $0x348] sm:$0xff] %vm6699, 0.0
    %6806 = vst.msk [vmem:[#allocation3 + $0x350] sm:$0xff] %vm6699, 0.0
    %6807 = vst.msk [vmem:[#allocation3 + $0x358] sm:$0xff] %vm6699, 0.0
    %6808 = vst.msk [vmem:[#allocation3 + $0x360] sm:$0xff] %vm6699, 0.0
    %6809 = vst.msk [vmem:[#allocation3 + $0x368] sm:$0xff] %vm6699, 0.0
    %6810 = vst.msk [vmem:[#allocation3 + $0x370] sm:$0xff] %vm6699, 0.0
    %6811 = vst.msk [vmem:[#allocation3 + $0x378] sm:$0xff] %vm6699, 0.0
    %6812 = vst.msk [vmem:[#allocation3 + $0x380] sm:$0xff] %vm6699, 0.0
    %6813 = vst.msk [vmem:[#allocation3 + $0x388] sm:$0xff] %vm6699, 0.0
    %6814 = vst.msk [vmem:[#allocation3 + $0x390] sm:$0xff] %vm6699, 0.0
    %6815 = vst.msk [vmem:[#allocation3 + $0x398] sm:$0xff] %vm6699, 0.0
    %6816 = vst.msk [vmem:[#allocation3 + $0x3a0] sm:$0xff] %vm6699, 0.0
    %6817 = vst.msk [vmem:[#allocation3 + $0x3a8] sm:$0xff] %vm6699, 0.0
    %6818 = vst.msk [vmem:[#allocation3 + $0x3b0] sm:$0xff] %vm6699, 0.0
    %6819 = vst.msk [vmem:[#allocation3 + $0x3b8] sm:$0xff] %vm6699, 0.0
    %6820 = vst.msk [vmem:[#allocation3 + $0x3c0] sm:$0xff] %vm6699, 0.0
    %6821 = vst.msk [vmem:[#allocation3 + $0x3c8] sm:$0xff] %vm6699, 0.0
    %6822 = vst.msk [vmem:[#allocation3 + $0x3d0] sm:$0xff] %vm6699, 0.0
    %6823 = vst.msk [vmem:[#allocation3 + $0x3d8] sm:$0xff] %vm6699, 0.0
    %6824 = vst.msk [vmem:[#allocation3 + $0x3e0] sm:$0xff] %vm6699, 0.0
    %6825 = vst.msk [vmem:[#allocation3 + $0x3e8] sm:$0xff] %vm6699, 0.0
    %6826 = vst.msk [vmem:[#allocation3 + $0x3f0] sm:$0xff] %vm6699, 0.0
    %6827 = vst.msk [vmem:[#allocation3 + $0x3f8] sm:$0xff] %vm6699, 0.0
    %6828 = vst.msk [vmem:[#allocation3 + $0x400] sm:$0xff] %vm6699, 0.0
    %6829 = vst.msk [vmem:[#allocation3 + $0x408] sm:$0xff] %vm6699, 0.0
    %6830 = vst.msk [vmem:[#allocation3 + $0x410] sm:$0xff] %vm6699, 0.0
    %6831 = vst.msk [vmem:[#allocation3 + $0x418] sm:$0xff] %vm6699, 0.0
    %6832 = vst.msk [vmem:[#allocation3 + $0x420] sm:$0xff] %vm6699, 0.0
    %6833 = vst.msk [vmem:[#allocation3 + $0x428] sm:$0xff] %vm6699, 0.0
    %6834 = vst.msk [vmem:[#allocation3 + $0x430] sm:$0xff] %vm6699, 0.0
    %6835 = vst.msk [vmem:[#allocation3 + $0x438] sm:$0xff] %vm6699, 0.0
    %6836 = vst.msk [vmem:[#allocation3 + $0x440] sm:$0xff] %vm6699, 0.0
    %6837 = vst.msk [vmem:[#allocation3 + $0x448] sm:$0xff] %vm6699, 0.0
    %6838 = vst.msk [vmem:[#allocation3 + $0x450] sm:$0xff] %vm6699, 0.0
    %6839 = vst.msk [vmem:[#allocation3 + $0x458] sm:$0xff] %vm6699, 0.0
    %6840 = vst.msk [vmem:[#allocation3 + $0x460] sm:$0xff] %vm6699, 0.0
    %6841 = vst.msk [vmem:[#allocation3 + $0x468] sm:$0xff] %vm6699, 0.0
    %6842 = vst.msk [vmem:[#allocation3 + $0x470] sm:$0xff] %vm6699, 0.0
    %6843 = vst.msk [vmem:[#allocation3 + $0x478] sm:$0xff] %vm6699, 0.0
    %s6844 = scalar_lea.vmem [#allocation3], 32
    %6845 = vst.msk [vmem:[%s6844 + $0x8] sm:$0xff] %vm6699, %v6635
    %6846 = vst.msk [vmem:[%s6844 + $0x10] sm:$0xff] %vm6699, %v6636
    %6847 = vst.msk [vmem:[%s6844 + $0x28] sm:$0xff] %vm6699, %v6637
    %6848 = vst.msk [vmem:[%s6844 + $0x30] sm:$0xff] %vm6699, %v6638
    %6849 = vst.msk [vmem:[%s6844 + $0x48] sm:$0xff] %vm6699, %v6639
    %6850 = vst.msk [vmem:[%s6844 + $0x50] sm:$0xff] %vm6699, %v6640
    %6851 = vst.msk [vmem:[%s6844 + $0x68] sm:$0xff] %vm6699, %v6641
    %6852 = vst.msk [vmem:[%s6844 + $0x70] sm:$0xff] %vm6699, %v6642
    %6853 = vst.msk [vmem:[%s6844 + $0x88] sm:$0xff] %vm6699, %v6643
    %6854 = vst.msk [vmem:[%s6844 + $0x90] sm:$0xff] %vm6699, %v6644
    %6855 = vst.msk [vmem:[%s6844 + $0xa8] sm:$0xff] %vm6699, %v6645
    %6856 = vst.msk [vmem:[%s6844 + $0xb0] sm:$0xff] %vm6699, %v6646
    %6857 = vst.msk [vmem:[%s6844 + $0xc8] sm:$0xff] %vm6699, %v6647
    %6858 = vst.msk [vmem:[%s6844 + $0xd0] sm:$0xff] %vm6699, %v6648
    %6859 = vst.msk [vmem:[%s6844 + $0xe8] sm:$0xff] %vm6699, %v6649
    %6860 = vst.msk [vmem:[%s6844 + $0xf0] sm:$0xff] %vm6699, %v6650
    %6861 = vst.msk [vmem:[%s6844 + $0x108] sm:$0xff] %vm6699, %v6651
    %6862 = vst.msk [vmem:[%s6844 + $0x110] sm:$0xff] %vm6699, %v6652
    %6863 = vst.msk [vmem:[%s6844 + $0x128] sm:$0xff] %vm6699, %v6653
    %6864 = vst.msk [vmem:[%s6844 + $0x130] sm:$0xff] %vm6699, %v6654
    %6865 = vst.msk [vmem:[%s6844 + $0x148] sm:$0xff] %vm6699, %v6655
    %6866 = vst.msk [vmem:[%s6844 + $0x150] sm:$0xff] %vm6699, %v6656
    %6867 = vst.msk [vmem:[%s6844 + $0x168] sm:$0xff] %vm6699, %v6657
    %6868 = vst.msk [vmem:[%s6844 + $0x170] sm:$0xff] %vm6699, %v6658
    %6869 = vst.msk [vmem:[%s6844 + $0x188] sm:$0xff] %vm6699, %v6659
    %6870 = vst.msk [vmem:[%s6844 + $0x190] sm:$0xff] %vm6699, %v6660
    %6871 = vst.msk [vmem:[%s6844 + $0x1a8] sm:$0xff] %vm6699, %v6661
    %6872 = vst.msk [vmem:[%s6844 + $0x1b0] sm:$0xff] %vm6699, %v6662
    %6873 = vst.msk [vmem:[%s6844 + $0x1c8] sm:$0xff] %vm6699, %v6663
    %6874 = vst.msk [vmem:[%s6844 + $0x1d0] sm:$0xff] %vm6699, %v6664
    %6875 = vst.msk [vmem:[%s6844 + $0x1e8] sm:$0xff] %vm6699, %v6665
    %6876 = vst.msk [vmem:[%s6844 + $0x1f0] sm:$0xff] %vm6699, %v6666
    %6877 = vst.msk [vmem:[%s6844 + $0x248] sm:$0xff] %vm6699, %v6667
    %6878 = vst.msk [vmem:[%s6844 + $0x250] sm:$0xff] %vm6699, %v6668
    %6879 = vst.msk [vmem:[%s6844 + $0x268] sm:$0xff] %vm6699, %v6669
    %6880 = vst.msk [vmem:[%s6844 + $0x270] sm:$0xff] %vm6699, %v6670
    %6881 = vst.msk [vmem:[%s6844 + $0x288] sm:$0xff] %vm6699, %v6671
    %6882 = vst.msk [vmem:[%s6844 + $0x290] sm:$0xff] %vm6699, %v6672
    %6883 = vst.msk [vmem:[%s6844 + $0x2a8] sm:$0xff] %vm6699, %v6673
    %6884 = vst.msk [vmem:[%s6844 + $0x2b0] sm:$0xff] %vm6699, %v6674
    %6885 = vst.msk [vmem:[%s6844 + $0x2c8] sm:$0xff] %vm6699, %v6675
    %6886 = vst.msk [vmem:[%s6844 + $0x2d0] sm:$0xff] %vm6699, %v6676
    %6887 = vst.msk [vmem:[%s6844 + $0x2e8] sm:$0xff] %vm6699, %v6677
    %6888 = vst.msk [vmem:[%s6844 + $0x2f0] sm:$0xff] %vm6699, %v6678
    %6889 = vst.msk [vmem:[%s6844 + $0x308] sm:$0xff] %vm6699, %v6679
    %6890 = vst.msk [vmem:[%s6844 + $0x310] sm:$0xff] %vm6699, %v6680
    %6891 = vst.msk [vmem:[%s6844 + $0x328] sm:$0xff] %vm6699, %v6681
    %6892 = vst.msk [vmem:[%s6844 + $0x330] sm:$0xff] %vm6699, %v6682
    %6893 = vst.msk [vmem:[%s6844 + $0x348] sm:$0xff] %vm6699, %v6683
    %6894 = vst.msk [vmem:[%s6844 + $0x350] sm:$0xff] %vm6699, %v6684
    %6895 = vst.msk [vmem:[%s6844 + $0x368] sm:$0xff] %vm6699, %v6685
    %6896 = vst.msk [vmem:[%s6844 + $0x370] sm:$0xff] %vm6699, %v6686
    %6897 = vst.msk [vmem:[%s6844 + $0x388] sm:$0xff] %vm6699, %v6687
    %6898 = vst.msk [vmem:[%s6844 + $0x390] sm:$0xff] %vm6699, %v6688
    %6899 = vst.msk [vmem:[%s6844 + $0x3a8] sm:$0xff] %vm6699, %v6689
    %6900 = vst.msk [vmem:[%s6844 + $0x3b0] sm:$0xff] %vm6699, %v6690
    %6901 = vst.msk [vmem:[%s6844 + $0x3c8] sm:$0xff] %vm6699, %v6691
    %6902 = vst.msk [vmem:[%s6844 + $0x3d0] sm:$0xff] %vm6699, %v6692
    %6903 = vst.msk [vmem:[%s6844 + $0x3e8] sm:$0xff] %vm6699, %v6693
    %6904 = vst.msk [vmem:[%s6844 + $0x3f0] sm:$0xff] %vm6699, %v6694
    %6905 = vst.msk [vmem:[%s6844 + $0x408] sm:$0xff] %vm6699, %v6695
    %6906 = vst.msk [vmem:[%s6844 + $0x410] sm:$0xff] %vm6699, %v6696
    %6907 = vst.msk [vmem:[%s6844 + $0x428] sm:$0xff] %vm6699, %v6697
    %6908 = vst.msk [vmem:[%s6844 + $0x430] sm:$0xff] %vm6699, %v6698
    %v6909 = vld [vmem:[#allocation3 + $0x7] sm:$0xff]
    %v6910 = vld [vmem:[#allocation3 + $0xf] sm:$0xff]
    %v6911 = vld [vmem:[#allocation3 + $0x27] sm:$0xff]
    %v6912 = vld [vmem:[#allocation3 + $0x2f] sm:$0xff]
    %v6913 = vld [vmem:[#allocation3 + $0x47] sm:$0xff]
    %v6914 = vld [vmem:[#allocation3 + $0x4f] sm:$0xff]
    %v6915 = vld [vmem:[#allocation3 + $0x67] sm:$0xff]
    %v6916 = vld [vmem:[#allocation3 + $0x6f] sm:$0xff]
    %v6917 = vld [vmem:[#allocation3 + $0x87] sm:$0xff]
    %v6918 = vld [vmem:[#allocation3 + $0x8f] sm:$0xff]
    %v6919 = vld [vmem:[#allocation3 + $0xa7] sm:$0xff]
    %v6920 = vld [vmem:[#allocation3 + $0xaf] sm:$0xff]
    %v6921 = vld [vmem:[#allocation3 + $0xc7] sm:$0xff]
    %v6922 = vld [vmem:[#allocation3 + $0xcf] sm:$0xff]
    %v6923 = vld [vmem:[#allocation3 + $0xe7] sm:$0xff]
    %v6924 = vld [vmem:[#allocation3 + $0xef] sm:$0xff]
    %v6925 = vld [vmem:[#allocation3 + $0x107] sm:$0xff]
    %v6926 = vld [vmem:[#allocation3 + $0x10f] sm:$0xff]
    %v6927 = vld [vmem:[#allocation3 + $0x127] sm:$0xff]
    %v6928 = vld [vmem:[#allocation3 + $0x12f] sm:$0xff]
    %v6929 = vld [vmem:[#allocation3 + $0x147] sm:$0xff]
    %v6930 = vld [vmem:[#allocation3 + $0x14f] sm:$0xff]
    %v6931 = vld [vmem:[#allocation3 + $0x167] sm:$0xff]
    %v6932 = vld [vmem:[#allocation3 + $0x16f] sm:$0xff]
    %v6933 = vld [vmem:[#allocation3 + $0x187] sm:$0xff]
    %v6934 = vld [vmem:[#allocation3 + $0x18f] sm:$0xff]
    %v6935 = vld [vmem:[#allocation3 + $0x1a7] sm:$0xff]
    %v6936 = vld [vmem:[#allocation3 + $0x1af] sm:$0xff]
    %v6937 = vld [vmem:[#allocation3 + $0x1c7] sm:$0xff]
    %v6938 = vld [vmem:[#allocation3 + $0x1cf] sm:$0xff]
    %v6939 = vld [vmem:[#allocation3 + $0x1e7] sm:$0xff]
    %v6940 = vld [vmem:[#allocation3 + $0x1ef] sm:$0xff]
    %v6941 = vld [vmem:[#allocation3 + $0x247] sm:$0xff]
    %v6942 = vld [vmem:[#allocation3 + $0x24f] sm:$0xff]
    %v6943 = vld [vmem:[#allocation3 + $0x267] sm:$0xff]
    %v6944 = vld [vmem:[#allocation3 + $0x26f] sm:$0xff]
    %v6945 = vld [vmem:[#allocation3 + $0x287] sm:$0xff]
    %v6946 = vld [vmem:[#allocation3 + $0x28f] sm:$0xff]
    %v6947 = vld [vmem:[#allocation3 + $0x2a7] sm:$0xff]
    %v6948 = vld [vmem:[#allocation3 + $0x2af] sm:$0xff]
    %v6949 = vld [vmem:[#allocation3 + $0x2c7] sm:$0xff]
    %v6950 = vld [vmem:[#allocation3 + $0x2cf] sm:$0xff]
    %v6951 = vld [vmem:[#allocation3 + $0x2e7] sm:$0xff]
    %v6952 = vld [vmem:[#allocation3 + $0x2ef] sm:$0xff]
    %v6953 = vld [vmem:[#allocation3 + $0x307] sm:$0xff]
    %v6954 = vld [vmem:[#allocation3 + $0x30f] sm:$0xff]
    %v6955 = vld [vmem:[#allocation3 + $0x327] sm:$0xff]
    %v6956 = vld [vmem:[#allocation3 + $0x32f] sm:$0xff]
    %v6957 = vld [vmem:[#allocation3 + $0x347] sm:$0xff]
    %v6958 = vld [vmem:[#allocation3 + $0x34f] sm:$0xff]
    %v6959 = vld [vmem:[#allocation3 + $0x367] sm:$0xff]
    %v6960 = vld [vmem:[#allocation3 + $0x36f] sm:$0xff]
    %v6961 = vld [vmem:[#allocation3 + $0x387] sm:$0xff]
    %v6962 = vld [vmem:[#allocation3 + $0x38f] sm:$0xff]
    %v6963 = vld [vmem:[#allocation3 + $0x3a7] sm:$0xff]
    %v6964 = vld [vmem:[#allocation3 + $0x3af] sm:$0xff]
    %v6965 = vld [vmem:[#allocation3 + $0x3c7] sm:$0xff]
    %v6966 = vld [vmem:[#allocation3 + $0x3cf] sm:$0xff]
    %v6967 = vld [vmem:[#allocation3 + $0x3e7] sm:$0xff]
    %v6968 = vld [vmem:[#allocation3 + $0x3ef] sm:$0xff]
    %v6969 = vld [vmem:[#allocation3 + $0x407] sm:$0xff]
    %v6970 = vld [vmem:[#allocation3 + $0x40f] sm:$0xff]
    %v6971 = vld [vmem:[#allocation3 + $0x427] sm:$0xff]
    %v6972 = vld [vmem:[#allocation3 + $0x42f] sm:$0xff]
    %v6973 = vld [vmem:[%s3] sm:$0xff]
    %v6974 = vld [vmem:[#allocation3 + $0x8] sm:$0xff]
    %v6975 = vld [vmem:[#allocation3 + $0x10] sm:$0xff]
    %v6976 = vld [vmem:[#allocation3 + $0x28] sm:$0xff]
    %v6977 = vld [vmem:[#allocation3 + $0x30] sm:$0xff]
    %v6978 = vld [vmem:[#allocation3 + $0x48] sm:$0xff]
    %v6979 = vld [vmem:[#allocation3 + $0x50] sm:$0xff]
    %v6980 = vld [vmem:[#allocation3 + $0x68] sm:$0xff]
    %v6981 = vld [vmem:[#allocation3 + $0x70] sm:$0xff]
    %v6982 = vld [vmem:[#allocation3 + $0x88] sm:$0xff]
    %v6983 = vld [vmem:[#allocation3 + $0x90] sm:$0xff]
    %v6984 = vld [vmem:[#allocation3 + $0xa8] sm:$0xff]
    %v6985 = vld [vmem:[#allocation3 + $0xb0] sm:$0xff]
    %v6986 = vld [vmem:[#allocation3 + $0xc8] sm:$0xff]
    %v6987 = vld [vmem:[#allocation3 + $0xd0] sm:$0xff]
    %v6988 = vld [vmem:[#allocation3 + $0xe8] sm:$0xff]
    %v6989 = vld [vmem:[#allocation3 + $0xf0] sm:$0xff]
    %v6990 = vld [vmem:[#allocation3 + $0x108] sm:$0xff]
    %v6991 = vld [vmem:[#allocation3 + $0x110] sm:$0xff]
    %v6992 = vld [vmem:[#allocation3 + $0x128] sm:$0xff]
    %v6993 = vld [vmem:[#allocation3 + $0x130] sm:$0xff]
    %v6994 = vld [vmem:[#allocation3 + $0x148] sm:$0xff]
    %v6995 = vld [vmem:[#allocation3 + $0x150] sm:$0xff]
    %v6996 = vld [vmem:[#allocation3 + $0x168] sm:$0xff]
    %v6997 = vld [vmem:[#allocation3 + $0x170] sm:$0xff]
    %v6998 = vld [vmem:[#allocation3 + $0x188] sm:$0xff]
    %v6999 = vld [vmem:[#allocation3 + $0x190] sm:$0xff]
    %v7000 = vld [vmem:[#allocation3 + $0x1a8] sm:$0xff]
    %v7001 = vld [vmem:[#allocation3 + $0x1b0] sm:$0xff]
    %v7002 = vld [vmem:[#allocation3 + $0x1c8] sm:$0xff]
    %v7003 = vld [vmem:[#allocation3 + $0x1d0] sm:$0xff]
    %v7004 = vld [vmem:[#allocation3 + $0x1e8] sm:$0xff]
    %v7005 = vld [vmem:[#allocation3 + $0x1f0] sm:$0xff]
    %v7006 = vld [vmem:[#allocation3 + $0x248] sm:$0xff]
    %v7007 = vld [vmem:[#allocation3 + $0x250] sm:$0xff]
    %v7008 = vld [vmem:[#allocation3 + $0x268] sm:$0xff]
    %v7009 = vld [vmem:[#allocation3 + $0x270] sm:$0xff]
    %v7010 = vld [vmem:[#allocation3 + $0x288] sm:$0xff]
    %v7011 = vld [vmem:[#allocation3 + $0x290] sm:$0xff]
    %v7012 = vld [vmem:[#allocation3 + $0x2a8] sm:$0xff]
    %v7013 = vld [vmem:[#allocation3 + $0x2b0] sm:$0xff]
    %v7014 = vld [vmem:[#allocation3 + $0x2c8] sm:$0xff]
    %v7015 = vld [vmem:[#allocation3 + $0x2d0] sm:$0xff]
    %v7016 = vld [vmem:[#allocation3 + $0x2e8] sm:$0xff]
    %v7017 = vld [vmem:[#allocation3 + $0x2f0] sm:$0xff]
    %v7018 = vld [vmem:[#allocation3 + $0x308] sm:$0xff]
    %v7019 = vld [vmem:[#allocation3 + $0x310] sm:$0xff]
    %v7020 = vld [vmem:[#allocation3 + $0x328] sm:$0xff]
    %v7021 = vld [vmem:[#allocation3 + $0x330] sm:$0xff]
    %v7022 = vld [vmem:[#allocation3 + $0x348] sm:$0xff]
    %v7023 = vld [vmem:[#allocation3 + $0x350] sm:$0xff]
    %v7024 = vld [vmem:[#allocation3 + $0x368] sm:$0xff]
    %v7025 = vld [vmem:[#allocation3 + $0x370] sm:$0xff]
    %v7026 = vld [vmem:[#allocation3 + $0x388] sm:$0xff]
    %v7027 = vld [vmem:[#allocation3 + $0x390] sm:$0xff]
    %v7028 = vld [vmem:[#allocation3 + $0x3a8] sm:$0xff]
    %v7029 = vld [vmem:[#allocation3 + $0x3b0] sm:$0xff]
    %v7030 = vld [vmem:[#allocation3 + $0x3c8] sm:$0xff]
    %v7031 = vld [vmem:[#allocation3 + $0x3d0] sm:$0xff]
    %v7032 = vld [vmem:[#allocation3 + $0x3e8] sm:$0xff]
    %v7033 = vld [vmem:[#allocation3 + $0x3f0] sm:$0xff]
    %v7034 = vld [vmem:[#allocation3 + $0x408] sm:$0xff]
    %v7035 = vld [vmem:[#allocation3 + $0x410] sm:$0xff]
    %v7036 = vld [vmem:[#allocation3 + $0x428] sm:$0xff]
    %v7037 = vld [vmem:[#allocation3 + $0x430] sm:$0xff]
    %s7038 = scalar_lea.vmem %s3, 8
    %v7039 = vld [vmem:[%s7038] sm:$0xff]
    %v7041 = vsel %vm6699, %v6974, 0
    %v7044 = vsel %vm6699, %v6975, 0
    %v7047 = vsel %vm6699, %v6976, 0
    %v7050 = vsel %vm6699, %v6977, 0
    %v7053 = vsel %vm6699, %v6978, 0
    %v7056 = vsel %vm6699, %v6979, 0
    %v7059 = vsel %vm6699, %v6980, 0
    %v7062 = vsel %vm6699, %v6981, 0
    %v7065 = vsel %vm6699, %v6982, 0
    %v7068 = vsel %vm6699, %v6983, 0
    %v7071 = vsel %vm6699, %v6984, 0
    %v7074 = vsel %vm6699, %v6985, 0
    %v7077 = vsel %vm6699, %v6986, 0
    %v7080 = vsel %vm6699, %v6987, 0
    %v7083 = vsel %vm6699, %v6988, 0
    %v7086 = vsel %vm6699, %v6989, 0
    %v7089 = vsel %vm6699, %v6990, 0
    %v7092 = vsel %vm6699, %v6991, 0
    %v7095 = vsel %vm6699, %v6992, 0
    %v7098 = vsel %vm6699, %v6993, 0
    %v7101 = vsel %vm6699, %v6994, 0
    %v7104 = vsel %vm6699, %v6995, 0
    %v7107 = vsel %vm6699, %v6996, 0
    %v7110 = vsel %vm6699, %v6997, 0
    %v7113 = vsel %vm6699, %v6998, 0
    %v7116 = vsel %vm6699, %v6999, 0
    %v7119 = vsel %vm6699, %v7000, 0
    %v7122 = vsel %vm6699, %v7001, 0
    %v7125 = vsel %vm6699, %v7002, 0
    %v7128 = vsel %vm6699, %v7003, 0
    %v7131 = vsel %vm6699, %v7004, 0
    %v7134 = vsel %vm6699, %v7005, 0
    %v7137 = vsel %vm6699, %v7006, 0
    %v7140 = vsel %vm6699, %v7007, 0
    %v7143 = vsel %vm6699, %v7008, 0
    %v7146 = vsel %vm6699, %v7009, 0
    %v7149 = vsel %vm6699, %v7010, 0
    %v7152 = vsel %vm6699, %v7011, 0
    %v7155 = vsel %vm6699, %v7012, 0
    %v7158 = vsel %vm6699, %v7013, 0
    %v7161 = vsel %vm6699, %v7014, 0
    %v7164 = vsel %vm6699, %v7015, 0
    %v7167 = vsel %vm6699, %v7016, 0
    %v7170 = vsel %vm6699, %v7017, 0
    %v7173 = vsel %vm6699, %v7018, 0
    %v7176 = vsel %vm6699, %v7019, 0
    %v7179 = vsel %vm6699, %v7020, 0
    %v7182 = vsel %vm6699, %v7021, 0
    %v7185 = vsel %vm6699, %v7022, 0
    %v7188 = vsel %vm6699, %v7023, 0
    %v7191 = vsel %vm6699, %v7024, 0
    %v7194 = vsel %vm6699, %v7025, 0
    %v7197 = vsel %vm6699, %v7026, 0
    %v7200 = vsel %vm6699, %v7027, 0
    %v7203 = vsel %vm6699, %v7028, 0
    %v7206 = vsel %vm6699, %v7029, 0
    %v7209 = vsel %vm6699, %v7030, 0
    %v7212 = vsel %vm6699, %v7031, 0
    %v7215 = vsel %vm6699, %v7032, 0
    %v7218 = vsel %vm6699, %v7033, 0
    %v7221 = vsel %vm6699, %v7034, 0
    %v7224 = vsel %vm6699, %v7035, 0
    %v7227 = vsel %vm6699, %v7036, 0
    %v7230 = vsel %vm6699, %v7037, 0
    %7232 = vmatprep.subr.mxu0 0.0
    %7233 = vmatpush1.msra.mxu0 0.0
    %7234 = vmatprep.subr.mxu0 0.0
    %7235 = vmatpush1.msra.mxu0 0.0
    %7236 = vmatprep.subr.mxu0 0.0
    %7237 = vmatpush1.msra.mxu0 0.0
    %7238 = vmatprep.subr.mxu0 0.0
    %7239 = vmatpush1.msra.mxu0 0.0
    %7240 = vmatprep.subr.mxu0 0.0
    %7241 = vmatpush1.msra.mxu0 0.0
    %7242 = vmatprep.subr.mxu0 0.0
    %7243 = vmatpush1.msra.mxu0 0.0
    %7244 = vmatprep.subr.mxu0 0.0
    %7245 = vmatpush1.msra.mxu0 0.0
    %7246 = vmatprep.subr.mxu0 0.0
    %7247 = vmatpush1.msra.mxu0 0.0
    %7248 = vmatprep.subr.mxu0 0.0
    %7249 = vmatpush1.msra.mxu0 0.0
    %7250 = vmatprep.subr.mxu0 0.0
    %7251 = vmatpush1.msra.mxu0 0.0
    %7252 = vmatprep.subr.mxu0 0.0
    %7253 = vmatpush1.msra.mxu0 0.0
    %7254 = vmatprep.subr.mxu0 0.0
    %7255 = vmatpush1.msra.mxu0 0.0
    %7256 = vmatprep.subr.mxu0 0.0
    %7257 = vmatpush1.msra.mxu0 0.0
    %7258 = vmatprep.subr.mxu0 0.0
    %7259 = vmatpush1.msra.mxu0 0.0
    %7260 = vmatprep.subr.mxu0 0.0
    %7261 = vmatpush1.msra.mxu0 0.0
    %7262 = vmatprep.subr.mxu0 0.0
    %7263 = vmatpush1.msra.mxu0 %v7039
    %7264 = vmatprep.subr.mxu0 0.0
    %7265 = vmatpush2.msra.mxu0 0.0
    %7266 = vmatprep.subr.mxu0 0.0
    %7267 = vmatpush2.msra.mxu0 0.0
    %7268 = vmatprep.subr.mxu0 0.0
    %7269 = vmatpush2.msra.mxu0 0.0
    %7270 = vmatprep.subr.mxu0 0.0
    %7271 = vmatpush2.msra.mxu0 0.0
    %7272 = vmatprep.subr.mxu0 0.0
    %7273 = vmatpush2.msra.mxu0 0.0
    %7274 = vmatprep.subr.mxu0 0.0
    %7275 = vmatpush2.msra.mxu0 0.0
    %7276 = vmatprep.subr.mxu0 0.0
    %7277 = vmatpush2.msra.mxu0 0.0
    %7278 = vmatprep.subr.mxu0 0.0
    %7279 = vmatpush2.msra.mxu0 0.0
    %7280 = vmatprep.subr.mxu0 0.0
    %7281 = vmatpush2.msra.mxu0 0.0
    %7282 = vmatprep.subr.mxu0 0.0
    %7283 = vmatpush2.msra.mxu0 0.0
    %7284 = vmatprep.subr.mxu0 0.0
    %7285 = vmatpush2.msra.mxu0 0.0
    %7286 = vmatprep.subr.mxu0 0.0
    %7287 = vmatpush2.msra.mxu0 0.0
    %7288 = vmatprep.subr.mxu0 0.0
    %7289 = vmatpush2.msra.mxu0 0.0
    %7290 = vmatprep.subr.mxu0 0.0
    %7291 = vmatpush2.msra.mxu0 0.0
    %7292 = vmatprep.subr.mxu0 0.0
    %7293 = vmatpush2.msra.mxu0 0.0
    %7294 = vmatprep.subr.mxu0 0.0
    %7295 = vmatpush2.msra.mxu0 0.0
    %7296 = vmatprep.mubr.f32.mxu0 0.0
    %7297 = vmatmul.mubr.f32.gmra.mxu0 %v7041
    %v7298 = vpop.f32.mrf.mxu0
    %v7299 = vadd.f32 0.0, %v7298
    %v7300 = vpop.f32.mrf.mxu0
    %7301 = vmatprep.mubr.f32.mxu0 0.0
    %7302 = vmatmul.mubr.f32.gmra.mxu0 %v7044
    %v7303 = vpop.f32.mrf.mxu0
    %v7304 = vadd.f32 0.0, %v7303
    %v7305 = vpop.f32.mrf.mxu0
    %7306 = vmatprep.mubr.f32.mxu0 0.0
    %7307 = vmatmul.mubr.f32.gmra.mxu0 %v7047
    %v7308 = vpop.f32.mrf.mxu0
    %v7309 = vadd.f32 0.0, %v7308
    %v7310 = vpop.f32.mrf.mxu0
    %7311 = vmatprep.mubr.f32.mxu0 0.0
    %7312 = vmatmul.mubr.f32.gmra.mxu0 %v7050
    %v7313 = vpop.f32.mrf.mxu0
    %v7314 = vadd.f32 0.0, %v7313
    %v7315 = vpop.f32.mrf.mxu0
    %7316 = vmatprep.mubr.f32.mxu0 0.0
    %7317 = vmatmul.mubr.f32.gmra.mxu0 %v7053
    %v7318 = vpop.f32.mrf.mxu0
    %v7319 = vadd.f32 0.0, %v7318
    %v7320 = vpop.f32.mrf.mxu0
    %7321 = vmatprep.mubr.f32.mxu0 0.0
    %7322 = vmatmul.mubr.f32.gmra.mxu0 %v7056
    %v7323 = vpop.f32.mrf.mxu0
    %v7324 = vadd.f32 0.0, %v7323
    %v7325 = vpop.f32.mrf.mxu0
    %7326 = vmatprep.mubr.f32.mxu0 0.0
    %7327 = vmatmul.mubr.f32.gmra.mxu0 %v7059
    %v7328 = vpop.f32.mrf.mxu0
    %v7329 = vadd.f32 0.0, %v7328
    %v7330 = vpop.f32.mrf.mxu0
    %7331 = vmatprep.mubr.f32.mxu0 0.0
    %7332 = vmatmul.mubr.f32.gmra.mxu0 %v7062
    %v7333 = vpop.f32.mrf.mxu0
    %v7334 = vadd.f32 0.0, %v7333
    %v7335 = vpop.f32.mrf.mxu0
    %7336 = vmatprep.mubr.f32.mxu0 0.0
    %7337 = vmatmul.mubr.f32.gmra.mxu0 %v7065
    %v7338 = vpop.f32.mrf.mxu0
    %v7339 = vadd.f32 0.0, %v7338
    %v7340 = vpop.f32.mrf.mxu0
    %7341 = vmatprep.mubr.f32.mxu0 0.0
    %7342 = vmatmul.mubr.f32.gmra.mxu0 %v7068
    %v7343 = vpop.f32.mrf.mxu0
    %v7344 = vadd.f32 0.0, %v7343
    %v7345 = vpop.f32.mrf.mxu0
    %7346 = vmatprep.mubr.f32.mxu0 0.0
    %7347 = vmatmul.mubr.f32.gmra.mxu0 %v7071
    %v7348 = vpop.f32.mrf.mxu0
    %v7349 = vadd.f32 0.0, %v7348
    %v7350 = vpop.f32.mrf.mxu0
    %7351 = vmatprep.mubr.f32.mxu0 0.0
    %7352 = vmatmul.mubr.f32.gmra.mxu0 %v7074
    %v7353 = vpop.f32.mrf.mxu0
    %v7354 = vadd.f32 0.0, %v7353
    %v7355 = vpop.f32.mrf.mxu0
    %7356 = vmatprep.mubr.f32.mxu0 0.0
    %7357 = vmatmul.mubr.f32.gmra.mxu0 %v7077
    %v7358 = vpop.f32.mrf.mxu0
    %v7359 = vadd.f32 0.0, %v7358
    %v7360 = vpop.f32.mrf.mxu0
    %7361 = vmatprep.mubr.f32.mxu0 0.0
    %7362 = vmatmul.mubr.f32.gmra.mxu0 %v7080
    %v7363 = vpop.f32.mrf.mxu0
    %v7364 = vadd.f32 0.0, %v7363
    %v7365 = vpop.f32.mrf.mxu0
    %7366 = vmatprep.mubr.f32.mxu0 0.0
    %7367 = vmatmul.mubr.f32.gmra.mxu0 %v7083
    %v7368 = vpop.f32.mrf.mxu0
    %v7369 = vadd.f32 0.0, %v7368
    %v7370 = vpop.f32.mrf.mxu0
    %7371 = vmatprep.mubr.f32.mxu0 0.0
    %7372 = vmatmul.mubr.f32.gmra.mxu0 %v7086
    %v7373 = vpop.f32.mrf.mxu0
    %v7374 = vadd.f32 0.0, %v7373
    %v7375 = vpop.f32.mrf.mxu0
    %7376 = vmatprep.mubr.f32.mxu0 0.0
    %7377 = vmatmul.mubr.f32.gmra.mxu0 %v7089
    %v7378 = vpop.f32.mrf.mxu0
    %v7379 = vadd.f32 0.0, %v7378
    %v7380 = vpop.f32.mrf.mxu0
    %7381 = vmatprep.mubr.f32.mxu0 0.0
    %7382 = vmatmul.mubr.f32.gmra.mxu0 %v7092
    %v7383 = vpop.f32.mrf.mxu0
    %v7384 = vadd.f32 0.0, %v7383
    %v7385 = vpop.f32.mrf.mxu0
    %7386 = vmatprep.mubr.f32.mxu0 0.0
    %7387 = vmatmul.mubr.f32.gmra.mxu0 %v7095
    %v7388 = vpop.f32.mrf.mxu0
    %v7389 = vadd.f32 0.0, %v7388
    %v7390 = vpop.f32.mrf.mxu0
    %7391 = vmatprep.mubr.f32.mxu0 0.0
    %7392 = vmatmul.mubr.f32.gmra.mxu0 %v7098
    %v7393 = vpop.f32.mrf.mxu0
    %v7394 = vadd.f32 0.0, %v7393
    %v7395 = vpop.f32.mrf.mxu0
    %7396 = vmatprep.mubr.f32.mxu0 0.0
    %7397 = vmatmul.mubr.f32.gmra.mxu0 %v7101
    %v7398 = vpop.f32.mrf.mxu0
    %v7399 = vadd.f32 0.0, %v7398
    %v7400 = vpop.f32.mrf.mxu0
    %7401 = vmatprep.mubr.f32.mxu0 0.0
    %7402 = vmatmul.mubr.f32.gmra.mxu0 %v7104
    %v7403 = vpop.f32.mrf.mxu0
    %v7404 = vadd.f32 0.0, %v7403
    %v7405 = vpop.f32.mrf.mxu0
    %7406 = vmatprep.mubr.f32.mxu0 0.0
    %7407 = vmatmul.mubr.f32.gmra.mxu0 %v7107
    %v7408 = vpop.f32.mrf.mxu0
    %v7409 = vadd.f32 0.0, %v7408
    %v7410 = vpop.f32.mrf.mxu0
    %7411 = vmatprep.mubr.f32.mxu0 0.0
    %7412 = vmatmul.mubr.f32.gmra.mxu0 %v7110
    %v7413 = vpop.f32.mrf.mxu0
    %v7414 = vadd.f32 0.0, %v7413
    %v7415 = vpop.f32.mrf.mxu0
    %7416 = vmatprep.mubr.f32.mxu0 0.0
    %7417 = vmatmul.mubr.f32.gmra.mxu0 %v7113
    %v7418 = vpop.f32.mrf.mxu0
    %v7419 = vadd.f32 0.0, %v7418
    %v7420 = vpop.f32.mrf.mxu0
    %7421 = vmatprep.mubr.f32.mxu0 0.0
    %7422 = vmatmul.mubr.f32.gmra.mxu0 %v7116
    %v7423 = vpop.f32.mrf.mxu0
    %v7424 = vadd.f32 0.0, %v7423
    %v7425 = vpop.f32.mrf.mxu0
    %7426 = vmatprep.mubr.f32.mxu0 0.0
    %7427 = vmatmul.mubr.f32.gmra.mxu0 %v7119
    %v7428 = vpop.f32.mrf.mxu0
    %v7429 = vadd.f32 0.0, %v7428
    %v7430 = vpop.f32.mrf.mxu0
    %7431 = vmatprep.mubr.f32.mxu0 0.0
    %7432 = vmatmul.mubr.f32.gmra.mxu0 %v7122
    %v7433 = vpop.f32.mrf.mxu0
    %v7434 = vadd.f32 0.0, %v7433
    %v7435 = vpop.f32.mrf.mxu0
    %7436 = vmatprep.mubr.f32.mxu0 0.0
    %7437 = vmatmul.mubr.f32.gmra.mxu0 %v7125
    %v7438 = vpop.f32.mrf.mxu0
    %v7439 = vadd.f32 0.0, %v7438
    %v7440 = vpop.f32.mrf.mxu0
    %7441 = vmatprep.mubr.f32.mxu0 0.0
    %7442 = vmatmul.mubr.f32.gmra.mxu0 %v7128
    %v7443 = vpop.f32.mrf.mxu0
    %v7444 = vadd.f32 0.0, %v7443
    %v7445 = vpop.f32.mrf.mxu0
    %7446 = vmatprep.mubr.f32.mxu0 0.0
    %7447 = vmatmul.mubr.f32.gmra.mxu0 %v7131
    %v7448 = vpop.f32.mrf.mxu0
    %v7449 = vadd.f32 0.0, %v7448
    %v7450 = vpop.f32.mrf.mxu0
    %7451 = vmatprep.mubr.f32.mxu0 0.0
    %7452 = vmatmul.mubr.f32.gmra.mxu0 %v7134
    %v7453 = vpop.f32.mrf.mxu0
    %v7454 = vadd.f32 0.0, %v7453
    %v7455 = vpop.f32.mrf.mxu0
    %7456 = vmatprep.mubr.f32.mxu0 0.0
    %7457 = vmatmul.mubr.f32.gmra.mxu0 %v7137
    %v7458 = vpop.f32.mrf.mxu0
    %v7459 = vadd.f32 0.0, %v7458
    %v7460 = vpop.f32.mrf.mxu0
    %7461 = vmatprep.mubr.f32.mxu0 0.0
    %7462 = vmatmul.mubr.f32.gmra.mxu0 %v7140
    %v7463 = vpop.f32.mrf.mxu0
    %v7464 = vadd.f32 0.0, %v7463
    %v7465 = vpop.f32.mrf.mxu0
    %7466 = vmatprep.mubr.f32.mxu0 0.0
    %7467 = vmatmul.mubr.f32.gmra.mxu0 %v7143
    %v7468 = vpop.f32.mrf.mxu0
    %v7469 = vadd.f32 0.0, %v7468
    %v7470 = vpop.f32.mrf.mxu0
    %7471 = vmatprep.mubr.f32.mxu0 0.0
    %7472 = vmatmul.mubr.f32.gmra.mxu0 %v7146
    %v7473 = vpop.f32.mrf.mxu0
    %v7474 = vadd.f32 0.0, %v7473
    %v7475 = vpop.f32.mrf.mxu0
    %7476 = vmatprep.mubr.f32.mxu0 0.0
    %7477 = vmatmul.mubr.f32.gmra.mxu0 %v7149
    %v7478 = vpop.f32.mrf.mxu0
    %v7479 = vadd.f32 0.0, %v7478
    %v7480 = vpop.f32.mrf.mxu0
    %7481 = vmatprep.mubr.f32.mxu0 0.0
    %7482 = vmatmul.mubr.f32.gmra.mxu0 %v7152
    %v7483 = vpop.f32.mrf.mxu0
    %v7484 = vadd.f32 0.0, %v7483
    %v7485 = vpop.f32.mrf.mxu0
    %7486 = vmatprep.mubr.f32.mxu0 0.0
    %7487 = vmatmul.mubr.f32.gmra.mxu0 %v7155
    %v7488 = vpop.f32.mrf.mxu0
    %v7489 = vadd.f32 0.0, %v7488
    %v7490 = vpop.f32.mrf.mxu0
    %7491 = vmatprep.mubr.f32.mxu0 0.0
    %7492 = vmatmul.mubr.f32.gmra.mxu0 %v7158
    %v7493 = vpop.f32.mrf.mxu0
    %v7494 = vadd.f32 0.0, %v7493
    %v7495 = vpop.f32.mrf.mxu0
    %7496 = vmatprep.mubr.f32.mxu0 0.0
    %7497 = vmatmul.mubr.f32.gmra.mxu0 %v7161
    %v7498 = vpop.f32.mrf.mxu0
    %v7499 = vadd.f32 0.0, %v7498
    %v7500 = vpop.f32.mrf.mxu0
    %7501 = vmatprep.mubr.f32.mxu0 0.0
    %7502 = vmatmul.mubr.f32.gmra.mxu0 %v7164
    %v7503 = vpop.f32.mrf.mxu0
    %v7504 = vadd.f32 0.0, %v7503
    %v7505 = vpop.f32.mrf.mxu0
    %7506 = vmatprep.mubr.f32.mxu0 0.0
    %7507 = vmatmul.mubr.f32.gmra.mxu0 %v7167
    %v7508 = vpop.f32.mrf.mxu0
    %v7509 = vadd.f32 0.0, %v7508
    %v7510 = vpop.f32.mrf.mxu0
    %7511 = vmatprep.mubr.f32.mxu0 0.0
    %7512 = vmatmul.mubr.f32.gmra.mxu0 %v7170
    %v7513 = vpop.f32.mrf.mxu0
    %v7514 = vadd.f32 0.0, %v7513
    %v7515 = vpop.f32.mrf.mxu0
    %7516 = vmatprep.mubr.f32.mxu0 0.0
    %7517 = vmatmul.mubr.f32.gmra.mxu0 %v7173
    %v7518 = vpop.f32.mrf.mxu0
    %v7519 = vadd.f32 0.0, %v7518
    %v7520 = vpop.f32.mrf.mxu0
    %7521 = vmatprep.mubr.f32.mxu0 0.0
    %7522 = vmatmul.mubr.f32.gmra.mxu0 %v7176
    %v7523 = vpop.f32.mrf.mxu0
    %v7524 = vadd.f32 0.0, %v7523
    %v7525 = vpop.f32.mrf.mxu0
    %7526 = vmatprep.mubr.f32.mxu0 0.0
    %7527 = vmatmul.mubr.f32.gmra.mxu0 %v7179
    %v7528 = vpop.f32.mrf.mxu0
    %v7529 = vadd.f32 0.0, %v7528
    %v7530 = vpop.f32.mrf.mxu0
    %7531 = vmatprep.mubr.f32.mxu0 0.0
    %7532 = vmatmul.mubr.f32.gmra.mxu0 %v7182
    %v7533 = vpop.f32.mrf.mxu0
    %v7534 = vadd.f32 0.0, %v7533
    %v7535 = vpop.f32.mrf.mxu0
    %7536 = vmatprep.mubr.f32.mxu0 0.0
    %7537 = vmatmul.mubr.f32.gmra.mxu0 %v7185
    %v7538 = vpop.f32.mrf.mxu0
    %v7539 = vadd.f32 0.0, %v7538
    %v7540 = vpop.f32.mrf.mxu0
    %7541 = vmatprep.mubr.f32.mxu0 0.0
    %7542 = vmatmul.mubr.f32.gmra.mxu0 %v7188
    %v7543 = vpop.f32.mrf.mxu0
    %v7544 = vadd.f32 0.0, %v7543
    %v7545 = vpop.f32.mrf.mxu0
    %7546 = vmatprep.mubr.f32.mxu0 0.0
    %7547 = vmatmul.mubr.f32.gmra.mxu0 %v7191
    %v7548 = vpop.f32.mrf.mxu0
    %v7549 = vadd.f32 0.0, %v7548
    %v7550 = vpop.f32.mrf.mxu0
    %7551 = vmatprep.mubr.f32.mxu0 0.0
    %7552 = vmatmul.mubr.f32.gmra.mxu0 %v7194
    %v7553 = vpop.f32.mrf.mxu0
    %v7554 = vadd.f32 0.0, %v7553
    %v7555 = vpop.f32.mrf.mxu0
    %7556 = vmatprep.mubr.f32.mxu0 0.0
    %7557 = vmatmul.mubr.f32.gmra.mxu0 %v7197
    %v7558 = vpop.f32.mrf.mxu0
    %v7559 = vadd.f32 0.0, %v7558
    %v7560 = vpop.f32.mrf.mxu0
    %7561 = vmatprep.mubr.f32.mxu0 0.0
    %7562 = vmatmul.mubr.f32.gmra.mxu0 %v7200
    %v7563 = vpop.f32.mrf.mxu0
    %v7564 = vadd.f32 0.0, %v7563
    %v7565 = vpop.f32.mrf.mxu0
    %7566 = vmatprep.mubr.f32.mxu0 0.0
    %7567 = vmatmul.mubr.f32.gmra.mxu0 %v7203
    %v7568 = vpop.f32.mrf.mxu0
    %v7569 = vadd.f32 0.0, %v7568
    %v7570 = vpop.f32.mrf.mxu0
    %7571 = vmatprep.mubr.f32.mxu0 0.0
    %7572 = vmatmul.mubr.f32.gmra.mxu0 %v7206
    %v7573 = vpop.f32.mrf.mxu0
    %v7574 = vadd.f32 0.0, %v7573
    %v7575 = vpop.f32.mrf.mxu0
    %7576 = vmatprep.mubr.f32.mxu0 0.0
    %7577 = vmatmul.mubr.f32.gmra.mxu0 %v7209
    %v7578 = vpop.f32.mrf.mxu0
    %v7579 = vadd.f32 0.0, %v7578
    %v7580 = vpop.f32.mrf.mxu0
    %7581 = vmatprep.mubr.f32.mxu0 0.0
    %7582 = vmatmul.mubr.f32.gmra.mxu0 %v7212
    %v7583 = vpop.f32.mrf.mxu0
    %v7584 = vadd.f32 0.0, %v7583
    %v7585 = vpop.f32.mrf.mxu0
    %7586 = vmatprep.mubr.f32.mxu0 0.0
    %7587 = vmatmul.mubr.f32.gmra.mxu0 %v7215
    %v7588 = vpop.f32.mrf.mxu0
    %v7589 = vadd.f32 0.0, %v7588
    %v7590 = vpop.f32.mrf.mxu0
    %7591 = vmatprep.mubr.f32.mxu0 0.0
    %7592 = vmatmul.mubr.f32.gmra.mxu0 %v7218
    %v7593 = vpop.f32.mrf.mxu0
    %v7594 = vadd.f32 0.0, %v7593
    %v7595 = vpop.f32.mrf.mxu0
    %7596 = vmatprep.mubr.f32.mxu0 0.0
    %7597 = vmatmul.mubr.f32.gmra.mxu0 %v7221
    %v7598 = vpop.f32.mrf.mxu0
    %v7599 = vadd.f32 0.0, %v7598
    %v7600 = vpop.f32.mrf.mxu0
    %7601 = vmatprep.mubr.f32.mxu0 0.0
    %7602 = vmatmul.mubr.f32.gmra.mxu0 %v7224
    %v7603 = vpop.f32.mrf.mxu0
    %v7604 = vadd.f32 0.0, %v7603
    %v7605 = vpop.f32.mrf.mxu0
    %7606 = vmatprep.mubr.f32.mxu0 0.0
    %7607 = vmatmul.mubr.f32.gmra.mxu0 %v7227
    %v7608 = vpop.f32.mrf.mxu0
    %v7609 = vadd.f32 0.0, %v7608
    %v7610 = vpop.f32.mrf.mxu0
    %7611 = vmatprep.mubr.f32.mxu0 0.0
    %7612 = vmatmul.mubr.f32.gmra.mxu0 %v7230
    %v7613 = vpop.f32.mrf.mxu0
    %v7614 = vadd.f32 0.0, %v7613
    %v7615 = vpop.f32.mrf.mxu0
    %7616 = vdwg.mxu0
    %v7618 = vsel %vm6699, %v6909, 0
    %v7621 = vsel %vm6699, %v6910, 0
    %v7624 = vsel %vm6699, %v6911, 0
    %v7627 = vsel %vm6699, %v6912, 0
    %v7630 = vsel %vm6699, %v6913, 0
    %v7633 = vsel %vm6699, %v6914, 0
    %v7636 = vsel %vm6699, %v6915, 0
    %v7639 = vsel %vm6699, %v6916, 0
    %v7642 = vsel %vm6699, %v6917, 0
    %v7645 = vsel %vm6699, %v6918, 0
    %v7648 = vsel %vm6699, %v6919, 0
    %v7651 = vsel %vm6699, %v6920, 0
    %v7654 = vsel %vm6699, %v6921, 0
    %v7657 = vsel %vm6699, %v6922, 0
    %v7660 = vsel %vm6699, %v6923, 0
    %v7663 = vsel %vm6699, %v6924, 0
    %v7666 = vsel %vm6699, %v6925, 0
    %v7669 = vsel %vm6699, %v6926, 0
    %v7672 = vsel %vm6699, %v6927, 0
    %v7675 = vsel %vm6699, %v6928, 0
    %v7678 = vsel %vm6699, %v6929, 0
    %v7681 = vsel %vm6699, %v6930, 0
    %v7684 = vsel %vm6699, %v6931, 0
    %v7687 = vsel %vm6699, %v6932, 0
    %v7690 = vsel %vm6699, %v6933, 0
    %v7693 = vsel %vm6699, %v6934, 0
    %v7696 = vsel %vm6699, %v6935, 0
    %v7699 = vsel %vm6699, %v6936, 0
    %v7702 = vsel %vm6699, %v6937, 0
    %v7705 = vsel %vm6699, %v6938, 0
    %v7708 = vsel %vm6699, %v6939, 0
    %v7711 = vsel %vm6699, %v6940, 0
    %v7714 = vsel %vm6699, %v6941, 0
    %v7717 = vsel %vm6699, %v6942, 0
    %v7720 = vsel %vm6699, %v6943, 0
    %v7723 = vsel %vm6699, %v6944, 0
    %v7726 = vsel %vm6699, %v6945, 0
    %v7729 = vsel %vm6699, %v6946, 0
    %v7732 = vsel %vm6699, %v6947, 0
    %v7735 = vsel %vm6699, %v6948, 0
    %v7738 = vsel %vm6699, %v6949, 0
    %v7741 = vsel %vm6699, %v6950, 0
    %v7744 = vsel %vm6699, %v6951, 0
    %v7747 = vsel %vm6699, %v6952, 0
    %v7750 = vsel %vm6699, %v6953, 0
    %v7753 = vsel %vm6699, %v6954, 0
    %v7756 = vsel %vm6699, %v6955, 0
    %v7759 = vsel %vm6699, %v6956, 0
    %v7762 = vsel %vm6699, %v6957, 0
    %v7765 = vsel %vm6699, %v6958, 0
    %v7768 = vsel %vm6699, %v6959, 0
    %v7771 = vsel %vm6699, %v6960, 0
    %v7774 = vsel %vm6699, %v6961, 0
    %v7777 = vsel %vm6699, %v6962, 0
    %v7780 = vsel %vm6699, %v6963, 0
    %v7783 = vsel %vm6699, %v6964, 0
    %v7786 = vsel %vm6699, %v6965, 0
    %v7789 = vsel %vm6699, %v6966, 0
    %v7792 = vsel %vm6699, %v6967, 0
    %v7795 = vsel %vm6699, %v6968, 0
    %v7798 = vsel %vm6699, %v6969, 0
    %v7801 = vsel %vm6699, %v6970, 0
    %v7804 = vsel %vm6699, %v6971, 0
    %v7807 = vsel %vm6699, %v6972, 0
    %7809 = vmatprep.subr.mxu0 0.0
    %7810 = vmatpush1.msra.mxu0 0.0
    %7811 = vmatprep.subr.mxu0 0.0
    %7812 = vmatpush1.msra.mxu0 0.0
    %7813 = vmatprep.subr.mxu0 0.0
    %7814 = vmatpush1.msra.mxu0 0.0
    %7815 = vmatprep.subr.mxu0 0.0
    %7816 = vmatpush1.msra.mxu0 0.0
    %7817 = vmatprep.subr.mxu0 0.0
    %7818 = vmatpush1.msra.mxu0 0.0
    %7819 = vmatprep.subr.mxu0 0.0
    %7820 = vmatpush1.msra.mxu0 0.0
    %7821 = vmatprep.subr.mxu0 0.0
    %7822 = vmatpush1.msra.mxu0 0.0
    %7823 = vmatprep.subr.mxu0 0.0
    %7824 = vmatpush1.msra.mxu0 0.0
    %7825 = vmatprep.subr.mxu0 0.0
    %7826 = vmatpush1.msra.mxu0 0.0
    %7827 = vmatprep.subr.mxu0 0.0
    %7828 = vmatpush1.msra.mxu0 0.0
    %7829 = vmatprep.subr.mxu0 0.0
    %7830 = vmatpush1.msra.mxu0 0.0
    %7831 = vmatprep.subr.mxu0 0.0
    %7832 = vmatpush1.msra.mxu0 0.0
    %7833 = vmatprep.subr.mxu0 0.0
    %7834 = vmatpush1.msra.mxu0 0.0
    %7835 = vmatprep.subr.mxu0 0.0
    %7836 = vmatpush1.msra.mxu0 0.0
    %7837 = vmatprep.subr.mxu0 0.0
    %7838 = vmatpush1.msra.mxu0 0.0
    %7839 = vmatprep.subr.mxu0 0.0
    %7840 = vmatpush1.msra.mxu0 %v6973
    %7841 = vmatprep.subr.mxu0 0.0
    %7842 = vmatpush2.msra.mxu0 0.0
    %7843 = vmatprep.subr.mxu0 0.0
    %7844 = vmatpush2.msra.mxu0 0.0
    %7845 = vmatprep.subr.mxu0 0.0
    %7846 = vmatpush2.msra.mxu0 0.0
    %7847 = vmatprep.subr.mxu0 0.0
    %7848 = vmatpush2.msra.mxu0 0.0
    %7849 = vmatprep.subr.mxu0 0.0
    %7850 = vmatpush2.msra.mxu0 0.0
    %7851 = vmatprep.subr.mxu0 0.0
    %7852 = vmatpush2.msra.mxu0 0.0
    %7853 = vmatprep.subr.mxu0 0.0
    %7854 = vmatpush2.msra.mxu0 0.0
    %7855 = vmatprep.subr.mxu0 0.0
    %7856 = vmatpush2.msra.mxu0 0.0
    %7857 = vmatprep.subr.mxu0 0.0
    %7858 = vmatpush2.msra.mxu0 0.0
    %7859 = vmatprep.subr.mxu0 0.0
    %7860 = vmatpush2.msra.mxu0 0.0
    %7861 = vmatprep.subr.mxu0 0.0
    %7862 = vmatpush2.msra.mxu0 0.0
    %7863 = vmatprep.subr.mxu0 0.0
    %7864 = vmatpush2.msra.mxu0 0.0
    %7865 = vmatprep.subr.mxu0 0.0
    %7866 = vmatpush2.msra.mxu0 0.0
    %7867 = vmatprep.subr.mxu0 0.0
    %7868 = vmatpush2.msra.mxu0 0.0
    %7869 = vmatprep.subr.mxu0 0.0
    %7870 = vmatpush2.msra.mxu0 0.0
    %7871 = vmatprep.subr.mxu0 0.0
    %7872 = vmatpush2.msra.mxu0 0.0
    %7873 = vmatprep.mubr.f32.mxu0 0.0
    %7874 = vmatmul.mubr.f32.gmra.mxu0 %v7618
    %v7875 = vpop.f32.mrf.mxu0
    %v7876 = vadd.f32 %v7299, %v7875
    %v7877 = vpop.f32.mrf.mxu0
    %7878 = vmatprep.mubr.f32.mxu0 0.0
    %7879 = vmatmul.mubr.f32.gmra.mxu0 %v7621
    %v7880 = vpop.f32.mrf.mxu0
    %v7881 = vadd.f32 %v7304, %v7880
    %v7882 = vpop.f32.mrf.mxu0
    %7883 = vmatprep.mubr.f32.mxu0 0.0
    %7884 = vmatmul.mubr.f32.gmra.mxu0 %v7624
    %v7885 = vpop.f32.mrf.mxu0
    %v7886 = vadd.f32 %v7309, %v7885
    %v7887 = vpop.f32.mrf.mxu0
    %7888 = vmatprep.mubr.f32.mxu0 0.0
    %7889 = vmatmul.mubr.f32.gmra.mxu0 %v7627
    %v7890 = vpop.f32.mrf.mxu0
    %v7891 = vadd.f32 %v7314, %v7890
    %v7892 = vpop.f32.mrf.mxu0
    %7893 = vmatprep.mubr.f32.mxu0 0.0
    %7894 = vmatmul.mubr.f32.gmra.mxu0 %v7630
    %v7895 = vpop.f32.mrf.mxu0
    %v7896 = vadd.f32 %v7319, %v7895
    %v7897 = vpop.f32.mrf.mxu0
    %7898 = vmatprep.mubr.f32.mxu0 0.0
    %7899 = vmatmul.mubr.f32.gmra.mxu0 %v7633
    %v7900 = vpop.f32.mrf.mxu0
    %v7901 = vadd.f32 %v7324, %v7900
    %v7902 = vpop.f32.mrf.mxu0
    %7903 = vmatprep.mubr.f32.mxu0 0.0
    %7904 = vmatmul.mubr.f32.gmra.mxu0 %v7636
    %v7905 = vpop.f32.mrf.mxu0
    %v7906 = vadd.f32 %v7329, %v7905
    %v7907 = vpop.f32.mrf.mxu0
    %7908 = vmatprep.mubr.f32.mxu0 0.0
    %7909 = vmatmul.mubr.f32.gmra.mxu0 %v7639
    %v7910 = vpop.f32.mrf.mxu0
    %v7911 = vadd.f32 %v7334, %v7910
    %v7912 = vpop.f32.mrf.mxu0
    %7913 = vmatprep.mubr.f32.mxu0 0.0
    %7914 = vmatmul.mubr.f32.gmra.mxu0 %v7642
    %v7915 = vpop.f32.mrf.mxu0
    %v7916 = vadd.f32 %v7339, %v7915
    %v7917 = vpop.f32.mrf.mxu0
    %7918 = vmatprep.mubr.f32.mxu0 0.0
    %7919 = vmatmul.mubr.f32.gmra.mxu0 %v7645
    %v7920 = vpop.f32.mrf.mxu0
    %v7921 = vadd.f32 %v7344, %v7920
    %v7922 = vpop.f32.mrf.mxu0
    %7923 = vmatprep.mubr.f32.mxu0 0.0
    %7924 = vmatmul.mubr.f32.gmra.mxu0 %v7648
    %v7925 = vpop.f32.mrf.mxu0
    %v7926 = vadd.f32 %v7349, %v7925
    %v7927 = vpop.f32.mrf.mxu0
    %7928 = vmatprep.mubr.f32.mxu0 0.0
    %7929 = vmatmul.mubr.f32.gmra.mxu0 %v7651
    %v7930 = vpop.f32.mrf.mxu0
    %v7931 = vadd.f32 %v7354, %v7930
    %v7932 = vpop.f32.mrf.mxu0
    %7933 = vmatprep.mubr.f32.mxu0 0.0
    %7934 = vmatmul.mubr.f32.gmra.mxu0 %v7654
    %v7935 = vpop.f32.mrf.mxu0
    %v7936 = vadd.f32 %v7359, %v7935
    %v7937 = vpop.f32.mrf.mxu0
    %7938 = vmatprep.mubr.f32.mxu0 0.0
    %7939 = vmatmul.mubr.f32.gmra.mxu0 %v7657
    %v7940 = vpop.f32.mrf.mxu0
    %v7941 = vadd.f32 %v7364, %v7940
    %v7942 = vpop.f32.mrf.mxu0
    %7943 = vmatprep.mubr.f32.mxu0 0.0
    %7944 = vmatmul.mubr.f32.gmra.mxu0 %v7660
    %v7945 = vpop.f32.mrf.mxu0
    %v7946 = vadd.f32 %v7369, %v7945
    %v7947 = vpop.f32.mrf.mxu0
    %7948 = vmatprep.mubr.f32.mxu0 0.0
    %7949 = vmatmul.mubr.f32.gmra.mxu0 %v7663
    %v7950 = vpop.f32.mrf.mxu0
    %v7951 = vadd.f32 %v7374, %v7950
    %v7952 = vpop.f32.mrf.mxu0
    %7953 = vmatprep.mubr.f32.mxu0 0.0
    %7954 = vmatmul.mubr.f32.gmra.mxu0 %v7666
    %v7955 = vpop.f32.mrf.mxu0
    %v7956 = vadd.f32 %v7379, %v7955
    %v7957 = vpop.f32.mrf.mxu0
    %7958 = vmatprep.mubr.f32.mxu0 0.0
    %7959 = vmatmul.mubr.f32.gmra.mxu0 %v7669
    %v7960 = vpop.f32.mrf.mxu0
    %v7961 = vadd.f32 %v7384, %v7960
    %v7962 = vpop.f32.mrf.mxu0
    %7963 = vmatprep.mubr.f32.mxu0 0.0
    %7964 = vmatmul.mubr.f32.gmra.mxu0 %v7672
    %v7965 = vpop.f32.mrf.mxu0
    %v7966 = vadd.f32 %v7389, %v7965
    %v7967 = vpop.f32.mrf.mxu0
    %7968 = vmatprep.mubr.f32.mxu0 0.0
    %7969 = vmatmul.mubr.f32.gmra.mxu0 %v7675
    %v7970 = vpop.f32.mrf.mxu0
    %v7971 = vadd.f32 %v7394, %v7970
    %v7972 = vpop.f32.mrf.mxu0
    %7973 = vmatprep.mubr.f32.mxu0 0.0
    %7974 = vmatmul.mubr.f32.gmra.mxu0 %v7678
    %v7975 = vpop.f32.mrf.mxu0
    %v7976 = vadd.f32 %v7399, %v7975
    %v7977 = vpop.f32.mrf.mxu0
    %7978 = vmatprep.mubr.f32.mxu0 0.0
    %7979 = vmatmul.mubr.f32.gmra.mxu0 %v7681
    %v7980 = vpop.f32.mrf.mxu0
    %v7981 = vadd.f32 %v7404, %v7980
    %v7982 = vpop.f32.mrf.mxu0
    %7983 = vmatprep.mubr.f32.mxu0 0.0
    %7984 = vmatmul.mubr.f32.gmra.mxu0 %v7684
    %v7985 = vpop.f32.mrf.mxu0
    %v7986 = vadd.f32 %v7409, %v7985
    %v7987 = vpop.f32.mrf.mxu0
    %7988 = vmatprep.mubr.f32.mxu0 0.0
    %7989 = vmatmul.mubr.f32.gmra.mxu0 %v7687
    %v7990 = vpop.f32.mrf.mxu0
    %v7991 = vadd.f32 %v7414, %v7990
    %v7992 = vpop.f32.mrf.mxu0
    %7993 = vmatprep.mubr.f32.mxu0 0.0
    %7994 = vmatmul.mubr.f32.gmra.mxu0 %v7690
    %v7995 = vpop.f32.mrf.mxu0
    %v7996 = vadd.f32 %v7419, %v7995
    %v7997 = vpop.f32.mrf.mxu0
    %7998 = vmatprep.mubr.f32.mxu0 0.0
    %7999 = vmatmul.mubr.f32.gmra.mxu0 %v7693
    %v8000 = vpop.f32.mrf.mxu0
    %v8001 = vadd.f32 %v7424, %v8000
    %v8002 = vpop.f32.mrf.mxu0
    %8003 = vmatprep.mubr.f32.mxu0 0.0
    %8004 = vmatmul.mubr.f32.gmra.mxu0 %v7696
    %v8005 = vpop.f32.mrf.mxu0
    %v8006 = vadd.f32 %v7429, %v8005
    %v8007 = vpop.f32.mrf.mxu0
    %8008 = vmatprep.mubr.f32.mxu0 0.0
    %8009 = vmatmul.mubr.f32.gmra.mxu0 %v7699
    %v8010 = vpop.f32.mrf.mxu0
    %v8011 = vadd.f32 %v7434, %v8010
    %v8012 = vpop.f32.mrf.mxu0
    %8013 = vmatprep.mubr.f32.mxu0 0.0
    %8014 = vmatmul.mubr.f32.gmra.mxu0 %v7702
    %v8015 = vpop.f32.mrf.mxu0
    %v8016 = vadd.f32 %v7439, %v8015
    %v8017 = vpop.f32.mrf.mxu0
    %8018 = vmatprep.mubr.f32.mxu0 0.0
    %8019 = vmatmul.mubr.f32.gmra.mxu0 %v7705
    %v8020 = vpop.f32.mrf.mxu0
    %v8021 = vadd.f32 %v7444, %v8020
    %v8022 = vpop.f32.mrf.mxu0
    %8023 = vmatprep.mubr.f32.mxu0 0.0
    %8024 = vmatmul.mubr.f32.gmra.mxu0 %v7708
    %v8025 = vpop.f32.mrf.mxu0
    %v8026 = vadd.f32 %v7449, %v8025
    %v8027 = vpop.f32.mrf.mxu0
    %8028 = vmatprep.mubr.f32.mxu0 0.0
    %8029 = vmatmul.mubr.f32.gmra.mxu0 %v7711
    %v8030 = vpop.f32.mrf.mxu0
    %v8031 = vadd.f32 %v7454, %v8030
    %v8032 = vpop.f32.mrf.mxu0
    %8033 = vmatprep.mubr.f32.mxu0 0.0
    %8034 = vmatmul.mubr.f32.gmra.mxu0 %v7714
    %v8035 = vpop.f32.mrf.mxu0
    %v8036 = vadd.f32 %v7459, %v8035
    %v8037 = vpop.f32.mrf.mxu0
    %8038 = vmatprep.mubr.f32.mxu0 0.0
    %8039 = vmatmul.mubr.f32.gmra.mxu0 %v7717
    %v8040 = vpop.f32.mrf.mxu0
    %v8041 = vadd.f32 %v7464, %v8040
    %v8042 = vpop.f32.mrf.mxu0
    %8043 = vmatprep.mubr.f32.mxu0 0.0
    %8044 = vmatmul.mubr.f32.gmra.mxu0 %v7720
    %v8045 = vpop.f32.mrf.mxu0
    %v8046 = vadd.f32 %v7469, %v8045
    %v8047 = vpop.f32.mrf.mxu0
    %8048 = vmatprep.mubr.f32.mxu0 0.0
    %8049 = vmatmul.mubr.f32.gmra.mxu0 %v7723
    %v8050 = vpop.f32.mrf.mxu0
    %v8051 = vadd.f32 %v7474, %v8050
    %v8052 = vpop.f32.mrf.mxu0
    %8053 = vmatprep.mubr.f32.mxu0 0.0
    %8054 = vmatmul.mubr.f32.gmra.mxu0 %v7726
    %v8055 = vpop.f32.mrf.mxu0
    %v8056 = vadd.f32 %v7479, %v8055
    %v8057 = vpop.f32.mrf.mxu0
    %8058 = vmatprep.mubr.f32.mxu0 0.0
    %8059 = vmatmul.mubr.f32.gmra.mxu0 %v7729
    %v8060 = vpop.f32.mrf.mxu0
    %v8061 = vadd.f32 %v7484, %v8060
    %v8062 = vpop.f32.mrf.mxu0
    %8063 = vmatprep.mubr.f32.mxu0 0.0
    %8064 = vmatmul.mubr.f32.gmra.mxu0 %v7732
    %v8065 = vpop.f32.mrf.mxu0
    %v8066 = vadd.f32 %v7489, %v8065
    %v8067 = vpop.f32.mrf.mxu0
    %8068 = vmatprep.mubr.f32.mxu0 0.0
    %8069 = vmatmul.mubr.f32.gmra.mxu0 %v7735
    %v8070 = vpop.f32.mrf.mxu0
    %v8071 = vadd.f32 %v7494, %v8070
    %v8072 = vpop.f32.mrf.mxu0
    %8073 = vmatprep.mubr.f32.mxu0 0.0
    %8074 = vmatmul.mubr.f32.gmra.mxu0 %v7738
    %v8075 = vpop.f32.mrf.mxu0
    %v8076 = vadd.f32 %v7499, %v8075
    %v8077 = vpop.f32.mrf.mxu0
    %8078 = vmatprep.mubr.f32.mxu0 0.0
    %8079 = vmatmul.mubr.f32.gmra.mxu0 %v7741
    %v8080 = vpop.f32.mrf.mxu0
    %v8081 = vadd.f32 %v7504, %v8080
    %v8082 = vpop.f32.mrf.mxu0
    %8083 = vmatprep.mubr.f32.mxu0 0.0
    %8084 = vmatmul.mubr.f32.gmra.mxu0 %v7744
    %v8085 = vpop.f32.mrf.mxu0
    %v8086 = vadd.f32 %v7509, %v8085
    %v8087 = vpop.f32.mrf.mxu0
    %8088 = vmatprep.mubr.f32.mxu0 0.0
    %8089 = vmatmul.mubr.f32.gmra.mxu0 %v7747
    %v8090 = vpop.f32.mrf.mxu0
    %v8091 = vadd.f32 %v7514, %v8090
    %v8092 = vpop.f32.mrf.mxu0
    %8093 = vmatprep.mubr.f32.mxu0 0.0
    %8094 = vmatmul.mubr.f32.gmra.mxu0 %v7750
    %v8095 = vpop.f32.mrf.mxu0
    %v8096 = vadd.f32 %v7519, %v8095
    %v8097 = vpop.f32.mrf.mxu0
    %8098 = vmatprep.mubr.f32.mxu0 0.0
    %8099 = vmatmul.mubr.f32.gmra.mxu0 %v7753
    %v8100 = vpop.f32.mrf.mxu0
    %v8101 = vadd.f32 %v7524, %v8100
    %v8102 = vpop.f32.mrf.mxu0
    %8103 = vmatprep.mubr.f32.mxu0 0.0
    %8104 = vmatmul.mubr.f32.gmra.mxu0 %v7756
    %v8105 = vpop.f32.mrf.mxu0
    %v8106 = vadd.f32 %v7529, %v8105
    %v8107 = vpop.f32.mrf.mxu0
    %8108 = vmatprep.mubr.f32.mxu0 0.0
    %8109 = vmatmul.mubr.f32.gmra.mxu0 %v7759
    %v8110 = vpop.f32.mrf.mxu0
    %v8111 = vadd.f32 %v7534, %v8110
    %v8112 = vpop.f32.mrf.mxu0
    %8113 = vmatprep.mubr.f32.mxu0 0.0
    %8114 = vmatmul.mubr.f32.gmra.mxu0 %v7762
    %v8115 = vpop.f32.mrf.mxu0
    %v8116 = vadd.f32 %v7539, %v8115
    %v8117 = vpop.f32.mrf.mxu0
    %8118 = vmatprep.mubr.f32.mxu0 0.0
    %8119 = vmatmul.mubr.f32.gmra.mxu0 %v7765
    %v8120 = vpop.f32.mrf.mxu0
    %v8121 = vadd.f32 %v7544, %v8120
    %v8122 = vpop.f32.mrf.mxu0
    %8123 = vmatprep.mubr.f32.mxu0 0.0
    %8124 = vmatmul.mubr.f32.gmra.mxu0 %v7768
    %v8125 = vpop.f32.mrf.mxu0
    %v8126 = vadd.f32 %v7549, %v8125
    %v8127 = vpop.f32.mrf.mxu0
    %8128 = vmatprep.mubr.f32.mxu0 0.0
    %8129 = vmatmul.mubr.f32.gmra.mxu0 %v7771
    %v8130 = vpop.f32.mrf.mxu0
    %v8131 = vadd.f32 %v7554, %v8130
    %v8132 = vpop.f32.mrf.mxu0
    %8133 = vmatprep.mubr.f32.mxu0 0.0
    %8134 = vmatmul.mubr.f32.gmra.mxu0 %v7774
    %v8135 = vpop.f32.mrf.mxu0
    %v8136 = vadd.f32 %v7559, %v8135
    %v8137 = vpop.f32.mrf.mxu0
    %8138 = vmatprep.mubr.f32.mxu0 0.0
    %8139 = vmatmul.mubr.f32.gmra.mxu0 %v7777
    %v8140 = vpop.f32.mrf.mxu0
    %v8141 = vadd.f32 %v7564, %v8140
    %v8142 = vpop.f32.mrf.mxu0
    %8143 = vmatprep.mubr.f32.mxu0 0.0
    %8144 = vmatmul.mubr.f32.gmra.mxu0 %v7780
    %v8145 = vpop.f32.mrf.mxu0
    %v8146 = vadd.f32 %v7569, %v8145
    %v8147 = vpop.f32.mrf.mxu0
    %8148 = vmatprep.mubr.f32.mxu0 0.0
    %8149 = vmatmul.mubr.f32.gmra.mxu0 %v7783
    %v8150 = vpop.f32.mrf.mxu0
    %v8151 = vadd.f32 %v7574, %v8150
    %v8152 = vpop.f32.mrf.mxu0
    %8153 = vmatprep.mubr.f32.mxu0 0.0
    %8154 = vmatmul.mubr.f32.gmra.mxu0 %v7786
    %v8155 = vpop.f32.mrf.mxu0
    %v8156 = vadd.f32 %v7579, %v8155
    %v8157 = vpop.f32.mrf.mxu0
    %8158 = vmatprep.mubr.f32.mxu0 0.0
    %8159 = vmatmul.mubr.f32.gmra.mxu0 %v7789
    %v8160 = vpop.f32.mrf.mxu0
    %v8161 = vadd.f32 %v7584, %v8160
    %v8162 = vpop.f32.mrf.mxu0
    %8163 = vmatprep.mubr.f32.mxu0 0.0
    %8164 = vmatmul.mubr.f32.gmra.mxu0 %v7792
    %v8165 = vpop.f32.mrf.mxu0
    %v8166 = vadd.f32 %v7589, %v8165
    %v8167 = vpop.f32.mrf.mxu0
    %8168 = vmatprep.mubr.f32.mxu0 0.0
    %8169 = vmatmul.mubr.f32.gmra.mxu0 %v7795
    %v8170 = vpop.f32.mrf.mxu0
    %v8171 = vadd.f32 %v7594, %v8170
    %v8172 = vpop.f32.mrf.mxu0
    %8173 = vmatprep.mubr.f32.mxu0 0.0
    %8174 = vmatmul.mubr.f32.gmra.mxu0 %v7798
    %v8175 = vpop.f32.mrf.mxu0
    %v8176 = vadd.f32 %v7599, %v8175
    %v8177 = vpop.f32.mrf.mxu0
    %8178 = vmatprep.mubr.f32.mxu0 0.0
    %8179 = vmatmul.mubr.f32.gmra.mxu0 %v7801
    %v8180 = vpop.f32.mrf.mxu0
    %v8181 = vadd.f32 %v7604, %v8180
    %v8182 = vpop.f32.mrf.mxu0
    %8183 = vmatprep.mubr.f32.mxu0 0.0
    %8184 = vmatmul.mubr.f32.gmra.mxu0 %v7804
    %v8185 = vpop.f32.mrf.mxu0
    %v8186 = vadd.f32 %v7609, %v8185
    %v8187 = vpop.f32.mrf.mxu0
    %8188 = vmatprep.mubr.f32.mxu0 0.0
    %8189 = vmatmul.mubr.f32.gmra.mxu0 %v7807
    %v8190 = vpop.f32.mrf.mxu0
    %v8191 = vadd.f32 %v7614, %v8190
    %v8192 = vpop.f32.mrf.mxu0
    %8193 = vdwg.mxu0
    %v8194 = vld [vmem:[#allocation3 + $0x9] sm:$0xff]
    %v8195 = vld [vmem:[#allocation3 + $0x11] sm:$0xff]
    %v8196 = vld [vmem:[#allocation3 + $0x29] sm:$0xff]
    %v8197 = vld [vmem:[#allocation3 + $0x31] sm:$0xff]
    %v8198 = vld [vmem:[#allocation3 + $0x49] sm:$0xff]
    %v8199 = vld [vmem:[#allocation3 + $0x51] sm:$0xff]
    %v8200 = vld [vmem:[#allocation3 + $0x69] sm:$0xff]
    %v8201 = vld [vmem:[#allocation3 + $0x71] sm:$0xff]
    %v8202 = vld [vmem:[#allocation3 + $0x89] sm:$0xff]
    %v8203 = vld [vmem:[#allocation3 + $0x91] sm:$0xff]
    %v8204 = vld [vmem:[#allocation3 + $0xa9] sm:$0xff]
    %v8205 = vld [vmem:[#allocation3 + $0xb1] sm:$0xff]
    %v8206 = vld [vmem:[#allocation3 + $0xc9] sm:$0xff]
    %v8207 = vld [vmem:[#allocation3 + $0xd1] sm:$0xff]
    %v8208 = vld [vmem:[#allocation3 + $0xe9] sm:$0xff]
    %v8209 = vld [vmem:[#allocation3 + $0xf1] sm:$0xff]
    %v8210 = vld [vmem:[#allocation3 + $0x109] sm:$0xff]
    %v8211 = vld [vmem:[#allocation3 + $0x111] sm:$0xff]
    %v8212 = vld [vmem:[#allocation3 + $0x129] sm:$0xff]
    %v8213 = vld [vmem:[#allocation3 + $0x131] sm:$0xff]
    %v8214 = vld [vmem:[#allocation3 + $0x149] sm:$0xff]
    %v8215 = vld [vmem:[#allocation3 + $0x151] sm:$0xff]
    %v8216 = vld [vmem:[#allocation3 + $0x169] sm:$0xff]
    %v8217 = vld [vmem:[#allocation3 + $0x171] sm:$0xff]
    %v8218 = vld [vmem:[#allocation3 + $0x189] sm:$0xff]
    %v8219 = vld [vmem:[#allocation3 + $0x191] sm:$0xff]
    %v8220 = vld [vmem:[#allocation3 + $0x1a9] sm:$0xff]
    %v8221 = vld [vmem:[#allocation3 + $0x1b1] sm:$0xff]
    %v8222 = vld [vmem:[#allocation3 + $0x1c9] sm:$0xff]
    %v8223 = vld [vmem:[#allocation3 + $0x1d1] sm:$0xff]
    %v8224 = vld [vmem:[#allocation3 + $0x1e9] sm:$0xff]
    %v8225 = vld [vmem:[#allocation3 + $0x1f1] sm:$0xff]
    %v8226 = vld [vmem:[#allocation3 + $0x249] sm:$0xff]
    %v8227 = vld [vmem:[#allocation3 + $0x251] sm:$0xff]
    %v8228 = vld [vmem:[#allocation3 + $0x269] sm:$0xff]
    %v8229 = vld [vmem:[#allocation3 + $0x271] sm:$0xff]
    %v8230 = vld [vmem:[#allocation3 + $0x289] sm:$0xff]
    %v8231 = vld [vmem:[#allocation3 + $0x291] sm:$0xff]
    %v8232 = vld [vmem:[#allocation3 + $0x2a9] sm:$0xff]
    %v8233 = vld [vmem:[#allocation3 + $0x2b1] sm:$0xff]
    %v8234 = vld [vmem:[#allocation3 + $0x2c9] sm:$0xff]
    %v8235 = vld [vmem:[#allocation3 + $0x2d1] sm:$0xff]
    %v8236 = vld [vmem:[#allocation3 + $0x2e9] sm:$0xff]
    %v8237 = vld [vmem:[#allocation3 + $0x2f1] sm:$0xff]
    %v8238 = vld [vmem:[#allocation3 + $0x309] sm:$0xff]
    %v8239 = vld [vmem:[#allocation3 + $0x311] sm:$0xff]
    %v8240 = vld [vmem:[#allocation3 + $0x329] sm:$0xff]
    %v8241 = vld [vmem:[#allocation3 + $0x331] sm:$0xff]
    %v8242 = vld [vmem:[#allocation3 + $0x349] sm:$0xff]
    %v8243 = vld [vmem:[#allocation3 + $0x351] sm:$0xff]
    %v8244 = vld [vmem:[#allocation3 + $0x369] sm:$0xff]
    %v8245 = vld [vmem:[#allocation3 + $0x371] sm:$0xff]
    %v8246 = vld [vmem:[#allocation3 + $0x389] sm:$0xff]
    %v8247 = vld [vmem:[#allocation3 + $0x391] sm:$0xff]
    %v8248 = vld [vmem:[#allocation3 + $0x3a9] sm:$0xff]
    %v8249 = vld [vmem:[#allocation3 + $0x3b1] sm:$0xff]
    %v8250 = vld [vmem:[#allocation3 + $0x3c9] sm:$0xff]
    %v8251 = vld [vmem:[#allocation3 + $0x3d1] sm:$0xff]
    %v8252 = vld [vmem:[#allocation3 + $0x3e9] sm:$0xff]
    %v8253 = vld [vmem:[#allocation3 + $0x3f1] sm:$0xff]
    %v8254 = vld [vmem:[#allocation3 + $0x409] sm:$0xff]
    %v8255 = vld [vmem:[#allocation3 + $0x411] sm:$0xff]
    %v8256 = vld [vmem:[#allocation3 + $0x429] sm:$0xff]
    %v8257 = vld [vmem:[#allocation3 + $0x431] sm:$0xff]
    %s8258 = scalar_lea.vmem %s3, 16
    %v8259 = vld [vmem:[%s8258] sm:$0xff]
    %v8261 = vsel %vm6699, %v8194, 0
    %v8264 = vsel %vm6699, %v8195, 0
    %v8267 = vsel %vm6699, %v8196, 0
    %v8270 = vsel %vm6699, %v8197, 0
    %v8273 = vsel %vm6699, %v8198, 0
    %v8276 = vsel %vm6699, %v8199, 0
    %v8279 = vsel %vm6699, %v8200, 0
    %v8282 = vsel %vm6699, %v8201, 0
    %v8285 = vsel %vm6699, %v8202, 0
    %v8288 = vsel %vm6699, %v8203, 0
    %v8291 = vsel %vm6699, %v8204, 0
    %v8294 = vsel %vm6699, %v8205, 0
    %v8297 = vsel %vm6699, %v8206, 0
    %v8300 = vsel %vm6699, %v8207, 0
    %v8303 = vsel %vm6699, %v8208, 0
    %v8306 = vsel %vm6699, %v8209, 0
    %v8309 = vsel %vm6699, %v8210, 0
    %v8312 = vsel %vm6699, %v8211, 0
    %v8315 = vsel %vm6699, %v8212, 0
    %v8318 = vsel %vm6699, %v8213, 0
    %v8321 = vsel %vm6699, %v8214, 0
    %v8324 = vsel %vm6699, %v8215, 0
    %v8327 = vsel %vm6699, %v8216, 0
    %v8330 = vsel %vm6699, %v8217, 0
    %v8333 = vsel %vm6699, %v8218, 0
    %v8336 = vsel %vm6699, %v8219, 0
    %v8339 = vsel %vm6699, %v8220, 0
    %v8342 = vsel %vm6699, %v8221, 0
    %v8345 = vsel %vm6699, %v8222, 0
    %v8348 = vsel %vm6699, %v8223, 0
    %v8351 = vsel %vm6699, %v8224, 0
    %v8354 = vsel %vm6699, %v8225, 0
    %v8357 = vsel %vm6699, %v8226, 0
    %v8360 = vsel %vm6699, %v8227, 0
    %v8363 = vsel %vm6699, %v8228, 0
    %v8366 = vsel %vm6699, %v8229, 0
    %v8369 = vsel %vm6699, %v8230, 0
    %v8372 = vsel %vm6699, %v8231, 0
    %v8375 = vsel %vm6699, %v8232, 0
    %v8378 = vsel %vm6699, %v8233, 0
    %v8381 = vsel %vm6699, %v8234, 0
    %v8384 = vsel %vm6699, %v8235, 0
    %v8387 = vsel %vm6699, %v8236, 0
    %v8390 = vsel %vm6699, %v8237, 0
    %v8393 = vsel %vm6699, %v8238, 0
    %v8396 = vsel %vm6699, %v8239, 0
    %v8399 = vsel %vm6699, %v8240, 0
    %v8402 = vsel %vm6699, %v8241, 0
    %v8405 = vsel %vm6699, %v8242, 0
    %v8408 = vsel %vm6699, %v8243, 0
    %v8411 = vsel %vm6699, %v8244, 0
    %v8414 = vsel %vm6699, %v8245, 0
    %v8417 = vsel %vm6699, %v8246, 0
    %v8420 = vsel %vm6699, %v8247, 0
    %v8423 = vsel %vm6699, %v8248, 0
    %v8426 = vsel %vm6699, %v8249, 0
    %v8429 = vsel %vm6699, %v8250, 0
    %v8432 = vsel %vm6699, %v8251, 0
    %v8435 = vsel %vm6699, %v8252, 0
    %v8438 = vsel %vm6699, %v8253, 0
    %v8441 = vsel %vm6699, %v8254, 0
    %v8444 = vsel %vm6699, %v8255, 0
    %v8447 = vsel %vm6699, %v8256, 0
    %v8450 = vsel %vm6699, %v8257, 0
    %8452 = vmatprep.subr.mxu0 0.0
    %8453 = vmatpush1.msra.mxu0 0.0
    %8454 = vmatprep.subr.mxu0 0.0
    %8455 = vmatpush1.msra.mxu0 0.0
    %8456 = vmatprep.subr.mxu0 0.0
    %8457 = vmatpush1.msra.mxu0 0.0
    %8458 = vmatprep.subr.mxu0 0.0
    %8459 = vmatpush1.msra.mxu0 0.0
    %8460 = vmatprep.subr.mxu0 0.0
    %8461 = vmatpush1.msra.mxu0 0.0
    %8462 = vmatprep.subr.mxu0 0.0
    %8463 = vmatpush1.msra.mxu0 0.0
    %8464 = vmatprep.subr.mxu0 0.0
    %8465 = vmatpush1.msra.mxu0 0.0
    %8466 = vmatprep.subr.mxu0 0.0
    %8467 = vmatpush1.msra.mxu0 0.0
    %8468 = vmatprep.subr.mxu0 0.0
    %8469 = vmatpush1.msra.mxu0 0.0
    %8470 = vmatprep.subr.mxu0 0.0
    %8471 = vmatpush1.msra.mxu0 0.0
    %8472 = vmatprep.subr.mxu0 0.0
    %8473 = vmatpush1.msra.mxu0 0.0
    %8474 = vmatprep.subr.mxu0 0.0
    %8475 = vmatpush1.msra.mxu0 0.0
    %8476 = vmatprep.subr.mxu0 0.0
    %8477 = vmatpush1.msra.mxu0 0.0
    %8478 = vmatprep.subr.mxu0 0.0
    %8479 = vmatpush1.msra.mxu0 0.0
    %8480 = vmatprep.subr.mxu0 0.0
    %8481 = vmatpush1.msra.mxu0 0.0
    %8482 = vmatprep.subr.mxu0 0.0
    %8483 = vmatpush1.msra.mxu0 %v8259
    %8484 = vmatprep.subr.mxu0 0.0
    %8485 = vmatpush2.msra.mxu0 0.0
    %8486 = vmatprep.subr.mxu0 0.0
    %8487 = vmatpush2.msra.mxu0 0.0
    %8488 = vmatprep.subr.mxu0 0.0
    %8489 = vmatpush2.msra.mxu0 0.0
    %8490 = vmatprep.subr.mxu0 0.0
    %8491 = vmatpush2.msra.mxu0 0.0
    %8492 = vmatprep.subr.mxu0 0.0
    %8493 = vmatpush2.msra.mxu0 0.0
    %8494 = vmatprep.subr.mxu0 0.0
    %8495 = vmatpush2.msra.mxu0 0.0
    %8496 = vmatprep.subr.mxu0 0.0
    %8497 = vmatpush2.msra.mxu0 0.0
    %8498 = vmatprep.subr.mxu0 0.0
    %8499 = vmatpush2.msra.mxu0 0.0
    %8500 = vmatprep.subr.mxu0 0.0
    %8501 = vmatpush2.msra.mxu0 0.0
    %8502 = vmatprep.subr.mxu0 0.0
    %8503 = vmatpush2.msra.mxu0 0.0
    %8504 = vmatprep.subr.mxu0 0.0
    %8505 = vmatpush2.msra.mxu0 0.0
    %8506 = vmatprep.subr.mxu0 0.0
    %8507 = vmatpush2.msra.mxu0 0.0
    %8508 = vmatprep.subr.mxu0 0.0
    %8509 = vmatpush2.msra.mxu0 0.0
    %8510 = vmatprep.subr.mxu0 0.0
    %8511 = vmatpush2.msra.mxu0 0.0
    %8512 = vmatprep.subr.mxu0 0.0
    %8513 = vmatpush2.msra.mxu0 0.0
    %8514 = vmatprep.subr.mxu0 0.0
    %8515 = vmatpush2.msra.mxu0 0.0
    %8516 = vmatprep.mubr.f32.mxu0 0.0
    %8517 = vmatmul.mubr.f32.gmra.mxu0 %v8261
    %v8518 = vpop.f32.mrf.mxu0
    %v8519 = vadd.f32 0.0, %v8518
    %v8520 = vpop.f32.mrf.mxu0
    %8521 = vmatprep.mubr.f32.mxu0 0.0
    %8522 = vmatmul.mubr.f32.gmra.mxu0 %v8264
    %v8523 = vpop.f32.mrf.mxu0
    %v8524 = vadd.f32 0.0, %v8523
    %v8525 = vpop.f32.mrf.mxu0
    %8526 = vmatprep.mubr.f32.mxu0 0.0
    %8527 = vmatmul.mubr.f32.gmra.mxu0 %v8267
    %v8528 = vpop.f32.mrf.mxu0
    %v8529 = vadd.f32 0.0, %v8528
    %v8530 = vpop.f32.mrf.mxu0
    %8531 = vmatprep.mubr.f32.mxu0 0.0
    %8532 = vmatmul.mubr.f32.gmra.mxu0 %v8270
    %v8533 = vpop.f32.mrf.mxu0
    %v8534 = vadd.f32 0.0, %v8533
    %v8535 = vpop.f32.mrf.mxu0
    %8536 = vmatprep.mubr.f32.mxu0 0.0
    %8537 = vmatmul.mubr.f32.gmra.mxu0 %v8273
    %v8538 = vpop.f32.mrf.mxu0
    %v8539 = vadd.f32 0.0, %v8538
    %v8540 = vpop.f32.mrf.mxu0
    %8541 = vmatprep.mubr.f32.mxu0 0.0
    %8542 = vmatmul.mubr.f32.gmra.mxu0 %v8276
    %v8543 = vpop.f32.mrf.mxu0
    %v8544 = vadd.f32 0.0, %v8543
    %v8545 = vpop.f32.mrf.mxu0
    %8546 = vmatprep.mubr.f32.mxu0 0.0
    %8547 = vmatmul.mubr.f32.gmra.mxu0 %v8279
    %v8548 = vpop.f32.mrf.mxu0
    %v8549 = vadd.f32 0.0, %v8548
    %v8550 = vpop.f32.mrf.mxu0
    %8551 = vmatprep.mubr.f32.mxu0 0.0
    %8552 = vmatmul.mubr.f32.gmra.mxu0 %v8282
    %v8553 = vpop.f32.mrf.mxu0
    %v8554 = vadd.f32 0.0, %v8553
    %v8555 = vpop.f32.mrf.mxu0
    %8556 = vmatprep.mubr.f32.mxu0 0.0
    %8557 = vmatmul.mubr.f32.gmra.mxu0 %v8285
    %v8558 = vpop.f32.mrf.mxu0
    %v8559 = vadd.f32 0.0, %v8558
    %v8560 = vpop.f32.mrf.mxu0
    %8561 = vmatprep.mubr.f32.mxu0 0.0
    %8562 = vmatmul.mubr.f32.gmra.mxu0 %v8288
    %v8563 = vpop.f32.mrf.mxu0
    %v8564 = vadd.f32 0.0, %v8563
    %v8565 = vpop.f32.mrf.mxu0
    %8566 = vmatprep.mubr.f32.mxu0 0.0
    %8567 = vmatmul.mubr.f32.gmra.mxu0 %v8291
    %v8568 = vpop.f32.mrf.mxu0
    %v8569 = vadd.f32 0.0, %v8568
    %v8570 = vpop.f32.mrf.mxu0
    %8571 = vmatprep.mubr.f32.mxu0 0.0
    %8572 = vmatmul.mubr.f32.gmra.mxu0 %v8294
    %v8573 = vpop.f32.mrf.mxu0
    %v8574 = vadd.f32 0.0, %v8573
    %v8575 = vpop.f32.mrf.mxu0
    %8576 = vmatprep.mubr.f32.mxu0 0.0
    %8577 = vmatmul.mubr.f32.gmra.mxu0 %v8297
    %v8578 = vpop.f32.mrf.mxu0
    %v8579 = vadd.f32 0.0, %v8578
    %v8580 = vpop.f32.mrf.mxu0
    %8581 = vmatprep.mubr.f32.mxu0 0.0
    %8582 = vmatmul.mubr.f32.gmra.mxu0 %v8300
    %v8583 = vpop.f32.mrf.mxu0
    %v8584 = vadd.f32 0.0, %v8583
    %v8585 = vpop.f32.mrf.mxu0
    %8586 = vmatprep.mubr.f32.mxu0 0.0
    %8587 = vmatmul.mubr.f32.gmra.mxu0 %v8303
    %v8588 = vpop.f32.mrf.mxu0
    %v8589 = vadd.f32 0.0, %v8588
    %v8590 = vpop.f32.mrf.mxu0
    %8591 = vmatprep.mubr.f32.mxu0 0.0
    %8592 = vmatmul.mubr.f32.gmra.mxu0 %v8306
    %v8593 = vpop.f32.mrf.mxu0
    %v8594 = vadd.f32 0.0, %v8593
    %v8595 = vpop.f32.mrf.mxu0
    %8596 = vmatprep.mubr.f32.mxu0 0.0
    %8597 = vmatmul.mubr.f32.gmra.mxu0 %v8309
    %v8598 = vpop.f32.mrf.mxu0
    %v8599 = vadd.f32 0.0, %v8598
    %v8600 = vpop.f32.mrf.mxu0
    %8601 = vmatprep.mubr.f32.mxu0 0.0
    %8602 = vmatmul.mubr.f32.gmra.mxu0 %v8312
    %v8603 = vpop.f32.mrf.mxu0
    %v8604 = vadd.f32 0.0, %v8603
    %v8605 = vpop.f32.mrf.mxu0
    %8606 = vmatprep.mubr.f32.mxu0 0.0
    %8607 = vmatmul.mubr.f32.gmra.mxu0 %v8315
    %v8608 = vpop.f32.mrf.mxu0
    %v8609 = vadd.f32 0.0, %v8608
    %v8610 = vpop.f32.mrf.mxu0
    %8611 = vmatprep.mubr.f32.mxu0 0.0
    %8612 = vmatmul.mubr.f32.gmra.mxu0 %v8318
    %v8613 = vpop.f32.mrf.mxu0
    %v8614 = vadd.f32 0.0, %v8613
    %v8615 = vpop.f32.mrf.mxu0
    %8616 = vmatprep.mubr.f32.mxu0 0.0
    %8617 = vmatmul.mubr.f32.gmra.mxu0 %v8321
    %v8618 = vpop.f32.mrf.mxu0
    %v8619 = vadd.f32 0.0, %v8618
    %v8620 = vpop.f32.mrf.mxu0
    %8621 = vmatprep.mubr.f32.mxu0 0.0
    %8622 = vmatmul.mubr.f32.gmra.mxu0 %v8324
    %v8623 = vpop.f32.mrf.mxu0
    %v8624 = vadd.f32 0.0, %v8623
    %v8625 = vpop.f32.mrf.mxu0
    %8626 = vmatprep.mubr.f32.mxu0 0.0
    %8627 = vmatmul.mubr.f32.gmra.mxu0 %v8327
    %v8628 = vpop.f32.mrf.mxu0
    %v8629 = vadd.f32 0.0, %v8628
    %v8630 = vpop.f32.mrf.mxu0
    %8631 = vmatprep.mubr.f32.mxu0 0.0
    %8632 = vmatmul.mubr.f32.gmra.mxu0 %v8330
    %v8633 = vpop.f32.mrf.mxu0
    %v8634 = vadd.f32 0.0, %v8633
    %v8635 = vpop.f32.mrf.mxu0
    %8636 = vmatprep.mubr.f32.mxu0 0.0
    %8637 = vmatmul.mubr.f32.gmra.mxu0 %v8333
    %v8638 = vpop.f32.mrf.mxu0
    %v8639 = vadd.f32 0.0, %v8638
    %v8640 = vpop.f32.mrf.mxu0
    %8641 = vmatprep.mubr.f32.mxu0 0.0
    %8642 = vmatmul.mubr.f32.gmra.mxu0 %v8336
    %v8643 = vpop.f32.mrf.mxu0
    %v8644 = vadd.f32 0.0, %v8643
    %v8645 = vpop.f32.mrf.mxu0
    %8646 = vmatprep.mubr.f32.mxu0 0.0
    %8647 = vmatmul.mubr.f32.gmra.mxu0 %v8339
    %v8648 = vpop.f32.mrf.mxu0
    %v8649 = vadd.f32 0.0, %v8648
    %v8650 = vpop.f32.mrf.mxu0
    %8651 = vmatprep.mubr.f32.mxu0 0.0
    %8652 = vmatmul.mubr.f32.gmra.mxu0 %v8342
    %v8653 = vpop.f32.mrf.mxu0
    %v8654 = vadd.f32 0.0, %v8653
    %v8655 = vpop.f32.mrf.mxu0
    %8656 = vmatprep.mubr.f32.mxu0 0.0
    %8657 = vmatmul.mubr.f32.gmra.mxu0 %v8345
    %v8658 = vpop.f32.mrf.mxu0
    %v8659 = vadd.f32 0.0, %v8658
    %v8660 = vpop.f32.mrf.mxu0
    %8661 = vmatprep.mubr.f32.mxu0 0.0
    %8662 = vmatmul.mubr.f32.gmra.mxu0 %v8348
    %v8663 = vpop.f32.mrf.mxu0
    %v8664 = vadd.f32 0.0, %v8663
    %v8665 = vpop.f32.mrf.mxu0
    %8666 = vmatprep.mubr.f32.mxu0 0.0
    %8667 = vmatmul.mubr.f32.gmra.mxu0 %v8351
    %v8668 = vpop.f32.mrf.mxu0
    %v8669 = vadd.f32 0.0, %v8668
    %v8670 = vpop.f32.mrf.mxu0
    %8671 = vmatprep.mubr.f32.mxu0 0.0
    %8672 = vmatmul.mubr.f32.gmra.mxu0 %v8354
    %v8673 = vpop.f32.mrf.mxu0
    %v8674 = vadd.f32 0.0, %v8673
    %v8675 = vpop.f32.mrf.mxu0
    %8676 = vmatprep.mubr.f32.mxu0 0.0
    %8677 = vmatmul.mubr.f32.gmra.mxu0 %v8357
    %v8678 = vpop.f32.mrf.mxu0
    %v8679 = vadd.f32 0.0, %v8678
    %v8680 = vpop.f32.mrf.mxu0
    %8681 = vmatprep.mubr.f32.mxu0 0.0
    %8682 = vmatmul.mubr.f32.gmra.mxu0 %v8360
    %v8683 = vpop.f32.mrf.mxu0
    %v8684 = vadd.f32 0.0, %v8683
    %v8685 = vpop.f32.mrf.mxu0
    %8686 = vmatprep.mubr.f32.mxu0 0.0
    %8687 = vmatmul.mubr.f32.gmra.mxu0 %v8363
    %v8688 = vpop.f32.mrf.mxu0
    %v8689 = vadd.f32 0.0, %v8688
    %v8690 = vpop.f32.mrf.mxu0
    %8691 = vmatprep.mubr.f32.mxu0 0.0
    %8692 = vmatmul.mubr.f32.gmra.mxu0 %v8366
    %v8693 = vpop.f32.mrf.mxu0
    %v8694 = vadd.f32 0.0, %v8693
    %v8695 = vpop.f32.mrf.mxu0
    %8696 = vmatprep.mubr.f32.mxu0 0.0
    %8697 = vmatmul.mubr.f32.gmra.mxu0 %v8369
    %v8698 = vpop.f32.mrf.mxu0
    %v8699 = vadd.f32 0.0, %v8698
    %v8700 = vpop.f32.mrf.mxu0
    %8701 = vmatprep.mubr.f32.mxu0 0.0
    %8702 = vmatmul.mubr.f32.gmra.mxu0 %v8372
    %v8703 = vpop.f32.mrf.mxu0
    %v8704 = vadd.f32 0.0, %v8703
    %v8705 = vpop.f32.mrf.mxu0
    %8706 = vmatprep.mubr.f32.mxu0 0.0
    %8707 = vmatmul.mubr.f32.gmra.mxu0 %v8375
    %v8708 = vpop.f32.mrf.mxu0
    %v8709 = vadd.f32 0.0, %v8708
    %v8710 = vpop.f32.mrf.mxu0
    %8711 = vmatprep.mubr.f32.mxu0 0.0
    %8712 = vmatmul.mubr.f32.gmra.mxu0 %v8378
    %v8713 = vpop.f32.mrf.mxu0
    %v8714 = vadd.f32 0.0, %v8713
    %v8715 = vpop.f32.mrf.mxu0
    %8716 = vmatprep.mubr.f32.mxu0 0.0
    %8717 = vmatmul.mubr.f32.gmra.mxu0 %v8381
    %v8718 = vpop.f32.mrf.mxu0
    %v8719 = vadd.f32 0.0, %v8718
    %v8720 = vpop.f32.mrf.mxu0
    %8721 = vmatprep.mubr.f32.mxu0 0.0
    %8722 = vmatmul.mubr.f32.gmra.mxu0 %v8384
    %v8723 = vpop.f32.mrf.mxu0
    %v8724 = vadd.f32 0.0, %v8723
    %v8725 = vpop.f32.mrf.mxu0
    %8726 = vmatprep.mubr.f32.mxu0 0.0
    %8727 = vmatmul.mubr.f32.gmra.mxu0 %v8387
    %v8728 = vpop.f32.mrf.mxu0
    %v8729 = vadd.f32 0.0, %v8728
    %v8730 = vpop.f32.mrf.mxu0
    %8731 = vmatprep.mubr.f32.mxu0 0.0
    %8732 = vmatmul.mubr.f32.gmra.mxu0 %v8390
    %v8733 = vpop.f32.mrf.mxu0
    %v8734 = vadd.f32 0.0, %v8733
    %v8735 = vpop.f32.mrf.mxu0
    %8736 = vmatprep.mubr.f32.mxu0 0.0
    %8737 = vmatmul.mubr.f32.gmra.mxu0 %v8393
    %v8738 = vpop.f32.mrf.mxu0
    %v8739 = vadd.f32 0.0, %v8738
    %v8740 = vpop.f32.mrf.mxu0
    %8741 = vmatprep.mubr.f32.mxu0 0.0
    %8742 = vmatmul.mubr.f32.gmra.mxu0 %v8396
    %v8743 = vpop.f32.mrf.mxu0
    %v8744 = vadd.f32 0.0, %v8743
    %v8745 = vpop.f32.mrf.mxu0
    %8746 = vmatprep.mubr.f32.mxu0 0.0
    %8747 = vmatmul.mubr.f32.gmra.mxu0 %v8399
    %v8748 = vpop.f32.mrf.mxu0
    %v8749 = vadd.f32 0.0, %v8748
    %v8750 = vpop.f32.mrf.mxu0
    %8751 = vmatprep.mubr.f32.mxu0 0.0
    %8752 = vmatmul.mubr.f32.gmra.mxu0 %v8402
    %v8753 = vpop.f32.mrf.mxu0
    %v8754 = vadd.f32 0.0, %v8753
    %v8755 = vpop.f32.mrf.mxu0
    %8756 = vmatprep.mubr.f32.mxu0 0.0
    %8757 = vmatmul.mubr.f32.gmra.mxu0 %v8405
    %v8758 = vpop.f32.mrf.mxu0
    %v8759 = vadd.f32 0.0, %v8758
    %v8760 = vpop.f32.mrf.mxu0
    %8761 = vmatprep.mubr.f32.mxu0 0.0
    %8762 = vmatmul.mubr.f32.gmra.mxu0 %v8408
    %v8763 = vpop.f32.mrf.mxu0
    %v8764 = vadd.f32 0.0, %v8763
    %v8765 = vpop.f32.mrf.mxu0
    %8766 = vmatprep.mubr.f32.mxu0 0.0
    %8767 = vmatmul.mubr.f32.gmra.mxu0 %v8411
    %v8768 = vpop.f32.mrf.mxu0
    %v8769 = vadd.f32 0.0, %v8768
    %v8770 = vpop.f32.mrf.mxu0
    %8771 = vmatprep.mubr.f32.mxu0 0.0
    %8772 = vmatmul.mubr.f32.gmra.mxu0 %v8414
    %v8773 = vpop.f32.mrf.mxu0
    %v8774 = vadd.f32 0.0, %v8773
    %v8775 = vpop.f32.mrf.mxu0
    %8776 = vmatprep.mubr.f32.mxu0 0.0
    %8777 = vmatmul.mubr.f32.gmra.mxu0 %v8417
    %v8778 = vpop.f32.mrf.mxu0
    %v8779 = vadd.f32 0.0, %v8778
    %v8780 = vpop.f32.mrf.mxu0
    %8781 = vmatprep.mubr.f32.mxu0 0.0
    %8782 = vmatmul.mubr.f32.gmra.mxu0 %v8420
    %v8783 = vpop.f32.mrf.mxu0
    %v8784 = vadd.f32 0.0, %v8783
    %v8785 = vpop.f32.mrf.mxu0
    %8786 = vmatprep.mubr.f32.mxu0 0.0
    %8787 = vmatmul.mubr.f32.gmra.mxu0 %v8423
    %v8788 = vpop.f32.mrf.mxu0
    %v8789 = vadd.f32 0.0, %v8788
    %v8790 = vpop.f32.mrf.mxu0
    %8791 = vmatprep.mubr.f32.mxu0 0.0
    %8792 = vmatmul.mubr.f32.gmra.mxu0 %v8426
    %v8793 = vpop.f32.mrf.mxu0
    %v8794 = vadd.f32 0.0, %v8793
    %v8795 = vpop.f32.mrf.mxu0
    %8796 = vmatprep.mubr.f32.mxu0 0.0
    %8797 = vmatmul.mubr.f32.gmra.mxu0 %v8429
    %v8798 = vpop.f32.mrf.mxu0
    %v8799 = vadd.f32 0.0, %v8798
    %v8800 = vpop.f32.mrf.mxu0
    %8801 = vmatprep.mubr.f32.mxu0 0.0
    %8802 = vmatmul.mubr.f32.gmra.mxu0 %v8432
    %v8803 = vpop.f32.mrf.mxu0
    %v8804 = vadd.f32 0.0, %v8803
    %v8805 = vpop.f32.mrf.mxu0
    %8806 = vmatprep.mubr.f32.mxu0 0.0
    %8807 = vmatmul.mubr.f32.gmra.mxu0 %v8435
    %v8808 = vpop.f32.mrf.mxu0
    %v8809 = vadd.f32 0.0, %v8808
    %v8810 = vpop.f32.mrf.mxu0
    %8811 = vmatprep.mubr.f32.mxu0 0.0
    %8812 = vmatmul.mubr.f32.gmra.mxu0 %v8438
    %v8813 = vpop.f32.mrf.mxu0
    %v8814 = vadd.f32 0.0, %v8813
    %v8815 = vpop.f32.mrf.mxu0
    %8816 = vmatprep.mubr.f32.mxu0 0.0
    %8817 = vmatmul.mubr.f32.gmra.mxu0 %v8441
    %v8818 = vpop.f32.mrf.mxu0
    %v8819 = vadd.f32 0.0, %v8818
    %v8820 = vpop.f32.mrf.mxu0
    %8821 = vmatprep.mubr.f32.mxu0 0.0
    %8822 = vmatmul.mubr.f32.gmra.mxu0 %v8444
    %v8823 = vpop.f32.mrf.mxu0
    %v8824 = vadd.f32 0.0, %v8823
    %v8825 = vpop.f32.mrf.mxu0
    %8826 = vmatprep.mubr.f32.mxu0 0.0
    %8827 = vmatmul.mubr.f32.gmra.mxu0 %v8447
    %v8828 = vpop.f32.mrf.mxu0
    %v8829 = vadd.f32 0.0, %v8828
    %v8830 = vpop.f32.mrf.mxu0
    %8831 = vmatprep.mubr.f32.mxu0 0.0
    %8832 = vmatmul.mubr.f32.gmra.mxu0 %v8450
    %v8833 = vpop.f32.mrf.mxu0
    %v8834 = vadd.f32 0.0, %v8833
    %v8835 = vpop.f32.mrf.mxu0
    %8836 = vdwg.mxu0
    %v8837 = vadd.f32 %v7876, %v8519
    %v8838 = vadd.f32 %v7881, %v8524
    %v8839 = vadd.f32 %v7886, %v8529
    %v8840 = vadd.f32 %v7891, %v8534
    %v8841 = vadd.f32 %v7896, %v8539
    %v8842 = vadd.f32 %v7901, %v8544
    %v8843 = vadd.f32 %v7906, %v8549
    %v8844 = vadd.f32 %v7911, %v8554
    %v8845 = vadd.f32 %v7916, %v8559
    %v8846 = vadd.f32 %v7921, %v8564
    %v8847 = vadd.f32 %v7926, %v8569
    %v8848 = vadd.f32 %v7931, %v8574
    %v8849 = vadd.f32 %v7936, %v8579
    %v8850 = vadd.f32 %v7941, %v8584
    %v8851 = vadd.f32 %v7946, %v8589
    %v8852 = vadd.f32 %v7951, %v8594
    %v8853 = vadd.f32 %v7956, %v8599
    %v8854 = vadd.f32 %v7961, %v8604
    %v8855 = vadd.f32 %v7966, %v8609
    %v8856 = vadd.f32 %v7971, %v8614
    %v8857 = vadd.f32 %v7976, %v8619
    %v8858 = vadd.f32 %v7981, %v8624
    %v8859 = vadd.f32 %v7986, %v8629
    %v8860 = vadd.f32 %v7991, %v8634
    %v8861 = vadd.f32 %v7996, %v8639
    %v8862 = vadd.f32 %v8001, %v8644
    %v8863 = vadd.f32 %v8006, %v8649
    %v8864 = vadd.f32 %v8011, %v8654
    %v8865 = vadd.f32 %v8016, %v8659
    %v8866 = vadd.f32 %v8021, %v8664
    %v8867 = vadd.f32 %v8026, %v8669
    %v8868 = vadd.f32 %v8031, %v8674
    %v8869 = vadd.f32 %v8036, %v8679
    %v8870 = vadd.f32 %v8041, %v8684
    %v8871 = vadd.f32 %v8046, %v8689
    %v8872 = vadd.f32 %v8051, %v8694
    %v8873 = vadd.f32 %v8056, %v8699
    %v8874 = vadd.f32 %v8061, %v8704
    %v8875 = vadd.f32 %v8066, %v8709
    %v8876 = vadd.f32 %v8071, %v8714
    %v8877 = vadd.f32 %v8076, %v8719
    %v8878 = vadd.f32 %v8081, %v8724
    %v8879 = vadd.f32 %v8086, %v8729
    %v8880 = vadd.f32 %v8091, %v8734
    %v8881 = vadd.f32 %v8096, %v8739
    %v8882 = vadd.f32 %v8101, %v8744
    %v8883 = vadd.f32 %v8106, %v8749
    %v8884 = vadd.f32 %v8111, %v8754
    %v8885 = vadd.f32 %v8116, %v8759
    %v8886 = vadd.f32 %v8121, %v8764
    %v8887 = vadd.f32 %v8126, %v8769
    %v8888 = vadd.f32 %v8131, %v8774
    %v8889 = vadd.f32 %v8136, %v8779
    %v8890 = vadd.f32 %v8141, %v8784
    %v8891 = vadd.f32 %v8146, %v8789
    %v8892 = vadd.f32 %v8151, %v8794
    %v8893 = vadd.f32 %v8156, %v8799
    %v8894 = vadd.f32 %v8161, %v8804
    %v8895 = vadd.f32 %v8166, %v8809
    %v8896 = vadd.f32 %v8171, %v8814
    %v8897 = vadd.f32 %v8176, %v8819
    %v8898 = vadd.f32 %v8181, %v8824
    %v8899 = vadd.f32 %v8186, %v8829
    %v8900 = vadd.f32 %v8191, %v8834
    %v8901 = vld [vmem:[%s6844 + $0x7] sm:$0xff]
    %v8902 = vld [vmem:[%s6844 + $0xf] sm:$0xff]
    %v8903 = vld [vmem:[%s6844 + $0x27] sm:$0xff]
    %v8904 = vld [vmem:[%s6844 + $0x2f] sm:$0xff]
    %v8905 = vld [vmem:[%s6844 + $0x47] sm:$0xff]
    %v8906 = vld [vmem:[%s6844 + $0x4f] sm:$0xff]
    %v8907 = vld [vmem:[%s6844 + $0x67] sm:$0xff]
    %v8908 = vld [vmem:[%s6844 + $0x6f] sm:$0xff]
    %v8909 = vld [vmem:[%s6844 + $0x87] sm:$0xff]
    %v8910 = vld [vmem:[%s6844 + $0x8f] sm:$0xff]
    %v8911 = vld [vmem:[%s6844 + $0xa7] sm:$0xff]
    %v8912 = vld [vmem:[%s6844 + $0xaf] sm:$0xff]
    %v8913 = vld [vmem:[%s6844 + $0xc7] sm:$0xff]
    %v8914 = vld [vmem:[%s6844 + $0xcf] sm:$0xff]
    %v8915 = vld [vmem:[%s6844 + $0xe7] sm:$0xff]
    %v8916 = vld [vmem:[%s6844 + $0xef] sm:$0xff]
    %v8917 = vld [vmem:[%s6844 + $0x107] sm:$0xff]
    %v8918 = vld [vmem:[%s6844 + $0x10f] sm:$0xff]
    %v8919 = vld [vmem:[%s6844 + $0x127] sm:$0xff]
    %v8920 = vld [vmem:[%s6844 + $0x12f] sm:$0xff]
    %v8921 = vld [vmem:[%s6844 + $0x147] sm:$0xff]
    %v8922 = vld [vmem:[%s6844 + $0x14f] sm:$0xff]
    %v8923 = vld [vmem:[%s6844 + $0x167] sm:$0xff]
    %v8924 = vld [vmem:[%s6844 + $0x16f] sm:$0xff]
    %v8925 = vld [vmem:[%s6844 + $0x187] sm:$0xff]
    %v8926 = vld [vmem:[%s6844 + $0x18f] sm:$0xff]
    %v8927 = vld [vmem:[%s6844 + $0x1a7] sm:$0xff]
    %v8928 = vld [vmem:[%s6844 + $0x1af] sm:$0xff]
    %v8929 = vld [vmem:[%s6844 + $0x1c7] sm:$0xff]
    %v8930 = vld [vmem:[%s6844 + $0x1cf] sm:$0xff]
    %v8931 = vld [vmem:[%s6844 + $0x1e7] sm:$0xff]
    %v8932 = vld [vmem:[%s6844 + $0x1ef] sm:$0xff]
    %v8933 = vld [vmem:[%s6844 + $0x247] sm:$0xff]
    %v8934 = vld [vmem:[%s6844 + $0x24f] sm:$0xff]
    %v8935 = vld [vmem:[%s6844 + $0x267] sm:$0xff]
    %v8936 = vld [vmem:[%s6844 + $0x26f] sm:$0xff]
    %v8937 = vld [vmem:[%s6844 + $0x287] sm:$0xff]
    %v8938 = vld [vmem:[%s6844 + $0x28f] sm:$0xff]
    %v8939 = vld [vmem:[%s6844 + $0x2a7] sm:$0xff]
    %v8940 = vld [vmem:[%s6844 + $0x2af] sm:$0xff]
    %v8941 = vld [vmem:[%s6844 + $0x2c7] sm:$0xff]
    %v8942 = vld [vmem:[%s6844 + $0x2cf] sm:$0xff]
    %v8943 = vld [vmem:[%s6844 + $0x2e7] sm:$0xff]
    %v8944 = vld [vmem:[%s6844 + $0x2ef] sm:$0xff]
    %v8945 = vld [vmem:[%s6844 + $0x307] sm:$0xff]
    %v8946 = vld [vmem:[%s6844 + $0x30f] sm:$0xff]
    %v8947 = vld [vmem:[%s6844 + $0x327] sm:$0xff]
    %v8948 = vld [vmem:[%s6844 + $0x32f] sm:$0xff]
    %v8949 = vld [vmem:[%s6844 + $0x347] sm:$0xff]
    %v8950 = vld [vmem:[%s6844 + $0x34f] sm:$0xff]
    %v8951 = vld [vmem:[%s6844 + $0x367] sm:$0xff]
    %v8952 = vld [vmem:[%s6844 + $0x36f] sm:$0xff]
    %v8953 = vld [vmem:[%s6844 + $0x387] sm:$0xff]
    %v8954 = vld [vmem:[%s6844 + $0x38f] sm:$0xff]
    %v8955 = vld [vmem:[%s6844 + $0x3a7] sm:$0xff]
    %v8956 = vld [vmem:[%s6844 + $0x3af] sm:$0xff]
    %v8957 = vld [vmem:[%s6844 + $0x3c7] sm:$0xff]
    %v8958 = vld [vmem:[%s6844 + $0x3cf] sm:$0xff]
    %v8959 = vld [vmem:[%s6844 + $0x3e7] sm:$0xff]
    %v8960 = vld [vmem:[%s6844 + $0x3ef] sm:$0xff]
    %v8961 = vld [vmem:[%s6844 + $0x407] sm:$0xff]
    %v8962 = vld [vmem:[%s6844 + $0x40f] sm:$0xff]
    %v8963 = vld [vmem:[%s6844 + $0x427] sm:$0xff]
    %v8964 = vld [vmem:[%s6844 + $0x42f] sm:$0xff]
    %s8965 = scalar_lea.vmem %s3, 24
    %v8966 = vld [vmem:[%s8965] sm:$0xff]
    %v8968 = vsel %vm6699, %v8901, 0
    %v8971 = vsel %vm6699, %v8902, 0
    %v8974 = vsel %vm6699, %v8903, 0
    %v8977 = vsel %vm6699, %v8904, 0
    %v8980 = vsel %vm6699, %v8905, 0
    %v8983 = vsel %vm6699, %v8906, 0
    %v8986 = vsel %vm6699, %v8907, 0
    %v8989 = vsel %vm6699, %v8908, 0
    %v8992 = vsel %vm6699, %v8909, 0
    %v8995 = vsel %vm6699, %v8910, 0
    %v8998 = vsel %vm6699, %v8911, 0
    %v9001 = vsel %vm6699, %v8912, 0
    %v9004 = vsel %vm6699, %v8913, 0
    %v9007 = vsel %vm6699, %v8914, 0
    %v9010 = vsel %vm6699, %v8915, 0
    %v9013 = vsel %vm6699, %v8916, 0
    %v9016 = vsel %vm6699, %v8917, 0
    %v9019 = vsel %vm6699, %v8918, 0
    %v9022 = vsel %vm6699, %v8919, 0
    %v9025 = vsel %vm6699, %v8920, 0
    %v9028 = vsel %vm6699, %v8921, 0
    %v9031 = vsel %vm6699, %v8922, 0
    %v9034 = vsel %vm6699, %v8923, 0
    %v9037 = vsel %vm6699, %v8924, 0
    %v9040 = vsel %vm6699, %v8925, 0
    %v9043 = vsel %vm6699, %v8926, 0
    %v9046 = vsel %vm6699, %v8927, 0
    %v9049 = vsel %vm6699, %v8928, 0
    %v9052 = vsel %vm6699, %v8929, 0
    %v9055 = vsel %vm6699, %v8930, 0
    %v9058 = vsel %vm6699, %v8931, 0
    %v9061 = vsel %vm6699, %v8932, 0
    %v9064 = vsel %vm6699, %v8933, 0
    %v9067 = vsel %vm6699, %v8934, 0
    %v9070 = vsel %vm6699, %v8935, 0
    %v9073 = vsel %vm6699, %v8936, 0
    %v9076 = vsel %vm6699, %v8937, 0
    %v9079 = vsel %vm6699, %v8938, 0
    %v9082 = vsel %vm6699, %v8939, 0
    %v9085 = vsel %vm6699, %v8940, 0
    %v9088 = vsel %vm6699, %v8941, 0
    %v9091 = vsel %vm6699, %v8942, 0
    %v9094 = vsel %vm6699, %v8943, 0
    %v9097 = vsel %vm6699, %v8944, 0
    %v9100 = vsel %vm6699, %v8945, 0
    %v9103 = vsel %vm6699, %v8946, 0
    %v9106 = vsel %vm6699, %v8947, 0
    %v9109 = vsel %vm6699, %v8948, 0
    %v9112 = vsel %vm6699, %v8949, 0
    %v9115 = vsel %vm6699, %v8950, 0
    %v9118 = vsel %vm6699, %v8951, 0
    %v9121 = vsel %vm6699, %v8952, 0
    %v9124 = vsel %vm6699, %v8953, 0
    %v9127 = vsel %vm6699, %v8954, 0
    %v9130 = vsel %vm6699, %v8955, 0
    %v9133 = vsel %vm6699, %v8956, 0
    %v9136 = vsel %vm6699, %v8957, 0
    %v9139 = vsel %vm6699, %v8958, 0
    %v9142 = vsel %vm6699, %v8959, 0
    %v9145 = vsel %vm6699, %v8960, 0
    %v9148 = vsel %vm6699, %v8961, 0
    %v9151 = vsel %vm6699, %v8962, 0
    %v9154 = vsel %vm6699, %v8963, 0
    %v9157 = vsel %vm6699, %v8964, 0
    %9159 = vmatprep.subr.mxu0 0.0
    %9160 = vmatpush1.msra.mxu0 0.0
    %9161 = vmatprep.subr.mxu0 0.0
    %9162 = vmatpush1.msra.mxu0 0.0
    %9163 = vmatprep.subr.mxu0 0.0
    %9164 = vmatpush1.msra.mxu0 0.0
    %9165 = vmatprep.subr.mxu0 0.0
    %9166 = vmatpush1.msra.mxu0 0.0
    %9167 = vmatprep.subr.mxu0 0.0
    %9168 = vmatpush1.msra.mxu0 0.0
    %9169 = vmatprep.subr.mxu0 0.0
    %9170 = vmatpush1.msra.mxu0 0.0
    %9171 = vmatprep.subr.mxu0 0.0
    %9172 = vmatpush1.msra.mxu0 0.0
    %9173 = vmatprep.subr.mxu0 0.0
    %9174 = vmatpush1.msra.mxu0 0.0
    %9175 = vmatprep.subr.mxu0 0.0
    %9176 = vmatpush1.msra.mxu0 0.0
    %9177 = vmatprep.subr.mxu0 0.0
    %9178 = vmatpush1.msra.mxu0 0.0
    %9179 = vmatprep.subr.mxu0 0.0
    %9180 = vmatpush1.msra.mxu0 0.0
    %9181 = vmatprep.subr.mxu0 0.0
    %9182 = vmatpush1.msra.mxu0 0.0
    %9183 = vmatprep.subr.mxu0 0.0
    %9184 = vmatpush1.msra.mxu0 0.0
    %9185 = vmatprep.subr.mxu0 0.0
    %9186 = vmatpush1.msra.mxu0 0.0
    %9187 = vmatprep.subr.mxu0 0.0
    %9188 = vmatpush1.msra.mxu0 0.0
    %9189 = vmatprep.subr.mxu0 0.0
    %9190 = vmatpush1.msra.mxu0 %v8966
    %9191 = vmatprep.subr.mxu0 0.0
    %9192 = vmatpush2.msra.mxu0 0.0
    %9193 = vmatprep.subr.mxu0 0.0
    %9194 = vmatpush2.msra.mxu0 0.0
    %9195 = vmatprep.subr.mxu0 0.0
    %9196 = vmatpush2.msra.mxu0 0.0
    %9197 = vmatprep.subr.mxu0 0.0
    %9198 = vmatpush2.msra.mxu0 0.0
    %9199 = vmatprep.subr.mxu0 0.0
    %9200 = vmatpush2.msra.mxu0 0.0
    %9201 = vmatprep.subr.mxu0 0.0
    %9202 = vmatpush2.msra.mxu0 0.0
    %9203 = vmatprep.subr.mxu0 0.0
    %9204 = vmatpush2.msra.mxu0 0.0
    %9205 = vmatprep.subr.mxu0 0.0
    %9206 = vmatpush2.msra.mxu0 0.0
    %9207 = vmatprep.subr.mxu0 0.0
    %9208 = vmatpush2.msra.mxu0 0.0
    %9209 = vmatprep.subr.mxu0 0.0
    %9210 = vmatpush2.msra.mxu0 0.0
    %9211 = vmatprep.subr.mxu0 0.0
    %9212 = vmatpush2.msra.mxu0 0.0
    %9213 = vmatprep.subr.mxu0 0.0
    %9214 = vmatpush2.msra.mxu0 0.0
    %9215 = vmatprep.subr.mxu0 0.0
    %9216 = vmatpush2.msra.mxu0 0.0
    %9217 = vmatprep.subr.mxu0 0.0
    %9218 = vmatpush2.msra.mxu0 0.0
    %9219 = vmatprep.subr.mxu0 0.0
    %9220 = vmatpush2.msra.mxu0 0.0
    %9221 = vmatprep.subr.mxu0 0.0
    %9222 = vmatpush2.msra.mxu0 0.0
    %9223 = vmatprep.mubr.f32.mxu0 0.0
    %9224 = vmatmul.mubr.f32.gmra.mxu0 %v8968
    %v9225 = vpop.f32.mrf.mxu0
    %v9226 = vadd.f32 0.0, %v9225
    %v9227 = vpop.f32.mrf.mxu0
    %9228 = vmatprep.mubr.f32.mxu0 0.0
    %9229 = vmatmul.mubr.f32.gmra.mxu0 %v8971
    %v9230 = vpop.f32.mrf.mxu0
    %v9231 = vadd.f32 0.0, %v9230
    %v9232 = vpop.f32.mrf.mxu0
    %9233 = vmatprep.mubr.f32.mxu0 0.0
    %9234 = vmatmul.mubr.f32.gmra.mxu0 %v8974
    %v9235 = vpop.f32.mrf.mxu0
    %v9236 = vadd.f32 0.0, %v9235
    %v9237 = vpop.f32.mrf.mxu0
    %9238 = vmatprep.mubr.f32.mxu0 0.0
    %9239 = vmatmul.mubr.f32.gmra.mxu0 %v8977
    %v9240 = vpop.f32.mrf.mxu0
    %v9241 = vadd.f32 0.0, %v9240
    %v9242 = vpop.f32.mrf.mxu0
    %9243 = vmatprep.mubr.f32.mxu0 0.0
    %9244 = vmatmul.mubr.f32.gmra.mxu0 %v8980
    %v9245 = vpop.f32.mrf.mxu0
    %v9246 = vadd.f32 0.0, %v9245
    %v9247 = vpop.f32.mrf.mxu0
    %9248 = vmatprep.mubr.f32.mxu0 0.0
    %9249 = vmatmul.mubr.f32.gmra.mxu0 %v8983
    %v9250 = vpop.f32.mrf.mxu0
    %v9251 = vadd.f32 0.0, %v9250
    %v9252 = vpop.f32.mrf.mxu0
    %9253 = vmatprep.mubr.f32.mxu0 0.0
    %9254 = vmatmul.mubr.f32.gmra.mxu0 %v8986
    %v9255 = vpop.f32.mrf.mxu0
    %v9256 = vadd.f32 0.0, %v9255
    %v9257 = vpop.f32.mrf.mxu0
    %9258 = vmatprep.mubr.f32.mxu0 0.0
    %9259 = vmatmul.mubr.f32.gmra.mxu0 %v8989
    %v9260 = vpop.f32.mrf.mxu0
    %v9261 = vadd.f32 0.0, %v9260
    %v9262 = vpop.f32.mrf.mxu0
    %9263 = vmatprep.mubr.f32.mxu0 0.0
    %9264 = vmatmul.mubr.f32.gmra.mxu0 %v8992
    %v9265 = vpop.f32.mrf.mxu0
    %v9266 = vadd.f32 0.0, %v9265
    %v9267 = vpop.f32.mrf.mxu0
    %9268 = vmatprep.mubr.f32.mxu0 0.0
    %9269 = vmatmul.mubr.f32.gmra.mxu0 %v8995
    %v9270 = vpop.f32.mrf.mxu0
    %v9271 = vadd.f32 0.0, %v9270
    %v9272 = vpop.f32.mrf.mxu0
    %9273 = vmatprep.mubr.f32.mxu0 0.0
    %9274 = vmatmul.mubr.f32.gmra.mxu0 %v8998
    %v9275 = vpop.f32.mrf.mxu0
    %v9276 = vadd.f32 0.0, %v9275
    %v9277 = vpop.f32.mrf.mxu0
    %9278 = vmatprep.mubr.f32.mxu0 0.0
    %9279 = vmatmul.mubr.f32.gmra.mxu0 %v9001
    %v9280 = vpop.f32.mrf.mxu0
    %v9281 = vadd.f32 0.0, %v9280
    %v9282 = vpop.f32.mrf.mxu0
    %9283 = vmatprep.mubr.f32.mxu0 0.0
    %9284 = vmatmul.mubr.f32.gmra.mxu0 %v9004
    %v9285 = vpop.f32.mrf.mxu0
    %v9286 = vadd.f32 0.0, %v9285
    %v9287 = vpop.f32.mrf.mxu0
    %9288 = vmatprep.mubr.f32.mxu0 0.0
    %9289 = vmatmul.mubr.f32.gmra.mxu0 %v9007
    %v9290 = vpop.f32.mrf.mxu0
    %v9291 = vadd.f32 0.0, %v9290
    %v9292 = vpop.f32.mrf.mxu0
    %9293 = vmatprep.mubr.f32.mxu0 0.0
    %9294 = vmatmul.mubr.f32.gmra.mxu0 %v9010
    %v9295 = vpop.f32.mrf.mxu0
    %v9296 = vadd.f32 0.0, %v9295
    %v9297 = vpop.f32.mrf.mxu0
    %9298 = vmatprep.mubr.f32.mxu0 0.0
    %9299 = vmatmul.mubr.f32.gmra.mxu0 %v9013
    %v9300 = vpop.f32.mrf.mxu0
    %v9301 = vadd.f32 0.0, %v9300
    %v9302 = vpop.f32.mrf.mxu0
    %9303 = vmatprep.mubr.f32.mxu0 0.0
    %9304 = vmatmul.mubr.f32.gmra.mxu0 %v9016
    %v9305 = vpop.f32.mrf.mxu0
    %v9306 = vadd.f32 0.0, %v9305
    %v9307 = vpop.f32.mrf.mxu0
    %9308 = vmatprep.mubr.f32.mxu0 0.0
    %9309 = vmatmul.mubr.f32.gmra.mxu0 %v9019
    %v9310 = vpop.f32.mrf.mxu0
    %v9311 = vadd.f32 0.0, %v9310
    %v9312 = vpop.f32.mrf.mxu0
    %9313 = vmatprep.mubr.f32.mxu0 0.0
    %9314 = vmatmul.mubr.f32.gmra.mxu0 %v9022
    %v9315 = vpop.f32.mrf.mxu0
    %v9316 = vadd.f32 0.0, %v9315
    %v9317 = vpop.f32.mrf.mxu0
    %9318 = vmatprep.mubr.f32.mxu0 0.0
    %9319 = vmatmul.mubr.f32.gmra.mxu0 %v9025
    %v9320 = vpop.f32.mrf.mxu0
    %v9321 = vadd.f32 0.0, %v9320
    %v9322 = vpop.f32.mrf.mxu0
    %9323 = vmatprep.mubr.f32.mxu0 0.0
    %9324 = vmatmul.mubr.f32.gmra.mxu0 %v9028
    %v9325 = vpop.f32.mrf.mxu0
    %v9326 = vadd.f32 0.0, %v9325
    %v9327 = vpop.f32.mrf.mxu0
    %9328 = vmatprep.mubr.f32.mxu0 0.0
    %9329 = vmatmul.mubr.f32.gmra.mxu0 %v9031
    %v9330 = vpop.f32.mrf.mxu0
    %v9331 = vadd.f32 0.0, %v9330
    %v9332 = vpop.f32.mrf.mxu0
    %9333 = vmatprep.mubr.f32.mxu0 0.0
    %9334 = vmatmul.mubr.f32.gmra.mxu0 %v9034
    %v9335 = vpop.f32.mrf.mxu0
    %v9336 = vadd.f32 0.0, %v9335
    %v9337 = vpop.f32.mrf.mxu0
    %9338 = vmatprep.mubr.f32.mxu0 0.0
    %9339 = vmatmul.mubr.f32.gmra.mxu0 %v9037
    %v9340 = vpop.f32.mrf.mxu0
    %v9341 = vadd.f32 0.0, %v9340
    %v9342 = vpop.f32.mrf.mxu0
    %9343 = vmatprep.mubr.f32.mxu0 0.0
    %9344 = vmatmul.mubr.f32.gmra.mxu0 %v9040
    %v9345 = vpop.f32.mrf.mxu0
    %v9346 = vadd.f32 0.0, %v9345
    %v9347 = vpop.f32.mrf.mxu0
    %9348 = vmatprep.mubr.f32.mxu0 0.0
    %9349 = vmatmul.mubr.f32.gmra.mxu0 %v9043
    %v9350 = vpop.f32.mrf.mxu0
    %v9351 = vadd.f32 0.0, %v9350
    %v9352 = vpop.f32.mrf.mxu0
    %9353 = vmatprep.mubr.f32.mxu0 0.0
    %9354 = vmatmul.mubr.f32.gmra.mxu0 %v9046
    %v9355 = vpop.f32.mrf.mxu0
    %v9356 = vadd.f32 0.0, %v9355
    %v9357 = vpop.f32.mrf.mxu0
    %9358 = vmatprep.mubr.f32.mxu0 0.0
    %9359 = vmatmul.mubr.f32.gmra.mxu0 %v9049
    %v9360 = vpop.f32.mrf.mxu0
    %v9361 = vadd.f32 0.0, %v9360
    %v9362 = vpop.f32.mrf.mxu0
    %9363 = vmatprep.mubr.f32.mxu0 0.0
    %9364 = vmatmul.mubr.f32.gmra.mxu0 %v9052
    %v9365 = vpop.f32.mrf.mxu0
    %v9366 = vadd.f32 0.0, %v9365
    %v9367 = vpop.f32.mrf.mxu0
    %9368 = vmatprep.mubr.f32.mxu0 0.0
    %9369 = vmatmul.mubr.f32.gmra.mxu0 %v9055
    %v9370 = vpop.f32.mrf.mxu0
    %v9371 = vadd.f32 0.0, %v9370
    %v9372 = vpop.f32.mrf.mxu0
    %9373 = vmatprep.mubr.f32.mxu0 0.0
    %9374 = vmatmul.mubr.f32.gmra.mxu0 %v9058
    %v9375 = vpop.f32.mrf.mxu0
    %v9376 = vadd.f32 0.0, %v9375
    %v9377 = vpop.f32.mrf.mxu0
    %9378 = vmatprep.mubr.f32.mxu0 0.0
    %9379 = vmatmul.mubr.f32.gmra.mxu0 %v9061
    %v9380 = vpop.f32.mrf.mxu0
    %v9381 = vadd.f32 0.0, %v9380
    %v9382 = vpop.f32.mrf.mxu0
    %9383 = vmatprep.mubr.f32.mxu0 0.0
    %9384 = vmatmul.mubr.f32.gmra.mxu0 %v9064
    %v9385 = vpop.f32.mrf.mxu0
    %v9386 = vadd.f32 0.0, %v9385
    %v9387 = vpop.f32.mrf.mxu0
    %9388 = vmatprep.mubr.f32.mxu0 0.0
    %9389 = vmatmul.mubr.f32.gmra.mxu0 %v9067
    %v9390 = vpop.f32.mrf.mxu0
    %v9391 = vadd.f32 0.0, %v9390
    %v9392 = vpop.f32.mrf.mxu0
    %9393 = vmatprep.mubr.f32.mxu0 0.0
    %9394 = vmatmul.mubr.f32.gmra.mxu0 %v9070
    %v9395 = vpop.f32.mrf.mxu0
    %v9396 = vadd.f32 0.0, %v9395
    %v9397 = vpop.f32.mrf.mxu0
    %9398 = vmatprep.mubr.f32.mxu0 0.0
    %9399 = vmatmul.mubr.f32.gmra.mxu0 %v9073
    %v9400 = vpop.f32.mrf.mxu0
    %v9401 = vadd.f32 0.0, %v9400
    %v9402 = vpop.f32.mrf.mxu0
    %9403 = vmatprep.mubr.f32.mxu0 0.0
    %9404 = vmatmul.mubr.f32.gmra.mxu0 %v9076
    %v9405 = vpop.f32.mrf.mxu0
    %v9406 = vadd.f32 0.0, %v9405
    %v9407 = vpop.f32.mrf.mxu0
    %9408 = vmatprep.mubr.f32.mxu0 0.0
    %9409 = vmatmul.mubr.f32.gmra.mxu0 %v9079
    %v9410 = vpop.f32.mrf.mxu0
    %v9411 = vadd.f32 0.0, %v9410
    %v9412 = vpop.f32.mrf.mxu0
    %9413 = vmatprep.mubr.f32.mxu0 0.0
    %9414 = vmatmul.mubr.f32.gmra.mxu0 %v9082
    %v9415 = vpop.f32.mrf.mxu0
    %v9416 = vadd.f32 0.0, %v9415
    %v9417 = vpop.f32.mrf.mxu0
    %9418 = vmatprep.mubr.f32.mxu0 0.0
    %9419 = vmatmul.mubr.f32.gmra.mxu0 %v9085
    %v9420 = vpop.f32.mrf.mxu0
    %v9421 = vadd.f32 0.0, %v9420
    %v9422 = vpop.f32.mrf.mxu0
    %9423 = vmatprep.mubr.f32.mxu0 0.0
    %9424 = vmatmul.mubr.f32.gmra.mxu0 %v9088
    %v9425 = vpop.f32.mrf.mxu0
    %v9426 = vadd.f32 0.0, %v9425
    %v9427 = vpop.f32.mrf.mxu0
    %9428 = vmatprep.mubr.f32.mxu0 0.0
    %9429 = vmatmul.mubr.f32.gmra.mxu0 %v9091
    %v9430 = vpop.f32.mrf.mxu0
    %v9431 = vadd.f32 0.0, %v9430
    %v9432 = vpop.f32.mrf.mxu0
    %9433 = vmatprep.mubr.f32.mxu0 0.0
    %9434 = vmatmul.mubr.f32.gmra.mxu0 %v9094
    %v9435 = vpop.f32.mrf.mxu0
    %v9436 = vadd.f32 0.0, %v9435
    %v9437 = vpop.f32.mrf.mxu0
    %9438 = vmatprep.mubr.f32.mxu0 0.0
    %9439 = vmatmul.mubr.f32.gmra.mxu0 %v9097
    %v9440 = vpop.f32.mrf.mxu0
    %v9441 = vadd.f32 0.0, %v9440
    %v9442 = vpop.f32.mrf.mxu0
    %9443 = vmatprep.mubr.f32.mxu0 0.0
    %9444 = vmatmul.mubr.f32.gmra.mxu0 %v9100
    %v9445 = vpop.f32.mrf.mxu0
    %v9446 = vadd.f32 0.0, %v9445
    %v9447 = vpop.f32.mrf.mxu0
    %9448 = vmatprep.mubr.f32.mxu0 0.0
    %9449 = vmatmul.mubr.f32.gmra.mxu0 %v9103
    %v9450 = vpop.f32.mrf.mxu0
    %v9451 = vadd.f32 0.0, %v9450
    %v9452 = vpop.f32.mrf.mxu0
    %9453 = vmatprep.mubr.f32.mxu0 0.0
    %9454 = vmatmul.mubr.f32.gmra.mxu0 %v9106
    %v9455 = vpop.f32.mrf.mxu0
    %v9456 = vadd.f32 0.0, %v9455
    %v9457 = vpop.f32.mrf.mxu0
    %9458 = vmatprep.mubr.f32.mxu0 0.0
    %9459 = vmatmul.mubr.f32.gmra.mxu0 %v9109
    %v9460 = vpop.f32.mrf.mxu0
    %v9461 = vadd.f32 0.0, %v9460
    %v9462 = vpop.f32.mrf.mxu0
    %9463 = vmatprep.mubr.f32.mxu0 0.0
    %9464 = vmatmul.mubr.f32.gmra.mxu0 %v9112
    %v9465 = vpop.f32.mrf.mxu0
    %v9466 = vadd.f32 0.0, %v9465
    %v9467 = vpop.f32.mrf.mxu0
    %9468 = vmatprep.mubr.f32.mxu0 0.0
    %9469 = vmatmul.mubr.f32.gmra.mxu0 %v9115
    %v9470 = vpop.f32.mrf.mxu0
    %v9471 = vadd.f32 0.0, %v9470
    %v9472 = vpop.f32.mrf.mxu0
    %9473 = vmatprep.mubr.f32.mxu0 0.0
    %9474 = vmatmul.mubr.f32.gmra.mxu0 %v9118
    %v9475 = vpop.f32.mrf.mxu0
    %v9476 = vadd.f32 0.0, %v9475
    %v9477 = vpop.f32.mrf.mxu0
    %9478 = vmatprep.mubr.f32.mxu0 0.0
    %9479 = vmatmul.mubr.f32.gmra.mxu0 %v9121
    %v9480 = vpop.f32.mrf.mxu0
    %v9481 = vadd.f32 0.0, %v9480
    %v9482 = vpop.f32.mrf.mxu0
    %9483 = vmatprep.mubr.f32.mxu0 0.0
    %9484 = vmatmul.mubr.f32.gmra.mxu0 %v9124
    %v9485 = vpop.f32.mrf.mxu0
    %v9486 = vadd.f32 0.0, %v9485
    %v9487 = vpop.f32.mrf.mxu0
    %9488 = vmatprep.mubr.f32.mxu0 0.0
    %9489 = vmatmul.mubr.f32.gmra.mxu0 %v9127
    %v9490 = vpop.f32.mrf.mxu0
    %v9491 = vadd.f32 0.0, %v9490
    %v9492 = vpop.f32.mrf.mxu0
    %9493 = vmatprep.mubr.f32.mxu0 0.0
    %9494 = vmatmul.mubr.f32.gmra.mxu0 %v9130
    %v9495 = vpop.f32.mrf.mxu0
    %v9496 = vadd.f32 0.0, %v9495
    %v9497 = vpop.f32.mrf.mxu0
    %9498 = vmatprep.mubr.f32.mxu0 0.0
    %9499 = vmatmul.mubr.f32.gmra.mxu0 %v9133
    %v9500 = vpop.f32.mrf.mxu0
    %v9501 = vadd.f32 0.0, %v9500
    %v9502 = vpop.f32.mrf.mxu0
    %9503 = vmatprep.mubr.f32.mxu0 0.0
    %9504 = vmatmul.mubr.f32.gmra.mxu0 %v9136
    %v9505 = vpop.f32.mrf.mxu0
    %v9506 = vadd.f32 0.0, %v9505
    %v9507 = vpop.f32.mrf.mxu0
    %9508 = vmatprep.mubr.f32.mxu0 0.0
    %9509 = vmatmul.mubr.f32.gmra.mxu0 %v9139
    %v9510 = vpop.f32.mrf.mxu0
    %v9511 = vadd.f32 0.0, %v9510
    %v9512 = vpop.f32.mrf.mxu0
    %9513 = vmatprep.mubr.f32.mxu0 0.0
    %9514 = vmatmul.mubr.f32.gmra.mxu0 %v9142
    %v9515 = vpop.f32.mrf.mxu0
    %v9516 = vadd.f32 0.0, %v9515
    %v9517 = vpop.f32.mrf.mxu0
    %9518 = vmatprep.mubr.f32.mxu0 0.0
    %9519 = vmatmul.mubr.f32.gmra.mxu0 %v9145
    %v9520 = vpop.f32.mrf.mxu0
    %v9521 = vadd.f32 0.0, %v9520
    %v9522 = vpop.f32.mrf.mxu0
    %9523 = vmatprep.mubr.f32.mxu0 0.0
    %9524 = vmatmul.mubr.f32.gmra.mxu0 %v9148
    %v9525 = vpop.f32.mrf.mxu0
    %v9526 = vadd.f32 0.0, %v9525
    %v9527 = vpop.f32.mrf.mxu0
    %9528 = vmatprep.mubr.f32.mxu0 0.0
    %9529 = vmatmul.mubr.f32.gmra.mxu0 %v9151
    %v9530 = vpop.f32.mrf.mxu0
    %v9531 = vadd.f32 0.0, %v9530
    %v9532 = vpop.f32.mrf.mxu0
    %9533 = vmatprep.mubr.f32.mxu0 0.0
    %9534 = vmatmul.mubr.f32.gmra.mxu0 %v9154
    %v9535 = vpop.f32.mrf.mxu0
    %v9536 = vadd.f32 0.0, %v9535
    %v9537 = vpop.f32.mrf.mxu0
    %9538 = vmatprep.mubr.f32.mxu0 0.0
    %9539 = vmatmul.mubr.f32.gmra.mxu0 %v9157
    %v9540 = vpop.f32.mrf.mxu0
    %v9541 = vadd.f32 0.0, %v9540
    %v9542 = vpop.f32.mrf.mxu0
    %9543 = vdwg.mxu0
    %v9544 = vadd.f32 %v8837, %v9226
    %v9545 = vadd.f32 %v8838, %v9231
    %v9546 = vadd.f32 %v8839, %v9236
    %v9547 = vadd.f32 %v8840, %v9241
    %v9548 = vadd.f32 %v8841, %v9246
    %v9549 = vadd.f32 %v8842, %v9251
    %v9550 = vadd.f32 %v8843, %v9256
    %v9551 = vadd.f32 %v8844, %v9261
    %v9552 = vadd.f32 %v8845, %v9266
    %v9553 = vadd.f32 %v8846, %v9271
    %v9554 = vadd.f32 %v8847, %v9276
    %v9555 = vadd.f32 %v8848, %v9281
    %v9556 = vadd.f32 %v8849, %v9286
    %v9557 = vadd.f32 %v8850, %v9291
    %v9558 = vadd.f32 %v8851, %v9296
    %v9559 = vadd.f32 %v8852, %v9301
    %v9560 = vadd.f32 %v8853, %v9306
    %v9561 = vadd.f32 %v8854, %v9311
    %v9562 = vadd.f32 %v8855, %v9316
    %v9563 = vadd.f32 %v8856, %v9321
    %v9564 = vadd.f32 %v8857, %v9326
    %v9565 = vadd.f32 %v8858, %v9331
    %v9566 = vadd.f32 %v8859, %v9336
    %v9567 = vadd.f32 %v8860, %v9341
    %v9568 = vadd.f32 %v8861, %v9346
    %v9569 = vadd.f32 %v8862, %v9351
    %v9570 = vadd.f32 %v8863, %v9356
    %v9571 = vadd.f32 %v8864, %v9361
    %v9572 = vadd.f32 %v8865, %v9366
    %v9573 = vadd.f32 %v8866, %v9371
    %v9574 = vadd.f32 %v8867, %v9376
    %v9575 = vadd.f32 %v8868, %v9381
    %v9576 = vadd.f32 %v8869, %v9386
    %v9577 = vadd.f32 %v8870, %v9391
    %v9578 = vadd.f32 %v8871, %v9396
    %v9579 = vadd.f32 %v8872, %v9401
    %v9580 = vadd.f32 %v8873, %v9406
    %v9581 = vadd.f32 %v8874, %v9411
    %v9582 = vadd.f32 %v8875, %v9416
    %v9583 = vadd.f32 %v8876, %v9421
    %v9584 = vadd.f32 %v8877, %v9426
    %v9585 = vadd.f32 %v8878, %v9431
    %v9586 = vadd.f32 %v8879, %v9436
    %v9587 = vadd.f32 %v8880, %v9441
    %v9588 = vadd.f32 %v8881, %v9446
    %v9589 = vadd.f32 %v8882, %v9451
    %v9590 = vadd.f32 %v8883, %v9456
    %v9591 = vadd.f32 %v8884, %v9461
    %v9592 = vadd.f32 %v8885, %v9466
    %v9593 = vadd.f32 %v8886, %v9471
    %v9594 = vadd.f32 %v8887, %v9476
    %v9595 = vadd.f32 %v8888, %v9481
    %v9596 = vadd.f32 %v8889, %v9486
    %v9597 = vadd.f32 %v8890, %v9491
    %v9598 = vadd.f32 %v8891, %v9496
    %v9599 = vadd.f32 %v8892, %v9501
    %v9600 = vadd.f32 %v8893, %v9506
    %v9601 = vadd.f32 %v8894, %v9511
    %v9602 = vadd.f32 %v8895, %v9516
    %v9603 = vadd.f32 %v8896, %v9521
    %v9604 = vadd.f32 %v8897, %v9526
    %v9605 = vadd.f32 %v8898, %v9531
    %v9606 = vadd.f32 %v8899, %v9536
    %v9607 = vadd.f32 %v8900, %v9541
    %v9608 = vld [vmem:[%s6844 + $0x8] sm:$0xff]
    %v9609 = vld [vmem:[%s6844 + $0x10] sm:$0xff]
    %v9610 = vld [vmem:[%s6844 + $0x28] sm:$0xff]
    %v9611 = vld [vmem:[%s6844 + $0x30] sm:$0xff]
    %v9612 = vld [vmem:[%s6844 + $0x48] sm:$0xff]
    %v9613 = vld [vmem:[%s6844 + $0x50] sm:$0xff]
    %v9614 = vld [vmem:[%s6844 + $0x68] sm:$0xff]
    %v9615 = vld [vmem:[%s6844 + $0x70] sm:$0xff]
    %v9616 = vld [vmem:[%s6844 + $0x88] sm:$0xff]
    %v9617 = vld [vmem:[%s6844 + $0x90] sm:$0xff]
    %v9618 = vld [vmem:[%s6844 + $0xa8] sm:$0xff]
    %v9619 = vld [vmem:[%s6844 + $0xb0] sm:$0xff]
    %v9620 = vld [vmem:[%s6844 + $0xc8] sm:$0xff]
    %v9621 = vld [vmem:[%s6844 + $0xd0] sm:$0xff]
    %v9622 = vld [vmem:[%s6844 + $0xe8] sm:$0xff]
    %v9623 = vld [vmem:[%s6844 + $0xf0] sm:$0xff]
    %v9624 = vld [vmem:[%s6844 + $0x108] sm:$0xff]
    %v9625 = vld [vmem:[%s6844 + $0x110] sm:$0xff]
    %v9626 = vld [vmem:[%s6844 + $0x128] sm:$0xff]
    %v9627 = vld [vmem:[%s6844 + $0x130] sm:$0xff]
    %v9628 = vld [vmem:[%s6844 + $0x148] sm:$0xff]
    %v9629 = vld [vmem:[%s6844 + $0x150] sm:$0xff]
    %v9630 = vld [vmem:[%s6844 + $0x168] sm:$0xff]
    %v9631 = vld [vmem:[%s6844 + $0x170] sm:$0xff]
    %v9632 = vld [vmem:[%s6844 + $0x188] sm:$0xff]
    %v9633 = vld [vmem:[%s6844 + $0x190] sm:$0xff]
    %v9634 = vld [vmem:[%s6844 + $0x1a8] sm:$0xff]
    %v9635 = vld [vmem:[%s6844 + $0x1b0] sm:$0xff]
    %v9636 = vld [vmem:[%s6844 + $0x1c8] sm:$0xff]
    %v9637 = vld [vmem:[%s6844 + $0x1d0] sm:$0xff]
    %v9638 = vld [vmem:[%s6844 + $0x1e8] sm:$0xff]
    %v9639 = vld [vmem:[%s6844 + $0x1f0] sm:$0xff]
    %v9640 = vld [vmem:[%s6844 + $0x248] sm:$0xff]
    %v9641 = vld [vmem:[%s6844 + $0x250] sm:$0xff]
    %v9642 = vld [vmem:[%s6844 + $0x268] sm:$0xff]
    %v9643 = vld [vmem:[%s6844 + $0x270] sm:$0xff]
    %v9644 = vld [vmem:[%s6844 + $0x288] sm:$0xff]
    %v9645 = vld [vmem:[%s6844 + $0x290] sm:$0xff]
    %v9646 = vld [vmem:[%s6844 + $0x2a8] sm:$0xff]
    %v9647 = vld [vmem:[%s6844 + $0x2b0] sm:$0xff]
    %v9648 = vld [vmem:[%s6844 + $0x2c8] sm:$0xff]
    %v9649 = vld [vmem:[%s6844 + $0x2d0] sm:$0xff]
    %v9650 = vld [vmem:[%s6844 + $0x2e8] sm:$0xff]
    %v9651 = vld [vmem:[%s6844 + $0x2f0] sm:$0xff]
    %v9652 = vld [vmem:[%s6844 + $0x308] sm:$0xff]
    %v9653 = vld [vmem:[%s6844 + $0x310] sm:$0xff]
    %v9654 = vld [vmem:[%s6844 + $0x328] sm:$0xff]
    %v9655 = vld [vmem:[%s6844 + $0x330] sm:$0xff]
    %v9656 = vld [vmem:[%s6844 + $0x348] sm:$0xff]
    %v9657 = vld [vmem:[%s6844 + $0x350] sm:$0xff]
    %v9658 = vld [vmem:[%s6844 + $0x368] sm:$0xff]
    %v9659 = vld [vmem:[%s6844 + $0x370] sm:$0xff]
    %v9660 = vld [vmem:[%s6844 + $0x388] sm:$0xff]
    %v9661 = vld [vmem:[%s6844 + $0x390] sm:$0xff]
    %v9662 = vld [vmem:[%s6844 + $0x3a8] sm:$0xff]
    %v9663 = vld [vmem:[%s6844 + $0x3b0] sm:$0xff]
    %v9664 = vld [vmem:[%s6844 + $0x3c8] sm:$0xff]
    %v9665 = vld [vmem:[%s6844 + $0x3d0] sm:$0xff]
    %v9666 = vld [vmem:[%s6844 + $0x3e8] sm:$0xff]
    %v9667 = vld [vmem:[%s6844 + $0x3f0] sm:$0xff]
    %v9668 = vld [vmem:[%s6844 + $0x408] sm:$0xff]
    %v9669 = vld [vmem:[%s6844 + $0x410] sm:$0xff]
    %v9670 = vld [vmem:[%s6844 + $0x428] sm:$0xff]
    %v9671 = vld [vmem:[%s6844 + $0x430] sm:$0xff]
    %s9672 = scalar_lea.vmem %s3, 32
    %v9673 = vld [vmem:[%s9672] sm:$0xff]
    %v9675 = vsel %vm6699, %v9608, 0
    %v9678 = vsel %vm6699, %v9609, 0
    %v9681 = vsel %vm6699, %v9610, 0
    %v9684 = vsel %vm6699, %v9611, 0
    %v9687 = vsel %vm6699, %v9612, 0
    %v9690 = vsel %vm6699, %v9613, 0
    %v9693 = vsel %vm6699, %v9614, 0
    %v9696 = vsel %vm6699, %v9615, 0
    %v9699 = vsel %vm6699, %v9616, 0
    %v9702 = vsel %vm6699, %v9617, 0
    %v9705 = vsel %vm6699, %v9618, 0
    %v9708 = vsel %vm6699, %v9619, 0
    %v9711 = vsel %vm6699, %v9620, 0
    %v9714 = vsel %vm6699, %v9621, 0
    %v9717 = vsel %vm6699, %v9622, 0
    %v9720 = vsel %vm6699, %v9623, 0
    %v9723 = vsel %vm6699, %v9624, 0
    %v9726 = vsel %vm6699, %v9625, 0
    %v9729 = vsel %vm6699, %v9626, 0
    %v9732 = vsel %vm6699, %v9627, 0
    %v9735 = vsel %vm6699, %v9628, 0
    %v9738 = vsel %vm6699, %v9629, 0
    %v9741 = vsel %vm6699, %v9630, 0
    %v9744 = vsel %vm6699, %v9631, 0
    %v9747 = vsel %vm6699, %v9632, 0
    %v9750 = vsel %vm6699, %v9633, 0
    %v9753 = vsel %vm6699, %v9634, 0
    %v9756 = vsel %vm6699, %v9635, 0
    %v9759 = vsel %vm6699, %v9636, 0
    %v9762 = vsel %vm6699, %v9637, 0
    %v9765 = vsel %vm6699, %v9638, 0
    %v9768 = vsel %vm6699, %v9639, 0
    %v9771 = vsel %vm6699, %v9640, 0
    %v9774 = vsel %vm6699, %v9641, 0
    %v9777 = vsel %vm6699, %v9642, 0
    %v9780 = vsel %vm6699, %v9643, 0
    %v9783 = vsel %vm6699, %v9644, 0
    %v9786 = vsel %vm6699, %v9645, 0
    %v9789 = vsel %vm6699, %v9646, 0
    %v9792 = vsel %vm6699, %v9647, 0
    %v9795 = vsel %vm6699, %v9648, 0
    %v9798 = vsel %vm6699, %v9649, 0
    %v9801 = vsel %vm6699, %v9650, 0
    %v9804 = vsel %vm6699, %v9651, 0
    %v9807 = vsel %vm6699, %v9652, 0
    %v9810 = vsel %vm6699, %v9653, 0
    %v9813 = vsel %vm6699, %v9654, 0
    %v9816 = vsel %vm6699, %v9655, 0
    %v9819 = vsel %vm6699, %v9656, 0
    %v9822 = vsel %vm6699, %v9657, 0
    %v9825 = vsel %vm6699, %v9658, 0
    %v9828 = vsel %vm6699, %v9659, 0
    %v9831 = vsel %vm6699, %v9660, 0
    %v9834 = vsel %vm6699, %v9661, 0
    %v9837 = vsel %vm6699, %v9662, 0
    %v9840 = vsel %vm6699, %v9663, 0
    %v9843 = vsel %vm6699, %v9664, 0
    %v9846 = vsel %vm6699, %v9665, 0
    %v9849 = vsel %vm6699, %v9666, 0
    %v9852 = vsel %vm6699, %v9667, 0
    %v9855 = vsel %vm6699, %v9668, 0
    %v9858 = vsel %vm6699, %v9669, 0
    %v9861 = vsel %vm6699, %v9670, 0
    %v9864 = vsel %vm6699, %v9671, 0
    %9866 = vmatprep.subr.mxu0 0.0
    %9867 = vmatpush1.msra.mxu0 0.0
    %9868 = vmatprep.subr.mxu0 0.0
    %9869 = vmatpush1.msra.mxu0 0.0
    %9870 = vmatprep.subr.mxu0 0.0
    %9871 = vmatpush1.msra.mxu0 0.0
    %9872 = vmatprep.subr.mxu0 0.0
    %9873 = vmatpush1.msra.mxu0 0.0
    %9874 = vmatprep.subr.mxu0 0.0
    %9875 = vmatpush1.msra.mxu0 0.0
    %9876 = vmatprep.subr.mxu0 0.0
    %9877 = vmatpush1.msra.mxu0 0.0
    %9878 = vmatprep.subr.mxu0 0.0
    %9879 = vmatpush1.msra.mxu0 0.0
    %9880 = vmatprep.subr.mxu0 0.0
    %9881 = vmatpush1.msra.mxu0 0.0
    %9882 = vmatprep.subr.mxu0 0.0
    %9883 = vmatpush1.msra.mxu0 0.0
    %9884 = vmatprep.subr.mxu0 0.0
    %9885 = vmatpush1.msra.mxu0 0.0
    %9886 = vmatprep.subr.mxu0 0.0
    %9887 = vmatpush1.msra.mxu0 0.0
    %9888 = vmatprep.subr.mxu0 0.0
    %9889 = vmatpush1.msra.mxu0 0.0
    %9890 = vmatprep.subr.mxu0 0.0
    %9891 = vmatpush1.msra.mxu0 0.0
    %9892 = vmatprep.subr.mxu0 0.0
    %9893 = vmatpush1.msra.mxu0 0.0
    %9894 = vmatprep.subr.mxu0 0.0
    %9895 = vmatpush1.msra.mxu0 0.0
    %9896 = vmatprep.subr.mxu0 0.0
    %9897 = vmatpush1.msra.mxu0 %v9673
    %9898 = vmatprep.subr.mxu0 0.0
    %9899 = vmatpush2.msra.mxu0 0.0
    %9900 = vmatprep.subr.mxu0 0.0
    %9901 = vmatpush2.msra.mxu0 0.0
    %9902 = vmatprep.subr.mxu0 0.0
    %9903 = vmatpush2.msra.mxu0 0.0
    %9904 = vmatprep.subr.mxu0 0.0
    %9905 = vmatpush2.msra.mxu0 0.0
    %9906 = vmatprep.subr.mxu0 0.0
    %9907 = vmatpush2.msra.mxu0 0.0
    %9908 = vmatprep.subr.mxu0 0.0
    %9909 = vmatpush2.msra.mxu0 0.0
    %9910 = vmatprep.subr.mxu0 0.0
    %9911 = vmatpush2.msra.mxu0 0.0
    %9912 = vmatprep.subr.mxu0 0.0
    %9913 = vmatpush2.msra.mxu0 0.0
    %9914 = vmatprep.subr.mxu0 0.0
    %9915 = vmatpush2.msra.mxu0 0.0
    %9916 = vmatprep.subr.mxu0 0.0
    %9917 = vmatpush2.msra.mxu0 0.0
    %9918 = vmatprep.subr.mxu0 0.0
    %9919 = vmatpush2.msra.mxu0 0.0
    %9920 = vmatprep.subr.mxu0 0.0
    %9921 = vmatpush2.msra.mxu0 0.0
    %9922 = vmatprep.subr.mxu0 0.0
    %9923 = vmatpush2.msra.mxu0 0.0
    %9924 = vmatprep.subr.mxu0 0.0
    %9925 = vmatpush2.msra.mxu0 0.0
    %9926 = vmatprep.subr.mxu0 0.0
    %9927 = vmatpush2.msra.mxu0 0.0
    %9928 = vmatprep.subr.mxu0 0.0
    %9929 = vmatpush2.msra.mxu0 0.0
    %9930 = vmatprep.mubr.f32.mxu0 0.0
    %9931 = vmatmul.mubr.f32.gmra.mxu0 %v9675
    %v9932 = vpop.f32.mrf.mxu0
    %v9933 = vadd.f32 0.0, %v9932
    %v9934 = vpop.f32.mrf.mxu0
    %9935 = vmatprep.mubr.f32.mxu0 0.0
    %9936 = vmatmul.mubr.f32.gmra.mxu0 %v9678
    %v9937 = vpop.f32.mrf.mxu0
    %v9938 = vadd.f32 0.0, %v9937
    %v9939 = vpop.f32.mrf.mxu0
    %9940 = vmatprep.mubr.f32.mxu0 0.0
    %9941 = vmatmul.mubr.f32.gmra.mxu0 %v9681
    %v9942 = vpop.f32.mrf.mxu0
    %v9943 = vadd.f32 0.0, %v9942
    %v9944 = vpop.f32.mrf.mxu0
    %9945 = vmatprep.mubr.f32.mxu0 0.0
    %9946 = vmatmul.mubr.f32.gmra.mxu0 %v9684
    %v9947 = vpop.f32.mrf.mxu0
    %v9948 = vadd.f32 0.0, %v9947
    %v9949 = vpop.f32.mrf.mxu0
    %9950 = vmatprep.mubr.f32.mxu0 0.0
    %9951 = vmatmul.mubr.f32.gmra.mxu0 %v9687
    %v9952 = vpop.f32.mrf.mxu0
    %v9953 = vadd.f32 0.0, %v9952
    %v9954 = vpop.f32.mrf.mxu0
    %9955 = vmatprep.mubr.f32.mxu0 0.0
    %9956 = vmatmul.mubr.f32.gmra.mxu0 %v9690
    %v9957 = vpop.f32.mrf.mxu0
    %v9958 = vadd.f32 0.0, %v9957
    %v9959 = vpop.f32.mrf.mxu0
    %9960 = vmatprep.mubr.f32.mxu0 0.0
    %9961 = vmatmul.mubr.f32.gmra.mxu0 %v9693
    %v9962 = vpop.f32.mrf.mxu0
    %v9963 = vadd.f32 0.0, %v9962
    %v9964 = vpop.f32.mrf.mxu0
    %9965 = vmatprep.mubr.f32.mxu0 0.0
    %9966 = vmatmul.mubr.f32.gmra.mxu0 %v9696
    %v9967 = vpop.f32.mrf.mxu0
    %v9968 = vadd.f32 0.0, %v9967
    %v9969 = vpop.f32.mrf.mxu0
    %9970 = vmatprep.mubr.f32.mxu0 0.0
    %9971 = vmatmul.mubr.f32.gmra.mxu0 %v9699
    %v9972 = vpop.f32.mrf.mxu0
    %v9973 = vadd.f32 0.0, %v9972
    %v9974 = vpop.f32.mrf.mxu0
    %9975 = vmatprep.mubr.f32.mxu0 0.0
    %9976 = vmatmul.mubr.f32.gmra.mxu0 %v9702
    %v9977 = vpop.f32.mrf.mxu0
    %v9978 = vadd.f32 0.0, %v9977
    %v9979 = vpop.f32.mrf.mxu0
    %9980 = vmatprep.mubr.f32.mxu0 0.0
    %9981 = vmatmul.mubr.f32.gmra.mxu0 %v9705
    %v9982 = vpop.f32.mrf.mxu0
    %v9983 = vadd.f32 0.0, %v9982
    %v9984 = vpop.f32.mrf.mxu0
    %9985 = vmatprep.mubr.f32.mxu0 0.0
    %9986 = vmatmul.mubr.f32.gmra.mxu0 %v9708
    %v9987 = vpop.f32.mrf.mxu0
    %v9988 = vadd.f32 0.0, %v9987
    %v9989 = vpop.f32.mrf.mxu0
    %9990 = vmatprep.mubr.f32.mxu0 0.0
    %9991 = vmatmul.mubr.f32.gmra.mxu0 %v9711
    %v9992 = vpop.f32.mrf.mxu0
    %v9993 = vadd.f32 0.0, %v9992
    %v9994 = vpop.f32.mrf.mxu0
    %9995 = vmatprep.mubr.f32.mxu0 0.0
    %9996 = vmatmul.mubr.f32.gmra.mxu0 %v9714
    %v9997 = vpop.f32.mrf.mxu0
    %v9998 = vadd.f32 0.0, %v9997
    %v9999 = vpop.f32.mrf.mxu0
    %10000 = vmatprep.mubr.f32.mxu0 0.0
    %10001 = vmatmul.mubr.f32.gmra.mxu0 %v9717
    %v10002 = vpop.f32.mrf.mxu0
    %v10003 = vadd.f32 0.0, %v10002
    %v10004 = vpop.f32.mrf.mxu0
    %10005 = vmatprep.mubr.f32.mxu0 0.0
    %10006 = vmatmul.mubr.f32.gmra.mxu0 %v9720
    %v10007 = vpop.f32.mrf.mxu0
    %v10008 = vadd.f32 0.0, %v10007
    %v10009 = vpop.f32.mrf.mxu0
    %10010 = vmatprep.mubr.f32.mxu0 0.0
    %10011 = vmatmul.mubr.f32.gmra.mxu0 %v9723
    %v10012 = vpop.f32.mrf.mxu0
    %v10013 = vadd.f32 0.0, %v10012
    %v10014 = vpop.f32.mrf.mxu0
    %10015 = vmatprep.mubr.f32.mxu0 0.0
    %10016 = vmatmul.mubr.f32.gmra.mxu0 %v9726
    %v10017 = vpop.f32.mrf.mxu0
    %v10018 = vadd.f32 0.0, %v10017
    %v10019 = vpop.f32.mrf.mxu0
    %10020 = vmatprep.mubr.f32.mxu0 0.0
    %10021 = vmatmul.mubr.f32.gmra.mxu0 %v9729
    %v10022 = vpop.f32.mrf.mxu0
    %v10023 = vadd.f32 0.0, %v10022
    %v10024 = vpop.f32.mrf.mxu0
    %10025 = vmatprep.mubr.f32.mxu0 0.0
    %10026 = vmatmul.mubr.f32.gmra.mxu0 %v9732
    %v10027 = vpop.f32.mrf.mxu0
    %v10028 = vadd.f32 0.0, %v10027
    %v10029 = vpop.f32.mrf.mxu0
    %10030 = vmatprep.mubr.f32.mxu0 0.0
    %10031 = vmatmul.mubr.f32.gmra.mxu0 %v9735
    %v10032 = vpop.f32.mrf.mxu0
    %v10033 = vadd.f32 0.0, %v10032
    %v10034 = vpop.f32.mrf.mxu0
    %10035 = vmatprep.mubr.f32.mxu0 0.0
    %10036 = vmatmul.mubr.f32.gmra.mxu0 %v9738
    %v10037 = vpop.f32.mrf.mxu0
    %v10038 = vadd.f32 0.0, %v10037
    %v10039 = vpop.f32.mrf.mxu0
    %10040 = vmatprep.mubr.f32.mxu0 0.0
    %10041 = vmatmul.mubr.f32.gmra.mxu0 %v9741
    %v10042 = vpop.f32.mrf.mxu0
    %v10043 = vadd.f32 0.0, %v10042
    %v10044 = vpop.f32.mrf.mxu0
    %10045 = vmatprep.mubr.f32.mxu0 0.0
    %10046 = vmatmul.mubr.f32.gmra.mxu0 %v9744
    %v10047 = vpop.f32.mrf.mxu0
    %v10048 = vadd.f32 0.0, %v10047
    %v10049 = vpop.f32.mrf.mxu0
    %10050 = vmatprep.mubr.f32.mxu0 0.0
    %10051 = vmatmul.mubr.f32.gmra.mxu0 %v9747
    %v10052 = vpop.f32.mrf.mxu0
    %v10053 = vadd.f32 0.0, %v10052
    %v10054 = vpop.f32.mrf.mxu0
    %10055 = vmatprep.mubr.f32.mxu0 0.0
    %10056 = vmatmul.mubr.f32.gmra.mxu0 %v9750
    %v10057 = vpop.f32.mrf.mxu0
    %v10058 = vadd.f32 0.0, %v10057
    %v10059 = vpop.f32.mrf.mxu0
    %10060 = vmatprep.mubr.f32.mxu0 0.0
    %10061 = vmatmul.mubr.f32.gmra.mxu0 %v9753
    %v10062 = vpop.f32.mrf.mxu0
    %v10063 = vadd.f32 0.0, %v10062
    %v10064 = vpop.f32.mrf.mxu0
    %10065 = vmatprep.mubr.f32.mxu0 0.0
    %10066 = vmatmul.mubr.f32.gmra.mxu0 %v9756
    %v10067 = vpop.f32.mrf.mxu0
    %v10068 = vadd.f32 0.0, %v10067
    %v10069 = vpop.f32.mrf.mxu0
    %10070 = vmatprep.mubr.f32.mxu0 0.0
    %10071 = vmatmul.mubr.f32.gmra.mxu0 %v9759
    %v10072 = vpop.f32.mrf.mxu0
    %v10073 = vadd.f32 0.0, %v10072
    %v10074 = vpop.f32.mrf.mxu0
    %10075 = vmatprep.mubr.f32.mxu0 0.0
    %10076 = vmatmul.mubr.f32.gmra.mxu0 %v9762
    %v10077 = vpop.f32.mrf.mxu0
    %v10078 = vadd.f32 0.0, %v10077
    %v10079 = vpop.f32.mrf.mxu0
    %10080 = vmatprep.mubr.f32.mxu0 0.0
    %10081 = vmatmul.mubr.f32.gmra.mxu0 %v9765
    %v10082 = vpop.f32.mrf.mxu0
    %v10083 = vadd.f32 0.0, %v10082
    %v10084 = vpop.f32.mrf.mxu0
    %10085 = vmatprep.mubr.f32.mxu0 0.0
    %10086 = vmatmul.mubr.f32.gmra.mxu0 %v9768
    %v10087 = vpop.f32.mrf.mxu0
    %v10088 = vadd.f32 0.0, %v10087
    %v10089 = vpop.f32.mrf.mxu0
    %10090 = vmatprep.mubr.f32.mxu0 0.0
    %10091 = vmatmul.mubr.f32.gmra.mxu0 %v9771
    %v10092 = vpop.f32.mrf.mxu0
    %v10093 = vadd.f32 0.0, %v10092
    %v10094 = vpop.f32.mrf.mxu0
    %10095 = vmatprep.mubr.f32.mxu0 0.0
    %10096 = vmatmul.mubr.f32.gmra.mxu0 %v9774
    %v10097 = vpop.f32.mrf.mxu0
    %v10098 = vadd.f32 0.0, %v10097
    %v10099 = vpop.f32.mrf.mxu0
    %10100 = vmatprep.mubr.f32.mxu0 0.0
    %10101 = vmatmul.mubr.f32.gmra.mxu0 %v9777
    %v10102 = vpop.f32.mrf.mxu0
    %v10103 = vadd.f32 0.0, %v10102
    %v10104 = vpop.f32.mrf.mxu0
    %10105 = vmatprep.mubr.f32.mxu0 0.0
    %10106 = vmatmul.mubr.f32.gmra.mxu0 %v9780
    %v10107 = vpop.f32.mrf.mxu0
    %v10108 = vadd.f32 0.0, %v10107
    %v10109 = vpop.f32.mrf.mxu0
    %10110 = vmatprep.mubr.f32.mxu0 0.0
    %10111 = vmatmul.mubr.f32.gmra.mxu0 %v9783
    %v10112 = vpop.f32.mrf.mxu0
    %v10113 = vadd.f32 0.0, %v10112
    %v10114 = vpop.f32.mrf.mxu0
    %10115 = vmatprep.mubr.f32.mxu0 0.0
    %10116 = vmatmul.mubr.f32.gmra.mxu0 %v9786
    %v10117 = vpop.f32.mrf.mxu0
    %v10118 = vadd.f32 0.0, %v10117
    %v10119 = vpop.f32.mrf.mxu0
    %10120 = vmatprep.mubr.f32.mxu0 0.0
    %10121 = vmatmul.mubr.f32.gmra.mxu0 %v9789
    %v10122 = vpop.f32.mrf.mxu0
    %v10123 = vadd.f32 0.0, %v10122
    %v10124 = vpop.f32.mrf.mxu0
    %10125 = vmatprep.mubr.f32.mxu0 0.0
    %10126 = vmatmul.mubr.f32.gmra.mxu0 %v9792
    %v10127 = vpop.f32.mrf.mxu0
    %v10128 = vadd.f32 0.0, %v10127
    %v10129 = vpop.f32.mrf.mxu0
    %10130 = vmatprep.mubr.f32.mxu0 0.0
    %10131 = vmatmul.mubr.f32.gmra.mxu0 %v9795
    %v10132 = vpop.f32.mrf.mxu0
    %v10133 = vadd.f32 0.0, %v10132
    %v10134 = vpop.f32.mrf.mxu0
    %10135 = vmatprep.mubr.f32.mxu0 0.0
    %10136 = vmatmul.mubr.f32.gmra.mxu0 %v9798
    %v10137 = vpop.f32.mrf.mxu0
    %v10138 = vadd.f32 0.0, %v10137
    %v10139 = vpop.f32.mrf.mxu0
    %10140 = vmatprep.mubr.f32.mxu0 0.0
    %10141 = vmatmul.mubr.f32.gmra.mxu0 %v9801
    %v10142 = vpop.f32.mrf.mxu0
    %v10143 = vadd.f32 0.0, %v10142
    %v10144 = vpop.f32.mrf.mxu0
    %10145 = vmatprep.mubr.f32.mxu0 0.0
    %10146 = vmatmul.mubr.f32.gmra.mxu0 %v9804
    %v10147 = vpop.f32.mrf.mxu0
    %v10148 = vadd.f32 0.0, %v10147
    %v10149 = vpop.f32.mrf.mxu0
    %10150 = vmatprep.mubr.f32.mxu0 0.0
    %10151 = vmatmul.mubr.f32.gmra.mxu0 %v9807
    %v10152 = vpop.f32.mrf.mxu0
    %v10153 = vadd.f32 0.0, %v10152
    %v10154 = vpop.f32.mrf.mxu0
    %10155 = vmatprep.mubr.f32.mxu0 0.0
    %10156 = vmatmul.mubr.f32.gmra.mxu0 %v9810
    %v10157 = vpop.f32.mrf.mxu0
    %v10158 = vadd.f32 0.0, %v10157
    %v10159 = vpop.f32.mrf.mxu0
    %10160 = vmatprep.mubr.f32.mxu0 0.0
    %10161 = vmatmul.mubr.f32.gmra.mxu0 %v9813
    %v10162 = vpop.f32.mrf.mxu0
    %v10163 = vadd.f32 0.0, %v10162
    %v10164 = vpop.f32.mrf.mxu0
    %10165 = vmatprep.mubr.f32.mxu0 0.0
    %10166 = vmatmul.mubr.f32.gmra.mxu0 %v9816
    %v10167 = vpop.f32.mrf.mxu0
    %v10168 = vadd.f32 0.0, %v10167
    %v10169 = vpop.f32.mrf.mxu0
    %10170 = vmatprep.mubr.f32.mxu0 0.0
    %10171 = vmatmul.mubr.f32.gmra.mxu0 %v9819
    %v10172 = vpop.f32.mrf.mxu0
    %v10173 = vadd.f32 0.0, %v10172
    %v10174 = vpop.f32.mrf.mxu0
    %10175 = vmatprep.mubr.f32.mxu0 0.0
    %10176 = vmatmul.mubr.f32.gmra.mxu0 %v9822
    %v10177 = vpop.f32.mrf.mxu0
    %v10178 = vadd.f32 0.0, %v10177
    %v10179 = vpop.f32.mrf.mxu0
    %10180 = vmatprep.mubr.f32.mxu0 0.0
    %10181 = vmatmul.mubr.f32.gmra.mxu0 %v9825
    %v10182 = vpop.f32.mrf.mxu0
    %v10183 = vadd.f32 0.0, %v10182
    %v10184 = vpop.f32.mrf.mxu0
    %10185 = vmatprep.mubr.f32.mxu0 0.0
    %10186 = vmatmul.mubr.f32.gmra.mxu0 %v9828
    %v10187 = vpop.f32.mrf.mxu0
    %v10188 = vadd.f32 0.0, %v10187
    %v10189 = vpop.f32.mrf.mxu0
    %10190 = vmatprep.mubr.f32.mxu0 0.0
    %10191 = vmatmul.mubr.f32.gmra.mxu0 %v9831
    %v10192 = vpop.f32.mrf.mxu0
    %v10193 = vadd.f32 0.0, %v10192
    %v10194 = vpop.f32.mrf.mxu0
    %10195 = vmatprep.mubr.f32.mxu0 0.0
    %10196 = vmatmul.mubr.f32.gmra.mxu0 %v9834
    %v10197 = vpop.f32.mrf.mxu0
    %v10198 = vadd.f32 0.0, %v10197
    %v10199 = vpop.f32.mrf.mxu0
    %10200 = vmatprep.mubr.f32.mxu0 0.0
    %10201 = vmatmul.mubr.f32.gmra.mxu0 %v9837
    %v10202 = vpop.f32.mrf.mxu0
    %v10203 = vadd.f32 0.0, %v10202
    %v10204 = vpop.f32.mrf.mxu0
    %10205 = vmatprep.mubr.f32.mxu0 0.0
    %10206 = vmatmul.mubr.f32.gmra.mxu0 %v9840
    %v10207 = vpop.f32.mrf.mxu0
    %v10208 = vadd.f32 0.0, %v10207
    %v10209 = vpop.f32.mrf.mxu0
    %10210 = vmatprep.mubr.f32.mxu0 0.0
    %10211 = vmatmul.mubr.f32.gmra.mxu0 %v9843
    %v10212 = vpop.f32.mrf.mxu0
    %v10213 = vadd.f32 0.0, %v10212
    %v10214 = vpop.f32.mrf.mxu0
    %10215 = vmatprep.mubr.f32.mxu0 0.0
    %10216 = vmatmul.mubr.f32.gmra.mxu0 %v9846
    %v10217 = vpop.f32.mrf.mxu0
    %v10218 = vadd.f32 0.0, %v10217
    %v10219 = vpop.f32.mrf.mxu0
    %10220 = vmatprep.mubr.f32.mxu0 0.0
    %10221 = vmatmul.mubr.f32.gmra.mxu0 %v9849
    %v10222 = vpop.f32.mrf.mxu0
    %v10223 = vadd.f32 0.0, %v10222
    %v10224 = vpop.f32.mrf.mxu0
    %10225 = vmatprep.mubr.f32.mxu0 0.0
    %10226 = vmatmul.mubr.f32.gmra.mxu0 %v9852
    %v10227 = vpop.f32.mrf.mxu0
    %v10228 = vadd.f32 0.0, %v10227
    %v10229 = vpop.f32.mrf.mxu0
    %10230 = vmatprep.mubr.f32.mxu0 0.0
    %10231 = vmatmul.mubr.f32.gmra.mxu0 %v9855
    %v10232 = vpop.f32.mrf.mxu0
    %v10233 = vadd.f32 0.0, %v10232
    %v10234 = vpop.f32.mrf.mxu0
    %10235 = vmatprep.mubr.f32.mxu0 0.0
    %10236 = vmatmul.mubr.f32.gmra.mxu0 %v9858
    %v10237 = vpop.f32.mrf.mxu0
    %v10238 = vadd.f32 0.0, %v10237
    %v10239 = vpop.f32.mrf.mxu0
    %10240 = vmatprep.mubr.f32.mxu0 0.0
    %10241 = vmatmul.mubr.f32.gmra.mxu0 %v9861
    %v10242 = vpop.f32.mrf.mxu0
    %v10243 = vadd.f32 0.0, %v10242
    %v10244 = vpop.f32.mrf.mxu0
    %10245 = vmatprep.mubr.f32.mxu0 0.0
    %10246 = vmatmul.mubr.f32.gmra.mxu0 %v9864
    %v10247 = vpop.f32.mrf.mxu0
    %v10248 = vadd.f32 0.0, %v10247
    %v10249 = vpop.f32.mrf.mxu0
    %10250 = vdwg.mxu0
    %v10251 = vadd.f32 %v9544, %v9933
    %v10252 = vadd.f32 %v9545, %v9938
    %v10253 = vadd.f32 %v9546, %v9943
    %v10254 = vadd.f32 %v9547, %v9948
    %v10255 = vadd.f32 %v9548, %v9953
    %v10256 = vadd.f32 %v9549, %v9958
    %v10257 = vadd.f32 %v9550, %v9963
    %v10258 = vadd.f32 %v9551, %v9968
    %v10259 = vadd.f32 %v9552, %v9973
    %v10260 = vadd.f32 %v9553, %v9978
    %v10261 = vadd.f32 %v9554, %v9983
    %v10262 = vadd.f32 %v9555, %v9988
    %v10263 = vadd.f32 %v9556, %v9993
    %v10264 = vadd.f32 %v9557, %v9998
    %v10265 = vadd.f32 %v9558, %v10003
    %v10266 = vadd.f32 %v9559, %v10008
    %v10267 = vadd.f32 %v9560, %v10013
    %v10268 = vadd.f32 %v9561, %v10018
    %v10269 = vadd.f32 %v9562, %v10023
    %v10270 = vadd.f32 %v9563, %v10028
    %v10271 = vadd.f32 %v9564, %v10033
    %v10272 = vadd.f32 %v9565, %v10038
    %v10273 = vadd.f32 %v9566, %v10043
    %v10274 = vadd.f32 %v9567, %v10048
    %v10275 = vadd.f32 %v9568, %v10053
    %v10276 = vadd.f32 %v9569, %v10058
    %v10277 = vadd.f32 %v9570, %v10063
    %v10278 = vadd.f32 %v9571, %v10068
    %v10279 = vadd.f32 %v9572, %v10073
    %v10280 = vadd.f32 %v9573, %v10078
    %v10281 = vadd.f32 %v9574, %v10083
    %v10282 = vadd.f32 %v9575, %v10088
    %v10283 = vadd.f32 %v9576, %v10093
    %v10284 = vadd.f32 %v9577, %v10098
    %v10285 = vadd.f32 %v9578, %v10103
    %v10286 = vadd.f32 %v9579, %v10108
    %v10287 = vadd.f32 %v9580, %v10113
    %v10288 = vadd.f32 %v9581, %v10118
    %v10289 = vadd.f32 %v9582, %v10123
    %v10290 = vadd.f32 %v9583, %v10128
    %v10291 = vadd.f32 %v9584, %v10133
    %v10292 = vadd.f32 %v9585, %v10138
    %v10293 = vadd.f32 %v9586, %v10143
    %v10294 = vadd.f32 %v9587, %v10148
    %v10295 = vadd.f32 %v9588, %v10153
    %v10296 = vadd.f32 %v9589, %v10158
    %v10297 = vadd.f32 %v9590, %v10163
    %v10298 = vadd.f32 %v9591, %v10168
    %v10299 = vadd.f32 %v9592, %v10173
    %v10300 = vadd.f32 %v9593, %v10178
    %v10301 = vadd.f32 %v9594, %v10183
    %v10302 = vadd.f32 %v9595, %v10188
    %v10303 = vadd.f32 %v9596, %v10193
    %v10304 = vadd.f32 %v9597, %v10198
    %v10305 = vadd.f32 %v9598, %v10203
    %v10306 = vadd.f32 %v9599, %v10208
    %v10307 = vadd.f32 %v9600, %v10213
    %v10308 = vadd.f32 %v9601, %v10218
    %v10309 = vadd.f32 %v9602, %v10223
    %v10310 = vadd.f32 %v9603, %v10228
    %v10311 = vadd.f32 %v9604, %v10233
    %v10312 = vadd.f32 %v9605, %v10238
    %v10313 = vadd.f32 %v9606, %v10243
    %v10314 = vadd.f32 %v9607, %v10248
    %v10315 = vld [vmem:[%s6844 + $0x9] sm:$0xff]
    %v10316 = vld [vmem:[%s6844 + $0x11] sm:$0xff]
    %v10317 = vld [vmem:[%s6844 + $0x29] sm:$0xff]
    %v10318 = vld [vmem:[%s6844 + $0x31] sm:$0xff]
    %v10319 = vld [vmem:[%s6844 + $0x49] sm:$0xff]
    %v10320 = vld [vmem:[%s6844 + $0x51] sm:$0xff]
    %v10321 = vld [vmem:[%s6844 + $0x69] sm:$0xff]
    %v10322 = vld [vmem:[%s6844 + $0x71] sm:$0xff]
    %v10323 = vld [vmem:[%s6844 + $0x89] sm:$0xff]
    %v10324 = vld [vmem:[%s6844 + $0x91] sm:$0xff]
    %v10325 = vld [vmem:[%s6844 + $0xa9] sm:$0xff]
    %v10326 = vld [vmem:[%s6844 + $0xb1] sm:$0xff]
    %v10327 = vld [vmem:[%s6844 + $0xc9] sm:$0xff]
    %v10328 = vld [vmem:[%s6844 + $0xd1] sm:$0xff]
    %v10329 = vld [vmem:[%s6844 + $0xe9] sm:$0xff]
    %v10330 = vld [vmem:[%s6844 + $0xf1] sm:$0xff]
    %v10331 = vld [vmem:[%s6844 + $0x109] sm:$0xff]
    %v10332 = vld [vmem:[%s6844 + $0x111] sm:$0xff]
    %v10333 = vld [vmem:[%s6844 + $0x129] sm:$0xff]
    %v10334 = vld [vmem:[%s6844 + $0x131] sm:$0xff]
    %v10335 = vld [vmem:[%s6844 + $0x149] sm:$0xff]
    %v10336 = vld [vmem:[%s6844 + $0x151] sm:$0xff]
    %v10337 = vld [vmem:[%s6844 + $0x169] sm:$0xff]
    %v10338 = vld [vmem:[%s6844 + $0x171] sm:$0xff]
    %v10339 = vld [vmem:[%s6844 + $0x189] sm:$0xff]
    %v10340 = vld [vmem:[%s6844 + $0x191] sm:$0xff]
    %v10341 = vld [vmem:[%s6844 + $0x1a9] sm:$0xff]
    %v10342 = vld [vmem:[%s6844 + $0x1b1] sm:$0xff]
    %v10343 = vld [vmem:[%s6844 + $0x1c9] sm:$0xff]
    %v10344 = vld [vmem:[%s6844 + $0x1d1] sm:$0xff]
    %v10345 = vld [vmem:[%s6844 + $0x1e9] sm:$0xff]
    %v10346 = vld [vmem:[%s6844 + $0x1f1] sm:$0xff]
    %v10347 = vld [vmem:[%s6844 + $0x249] sm:$0xff]
    %v10348 = vld [vmem:[%s6844 + $0x251] sm:$0xff]
    %v10349 = vld [vmem:[%s6844 + $0x269] sm:$0xff]
    %v10350 = vld [vmem:[%s6844 + $0x271] sm:$0xff]
    %v10351 = vld [vmem:[%s6844 + $0x289] sm:$0xff]
    %v10352 = vld [vmem:[%s6844 + $0x291] sm:$0xff]
    %v10353 = vld [vmem:[%s6844 + $0x2a9] sm:$0xff]
    %v10354 = vld [vmem:[%s6844 + $0x2b1] sm:$0xff]
    %v10355 = vld [vmem:[%s6844 + $0x2c9] sm:$0xff]
    %v10356 = vld [vmem:[%s6844 + $0x2d1] sm:$0xff]
    %v10357 = vld [vmem:[%s6844 + $0x2e9] sm:$0xff]
    %v10358 = vld [vmem:[%s6844 + $0x2f1] sm:$0xff]
    %v10359 = vld [vmem:[%s6844 + $0x309] sm:$0xff]
    %v10360 = vld [vmem:[%s6844 + $0x311] sm:$0xff]
    %v10361 = vld [vmem:[%s6844 + $0x329] sm:$0xff]
    %v10362 = vld [vmem:[%s6844 + $0x331] sm:$0xff]
    %v10363 = vld [vmem:[%s6844 + $0x349] sm:$0xff]
    %v10364 = vld [vmem:[%s6844 + $0x351] sm:$0xff]
    %v10365 = vld [vmem:[%s6844 + $0x369] sm:$0xff]
    %v10366 = vld [vmem:[%s6844 + $0x371] sm:$0xff]
    %v10367 = vld [vmem:[%s6844 + $0x389] sm:$0xff]
    %v10368 = vld [vmem:[%s6844 + $0x391] sm:$0xff]
    %v10369 = vld [vmem:[%s6844 + $0x3a9] sm:$0xff]
    %v10370 = vld [vmem:[%s6844 + $0x3b1] sm:$0xff]
    %v10371 = vld [vmem:[%s6844 + $0x3c9] sm:$0xff]
    %v10372 = vld [vmem:[%s6844 + $0x3d1] sm:$0xff]
    %v10373 = vld [vmem:[%s6844 + $0x3e9] sm:$0xff]
    %v10374 = vld [vmem:[%s6844 + $0x3f1] sm:$0xff]
    %v10375 = vld [vmem:[%s6844 + $0x409] sm:$0xff]
    %v10376 = vld [vmem:[%s6844 + $0x411] sm:$0xff]
    %v10377 = vld [vmem:[%s6844 + $0x429] sm:$0xff]
    %v10378 = vld [vmem:[%s6844 + $0x431] sm:$0xff]
    %s10379 = scalar_lea.vmem %s3, 40
    %v10380 = vld [vmem:[%s10379] sm:$0xff]
    %v10382 = vsel %vm6699, %v10315, 0
    %v10385 = vsel %vm6699, %v10316, 0
    %v10388 = vsel %vm6699, %v10317, 0
    %v10391 = vsel %vm6699, %v10318, 0
    %v10394 = vsel %vm6699, %v10319, 0
    %v10397 = vsel %vm6699, %v10320, 0
    %v10400 = vsel %vm6699, %v10321, 0
    %v10403 = vsel %vm6699, %v10322, 0
    %v10406 = vsel %vm6699, %v10323, 0
    %v10409 = vsel %vm6699, %v10324, 0
    %v10412 = vsel %vm6699, %v10325, 0
    %v10415 = vsel %vm6699, %v10326, 0
    %v10418 = vsel %vm6699, %v10327, 0
    %v10421 = vsel %vm6699, %v10328, 0
    %v10424 = vsel %vm6699, %v10329, 0
    %v10427 = vsel %vm6699, %v10330, 0
    %v10430 = vsel %vm6699, %v10331, 0
    %v10433 = vsel %vm6699, %v10332, 0
    %v10436 = vsel %vm6699, %v10333, 0
    %v10439 = vsel %vm6699, %v10334, 0
    %v10442 = vsel %vm6699, %v10335, 0
    %v10445 = vsel %vm6699, %v10336, 0
    %v10448 = vsel %vm6699, %v10337, 0
    %v10451 = vsel %vm6699, %v10338, 0
    %v10454 = vsel %vm6699, %v10339, 0
    %v10457 = vsel %vm6699, %v10340, 0
    %v10460 = vsel %vm6699, %v10341, 0
    %v10463 = vsel %vm6699, %v10342, 0
    %v10466 = vsel %vm6699, %v10343, 0
    %v10469 = vsel %vm6699, %v10344, 0
    %v10472 = vsel %vm6699, %v10345, 0
    %v10475 = vsel %vm6699, %v10346, 0
    %v10478 = vsel %vm6699, %v10347, 0
    %v10481 = vsel %vm6699, %v10348, 0
    %v10484 = vsel %vm6699, %v10349, 0
    %v10487 = vsel %vm6699, %v10350, 0
    %v10490 = vsel %vm6699, %v10351, 0
    %v10493 = vsel %vm6699, %v10352, 0
    %v10496 = vsel %vm6699, %v10353, 0
    %v10499 = vsel %vm6699, %v10354, 0
    %v10502 = vsel %vm6699, %v10355, 0
    %v10505 = vsel %vm6699, %v10356, 0
    %v10508 = vsel %vm6699, %v10357, 0
    %v10511 = vsel %vm6699, %v10358, 0
    %v10514 = vsel %vm6699, %v10359, 0
    %v10517 = vsel %vm6699, %v10360, 0
    %v10520 = vsel %vm6699, %v10361, 0
    %v10523 = vsel %vm6699, %v10362, 0
    %v10526 = vsel %vm6699, %v10363, 0
    %v10529 = vsel %vm6699, %v10364, 0
    %v10532 = vsel %vm6699, %v10365, 0
    %v10535 = vsel %vm6699, %v10366, 0
    %v10538 = vsel %vm6699, %v10367, 0
    %v10541 = vsel %vm6699, %v10368, 0
    %v10544 = vsel %vm6699, %v10369, 0
    %v10547 = vsel %vm6699, %v10370, 0
    %v10550 = vsel %vm6699, %v10371, 0
    %v10553 = vsel %vm6699, %v10372, 0
    %v10556 = vsel %vm6699, %v10373, 0
    %v10559 = vsel %vm6699, %v10374, 0
    %v10562 = vsel %vm6699, %v10375, 0
    %v10565 = vsel %vm6699, %v10376, 0
    %v10568 = vsel %vm6699, %v10377, 0
    %v10571 = vsel %vm6699, %v10378, 0
    %10573 = vmatprep.subr.mxu0 0.0
    %10574 = vmatpush1.msra.mxu0 0.0
    %10575 = vmatprep.subr.mxu0 0.0
    %10576 = vmatpush1.msra.mxu0 0.0
    %10577 = vmatprep.subr.mxu0 0.0
    %10578 = vmatpush1.msra.mxu0 0.0
    %10579 = vmatprep.subr.mxu0 0.0
    %10580 = vmatpush1.msra.mxu0 0.0
    %10581 = vmatprep.subr.mxu0 0.0
    %10582 = vmatpush1.msra.mxu0 0.0
    %10583 = vmatprep.subr.mxu0 0.0
    %10584 = vmatpush1.msra.mxu0 0.0
    %10585 = vmatprep.subr.mxu0 0.0
    %10586 = vmatpush1.msra.mxu0 0.0
    %10587 = vmatprep.subr.mxu0 0.0
    %10588 = vmatpush1.msra.mxu0 0.0
    %10589 = vmatprep.subr.mxu0 0.0
    %10590 = vmatpush1.msra.mxu0 0.0
    %10591 = vmatprep.subr.mxu0 0.0
    %10592 = vmatpush1.msra.mxu0 0.0
    %10593 = vmatprep.subr.mxu0 0.0
    %10594 = vmatpush1.msra.mxu0 0.0
    %10595 = vmatprep.subr.mxu0 0.0
    %10596 = vmatpush1.msra.mxu0 0.0
    %10597 = vmatprep.subr.mxu0 0.0
    %10598 = vmatpush1.msra.mxu0 0.0
    %10599 = vmatprep.subr.mxu0 0.0
    %10600 = vmatpush1.msra.mxu0 0.0
    %10601 = vmatprep.subr.mxu0 0.0
    %10602 = vmatpush1.msra.mxu0 0.0
    %10603 = vmatprep.subr.mxu0 0.0
    %10604 = vmatpush1.msra.mxu0 %v10380
    %10605 = vmatprep.subr.mxu0 0.0
    %10606 = vmatpush2.msra.mxu0 0.0
    %10607 = vmatprep.subr.mxu0 0.0
    %10608 = vmatpush2.msra.mxu0 0.0
    %10609 = vmatprep.subr.mxu0 0.0
    %10610 = vmatpush2.msra.mxu0 0.0
    %10611 = vmatprep.subr.mxu0 0.0
    %10612 = vmatpush2.msra.mxu0 0.0
    %10613 = vmatprep.subr.mxu0 0.0
    %10614 = vmatpush2.msra.mxu0 0.0
    %10615 = vmatprep.subr.mxu0 0.0
    %10616 = vmatpush2.msra.mxu0 0.0
    %10617 = vmatprep.subr.mxu0 0.0
    %10618 = vmatpush2.msra.mxu0 0.0
    %10619 = vmatprep.subr.mxu0 0.0
    %10620 = vmatpush2.msra.mxu0 0.0
    %10621 = vmatprep.subr.mxu0 0.0
    %10622 = vmatpush2.msra.mxu0 0.0
    %10623 = vmatprep.subr.mxu0 0.0
    %10624 = vmatpush2.msra.mxu0 0.0
    %10625 = vmatprep.subr.mxu0 0.0
    %10626 = vmatpush2.msra.mxu0 0.0
    %10627 = vmatprep.subr.mxu0 0.0
    %10628 = vmatpush2.msra.mxu0 0.0
    %10629 = vmatprep.subr.mxu0 0.0
    %10630 = vmatpush2.msra.mxu0 0.0
    %10631 = vmatprep.subr.mxu0 0.0
    %10632 = vmatpush2.msra.mxu0 0.0
    %10633 = vmatprep.subr.mxu0 0.0
    %10634 = vmatpush2.msra.mxu0 0.0
    %10635 = vmatprep.subr.mxu0 0.0
    %10636 = vmatpush2.msra.mxu0 0.0
    %10637 = vmatprep.mubr.f32.mxu0 0.0
    %10638 = vmatmul.mubr.f32.gmra.mxu0 %v10382
    %v10639 = vpop.f32.mrf.mxu0
    %v10640 = vadd.f32 0.0, %v10639
    %v10641 = vpop.f32.mrf.mxu0
    %10642 = vmatprep.mubr.f32.mxu0 0.0
    %10643 = vmatmul.mubr.f32.gmra.mxu0 %v10385
    %v10644 = vpop.f32.mrf.mxu0
    %v10645 = vadd.f32 0.0, %v10644
    %v10646 = vpop.f32.mrf.mxu0
    %10647 = vmatprep.mubr.f32.mxu0 0.0
    %10648 = vmatmul.mubr.f32.gmra.mxu0 %v10388
    %v10649 = vpop.f32.mrf.mxu0
    %v10650 = vadd.f32 0.0, %v10649
    %v10651 = vpop.f32.mrf.mxu0
    %10652 = vmatprep.mubr.f32.mxu0 0.0
    %10653 = vmatmul.mubr.f32.gmra.mxu0 %v10391
    %v10654 = vpop.f32.mrf.mxu0
    %v10655 = vadd.f32 0.0, %v10654
    %v10656 = vpop.f32.mrf.mxu0
    %10657 = vmatprep.mubr.f32.mxu0 0.0
    %10658 = vmatmul.mubr.f32.gmra.mxu0 %v10394
    %v10659 = vpop.f32.mrf.mxu0
    %v10660 = vadd.f32 0.0, %v10659
    %v10661 = vpop.f32.mrf.mxu0
    %10662 = vmatprep.mubr.f32.mxu0 0.0
    %10663 = vmatmul.mubr.f32.gmra.mxu0 %v10397
    %v10664 = vpop.f32.mrf.mxu0
    %v10665 = vadd.f32 0.0, %v10664
    %v10666 = vpop.f32.mrf.mxu0
    %10667 = vmatprep.mubr.f32.mxu0 0.0
    %10668 = vmatmul.mubr.f32.gmra.mxu0 %v10400
    %v10669 = vpop.f32.mrf.mxu0
    %v10670 = vadd.f32 0.0, %v10669
    %v10671 = vpop.f32.mrf.mxu0
    %10672 = vmatprep.mubr.f32.mxu0 0.0
    %10673 = vmatmul.mubr.f32.gmra.mxu0 %v10403
    %v10674 = vpop.f32.mrf.mxu0
    %v10675 = vadd.f32 0.0, %v10674
    %v10676 = vpop.f32.mrf.mxu0
    %10677 = vmatprep.mubr.f32.mxu0 0.0
    %10678 = vmatmul.mubr.f32.gmra.mxu0 %v10406
    %v10679 = vpop.f32.mrf.mxu0
    %v10680 = vadd.f32 0.0, %v10679
    %v10681 = vpop.f32.mrf.mxu0
    %10682 = vmatprep.mubr.f32.mxu0 0.0
    %10683 = vmatmul.mubr.f32.gmra.mxu0 %v10409
    %v10684 = vpop.f32.mrf.mxu0
    %v10685 = vadd.f32 0.0, %v10684
    %v10686 = vpop.f32.mrf.mxu0
    %10687 = vmatprep.mubr.f32.mxu0 0.0
    %10688 = vmatmul.mubr.f32.gmra.mxu0 %v10412
    %v10689 = vpop.f32.mrf.mxu0
    %v10690 = vadd.f32 0.0, %v10689
    %v10691 = vpop.f32.mrf.mxu0
    %10692 = vmatprep.mubr.f32.mxu0 0.0
    %10693 = vmatmul.mubr.f32.gmra.mxu0 %v10415
    %v10694 = vpop.f32.mrf.mxu0
    %v10695 = vadd.f32 0.0, %v10694
    %v10696 = vpop.f32.mrf.mxu0
    %10697 = vmatprep.mubr.f32.mxu0 0.0
    %10698 = vmatmul.mubr.f32.gmra.mxu0 %v10418
    %v10699 = vpop.f32.mrf.mxu0
    %v10700 = vadd.f32 0.0, %v10699
    %v10701 = vpop.f32.mrf.mxu0
    %10702 = vmatprep.mubr.f32.mxu0 0.0
    %10703 = vmatmul.mubr.f32.gmra.mxu0 %v10421
    %v10704 = vpop.f32.mrf.mxu0
    %v10705 = vadd.f32 0.0, %v10704
    %v10706 = vpop.f32.mrf.mxu0
    %10707 = vmatprep.mubr.f32.mxu0 0.0
    %10708 = vmatmul.mubr.f32.gmra.mxu0 %v10424
    %v10709 = vpop.f32.mrf.mxu0
    %v10710 = vadd.f32 0.0, %v10709
    %v10711 = vpop.f32.mrf.mxu0
    %10712 = vmatprep.mubr.f32.mxu0 0.0
    %10713 = vmatmul.mubr.f32.gmra.mxu0 %v10427
    %v10714 = vpop.f32.mrf.mxu0
    %v10715 = vadd.f32 0.0, %v10714
    %v10716 = vpop.f32.mrf.mxu0
    %10717 = vmatprep.mubr.f32.mxu0 0.0
    %10718 = vmatmul.mubr.f32.gmra.mxu0 %v10430
    %v10719 = vpop.f32.mrf.mxu0
    %v10720 = vadd.f32 0.0, %v10719
    %v10721 = vpop.f32.mrf.mxu0
    %10722 = vmatprep.mubr.f32.mxu0 0.0
    %10723 = vmatmul.mubr.f32.gmra.mxu0 %v10433
    %v10724 = vpop.f32.mrf.mxu0
    %v10725 = vadd.f32 0.0, %v10724
    %v10726 = vpop.f32.mrf.mxu0
    %10727 = vmatprep.mubr.f32.mxu0 0.0
    %10728 = vmatmul.mubr.f32.gmra.mxu0 %v10436
    %v10729 = vpop.f32.mrf.mxu0
    %v10730 = vadd.f32 0.0, %v10729
    %v10731 = vpop.f32.mrf.mxu0
    %10732 = vmatprep.mubr.f32.mxu0 0.0
    %10733 = vmatmul.mubr.f32.gmra.mxu0 %v10439
    %v10734 = vpop.f32.mrf.mxu0
    %v10735 = vadd.f32 0.0, %v10734
    %v10736 = vpop.f32.mrf.mxu0
    %10737 = vmatprep.mubr.f32.mxu0 0.0
    %10738 = vmatmul.mubr.f32.gmra.mxu0 %v10442
    %v10739 = vpop.f32.mrf.mxu0
    %v10740 = vadd.f32 0.0, %v10739
    %v10741 = vpop.f32.mrf.mxu0
    %10742 = vmatprep.mubr.f32.mxu0 0.0
    %10743 = vmatmul.mubr.f32.gmra.mxu0 %v10445
    %v10744 = vpop.f32.mrf.mxu0
    %v10745 = vadd.f32 0.0, %v10744
    %v10746 = vpop.f32.mrf.mxu0
    %10747 = vmatprep.mubr.f32.mxu0 0.0
    %10748 = vmatmul.mubr.f32.gmra.mxu0 %v10448
    %v10749 = vpop.f32.mrf.mxu0
    %v10750 = vadd.f32 0.0, %v10749
    %v10751 = vpop.f32.mrf.mxu0
    %10752 = vmatprep.mubr.f32.mxu0 0.0
    %10753 = vmatmul.mubr.f32.gmra.mxu0 %v10451
    %v10754 = vpop.f32.mrf.mxu0
    %v10755 = vadd.f32 0.0, %v10754
    %v10756 = vpop.f32.mrf.mxu0
    %10757 = vmatprep.mubr.f32.mxu0 0.0
    %10758 = vmatmul.mubr.f32.gmra.mxu0 %v10454
    %v10759 = vpop.f32.mrf.mxu0
    %v10760 = vadd.f32 0.0, %v10759
    %v10761 = vpop.f32.mrf.mxu0
    %10762 = vmatprep.mubr.f32.mxu0 0.0
    %10763 = vmatmul.mubr.f32.gmra.mxu0 %v10457
    %v10764 = vpop.f32.mrf.mxu0
    %v10765 = vadd.f32 0.0, %v10764
    %v10766 = vpop.f32.mrf.mxu0
    %10767 = vmatprep.mubr.f32.mxu0 0.0
    %10768 = vmatmul.mubr.f32.gmra.mxu0 %v10460
    %v10769 = vpop.f32.mrf.mxu0
    %v10770 = vadd.f32 0.0, %v10769
    %v10771 = vpop.f32.mrf.mxu0
    %10772 = vmatprep.mubr.f32.mxu0 0.0
    %10773 = vmatmul.mubr.f32.gmra.mxu0 %v10463
    %v10774 = vpop.f32.mrf.mxu0
    %v10775 = vadd.f32 0.0, %v10774
    %v10776 = vpop.f32.mrf.mxu0
    %10777 = vmatprep.mubr.f32.mxu0 0.0
    %10778 = vmatmul.mubr.f32.gmra.mxu0 %v10466
    %v10779 = vpop.f32.mrf.mxu0
    %v10780 = vadd.f32 0.0, %v10779
    %v10781 = vpop.f32.mrf.mxu0
    %10782 = vmatprep.mubr.f32.mxu0 0.0
    %10783 = vmatmul.mubr.f32.gmra.mxu0 %v10469
    %v10784 = vpop.f32.mrf.mxu0
    %v10785 = vadd.f32 0.0, %v10784
    %v10786 = vpop.f32.mrf.mxu0
    %10787 = vmatprep.mubr.f32.mxu0 0.0
    %10788 = vmatmul.mubr.f32.gmra.mxu0 %v10472
    %v10789 = vpop.f32.mrf.mxu0
    %v10790 = vadd.f32 0.0, %v10789
    %v10791 = vpop.f32.mrf.mxu0
    %10792 = vmatprep.mubr.f32.mxu0 0.0
    %10793 = vmatmul.mubr.f32.gmra.mxu0 %v10475
    %v10794 = vpop.f32.mrf.mxu0
    %v10795 = vadd.f32 0.0, %v10794
    %v10796 = vpop.f32.mrf.mxu0
    %10797 = vmatprep.mubr.f32.mxu0 0.0
    %10798 = vmatmul.mubr.f32.gmra.mxu0 %v10478
    %v10799 = vpop.f32.mrf.mxu0
    %v10800 = vadd.f32 0.0, %v10799
    %v10801 = vpop.f32.mrf.mxu0
    %10802 = vmatprep.mubr.f32.mxu0 0.0
    %10803 = vmatmul.mubr.f32.gmra.mxu0 %v10481
    %v10804 = vpop.f32.mrf.mxu0
    %v10805 = vadd.f32 0.0, %v10804
    %v10806 = vpop.f32.mrf.mxu0
    %10807 = vmatprep.mubr.f32.mxu0 0.0
    %10808 = vmatmul.mubr.f32.gmra.mxu0 %v10484
    %v10809 = vpop.f32.mrf.mxu0
    %v10810 = vadd.f32 0.0, %v10809
    %v10811 = vpop.f32.mrf.mxu0
    %10812 = vmatprep.mubr.f32.mxu0 0.0
    %10813 = vmatmul.mubr.f32.gmra.mxu0 %v10487
    %v10814 = vpop.f32.mrf.mxu0
    %v10815 = vadd.f32 0.0, %v10814
    %v10816 = vpop.f32.mrf.mxu0
    %10817 = vmatprep.mubr.f32.mxu0 0.0
    %10818 = vmatmul.mubr.f32.gmra.mxu0 %v10490
    %v10819 = vpop.f32.mrf.mxu0
    %v10820 = vadd.f32 0.0, %v10819
    %v10821 = vpop.f32.mrf.mxu0
    %10822 = vmatprep.mubr.f32.mxu0 0.0
    %10823 = vmatmul.mubr.f32.gmra.mxu0 %v10493
    %v10824 = vpop.f32.mrf.mxu0
    %v10825 = vadd.f32 0.0, %v10824
    %v10826 = vpop.f32.mrf.mxu0
    %10827 = vmatprep.mubr.f32.mxu0 0.0
    %10828 = vmatmul.mubr.f32.gmra.mxu0 %v10496
    %v10829 = vpop.f32.mrf.mxu0
    %v10830 = vadd.f32 0.0, %v10829
    %v10831 = vpop.f32.mrf.mxu0
    %10832 = vmatprep.mubr.f32.mxu0 0.0
    %10833 = vmatmul.mubr.f32.gmra.mxu0 %v10499
    %v10834 = vpop.f32.mrf.mxu0
    %v10835 = vadd.f32 0.0, %v10834
    %v10836 = vpop.f32.mrf.mxu0
    %10837 = vmatprep.mubr.f32.mxu0 0.0
    %10838 = vmatmul.mubr.f32.gmra.mxu0 %v10502
    %v10839 = vpop.f32.mrf.mxu0
    %v10840 = vadd.f32 0.0, %v10839
    %v10841 = vpop.f32.mrf.mxu0
    %10842 = vmatprep.mubr.f32.mxu0 0.0
    %10843 = vmatmul.mubr.f32.gmra.mxu0 %v10505
    %v10844 = vpop.f32.mrf.mxu0
    %v10845 = vadd.f32 0.0, %v10844
    %v10846 = vpop.f32.mrf.mxu0
    %10847 = vmatprep.mubr.f32.mxu0 0.0
    %10848 = vmatmul.mubr.f32.gmra.mxu0 %v10508
    %v10849 = vpop.f32.mrf.mxu0
    %v10850 = vadd.f32 0.0, %v10849
    %v10851 = vpop.f32.mrf.mxu0
    %10852 = vmatprep.mubr.f32.mxu0 0.0
    %10853 = vmatmul.mubr.f32.gmra.mxu0 %v10511
    %v10854 = vpop.f32.mrf.mxu0
    %v10855 = vadd.f32 0.0, %v10854
    %v10856 = vpop.f32.mrf.mxu0
    %10857 = vmatprep.mubr.f32.mxu0 0.0
    %10858 = vmatmul.mubr.f32.gmra.mxu0 %v10514
    %v10859 = vpop.f32.mrf.mxu0
    %v10860 = vadd.f32 0.0, %v10859
    %v10861 = vpop.f32.mrf.mxu0
    %10862 = vmatprep.mubr.f32.mxu0 0.0
    %10863 = vmatmul.mubr.f32.gmra.mxu0 %v10517
    %v10864 = vpop.f32.mrf.mxu0
    %v10865 = vadd.f32 0.0, %v10864
    %v10866 = vpop.f32.mrf.mxu0
    %10867 = vmatprep.mubr.f32.mxu0 0.0
    %10868 = vmatmul.mubr.f32.gmra.mxu0 %v10520
    %v10869 = vpop.f32.mrf.mxu0
    %v10870 = vadd.f32 0.0, %v10869
    %v10871 = vpop.f32.mrf.mxu0
    %10872 = vmatprep.mubr.f32.mxu0 0.0
    %10873 = vmatmul.mubr.f32.gmra.mxu0 %v10523
    %v10874 = vpop.f32.mrf.mxu0
    %v10875 = vadd.f32 0.0, %v10874
    %v10876 = vpop.f32.mrf.mxu0
    %10877 = vmatprep.mubr.f32.mxu0 0.0
    %10878 = vmatmul.mubr.f32.gmra.mxu0 %v10526
    %v10879 = vpop.f32.mrf.mxu0
    %v10880 = vadd.f32 0.0, %v10879
    %v10881 = vpop.f32.mrf.mxu0
    %10882 = vmatprep.mubr.f32.mxu0 0.0
    %10883 = vmatmul.mubr.f32.gmra.mxu0 %v10529
    %v10884 = vpop.f32.mrf.mxu0
    %v10885 = vadd.f32 0.0, %v10884
    %v10886 = vpop.f32.mrf.mxu0
    %10887 = vmatprep.mubr.f32.mxu0 0.0
    %10888 = vmatmul.mubr.f32.gmra.mxu0 %v10532
    %v10889 = vpop.f32.mrf.mxu0
    %v10890 = vadd.f32 0.0, %v10889
    %v10891 = vpop.f32.mrf.mxu0
    %10892 = vmatprep.mubr.f32.mxu0 0.0
    %10893 = vmatmul.mubr.f32.gmra.mxu0 %v10535
    %v10894 = vpop.f32.mrf.mxu0
    %v10895 = vadd.f32 0.0, %v10894
    %v10896 = vpop.f32.mrf.mxu0
    %10897 = vmatprep.mubr.f32.mxu0 0.0
    %10898 = vmatmul.mubr.f32.gmra.mxu0 %v10538
    %v10899 = vpop.f32.mrf.mxu0
    %v10900 = vadd.f32 0.0, %v10899
    %v10901 = vpop.f32.mrf.mxu0
    %10902 = vmatprep.mubr.f32.mxu0 0.0
    %10903 = vmatmul.mubr.f32.gmra.mxu0 %v10541
    %v10904 = vpop.f32.mrf.mxu0
    %v10905 = vadd.f32 0.0, %v10904
    %v10906 = vpop.f32.mrf.mxu0
    %10907 = vmatprep.mubr.f32.mxu0 0.0
    %10908 = vmatmul.mubr.f32.gmra.mxu0 %v10544
    %v10909 = vpop.f32.mrf.mxu0
    %v10910 = vadd.f32 0.0, %v10909
    %v10911 = vpop.f32.mrf.mxu0
    %10912 = vmatprep.mubr.f32.mxu0 0.0
    %10913 = vmatmul.mubr.f32.gmra.mxu0 %v10547
    %v10914 = vpop.f32.mrf.mxu0
    %v10915 = vadd.f32 0.0, %v10914
    %v10916 = vpop.f32.mrf.mxu0
    %10917 = vmatprep.mubr.f32.mxu0 0.0
    %10918 = vmatmul.mubr.f32.gmra.mxu0 %v10550
    %v10919 = vpop.f32.mrf.mxu0
    %v10920 = vadd.f32 0.0, %v10919
    %v10921 = vpop.f32.mrf.mxu0
    %10922 = vmatprep.mubr.f32.mxu0 0.0
    %10923 = vmatmul.mubr.f32.gmra.mxu0 %v10553
    %v10924 = vpop.f32.mrf.mxu0
    %v10925 = vadd.f32 0.0, %v10924
    %v10926 = vpop.f32.mrf.mxu0
    %10927 = vmatprep.mubr.f32.mxu0 0.0
    %10928 = vmatmul.mubr.f32.gmra.mxu0 %v10556
    %v10929 = vpop.f32.mrf.mxu0
    %v10930 = vadd.f32 0.0, %v10929
    %v10931 = vpop.f32.mrf.mxu0
    %10932 = vmatprep.mubr.f32.mxu0 0.0
    %10933 = vmatmul.mubr.f32.gmra.mxu0 %v10559
    %v10934 = vpop.f32.mrf.mxu0
    %v10935 = vadd.f32 0.0, %v10934
    %v10936 = vpop.f32.mrf.mxu0
    %10937 = vmatprep.mubr.f32.mxu0 0.0
    %10938 = vmatmul.mubr.f32.gmra.mxu0 %v10562
    %v10939 = vpop.f32.mrf.mxu0
    %v10940 = vadd.f32 0.0, %v10939
    %v10941 = vpop.f32.mrf.mxu0
    %10942 = vmatprep.mubr.f32.mxu0 0.0
    %10943 = vmatmul.mubr.f32.gmra.mxu0 %v10565
    %v10944 = vpop.f32.mrf.mxu0
    %v10945 = vadd.f32 0.0, %v10944
    %v10946 = vpop.f32.mrf.mxu0
    %10947 = vmatprep.mubr.f32.mxu0 0.0
    %10948 = vmatmul.mubr.f32.gmra.mxu0 %v10568
    %v10949 = vpop.f32.mrf.mxu0
    %v10950 = vadd.f32 0.0, %v10949
    %v10951 = vpop.f32.mrf.mxu0
    %10952 = vmatprep.mubr.f32.mxu0 0.0
    %10953 = vmatmul.mubr.f32.gmra.mxu0 %v10571
    %v10954 = vpop.f32.mrf.mxu0
    %v10955 = vadd.f32 0.0, %v10954
    %v10956 = vpop.f32.mrf.mxu0
    %10957 = vdwg.mxu0
    %v10958 = vadd.f32 %v10251, %v10640
    %v10959 = vadd.f32 %v10252, %v10645
    %v10960 = vadd.f32 %v10253, %v10650
    %v10961 = vadd.f32 %v10254, %v10655
    %v10962 = vadd.f32 %v10255, %v10660
    %v10963 = vadd.f32 %v10256, %v10665
    %v10964 = vadd.f32 %v10257, %v10670
    %v10965 = vadd.f32 %v10258, %v10675
    %v10966 = vadd.f32 %v10259, %v10680
    %v10967 = vadd.f32 %v10260, %v10685
    %v10968 = vadd.f32 %v10261, %v10690
    %v10969 = vadd.f32 %v10262, %v10695
    %v10970 = vadd.f32 %v10263, %v10700
    %v10971 = vadd.f32 %v10264, %v10705
    %v10972 = vadd.f32 %v10265, %v10710
    %v10973 = vadd.f32 %v10266, %v10715
    %v10974 = vadd.f32 %v10267, %v10720
    %v10975 = vadd.f32 %v10268, %v10725
    %v10976 = vadd.f32 %v10269, %v10730
    %v10977 = vadd.f32 %v10270, %v10735
    %v10978 = vadd.f32 %v10271, %v10740
    %v10979 = vadd.f32 %v10272, %v10745
    %v10980 = vadd.f32 %v10273, %v10750
    %v10981 = vadd.f32 %v10274, %v10755
    %v10982 = vadd.f32 %v10275, %v10760
    %v10983 = vadd.f32 %v10276, %v10765
    %v10984 = vadd.f32 %v10277, %v10770
    %v10985 = vadd.f32 %v10278, %v10775
    %v10986 = vadd.f32 %v10279, %v10780
    %v10987 = vadd.f32 %v10280, %v10785
    %v10988 = vadd.f32 %v10281, %v10790
    %v10989 = vadd.f32 %v10282, %v10795
    %v10990 = vadd.f32 %v10283, %v10800
    %v10991 = vadd.f32 %v10284, %v10805
    %v10992 = vadd.f32 %v10285, %v10810
    %v10993 = vadd.f32 %v10286, %v10815
    %v10994 = vadd.f32 %v10287, %v10820
    %v10995 = vadd.f32 %v10288, %v10825
    %v10996 = vadd.f32 %v10289, %v10830
    %v10997 = vadd.f32 %v10290, %v10835
    %v10998 = vadd.f32 %v10291, %v10840
    %v10999 = vadd.f32 %v10292, %v10845
    %v11000 = vadd.f32 %v10293, %v10850
    %v11001 = vadd.f32 %v10294, %v10855
    %v11002 = vadd.f32 %v10295, %v10860
    %v11003 = vadd.f32 %v10296, %v10865
    %v11004 = vadd.f32 %v10297, %v10870
    %v11005 = vadd.f32 %v10298, %v10875
    %v11006 = vadd.f32 %v10299, %v10880
    %v11007 = vadd.f32 %v10300, %v10885
    %v11008 = vadd.f32 %v10301, %v10890
    %v11009 = vadd.f32 %v10302, %v10895
    %v11010 = vadd.f32 %v10303, %v10900
    %v11011 = vadd.f32 %v10304, %v10905
    %v11012 = vadd.f32 %v10305, %v10910
    %v11013 = vadd.f32 %v10306, %v10915
    %v11014 = vadd.f32 %v10307, %v10920
    %v11015 = vadd.f32 %v10308, %v10925
    %v11016 = vadd.f32 %v10309, %v10930
    %v11017 = vadd.f32 %v10310, %v10935
    %v11018 = vadd.f32 %v10311, %v10940
    %v11019 = vadd.f32 %v10312, %v10945
    %v11020 = vadd.f32 %v10313, %v10950
    %v11021 = vadd.f32 %v10314, %v10955
    %s11022 = scalar_lea.vmem [#allocation3], 64
    %v11023 = vld [vmem:[%s11022 + $0x7] sm:$0xff]
    %v11024 = vld [vmem:[%s11022 + $0xf] sm:$0xff]
    %v11025 = vld [vmem:[%s11022 + $0x27] sm:$0xff]
    %v11026 = vld [vmem:[%s11022 + $0x2f] sm:$0xff]
    %v11027 = vld [vmem:[%s11022 + $0x47] sm:$0xff]
    %v11028 = vld [vmem:[%s11022 + $0x4f] sm:$0xff]
    %v11029 = vld [vmem:[%s11022 + $0x67] sm:$0xff]
    %v11030 = vld [vmem:[%s11022 + $0x6f] sm:$0xff]
    %v11031 = vld [vmem:[%s11022 + $0x87] sm:$0xff]
    %v11032 = vld [vmem:[%s11022 + $0x8f] sm:$0xff]
    %v11033 = vld [vmem:[%s11022 + $0xa7] sm:$0xff]
    %v11034 = vld [vmem:[%s11022 + $0xaf] sm:$0xff]
    %v11035 = vld [vmem:[%s11022 + $0xc7] sm:$0xff]
    %v11036 = vld [vmem:[%s11022 + $0xcf] sm:$0xff]
    %v11037 = vld [vmem:[%s11022 + $0xe7] sm:$0xff]
    %v11038 = vld [vmem:[%s11022 + $0xef] sm:$0xff]
    %v11039 = vld [vmem:[%s11022 + $0x107] sm:$0xff]
    %v11040 = vld [vmem:[%s11022 + $0x10f] sm:$0xff]
    %v11041 = vld [vmem:[%s11022 + $0x127] sm:$0xff]
    %v11042 = vld [vmem:[%s11022 + $0x12f] sm:$0xff]
    %v11043 = vld [vmem:[%s11022 + $0x147] sm:$0xff]
    %v11044 = vld [vmem:[%s11022 + $0x14f] sm:$0xff]
    %v11045 = vld [vmem:[%s11022 + $0x167] sm:$0xff]
    %v11046 = vld [vmem:[%s11022 + $0x16f] sm:$0xff]
    %v11047 = vld [vmem:[%s11022 + $0x187] sm:$0xff]
    %v11048 = vld [vmem:[%s11022 + $0x18f] sm:$0xff]
    %v11049 = vld [vmem:[%s11022 + $0x1a7] sm:$0xff]
    %v11050 = vld [vmem:[%s11022 + $0x1af] sm:$0xff]
    %v11051 = vld [vmem:[%s11022 + $0x1c7] sm:$0xff]
    %v11052 = vld [vmem:[%s11022 + $0x1cf] sm:$0xff]
    %v11053 = vld [vmem:[%s11022 + $0x1e7] sm:$0xff]
    %v11054 = vld [vmem:[%s11022 + $0x1ef] sm:$0xff]
    %v11055 = vld [vmem:[%s11022 + $0x247] sm:$0xff]
    %v11056 = vld [vmem:[%s11022 + $0x24f] sm:$0xff]
    %v11057 = vld [vmem:[%s11022 + $0x267] sm:$0xff]
    %v11058 = vld [vmem:[%s11022 + $0x26f] sm:$0xff]
    %v11059 = vld [vmem:[%s11022 + $0x287] sm:$0xff]
    %v11060 = vld [vmem:[%s11022 + $0x28f] sm:$0xff]
    %v11061 = vld [vmem:[%s11022 + $0x2a7] sm:$0xff]
    %v11062 = vld [vmem:[%s11022 + $0x2af] sm:$0xff]
    %v11063 = vld [vmem:[%s11022 + $0x2c7] sm:$0xff]
    %v11064 = vld [vmem:[%s11022 + $0x2cf] sm:$0xff]
    %v11065 = vld [vmem:[%s11022 + $0x2e7] sm:$0xff]
    %v11066 = vld [vmem:[%s11022 + $0x2ef] sm:$0xff]
    %v11067 = vld [vmem:[%s11022 + $0x307] sm:$0xff]
    %v11068 = vld [vmem:[%s11022 + $0x30f] sm:$0xff]
    %v11069 = vld [vmem:[%s11022 + $0x327] sm:$0xff]
    %v11070 = vld [vmem:[%s11022 + $0x32f] sm:$0xff]
    %v11071 = vld [vmem:[%s11022 + $0x347] sm:$0xff]
    %v11072 = vld [vmem:[%s11022 + $0x34f] sm:$0xff]
    %v11073 = vld [vmem:[%s11022 + $0x367] sm:$0xff]
    %v11074 = vld [vmem:[%s11022 + $0x36f] sm:$0xff]
    %v11075 = vld [vmem:[%s11022 + $0x387] sm:$0xff]
    %v11076 = vld [vmem:[%s11022 + $0x38f] sm:$0xff]
    %v11077 = vld [vmem:[%s11022 + $0x3a7] sm:$0xff]
    %v11078 = vld [vmem:[%s11022 + $0x3af] sm:$0xff]
    %v11079 = vld [vmem:[%s11022 + $0x3c7] sm:$0xff]
    %v11080 = vld [vmem:[%s11022 + $0x3cf] sm:$0xff]
    %v11081 = vld [vmem:[%s11022 + $0x3e7] sm:$0xff]
    %v11082 = vld [vmem:[%s11022 + $0x3ef] sm:$0xff]
    %v11083 = vld [vmem:[%s11022 + $0x407] sm:$0xff]
    %v11084 = vld [vmem:[%s11022 + $0x40f] sm:$0xff]
    %v11085 = vld [vmem:[%s11022 + $0x427] sm:$0xff]
    %v11086 = vld [vmem:[%s11022 + $0x42f] sm:$0xff]
    %s11087 = scalar_lea.vmem %s3, 48
    %v11088 = vld [vmem:[%s11087] sm:$0xff]
    %v11090 = vsel %vm6699, %v11023, 0
    %v11093 = vsel %vm6699, %v11024, 0
    %v11096 = vsel %vm6699, %v11025, 0
    %v11099 = vsel %vm6699, %v11026, 0
    %v11102 = vsel %vm6699, %v11027, 0
    %v11105 = vsel %vm6699, %v11028, 0
    %v11108 = vsel %vm6699, %v11029, 0
    %v11111 = vsel %vm6699, %v11030, 0
    %v11114 = vsel %vm6699, %v11031, 0
    %v11117 = vsel %vm6699, %v11032, 0
    %v11120 = vsel %vm6699, %v11033, 0
    %v11123 = vsel %vm6699, %v11034, 0
    %v11126 = vsel %vm6699, %v11035, 0
    %v11129 = vsel %vm6699, %v11036, 0
    %v11132 = vsel %vm6699, %v11037, 0
    %v11135 = vsel %vm6699, %v11038, 0
    %v11138 = vsel %vm6699, %v11039, 0
    %v11141 = vsel %vm6699, %v11040, 0
    %v11144 = vsel %vm6699, %v11041, 0
    %v11147 = vsel %vm6699, %v11042, 0
    %v11150 = vsel %vm6699, %v11043, 0
    %v11153 = vsel %vm6699, %v11044, 0
    %v11156 = vsel %vm6699, %v11045, 0
    %v11159 = vsel %vm6699, %v11046, 0
    %v11162 = vsel %vm6699, %v11047, 0
    %v11165 = vsel %vm6699, %v11048, 0
    %v11168 = vsel %vm6699, %v11049, 0
    %v11171 = vsel %vm6699, %v11050, 0
    %v11174 = vsel %vm6699, %v11051, 0
    %v11177 = vsel %vm6699, %v11052, 0
    %v11180 = vsel %vm6699, %v11053, 0
    %v11183 = vsel %vm6699, %v11054, 0
    %v11186 = vsel %vm6699, %v11055, 0
    %v11189 = vsel %vm6699, %v11056, 0
    %v11192 = vsel %vm6699, %v11057, 0
    %v11195 = vsel %vm6699, %v11058, 0
    %v11198 = vsel %vm6699, %v11059, 0
    %v11201 = vsel %vm6699, %v11060, 0
    %v11204 = vsel %vm6699, %v11061, 0
    %v11207 = vsel %vm6699, %v11062, 0
    %v11210 = vsel %vm6699, %v11063, 0
    %v11213 = vsel %vm6699, %v11064, 0
    %v11216 = vsel %vm6699, %v11065, 0
    %v11219 = vsel %vm6699, %v11066, 0
    %v11222 = vsel %vm6699, %v11067, 0
    %v11225 = vsel %vm6699, %v11068, 0
    %v11228 = vsel %vm6699, %v11069, 0
    %v11231 = vsel %vm6699, %v11070, 0
    %v11234 = vsel %vm6699, %v11071, 0
    %v11237 = vsel %vm6699, %v11072, 0
    %v11240 = vsel %vm6699, %v11073, 0
    %v11243 = vsel %vm6699, %v11074, 0
    %v11246 = vsel %vm6699, %v11075, 0
    %v11249 = vsel %vm6699, %v11076, 0
    %v11252 = vsel %vm6699, %v11077, 0
    %v11255 = vsel %vm6699, %v11078, 0
    %v11258 = vsel %vm6699, %v11079, 0
    %v11261 = vsel %vm6699, %v11080, 0
    %v11264 = vsel %vm6699, %v11081, 0
    %v11267 = vsel %vm6699, %v11082, 0
    %v11270 = vsel %vm6699, %v11083, 0
    %v11273 = vsel %vm6699, %v11084, 0
    %v11276 = vsel %vm6699, %v11085, 0
    %v11279 = vsel %vm6699, %v11086, 0
    %11281 = vmatprep.subr.mxu0 0.0
    %11282 = vmatpush1.msra.mxu0 0.0
    %11283 = vmatprep.subr.mxu0 0.0
    %11284 = vmatpush1.msra.mxu0 0.0
    %11285 = vmatprep.subr.mxu0 0.0
    %11286 = vmatpush1.msra.mxu0 0.0
    %11287 = vmatprep.subr.mxu0 0.0
    %11288 = vmatpush1.msra.mxu0 0.0
    %11289 = vmatprep.subr.mxu0 0.0
    %11290 = vmatpush1.msra.mxu0 0.0
    %11291 = vmatprep.subr.mxu0 0.0
    %11292 = vmatpush1.msra.mxu0 0.0
    %11293 = vmatprep.subr.mxu0 0.0
    %11294 = vmatpush1.msra.mxu0 0.0
    %11295 = vmatprep.subr.mxu0 0.0
    %11296 = vmatpush1.msra.mxu0 0.0
    %11297 = vmatprep.subr.mxu0 0.0
    %11298 = vmatpush1.msra.mxu0 0.0
    %11299 = vmatprep.subr.mxu0 0.0
    %11300 = vmatpush1.msra.mxu0 0.0
    %11301 = vmatprep.subr.mxu0 0.0
    %11302 = vmatpush1.msra.mxu0 0.0
    %11303 = vmatprep.subr.mxu0 0.0
    %11304 = vmatpush1.msra.mxu0 0.0
    %11305 = vmatprep.subr.mxu0 0.0
    %11306 = vmatpush1.msra.mxu0 0.0
    %11307 = vmatprep.subr.mxu0 0.0
    %11308 = vmatpush1.msra.mxu0 0.0
    %11309 = vmatprep.subr.mxu0 0.0
    %11310 = vmatpush1.msra.mxu0 0.0
    %11311 = vmatprep.subr.mxu0 0.0
    %11312 = vmatpush1.msra.mxu0 %v11088
    %11313 = vmatprep.subr.mxu0 0.0
    %11314 = vmatpush2.msra.mxu0 0.0
    %11315 = vmatprep.subr.mxu0 0.0
    %11316 = vmatpush2.msra.mxu0 0.0
    %11317 = vmatprep.subr.mxu0 0.0
    %11318 = vmatpush2.msra.mxu0 0.0
    %11319 = vmatprep.subr.mxu0 0.0
    %11320 = vmatpush2.msra.mxu0 0.0
    %11321 = vmatprep.subr.mxu0 0.0
    %11322 = vmatpush2.msra.mxu0 0.0
    %11323 = vmatprep.subr.mxu0 0.0
    %11324 = vmatpush2.msra.mxu0 0.0
    %11325 = vmatprep.subr.mxu0 0.0
    %11326 = vmatpush2.msra.mxu0 0.0
    %11327 = vmatprep.subr.mxu0 0.0
    %11328 = vmatpush2.msra.mxu0 0.0
    %11329 = vmatprep.subr.mxu0 0.0
    %11330 = vmatpush2.msra.mxu0 0.0
    %11331 = vmatprep.subr.mxu0 0.0
    %11332 = vmatpush2.msra.mxu0 0.0
    %11333 = vmatprep.subr.mxu0 0.0
    %11334 = vmatpush2.msra.mxu0 0.0
    %11335 = vmatprep.subr.mxu0 0.0
    %11336 = vmatpush2.msra.mxu0 0.0
    %11337 = vmatprep.subr.mxu0 0.0
    %11338 = vmatpush2.msra.mxu0 0.0
    %11339 = vmatprep.subr.mxu0 0.0
    %11340 = vmatpush2.msra.mxu0 0.0
    %11341 = vmatprep.subr.mxu0 0.0
    %11342 = vmatpush2.msra.mxu0 0.0
    %11343 = vmatprep.subr.mxu0 0.0
    %11344 = vmatpush2.msra.mxu0 0.0
    %11345 = vmatprep.mubr.f32.mxu0 0.0
    %11346 = vmatmul.mubr.f32.gmra.mxu0 %v11090
    %v11347 = vpop.f32.mrf.mxu0
    %v11348 = vadd.f32 0.0, %v11347
    %v11349 = vpop.f32.mrf.mxu0
    %11350 = vmatprep.mubr.f32.mxu0 0.0
    %11351 = vmatmul.mubr.f32.gmra.mxu0 %v11093
    %v11352 = vpop.f32.mrf.mxu0
    %v11353 = vadd.f32 0.0, %v11352
    %v11354 = vpop.f32.mrf.mxu0
    %11355 = vmatprep.mubr.f32.mxu0 0.0
    %11356 = vmatmul.mubr.f32.gmra.mxu0 %v11096
    %v11357 = vpop.f32.mrf.mxu0
    %v11358 = vadd.f32 0.0, %v11357
    %v11359 = vpop.f32.mrf.mxu0
    %11360 = vmatprep.mubr.f32.mxu0 0.0
    %11361 = vmatmul.mubr.f32.gmra.mxu0 %v11099
    %v11362 = vpop.f32.mrf.mxu0
    %v11363 = vadd.f32 0.0, %v11362
    %v11364 = vpop.f32.mrf.mxu0
    %11365 = vmatprep.mubr.f32.mxu0 0.0
    %11366 = vmatmul.mubr.f32.gmra.mxu0 %v11102
    %v11367 = vpop.f32.mrf.mxu0
    %v11368 = vadd.f32 0.0, %v11367
    %v11369 = vpop.f32.mrf.mxu0
    %11370 = vmatprep.mubr.f32.mxu0 0.0
    %11371 = vmatmul.mubr.f32.gmra.mxu0 %v11105
    %v11372 = vpop.f32.mrf.mxu0
    %v11373 = vadd.f32 0.0, %v11372
    %v11374 = vpop.f32.mrf.mxu0
    %11375 = vmatprep.mubr.f32.mxu0 0.0
    %11376 = vmatmul.mubr.f32.gmra.mxu0 %v11108
    %v11377 = vpop.f32.mrf.mxu0
    %v11378 = vadd.f32 0.0, %v11377
    %v11379 = vpop.f32.mrf.mxu0
    %11380 = vmatprep.mubr.f32.mxu0 0.0
    %11381 = vmatmul.mubr.f32.gmra.mxu0 %v11111
    %v11382 = vpop.f32.mrf.mxu0
    %v11383 = vadd.f32 0.0, %v11382
    %v11384 = vpop.f32.mrf.mxu0
    %11385 = vmatprep.mubr.f32.mxu0 0.0
    %11386 = vmatmul.mubr.f32.gmra.mxu0 %v11114
    %v11387 = vpop.f32.mrf.mxu0
    %v11388 = vadd.f32 0.0, %v11387
    %v11389 = vpop.f32.mrf.mxu0
    %11390 = vmatprep.mubr.f32.mxu0 0.0
    %11391 = vmatmul.mubr.f32.gmra.mxu0 %v11117
    %v11392 = vpop.f32.mrf.mxu0
    %v11393 = vadd.f32 0.0, %v11392
    %v11394 = vpop.f32.mrf.mxu0
    %11395 = vmatprep.mubr.f32.mxu0 0.0
    %11396 = vmatmul.mubr.f32.gmra.mxu0 %v11120
    %v11397 = vpop.f32.mrf.mxu0
    %v11398 = vadd.f32 0.0, %v11397
    %v11399 = vpop.f32.mrf.mxu0
    %11400 = vmatprep.mubr.f32.mxu0 0.0
    %11401 = vmatmul.mubr.f32.gmra.mxu0 %v11123
    %v11402 = vpop.f32.mrf.mxu0
    %v11403 = vadd.f32 0.0, %v11402
    %v11404 = vpop.f32.mrf.mxu0
    %11405 = vmatprep.mubr.f32.mxu0 0.0
    %11406 = vmatmul.mubr.f32.gmra.mxu0 %v11126
    %v11407 = vpop.f32.mrf.mxu0
    %v11408 = vadd.f32 0.0, %v11407
    %v11409 = vpop.f32.mrf.mxu0
    %11410 = vmatprep.mubr.f32.mxu0 0.0
    %11411 = vmatmul.mubr.f32.gmra.mxu0 %v11129
    %v11412 = vpop.f32.mrf.mxu0
    %v11413 = vadd.f32 0.0, %v11412
    %v11414 = vpop.f32.mrf.mxu0
    %11415 = vmatprep.mubr.f32.mxu0 0.0
    %11416 = vmatmul.mubr.f32.gmra.mxu0 %v11132
    %v11417 = vpop.f32.mrf.mxu0
    %v11418 = vadd.f32 0.0, %v11417
    %v11419 = vpop.f32.mrf.mxu0
    %11420 = vmatprep.mubr.f32.mxu0 0.0
    %11421 = vmatmul.mubr.f32.gmra.mxu0 %v11135
    %v11422 = vpop.f32.mrf.mxu0
    %v11423 = vadd.f32 0.0, %v11422
    %v11424 = vpop.f32.mrf.mxu0
    %11425 = vmatprep.mubr.f32.mxu0 0.0
    %11426 = vmatmul.mubr.f32.gmra.mxu0 %v11138
    %v11427 = vpop.f32.mrf.mxu0
    %v11428 = vadd.f32 0.0, %v11427
    %v11429 = vpop.f32.mrf.mxu0
    %11430 = vmatprep.mubr.f32.mxu0 0.0
    %11431 = vmatmul.mubr.f32.gmra.mxu0 %v11141
    %v11432 = vpop.f32.mrf.mxu0
    %v11433 = vadd.f32 0.0, %v11432
    %v11434 = vpop.f32.mrf.mxu0
    %11435 = vmatprep.mubr.f32.mxu0 0.0
    %11436 = vmatmul.mubr.f32.gmra.mxu0 %v11144
    %v11437 = vpop.f32.mrf.mxu0
    %v11438 = vadd.f32 0.0, %v11437
    %v11439 = vpop.f32.mrf.mxu0
    %11440 = vmatprep.mubr.f32.mxu0 0.0
    %11441 = vmatmul.mubr.f32.gmra.mxu0 %v11147
    %v11442 = vpop.f32.mrf.mxu0
    %v11443 = vadd.f32 0.0, %v11442
    %v11444 = vpop.f32.mrf.mxu0
    %11445 = vmatprep.mubr.f32.mxu0 0.0
    %11446 = vmatmul.mubr.f32.gmra.mxu0 %v11150
    %v11447 = vpop.f32.mrf.mxu0
    %v11448 = vadd.f32 0.0, %v11447
    %v11449 = vpop.f32.mrf.mxu0
    %11450 = vmatprep.mubr.f32.mxu0 0.0
    %11451 = vmatmul.mubr.f32.gmra.mxu0 %v11153
    %v11452 = vpop.f32.mrf.mxu0
    %v11453 = vadd.f32 0.0, %v11452
    %v11454 = vpop.f32.mrf.mxu0
    %11455 = vmatprep.mubr.f32.mxu0 0.0
    %11456 = vmatmul.mubr.f32.gmra.mxu0 %v11156
    %v11457 = vpop.f32.mrf.mxu0
    %v11458 = vadd.f32 0.0, %v11457
    %v11459 = vpop.f32.mrf.mxu0
    %11460 = vmatprep.mubr.f32.mxu0 0.0
    %11461 = vmatmul.mubr.f32.gmra.mxu0 %v11159
    %v11462 = vpop.f32.mrf.mxu0
    %v11463 = vadd.f32 0.0, %v11462
    %v11464 = vpop.f32.mrf.mxu0
    %11465 = vmatprep.mubr.f32.mxu0 0.0
    %11466 = vmatmul.mubr.f32.gmra.mxu0 %v11162
    %v11467 = vpop.f32.mrf.mxu0
    %v11468 = vadd.f32 0.0, %v11467
    %v11469 = vpop.f32.mrf.mxu0
    %11470 = vmatprep.mubr.f32.mxu0 0.0
    %11471 = vmatmul.mubr.f32.gmra.mxu0 %v11165
    %v11472 = vpop.f32.mrf.mxu0
    %v11473 = vadd.f32 0.0, %v11472
    %v11474 = vpop.f32.mrf.mxu0
    %11475 = vmatprep.mubr.f32.mxu0 0.0
    %11476 = vmatmul.mubr.f32.gmra.mxu0 %v11168
    %v11477 = vpop.f32.mrf.mxu0
    %v11478 = vadd.f32 0.0, %v11477
    %v11479 = vpop.f32.mrf.mxu0
    %11480 = vmatprep.mubr.f32.mxu0 0.0
    %11481 = vmatmul.mubr.f32.gmra.mxu0 %v11171
    %v11482 = vpop.f32.mrf.mxu0
    %v11483 = vadd.f32 0.0, %v11482
    %v11484 = vpop.f32.mrf.mxu0
    %11485 = vmatprep.mubr.f32.mxu0 0.0
    %11486 = vmatmul.mubr.f32.gmra.mxu0 %v11174
    %v11487 = vpop.f32.mrf.mxu0
    %v11488 = vadd.f32 0.0, %v11487
    %v11489 = vpop.f32.mrf.mxu0
    %11490 = vmatprep.mubr.f32.mxu0 0.0
    %11491 = vmatmul.mubr.f32.gmra.mxu0 %v11177
    %v11492 = vpop.f32.mrf.mxu0
    %v11493 = vadd.f32 0.0, %v11492
    %v11494 = vpop.f32.mrf.mxu0
    %11495 = vmatprep.mubr.f32.mxu0 0.0
    %11496 = vmatmul.mubr.f32.gmra.mxu0 %v11180
    %v11497 = vpop.f32.mrf.mxu0
    %v11498 = vadd.f32 0.0, %v11497
    %v11499 = vpop.f32.mrf.mxu0
    %11500 = vmatprep.mubr.f32.mxu0 0.0
    %11501 = vmatmul.mubr.f32.gmra.mxu0 %v11183
    %v11502 = vpop.f32.mrf.mxu0
    %v11503 = vadd.f32 0.0, %v11502
    %v11504 = vpop.f32.mrf.mxu0
    %11505 = vmatprep.mubr.f32.mxu0 0.0
    %11506 = vmatmul.mubr.f32.gmra.mxu0 %v11186
    %v11507 = vpop.f32.mrf.mxu0
    %v11508 = vadd.f32 0.0, %v11507
    %v11509 = vpop.f32.mrf.mxu0
    %11510 = vmatprep.mubr.f32.mxu0 0.0
    %11511 = vmatmul.mubr.f32.gmra.mxu0 %v11189
    %v11512 = vpop.f32.mrf.mxu0
    %v11513 = vadd.f32 0.0, %v11512
    %v11514 = vpop.f32.mrf.mxu0
    %11515 = vmatprep.mubr.f32.mxu0 0.0
    %11516 = vmatmul.mubr.f32.gmra.mxu0 %v11192
    %v11517 = vpop.f32.mrf.mxu0
    %v11518 = vadd.f32 0.0, %v11517
    %v11519 = vpop.f32.mrf.mxu0
    %11520 = vmatprep.mubr.f32.mxu0 0.0
    %11521 = vmatmul.mubr.f32.gmra.mxu0 %v11195
    %v11522 = vpop.f32.mrf.mxu0
    %v11523 = vadd.f32 0.0, %v11522
    %v11524 = vpop.f32.mrf.mxu0
    %11525 = vmatprep.mubr.f32.mxu0 0.0
    %11526 = vmatmul.mubr.f32.gmra.mxu0 %v11198
    %v11527 = vpop.f32.mrf.mxu0
    %v11528 = vadd.f32 0.0, %v11527
    %v11529 = vpop.f32.mrf.mxu0
    %11530 = vmatprep.mubr.f32.mxu0 0.0
    %11531 = vmatmul.mubr.f32.gmra.mxu0 %v11201
    %v11532 = vpop.f32.mrf.mxu0
    %v11533 = vadd.f32 0.0, %v11532
    %v11534 = vpop.f32.mrf.mxu0
    %11535 = vmatprep.mubr.f32.mxu0 0.0
    %11536 = vmatmul.mubr.f32.gmra.mxu0 %v11204
    %v11537 = vpop.f32.mrf.mxu0
    %v11538 = vadd.f32 0.0, %v11537
    %v11539 = vpop.f32.mrf.mxu0
    %11540 = vmatprep.mubr.f32.mxu0 0.0
    %11541 = vmatmul.mubr.f32.gmra.mxu0 %v11207
    %v11542 = vpop.f32.mrf.mxu0
    %v11543 = vadd.f32 0.0, %v11542
    %v11544 = vpop.f32.mrf.mxu0
    %11545 = vmatprep.mubr.f32.mxu0 0.0
    %11546 = vmatmul.mubr.f32.gmra.mxu0 %v11210
    %v11547 = vpop.f32.mrf.mxu0
    %v11548 = vadd.f32 0.0, %v11547
    %v11549 = vpop.f32.mrf.mxu0
    %11550 = vmatprep.mubr.f32.mxu0 0.0
    %11551 = vmatmul.mubr.f32.gmra.mxu0 %v11213
    %v11552 = vpop.f32.mrf.mxu0
    %v11553 = vadd.f32 0.0, %v11552
    %v11554 = vpop.f32.mrf.mxu0
    %11555 = vmatprep.mubr.f32.mxu0 0.0
    %11556 = vmatmul.mubr.f32.gmra.mxu0 %v11216
    %v11557 = vpop.f32.mrf.mxu0
    %v11558 = vadd.f32 0.0, %v11557
    %v11559 = vpop.f32.mrf.mxu0
    %11560 = vmatprep.mubr.f32.mxu0 0.0
    %11561 = vmatmul.mubr.f32.gmra.mxu0 %v11219
    %v11562 = vpop.f32.mrf.mxu0
    %v11563 = vadd.f32 0.0, %v11562
    %v11564 = vpop.f32.mrf.mxu0
    %11565 = vmatprep.mubr.f32.mxu0 0.0
    %11566 = vmatmul.mubr.f32.gmra.mxu0 %v11222
    %v11567 = vpop.f32.mrf.mxu0
    %v11568 = vadd.f32 0.0, %v11567
    %v11569 = vpop.f32.mrf.mxu0
    %11570 = vmatprep.mubr.f32.mxu0 0.0
    %11571 = vmatmul.mubr.f32.gmra.mxu0 %v11225
    %v11572 = vpop.f32.mrf.mxu0
    %v11573 = vadd.f32 0.0, %v11572
    %v11574 = vpop.f32.mrf.mxu0
    %11575 = vmatprep.mubr.f32.mxu0 0.0
    %11576 = vmatmul.mubr.f32.gmra.mxu0 %v11228
    %v11577 = vpop.f32.mrf.mxu0
    %v11578 = vadd.f32 0.0, %v11577
    %v11579 = vpop.f32.mrf.mxu0
    %11580 = vmatprep.mubr.f32.mxu0 0.0
    %11581 = vmatmul.mubr.f32.gmra.mxu0 %v11231
    %v11582 = vpop.f32.mrf.mxu0
    %v11583 = vadd.f32 0.0, %v11582
    %v11584 = vpop.f32.mrf.mxu0
    %11585 = vmatprep.mubr.f32.mxu0 0.0
    %11586 = vmatmul.mubr.f32.gmra.mxu0 %v11234
    %v11587 = vpop.f32.mrf.mxu0
    %v11588 = vadd.f32 0.0, %v11587
    %v11589 = vpop.f32.mrf.mxu0
    %11590 = vmatprep.mubr.f32.mxu0 0.0
    %11591 = vmatmul.mubr.f32.gmra.mxu0 %v11237
    %v11592 = vpop.f32.mrf.mxu0
    %v11593 = vadd.f32 0.0, %v11592
    %v11594 = vpop.f32.mrf.mxu0
    %11595 = vmatprep.mubr.f32.mxu0 0.0
    %11596 = vmatmul.mubr.f32.gmra.mxu0 %v11240
    %v11597 = vpop.f32.mrf.mxu0
    %v11598 = vadd.f32 0.0, %v11597
    %v11599 = vpop.f32.mrf.mxu0
    %11600 = vmatprep.mubr.f32.mxu0 0.0
    %11601 = vmatmul.mubr.f32.gmra.mxu0 %v11243
    %v11602 = vpop.f32.mrf.mxu0
    %v11603 = vadd.f32 0.0, %v11602
    %v11604 = vpop.f32.mrf.mxu0
    %11605 = vmatprep.mubr.f32.mxu0 0.0
    %11606 = vmatmul.mubr.f32.gmra.mxu0 %v11246
    %v11607 = vpop.f32.mrf.mxu0
    %v11608 = vadd.f32 0.0, %v11607
    %v11609 = vpop.f32.mrf.mxu0
    %11610 = vmatprep.mubr.f32.mxu0 0.0
    %11611 = vmatmul.mubr.f32.gmra.mxu0 %v11249
    %v11612 = vpop.f32.mrf.mxu0
    %v11613 = vadd.f32 0.0, %v11612
    %v11614 = vpop.f32.mrf.mxu0
    %11615 = vmatprep.mubr.f32.mxu0 0.0
    %11616 = vmatmul.mubr.f32.gmra.mxu0 %v11252
    %v11617 = vpop.f32.mrf.mxu0
    %v11618 = vadd.f32 0.0, %v11617
    %v11619 = vpop.f32.mrf.mxu0
    %11620 = vmatprep.mubr.f32.mxu0 0.0
    %11621 = vmatmul.mubr.f32.gmra.mxu0 %v11255
    %v11622 = vpop.f32.mrf.mxu0
    %v11623 = vadd.f32 0.0, %v11622
    %v11624 = vpop.f32.mrf.mxu0
    %11625 = vmatprep.mubr.f32.mxu0 0.0
    %11626 = vmatmul.mubr.f32.gmra.mxu0 %v11258
    %v11627 = vpop.f32.mrf.mxu0
    %v11628 = vadd.f32 0.0, %v11627
    %v11629 = vpop.f32.mrf.mxu0
    %11630 = vmatprep.mubr.f32.mxu0 0.0
    %11631 = vmatmul.mubr.f32.gmra.mxu0 %v11261
    %v11632 = vpop.f32.mrf.mxu0
    %v11633 = vadd.f32 0.0, %v11632
    %v11634 = vpop.f32.mrf.mxu0
    %11635 = vmatprep.mubr.f32.mxu0 0.0
    %11636 = vmatmul.mubr.f32.gmra.mxu0 %v11264
    %v11637 = vpop.f32.mrf.mxu0
    %v11638 = vadd.f32 0.0, %v11637
    %v11639 = vpop.f32.mrf.mxu0
    %11640 = vmatprep.mubr.f32.mxu0 0.0
    %11641 = vmatmul.mubr.f32.gmra.mxu0 %v11267
    %v11642 = vpop.f32.mrf.mxu0
    %v11643 = vadd.f32 0.0, %v11642
    %v11644 = vpop.f32.mrf.mxu0
    %11645 = vmatprep.mubr.f32.mxu0 0.0
    %11646 = vmatmul.mubr.f32.gmra.mxu0 %v11270
    %v11647 = vpop.f32.mrf.mxu0
    %v11648 = vadd.f32 0.0, %v11647
    %v11649 = vpop.f32.mrf.mxu0
    %11650 = vmatprep.mubr.f32.mxu0 0.0
    %11651 = vmatmul.mubr.f32.gmra.mxu0 %v11273
    %v11652 = vpop.f32.mrf.mxu0
    %v11653 = vadd.f32 0.0, %v11652
    %v11654 = vpop.f32.mrf.mxu0
    %11655 = vmatprep.mubr.f32.mxu0 0.0
    %11656 = vmatmul.mubr.f32.gmra.mxu0 %v11276
    %v11657 = vpop.f32.mrf.mxu0
    %v11658 = vadd.f32 0.0, %v11657
    %v11659 = vpop.f32.mrf.mxu0
    %11660 = vmatprep.mubr.f32.mxu0 0.0
    %11661 = vmatmul.mubr.f32.gmra.mxu0 %v11279
    %v11662 = vpop.f32.mrf.mxu0
    %v11663 = vadd.f32 0.0, %v11662
    %v11664 = vpop.f32.mrf.mxu0
    %11665 = vdwg.mxu0
    %v11666 = vadd.f32 %v10958, %v11348
    %v11667 = vadd.f32 %v10959, %v11353
    %v11668 = vadd.f32 %v10960, %v11358
    %v11669 = vadd.f32 %v10961, %v11363
    %v11670 = vadd.f32 %v10962, %v11368
    %v11671 = vadd.f32 %v10963, %v11373
    %v11672 = vadd.f32 %v10964, %v11378
    %v11673 = vadd.f32 %v10965, %v11383
    %v11674 = vadd.f32 %v10966, %v11388
    %v11675 = vadd.f32 %v10967, %v11393
    %v11676 = vadd.f32 %v10968, %v11398
    %v11677 = vadd.f32 %v10969, %v11403
    %v11678 = vadd.f32 %v10970, %v11408
    %v11679 = vadd.f32 %v10971, %v11413
    %v11680 = vadd.f32 %v10972, %v11418
    %v11681 = vadd.f32 %v10973, %v11423
    %v11682 = vadd.f32 %v10974, %v11428
    %v11683 = vadd.f32 %v10975, %v11433
    %v11684 = vadd.f32 %v10976, %v11438
    %v11685 = vadd.f32 %v10977, %v11443
    %v11686 = vadd.f32 %v10978, %v11448
    %v11687 = vadd.f32 %v10979, %v11453
    %v11688 = vadd.f32 %v10980, %v11458
    %v11689 = vadd.f32 %v10981, %v11463
    %v11690 = vadd.f32 %v10982, %v11468
    %v11691 = vadd.f32 %v10983, %v11473
    %v11692 = vadd.f32 %v10984, %v11478
    %v11693 = vadd.f32 %v10985, %v11483
    %v11694 = vadd.f32 %v10986, %v11488
    %v11695 = vadd.f32 %v10987, %v11493
    %v11696 = vadd.f32 %v10988, %v11498
    %v11697 = vadd.f32 %v10989, %v11503
    %v11698 = vadd.f32 %v10990, %v11508
    %v11699 = vadd.f32 %v10991, %v11513
    %v11700 = vadd.f32 %v10992, %v11518
    %v11701 = vadd.f32 %v10993, %v11523
    %v11702 = vadd.f32 %v10994, %v11528
    %v11703 = vadd.f32 %v10995, %v11533
    %v11704 = vadd.f32 %v10996, %v11538
    %v11705 = vadd.f32 %v10997, %v11543
    %v11706 = vadd.f32 %v10998, %v11548
    %v11707 = vadd.f32 %v10999, %v11553
    %v11708 = vadd.f32 %v11000, %v11558
    %v11709 = vadd.f32 %v11001, %v11563
    %v11710 = vadd.f32 %v11002, %v11568
    %v11711 = vadd.f32 %v11003, %v11573
    %v11712 = vadd.f32 %v11004, %v11578
    %v11713 = vadd.f32 %v11005, %v11583
    %v11714 = vadd.f32 %v11006, %v11588
    %v11715 = vadd.f32 %v11007, %v11593
    %v11716 = vadd.f32 %v11008, %v11598
    %v11717 = vadd.f32 %v11009, %v11603
    %v11718 = vadd.f32 %v11010, %v11608
    %v11719 = vadd.f32 %v11011, %v11613
    %v11720 = vadd.f32 %v11012, %v11618
    %v11721 = vadd.f32 %v11013, %v11623
    %v11722 = vadd.f32 %v11014, %v11628
    %v11723 = vadd.f32 %v11015, %v11633
    %v11724 = vadd.f32 %v11016, %v11638
    %v11725 = vadd.f32 %v11017, %v11643
    %v11726 = vadd.f32 %v11018, %v11648
    %v11727 = vadd.f32 %v11019, %v11653
    %v11728 = vadd.f32 %v11020, %v11658
    %v11729 = vadd.f32 %v11021, %v11663
    %v11730 = vld [vmem:[%s11022 + $0x8] sm:$0xff]
    %v11731 = vld [vmem:[%s11022 + $0x10] sm:$0xff]
    %v11732 = vld [vmem:[%s11022 + $0x28] sm:$0xff]
    %v11733 = vld [vmem:[%s11022 + $0x30] sm:$0xff]
    %v11734 = vld [vmem:[%s11022 + $0x48] sm:$0xff]
    %v11735 = vld [vmem:[%s11022 + $0x50] sm:$0xff]
    %v11736 = vld [vmem:[%s11022 + $0x68] sm:$0xff]
    %v11737 = vld [vmem:[%s11022 + $0x70] sm:$0xff]
    %v11738 = vld [vmem:[%s11022 + $0x88] sm:$0xff]
    %v11739 = vld [vmem:[%s11022 + $0x90] sm:$0xff]
    %v11740 = vld [vmem:[%s11022 + $0xa8] sm:$0xff]
    %v11741 = vld [vmem:[%s11022 + $0xb0] sm:$0xff]
    %v11742 = vld [vmem:[%s11022 + $0xc8] sm:$0xff]
    %v11743 = vld [vmem:[%s11022 + $0xd0] sm:$0xff]
    %v11744 = vld [vmem:[%s11022 + $0xe8] sm:$0xff]
    %v11745 = vld [vmem:[%s11022 + $0xf0] sm:$0xff]
    %v11746 = vld [vmem:[%s11022 + $0x108] sm:$0xff]
    %v11747 = vld [vmem:[%s11022 + $0x110] sm:$0xff]
    %v11748 = vld [vmem:[%s11022 + $0x128] sm:$0xff]
    %v11749 = vld [vmem:[%s11022 + $0x130] sm:$0xff]
    %v11750 = vld [vmem:[%s11022 + $0x148] sm:$0xff]
    %v11751 = vld [vmem:[%s11022 + $0x150] sm:$0xff]
    %v11752 = vld [vmem:[%s11022 + $0x168] sm:$0xff]
    %v11753 = vld [vmem:[%s11022 + $0x170] sm:$0xff]
    %v11754 = vld [vmem:[%s11022 + $0x188] sm:$0xff]
    %v11755 = vld [vmem:[%s11022 + $0x190] sm:$0xff]
    %v11756 = vld [vmem:[%s11022 + $0x1a8] sm:$0xff]
    %v11757 = vld [vmem:[%s11022 + $0x1b0] sm:$0xff]
    %v11758 = vld [vmem:[%s11022 + $0x1c8] sm:$0xff]
    %v11759 = vld [vmem:[%s11022 + $0x1d0] sm:$0xff]
    %v11760 = vld [vmem:[%s11022 + $0x1e8] sm:$0xff]
    %v11761 = vld [vmem:[%s11022 + $0x1f0] sm:$0xff]
    %v11762 = vld [vmem:[%s11022 + $0x248] sm:$0xff]
    %v11763 = vld [vmem:[%s11022 + $0x250] sm:$0xff]
    %v11764 = vld [vmem:[%s11022 + $0x268] sm:$0xff]
    %v11765 = vld [vmem:[%s11022 + $0x270] sm:$0xff]
    %v11766 = vld [vmem:[%s11022 + $0x288] sm:$0xff]
    %v11767 = vld [vmem:[%s11022 + $0x290] sm:$0xff]
    %v11768 = vld [vmem:[%s11022 + $0x2a8] sm:$0xff]
    %v11769 = vld [vmem:[%s11022 + $0x2b0] sm:$0xff]
    %v11770 = vld [vmem:[%s11022 + $0x2c8] sm:$0xff]
    %v11771 = vld [vmem:[%s11022 + $0x2d0] sm:$0xff]
    %v11772 = vld [vmem:[%s11022 + $0x2e8] sm:$0xff]
    %v11773 = vld [vmem:[%s11022 + $0x2f0] sm:$0xff]
    %v11774 = vld [vmem:[%s11022 + $0x308] sm:$0xff]
    %v11775 = vld [vmem:[%s11022 + $0x310] sm:$0xff]
    %v11776 = vld [vmem:[%s11022 + $0x328] sm:$0xff]
    %v11777 = vld [vmem:[%s11022 + $0x330] sm:$0xff]
    %v11778 = vld [vmem:[%s11022 + $0x348] sm:$0xff]
    %v11779 = vld [vmem:[%s11022 + $0x350] sm:$0xff]
    %v11780 = vld [vmem:[%s11022 + $0x368] sm:$0xff]
    %v11781 = vld [vmem:[%s11022 + $0x370] sm:$0xff]
    %v11782 = vld [vmem:[%s11022 + $0x388] sm:$0xff]
    %v11783 = vld [vmem:[%s11022 + $0x390] sm:$0xff]
    %v11784 = vld [vmem:[%s11022 + $0x3a8] sm:$0xff]
    %v11785 = vld [vmem:[%s11022 + $0x3b0] sm:$0xff]
    %v11786 = vld [vmem:[%s11022 + $0x3c8] sm:$0xff]
    %v11787 = vld [vmem:[%s11022 + $0x3d0] sm:$0xff]
    %v11788 = vld [vmem:[%s11022 + $0x3e8] sm:$0xff]
    %v11789 = vld [vmem:[%s11022 + $0x3f0] sm:$0xff]
    %v11790 = vld [vmem:[%s11022 + $0x408] sm:$0xff]
    %v11791 = vld [vmem:[%s11022 + $0x410] sm:$0xff]
    %v11792 = vld [vmem:[%s11022 + $0x428] sm:$0xff]
    %v11793 = vld [vmem:[%s11022 + $0x430] sm:$0xff]
    %s11794 = scalar_lea.vmem %s3, 56
    %v11795 = vld [vmem:[%s11794] sm:$0xff]
    %v11797 = vsel %vm6699, %v11730, 0
    %v11800 = vsel %vm6699, %v11731, 0
    %v11803 = vsel %vm6699, %v11732, 0
    %v11806 = vsel %vm6699, %v11733, 0
    %v11809 = vsel %vm6699, %v11734, 0
    %v11812 = vsel %vm6699, %v11735, 0
    %v11815 = vsel %vm6699, %v11736, 0
    %v11818 = vsel %vm6699, %v11737, 0
    %v11821 = vsel %vm6699, %v11738, 0
    %v11824 = vsel %vm6699, %v11739, 0
    %v11827 = vsel %vm6699, %v11740, 0
    %v11830 = vsel %vm6699, %v11741, 0
    %v11833 = vsel %vm6699, %v11742, 0
    %v11836 = vsel %vm6699, %v11743, 0
    %v11839 = vsel %vm6699, %v11744, 0
    %v11842 = vsel %vm6699, %v11745, 0
    %v11845 = vsel %vm6699, %v11746, 0
    %v11848 = vsel %vm6699, %v11747, 0
    %v11851 = vsel %vm6699, %v11748, 0
    %v11854 = vsel %vm6699, %v11749, 0
    %v11857 = vsel %vm6699, %v11750, 0
    %v11860 = vsel %vm6699, %v11751, 0
    %v11863 = vsel %vm6699, %v11752, 0
    %v11866 = vsel %vm6699, %v11753, 0
    %v11869 = vsel %vm6699, %v11754, 0
    %v11872 = vsel %vm6699, %v11755, 0
    %v11875 = vsel %vm6699, %v11756, 0
    %v11878 = vsel %vm6699, %v11757, 0
    %v11881 = vsel %vm6699, %v11758, 0
    %v11884 = vsel %vm6699, %v11759, 0
    %v11887 = vsel %vm6699, %v11760, 0
    %v11890 = vsel %vm6699, %v11761, 0
    %v11893 = vsel %vm6699, %v11762, 0
    %v11896 = vsel %vm6699, %v11763, 0
    %v11899 = vsel %vm6699, %v11764, 0
    %v11902 = vsel %vm6699, %v11765, 0
    %v11905 = vsel %vm6699, %v11766, 0
    %v11908 = vsel %vm6699, %v11767, 0
    %v11911 = vsel %vm6699, %v11768, 0
    %v11914 = vsel %vm6699, %v11769, 0
    %v11917 = vsel %vm6699, %v11770, 0
    %v11920 = vsel %vm6699, %v11771, 0
    %v11923 = vsel %vm6699, %v11772, 0
    %v11926 = vsel %vm6699, %v11773, 0
    %v11929 = vsel %vm6699, %v11774, 0
    %v11932 = vsel %vm6699, %v11775, 0
    %v11935 = vsel %vm6699, %v11776, 0
    %v11938 = vsel %vm6699, %v11777, 0
    %v11941 = vsel %vm6699, %v11778, 0
    %v11944 = vsel %vm6699, %v11779, 0
    %v11947 = vsel %vm6699, %v11780, 0
    %v11950 = vsel %vm6699, %v11781, 0
    %v11953 = vsel %vm6699, %v11782, 0
    %v11956 = vsel %vm6699, %v11783, 0
    %v11959 = vsel %vm6699, %v11784, 0
    %v11962 = vsel %vm6699, %v11785, 0
    %v11965 = vsel %vm6699, %v11786, 0
    %v11968 = vsel %vm6699, %v11787, 0
    %v11971 = vsel %vm6699, %v11788, 0
    %v11974 = vsel %vm6699, %v11789, 0
    %v11977 = vsel %vm6699, %v11790, 0
    %v11980 = vsel %vm6699, %v11791, 0
    %v11983 = vsel %vm6699, %v11792, 0
    %v11986 = vsel %vm6699, %v11793, 0
    %11988 = vmatprep.subr.mxu0 0.0
    %11989 = vmatpush1.msra.mxu0 0.0
    %11990 = vmatprep.subr.mxu0 0.0
    %11991 = vmatpush1.msra.mxu0 0.0
    %11992 = vmatprep.subr.mxu0 0.0
    %11993 = vmatpush1.msra.mxu0 0.0
    %11994 = vmatprep.subr.mxu0 0.0
    %11995 = vmatpush1.msra.mxu0 0.0
    %11996 = vmatprep.subr.mxu0 0.0
    %11997 = vmatpush1.msra.mxu0 0.0
    %11998 = vmatprep.subr.mxu0 0.0
    %11999 = vmatpush1.msra.mxu0 0.0
    %12000 = vmatprep.subr.mxu0 0.0
    %12001 = vmatpush1.msra.mxu0 0.0
    %12002 = vmatprep.subr.mxu0 0.0
    %12003 = vmatpush1.msra.mxu0 0.0
    %12004 = vmatprep.subr.mxu0 0.0
    %12005 = vmatpush1.msra.mxu0 0.0
    %12006 = vmatprep.subr.mxu0 0.0
    %12007 = vmatpush1.msra.mxu0 0.0
    %12008 = vmatprep.subr.mxu0 0.0
    %12009 = vmatpush1.msra.mxu0 0.0
    %12010 = vmatprep.subr.mxu0 0.0
    %12011 = vmatpush1.msra.mxu0 0.0
    %12012 = vmatprep.subr.mxu0 0.0
    %12013 = vmatpush1.msra.mxu0 0.0
    %12014 = vmatprep.subr.mxu0 0.0
    %12015 = vmatpush1.msra.mxu0 0.0
    %12016 = vmatprep.subr.mxu0 0.0
    %12017 = vmatpush1.msra.mxu0 0.0
    %12018 = vmatprep.subr.mxu0 0.0
    %12019 = vmatpush1.msra.mxu0 %v11795
    %12020 = vmatprep.subr.mxu0 0.0
    %12021 = vmatpush2.msra.mxu0 0.0
    %12022 = vmatprep.subr.mxu0 0.0
    %12023 = vmatpush2.msra.mxu0 0.0
    %12024 = vmatprep.subr.mxu0 0.0
    %12025 = vmatpush2.msra.mxu0 0.0
    %12026 = vmatprep.subr.mxu0 0.0
    %12027 = vmatpush2.msra.mxu0 0.0
    %12028 = vmatprep.subr.mxu0 0.0
    %12029 = vmatpush2.msra.mxu0 0.0
    %12030 = vmatprep.subr.mxu0 0.0
    %12031 = vmatpush2.msra.mxu0 0.0
    %12032 = vmatprep.subr.mxu0 0.0
    %12033 = vmatpush2.msra.mxu0 0.0
    %12034 = vmatprep.subr.mxu0 0.0
    %12035 = vmatpush2.msra.mxu0 0.0
    %12036 = vmatprep.subr.mxu0 0.0
    %12037 = vmatpush2.msra.mxu0 0.0
    %12038 = vmatprep.subr.mxu0 0.0
    %12039 = vmatpush2.msra.mxu0 0.0
    %12040 = vmatprep.subr.mxu0 0.0
    %12041 = vmatpush2.msra.mxu0 0.0
    %12042 = vmatprep.subr.mxu0 0.0
    %12043 = vmatpush2.msra.mxu0 0.0
    %12044 = vmatprep.subr.mxu0 0.0
    %12045 = vmatpush2.msra.mxu0 0.0
    %12046 = vmatprep.subr.mxu0 0.0
    %12047 = vmatpush2.msra.mxu0 0.0
    %12048 = vmatprep.subr.mxu0 0.0
    %12049 = vmatpush2.msra.mxu0 0.0
    %12050 = vmatprep.subr.mxu0 0.0
    %12051 = vmatpush2.msra.mxu0 0.0
    %12052 = vmatprep.mubr.f32.mxu0 0.0
    %12053 = vmatmul.mubr.f32.gmra.mxu0 %v11797
    %v12054 = vpop.f32.mrf.mxu0
    %v12055 = vadd.f32 0.0, %v12054
    %v12056 = vpop.f32.mrf.mxu0
    %12057 = vmatprep.mubr.f32.mxu0 0.0
    %12058 = vmatmul.mubr.f32.gmra.mxu0 %v11800
    %v12059 = vpop.f32.mrf.mxu0
    %v12060 = vadd.f32 0.0, %v12059
    %v12061 = vpop.f32.mrf.mxu0
    %12062 = vmatprep.mubr.f32.mxu0 0.0
    %12063 = vmatmul.mubr.f32.gmra.mxu0 %v11803
    %v12064 = vpop.f32.mrf.mxu0
    %v12065 = vadd.f32 0.0, %v12064
    %v12066 = vpop.f32.mrf.mxu0
    %12067 = vmatprep.mubr.f32.mxu0 0.0
    %12068 = vmatmul.mubr.f32.gmra.mxu0 %v11806
    %v12069 = vpop.f32.mrf.mxu0
    %v12070 = vadd.f32 0.0, %v12069
    %v12071 = vpop.f32.mrf.mxu0
    %12072 = vmatprep.mubr.f32.mxu0 0.0
    %12073 = vmatmul.mubr.f32.gmra.mxu0 %v11809
    %v12074 = vpop.f32.mrf.mxu0
    %v12075 = vadd.f32 0.0, %v12074
    %v12076 = vpop.f32.mrf.mxu0
    %12077 = vmatprep.mubr.f32.mxu0 0.0
    %12078 = vmatmul.mubr.f32.gmra.mxu0 %v11812
    %v12079 = vpop.f32.mrf.mxu0
    %v12080 = vadd.f32 0.0, %v12079
    %v12081 = vpop.f32.mrf.mxu0
    %12082 = vmatprep.mubr.f32.mxu0 0.0
    %12083 = vmatmul.mubr.f32.gmra.mxu0 %v11815
    %v12084 = vpop.f32.mrf.mxu0
    %v12085 = vadd.f32 0.0, %v12084
    %v12086 = vpop.f32.mrf.mxu0
    %12087 = vmatprep.mubr.f32.mxu0 0.0
    %12088 = vmatmul.mubr.f32.gmra.mxu0 %v11818
    %v12089 = vpop.f32.mrf.mxu0
    %v12090 = vadd.f32 0.0, %v12089
    %v12091 = vpop.f32.mrf.mxu0
    %12092 = vmatprep.mubr.f32.mxu0 0.0
    %12093 = vmatmul.mubr.f32.gmra.mxu0 %v11821
    %v12094 = vpop.f32.mrf.mxu0
    %v12095 = vadd.f32 0.0, %v12094
    %v12096 = vpop.f32.mrf.mxu0
    %12097 = vmatprep.mubr.f32.mxu0 0.0
    %12098 = vmatmul.mubr.f32.gmra.mxu0 %v11824
    %v12099 = vpop.f32.mrf.mxu0
    %v12100 = vadd.f32 0.0, %v12099
    %v12101 = vpop.f32.mrf.mxu0
    %12102 = vmatprep.mubr.f32.mxu0 0.0
    %12103 = vmatmul.mubr.f32.gmra.mxu0 %v11827
    %v12104 = vpop.f32.mrf.mxu0
    %v12105 = vadd.f32 0.0, %v12104
    %v12106 = vpop.f32.mrf.mxu0
    %12107 = vmatprep.mubr.f32.mxu0 0.0
    %12108 = vmatmul.mubr.f32.gmra.mxu0 %v11830
    %v12109 = vpop.f32.mrf.mxu0
    %v12110 = vadd.f32 0.0, %v12109
    %v12111 = vpop.f32.mrf.mxu0
    %12112 = vmatprep.mubr.f32.mxu0 0.0
    %12113 = vmatmul.mubr.f32.gmra.mxu0 %v11833
    %v12114 = vpop.f32.mrf.mxu0
    %v12115 = vadd.f32 0.0, %v12114
    %v12116 = vpop.f32.mrf.mxu0
    %12117 = vmatprep.mubr.f32.mxu0 0.0
    %12118 = vmatmul.mubr.f32.gmra.mxu0 %v11836
    %v12119 = vpop.f32.mrf.mxu0
    %v12120 = vadd.f32 0.0, %v12119
    %v12121 = vpop.f32.mrf.mxu0
    %12122 = vmatprep.mubr.f32.mxu0 0.0
    %12123 = vmatmul.mubr.f32.gmra.mxu0 %v11839
    %v12124 = vpop.f32.mrf.mxu0
    %v12125 = vadd.f32 0.0, %v12124
    %v12126 = vpop.f32.mrf.mxu0
    %12127 = vmatprep.mubr.f32.mxu0 0.0
    %12128 = vmatmul.mubr.f32.gmra.mxu0 %v11842
    %v12129 = vpop.f32.mrf.mxu0
    %v12130 = vadd.f32 0.0, %v12129
    %v12131 = vpop.f32.mrf.mxu0
    %12132 = vmatprep.mubr.f32.mxu0 0.0
    %12133 = vmatmul.mubr.f32.gmra.mxu0 %v11845
    %v12134 = vpop.f32.mrf.mxu0
    %v12135 = vadd.f32 0.0, %v12134
    %v12136 = vpop.f32.mrf.mxu0
    %12137 = vmatprep.mubr.f32.mxu0 0.0
    %12138 = vmatmul.mubr.f32.gmra.mxu0 %v11848
    %v12139 = vpop.f32.mrf.mxu0
    %v12140 = vadd.f32 0.0, %v12139
    %v12141 = vpop.f32.mrf.mxu0
    %12142 = vmatprep.mubr.f32.mxu0 0.0
    %12143 = vmatmul.mubr.f32.gmra.mxu0 %v11851
    %v12144 = vpop.f32.mrf.mxu0
    %v12145 = vadd.f32 0.0, %v12144
    %v12146 = vpop.f32.mrf.mxu0
    %12147 = vmatprep.mubr.f32.mxu0 0.0
    %12148 = vmatmul.mubr.f32.gmra.mxu0 %v11854
    %v12149 = vpop.f32.mrf.mxu0
    %v12150 = vadd.f32 0.0, %v12149
    %v12151 = vpop.f32.mrf.mxu0
    %12152 = vmatprep.mubr.f32.mxu0 0.0
    %12153 = vmatmul.mubr.f32.gmra.mxu0 %v11857
    %v12154 = vpop.f32.mrf.mxu0
    %v12155 = vadd.f32 0.0, %v12154
    %v12156 = vpop.f32.mrf.mxu0
    %12157 = vmatprep.mubr.f32.mxu0 0.0
    %12158 = vmatmul.mubr.f32.gmra.mxu0 %v11860
    %v12159 = vpop.f32.mrf.mxu0
    %v12160 = vadd.f32 0.0, %v12159
    %v12161 = vpop.f32.mrf.mxu0
    %12162 = vmatprep.mubr.f32.mxu0 0.0
    %12163 = vmatmul.mubr.f32.gmra.mxu0 %v11863
    %v12164 = vpop.f32.mrf.mxu0
    %v12165 = vadd.f32 0.0, %v12164
    %v12166 = vpop.f32.mrf.mxu0
    %12167 = vmatprep.mubr.f32.mxu0 0.0
    %12168 = vmatmul.mubr.f32.gmra.mxu0 %v11866
    %v12169 = vpop.f32.mrf.mxu0
    %v12170 = vadd.f32 0.0, %v12169
    %v12171 = vpop.f32.mrf.mxu0
    %12172 = vmatprep.mubr.f32.mxu0 0.0
    %12173 = vmatmul.mubr.f32.gmra.mxu0 %v11869
    %v12174 = vpop.f32.mrf.mxu0
    %v12175 = vadd.f32 0.0, %v12174
    %v12176 = vpop.f32.mrf.mxu0
    %12177 = vmatprep.mubr.f32.mxu0 0.0
    %12178 = vmatmul.mubr.f32.gmra.mxu0 %v11872
    %v12179 = vpop.f32.mrf.mxu0
    %v12180 = vadd.f32 0.0, %v12179
    %v12181 = vpop.f32.mrf.mxu0
    %12182 = vmatprep.mubr.f32.mxu0 0.0
    %12183 = vmatmul.mubr.f32.gmra.mxu0 %v11875
    %v12184 = vpop.f32.mrf.mxu0
    %v12185 = vadd.f32 0.0, %v12184
    %v12186 = vpop.f32.mrf.mxu0
    %12187 = vmatprep.mubr.f32.mxu0 0.0
    %12188 = vmatmul.mubr.f32.gmra.mxu0 %v11878
    %v12189 = vpop.f32.mrf.mxu0
    %v12190 = vadd.f32 0.0, %v12189
    %v12191 = vpop.f32.mrf.mxu0
    %12192 = vmatprep.mubr.f32.mxu0 0.0
    %12193 = vmatmul.mubr.f32.gmra.mxu0 %v11881
    %v12194 = vpop.f32.mrf.mxu0
    %v12195 = vadd.f32 0.0, %v12194
    %v12196 = vpop.f32.mrf.mxu0
    %12197 = vmatprep.mubr.f32.mxu0 0.0
    %12198 = vmatmul.mubr.f32.gmra.mxu0 %v11884
    %v12199 = vpop.f32.mrf.mxu0
    %v12200 = vadd.f32 0.0, %v12199
    %v12201 = vpop.f32.mrf.mxu0
    %12202 = vmatprep.mubr.f32.mxu0 0.0
    %12203 = vmatmul.mubr.f32.gmra.mxu0 %v11887
    %v12204 = vpop.f32.mrf.mxu0
    %v12205 = vadd.f32 0.0, %v12204
    %v12206 = vpop.f32.mrf.mxu0
    %12207 = vmatprep.mubr.f32.mxu0 0.0
    %12208 = vmatmul.mubr.f32.gmra.mxu0 %v11890
    %v12209 = vpop.f32.mrf.mxu0
    %v12210 = vadd.f32 0.0, %v12209
    %v12211 = vpop.f32.mrf.mxu0
    %12212 = vmatprep.mubr.f32.mxu0 0.0
    %12213 = vmatmul.mubr.f32.gmra.mxu0 %v11893
    %v12214 = vpop.f32.mrf.mxu0
    %v12215 = vadd.f32 0.0, %v12214
    %v12216 = vpop.f32.mrf.mxu0
    %12217 = vmatprep.mubr.f32.mxu0 0.0
    %12218 = vmatmul.mubr.f32.gmra.mxu0 %v11896
    %v12219 = vpop.f32.mrf.mxu0
    %v12220 = vadd.f32 0.0, %v12219
    %v12221 = vpop.f32.mrf.mxu0
    %12222 = vmatprep.mubr.f32.mxu0 0.0
    %12223 = vmatmul.mubr.f32.gmra.mxu0 %v11899
    %v12224 = vpop.f32.mrf.mxu0
    %v12225 = vadd.f32 0.0, %v12224
    %v12226 = vpop.f32.mrf.mxu0
    %12227 = vmatprep.mubr.f32.mxu0 0.0
    %12228 = vmatmul.mubr.f32.gmra.mxu0 %v11902
    %v12229 = vpop.f32.mrf.mxu0
    %v12230 = vadd.f32 0.0, %v12229
    %v12231 = vpop.f32.mrf.mxu0
    %12232 = vmatprep.mubr.f32.mxu0 0.0
    %12233 = vmatmul.mubr.f32.gmra.mxu0 %v11905
    %v12234 = vpop.f32.mrf.mxu0
    %v12235 = vadd.f32 0.0, %v12234
    %v12236 = vpop.f32.mrf.mxu0
    %12237 = vmatprep.mubr.f32.mxu0 0.0
    %12238 = vmatmul.mubr.f32.gmra.mxu0 %v11908
    %v12239 = vpop.f32.mrf.mxu0
    %v12240 = vadd.f32 0.0, %v12239
    %v12241 = vpop.f32.mrf.mxu0
    %12242 = vmatprep.mubr.f32.mxu0 0.0
    %12243 = vmatmul.mubr.f32.gmra.mxu0 %v11911
    %v12244 = vpop.f32.mrf.mxu0
    %v12245 = vadd.f32 0.0, %v12244
    %v12246 = vpop.f32.mrf.mxu0
    %12247 = vmatprep.mubr.f32.mxu0 0.0
    %12248 = vmatmul.mubr.f32.gmra.mxu0 %v11914
    %v12249 = vpop.f32.mrf.mxu0
    %v12250 = vadd.f32 0.0, %v12249
    %v12251 = vpop.f32.mrf.mxu0
    %12252 = vmatprep.mubr.f32.mxu0 0.0
    %12253 = vmatmul.mubr.f32.gmra.mxu0 %v11917
    %v12254 = vpop.f32.mrf.mxu0
    %v12255 = vadd.f32 0.0, %v12254
    %v12256 = vpop.f32.mrf.mxu0
    %12257 = vmatprep.mubr.f32.mxu0 0.0
    %12258 = vmatmul.mubr.f32.gmra.mxu0 %v11920
    %v12259 = vpop.f32.mrf.mxu0
    %v12260 = vadd.f32 0.0, %v12259
    %v12261 = vpop.f32.mrf.mxu0
    %12262 = vmatprep.mubr.f32.mxu0 0.0
    %12263 = vmatmul.mubr.f32.gmra.mxu0 %v11923
    %v12264 = vpop.f32.mrf.mxu0
    %v12265 = vadd.f32 0.0, %v12264
    %v12266 = vpop.f32.mrf.mxu0
    %12267 = vmatprep.mubr.f32.mxu0 0.0
    %12268 = vmatmul.mubr.f32.gmra.mxu0 %v11926
    %v12269 = vpop.f32.mrf.mxu0
    %v12270 = vadd.f32 0.0, %v12269
    %v12271 = vpop.f32.mrf.mxu0
    %12272 = vmatprep.mubr.f32.mxu0 0.0
    %12273 = vmatmul.mubr.f32.gmra.mxu0 %v11929
    %v12274 = vpop.f32.mrf.mxu0
    %v12275 = vadd.f32 0.0, %v12274
    %v12276 = vpop.f32.mrf.mxu0
    %12277 = vmatprep.mubr.f32.mxu0 0.0
    %12278 = vmatmul.mubr.f32.gmra.mxu0 %v11932
    %v12279 = vpop.f32.mrf.mxu0
    %v12280 = vadd.f32 0.0, %v12279
    %v12281 = vpop.f32.mrf.mxu0
    %12282 = vmatprep.mubr.f32.mxu0 0.0
    %12283 = vmatmul.mubr.f32.gmra.mxu0 %v11935
    %v12284 = vpop.f32.mrf.mxu0
    %v12285 = vadd.f32 0.0, %v12284
    %v12286 = vpop.f32.mrf.mxu0
    %12287 = vmatprep.mubr.f32.mxu0 0.0
    %12288 = vmatmul.mubr.f32.gmra.mxu0 %v11938
    %v12289 = vpop.f32.mrf.mxu0
    %v12290 = vadd.f32 0.0, %v12289
    %v12291 = vpop.f32.mrf.mxu0
    %12292 = vmatprep.mubr.f32.mxu0 0.0
    %12293 = vmatmul.mubr.f32.gmra.mxu0 %v11941
    %v12294 = vpop.f32.mrf.mxu0
    %v12295 = vadd.f32 0.0, %v12294
    %v12296 = vpop.f32.mrf.mxu0
    %12297 = vmatprep.mubr.f32.mxu0 0.0
    %12298 = vmatmul.mubr.f32.gmra.mxu0 %v11944
    %v12299 = vpop.f32.mrf.mxu0
    %v12300 = vadd.f32 0.0, %v12299
    %v12301 = vpop.f32.mrf.mxu0
    %12302 = vmatprep.mubr.f32.mxu0 0.0
    %12303 = vmatmul.mubr.f32.gmra.mxu0 %v11947
    %v12304 = vpop.f32.mrf.mxu0
    %v12305 = vadd.f32 0.0, %v12304
    %v12306 = vpop.f32.mrf.mxu0
    %12307 = vmatprep.mubr.f32.mxu0 0.0
    %12308 = vmatmul.mubr.f32.gmra.mxu0 %v11950
    %v12309 = vpop.f32.mrf.mxu0
    %v12310 = vadd.f32 0.0, %v12309
    %v12311 = vpop.f32.mrf.mxu0
    %12312 = vmatprep.mubr.f32.mxu0 0.0
    %12313 = vmatmul.mubr.f32.gmra.mxu0 %v11953
    %v12314 = vpop.f32.mrf.mxu0
    %v12315 = vadd.f32 0.0, %v12314
    %v12316 = vpop.f32.mrf.mxu0
    %12317 = vmatprep.mubr.f32.mxu0 0.0
    %12318 = vmatmul.mubr.f32.gmra.mxu0 %v11956
    %v12319 = vpop.f32.mrf.mxu0
    %v12320 = vadd.f32 0.0, %v12319
    %v12321 = vpop.f32.mrf.mxu0
    %12322 = vmatprep.mubr.f32.mxu0 0.0
    %12323 = vmatmul.mubr.f32.gmra.mxu0 %v11959
    %v12324 = vpop.f32.mrf.mxu0
    %v12325 = vadd.f32 0.0, %v12324
    %v12326 = vpop.f32.mrf.mxu0
    %12327 = vmatprep.mubr.f32.mxu0 0.0
    %12328 = vmatmul.mubr.f32.gmra.mxu0 %v11962
    %v12329 = vpop.f32.mrf.mxu0
    %v12330 = vadd.f32 0.0, %v12329
    %v12331 = vpop.f32.mrf.mxu0
    %12332 = vmatprep.mubr.f32.mxu0 0.0
    %12333 = vmatmul.mubr.f32.gmra.mxu0 %v11965
    %v12334 = vpop.f32.mrf.mxu0
    %v12335 = vadd.f32 0.0, %v12334
    %v12336 = vpop.f32.mrf.mxu0
    %12337 = vmatprep.mubr.f32.mxu0 0.0
    %12338 = vmatmul.mubr.f32.gmra.mxu0 %v11968
    %v12339 = vpop.f32.mrf.mxu0
    %v12340 = vadd.f32 0.0, %v12339
    %v12341 = vpop.f32.mrf.mxu0
    %12342 = vmatprep.mubr.f32.mxu0 0.0
    %12343 = vmatmul.mubr.f32.gmra.mxu0 %v11971
    %v12344 = vpop.f32.mrf.mxu0
    %v12345 = vadd.f32 0.0, %v12344
    %v12346 = vpop.f32.mrf.mxu0
    %12347 = vmatprep.mubr.f32.mxu0 0.0
    %12348 = vmatmul.mubr.f32.gmra.mxu0 %v11974
    %v12349 = vpop.f32.mrf.mxu0
    %v12350 = vadd.f32 0.0, %v12349
    %v12351 = vpop.f32.mrf.mxu0
    %12352 = vmatprep.mubr.f32.mxu0 0.0
    %12353 = vmatmul.mubr.f32.gmra.mxu0 %v11977
    %v12354 = vpop.f32.mrf.mxu0
    %v12355 = vadd.f32 0.0, %v12354
    %v12356 = vpop.f32.mrf.mxu0
    %12357 = vmatprep.mubr.f32.mxu0 0.0
    %12358 = vmatmul.mubr.f32.gmra.mxu0 %v11980
    %v12359 = vpop.f32.mrf.mxu0
    %v12360 = vadd.f32 0.0, %v12359
    %v12361 = vpop.f32.mrf.mxu0
    %12362 = vmatprep.mubr.f32.mxu0 0.0
    %12363 = vmatmul.mubr.f32.gmra.mxu0 %v11983
    %v12364 = vpop.f32.mrf.mxu0
    %v12365 = vadd.f32 0.0, %v12364
    %v12366 = vpop.f32.mrf.mxu0
    %12367 = vmatprep.mubr.f32.mxu0 0.0
    %12368 = vmatmul.mubr.f32.gmra.mxu0 %v11986
    %v12369 = vpop.f32.mrf.mxu0
    %v12370 = vadd.f32 0.0, %v12369
    %v12371 = vpop.f32.mrf.mxu0
    %12372 = vdwg.mxu0
    %v12373 = vadd.f32 %v11666, %v12055
    %v12374 = vadd.f32 %v11667, %v12060
    %v12375 = vadd.f32 %v11668, %v12065
    %v12376 = vadd.f32 %v11669, %v12070
    %v12377 = vadd.f32 %v11670, %v12075
    %v12378 = vadd.f32 %v11671, %v12080
    %v12379 = vadd.f32 %v11672, %v12085
    %v12380 = vadd.f32 %v11673, %v12090
    %v12381 = vadd.f32 %v11674, %v12095
    %v12382 = vadd.f32 %v11675, %v12100
    %v12383 = vadd.f32 %v11676, %v12105
    %v12384 = vadd.f32 %v11677, %v12110
    %v12385 = vadd.f32 %v11678, %v12115
    %v12386 = vadd.f32 %v11679, %v12120
    %v12387 = vadd.f32 %v11680, %v12125
    %v12388 = vadd.f32 %v11681, %v12130
    %v12389 = vadd.f32 %v11682, %v12135
    %v12390 = vadd.f32 %v11683, %v12140
    %v12391 = vadd.f32 %v11684, %v12145
    %v12392 = vadd.f32 %v11685, %v12150
    %v12393 = vadd.f32 %v11686, %v12155
    %v12394 = vadd.f32 %v11687, %v12160
    %v12395 = vadd.f32 %v11688, %v12165
    %v12396 = vadd.f32 %v11689, %v12170
    %v12397 = vadd.f32 %v11690, %v12175
    %v12398 = vadd.f32 %v11691, %v12180
    %v12399 = vadd.f32 %v11692, %v12185
    %v12400 = vadd.f32 %v11693, %v12190
    %v12401 = vadd.f32 %v11694, %v12195
    %v12402 = vadd.f32 %v11695, %v12200
    %v12403 = vadd.f32 %v11696, %v12205
    %v12404 = vadd.f32 %v11697, %v12210
    %v12405 = vadd.f32 %v11698, %v12215
    %v12406 = vadd.f32 %v11699, %v12220
    %v12407 = vadd.f32 %v11700, %v12225
    %v12408 = vadd.f32 %v11701, %v12230
    %v12409 = vadd.f32 %v11702, %v12235
    %v12410 = vadd.f32 %v11703, %v12240
    %v12411 = vadd.f32 %v11704, %v12245
    %v12412 = vadd.f32 %v11705, %v12250
    %v12413 = vadd.f32 %v11706, %v12255
    %v12414 = vadd.f32 %v11707, %v12260
    %v12415 = vadd.f32 %v11708, %v12265
    %v12416 = vadd.f32 %v11709, %v12270
    %v12417 = vadd.f32 %v11710, %v12275
    %v12418 = vadd.f32 %v11711, %v12280
    %v12419 = vadd.f32 %v11712, %v12285
    %v12420 = vadd.f32 %v11713, %v12290
    %v12421 = vadd.f32 %v11714, %v12295
    %v12422 = vadd.f32 %v11715, %v12300
    %v12423 = vadd.f32 %v11716, %v12305
    %v12424 = vadd.f32 %v11717, %v12310
    %v12425 = vadd.f32 %v11718, %v12315
    %v12426 = vadd.f32 %v11719, %v12320
    %v12427 = vadd.f32 %v11720, %v12325
    %v12428 = vadd.f32 %v11721, %v12330
    %v12429 = vadd.f32 %v11722, %v12335
    %v12430 = vadd.f32 %v11723, %v12340
    %v12431 = vadd.f32 %v11724, %v12345
    %v12432 = vadd.f32 %v11725, %v12350
    %v12433 = vadd.f32 %v11726, %v12355
    %v12434 = vadd.f32 %v11727, %v12360
    %v12435 = vadd.f32 %v11728, %v12365
    %v12436 = vadd.f32 %v11729, %v12370
    %v12437 = vld [vmem:[%s11022 + $0x9] sm:$0xff]
    %v12438 = vld [vmem:[%s11022 + $0x11] sm:$0xff]
    %v12439 = vld [vmem:[%s11022 + $0x29] sm:$0xff]
    %v12440 = vld [vmem:[%s11022 + $0x31] sm:$0xff]
    %v12441 = vld [vmem:[%s11022 + $0x49] sm:$0xff]
    %v12442 = vld [vmem:[%s11022 + $0x51] sm:$0xff]
    %v12443 = vld [vmem:[%s11022 + $0x69] sm:$0xff]
    %v12444 = vld [vmem:[%s11022 + $0x71] sm:$0xff]
    %v12445 = vld [vmem:[%s11022 + $0x89] sm:$0xff]
    %v12446 = vld [vmem:[%s11022 + $0x91] sm:$0xff]
    %v12447 = vld [vmem:[%s11022 + $0xa9] sm:$0xff]
    %v12448 = vld [vmem:[%s11022 + $0xb1] sm:$0xff]
    %v12449 = vld [vmem:[%s11022 + $0xc9] sm:$0xff]
    %v12450 = vld [vmem:[%s11022 + $0xd1] sm:$0xff]
    %v12451 = vld [vmem:[%s11022 + $0xe9] sm:$0xff]
    %v12452 = vld [vmem:[%s11022 + $0xf1] sm:$0xff]
    %v12453 = vld [vmem:[%s11022 + $0x109] sm:$0xff]
    %v12454 = vld [vmem:[%s11022 + $0x111] sm:$0xff]
    %v12455 = vld [vmem:[%s11022 + $0x129] sm:$0xff]
    %v12456 = vld [vmem:[%s11022 + $0x131] sm:$0xff]
    %v12457 = vld [vmem:[%s11022 + $0x149] sm:$0xff]
    %v12458 = vld [vmem:[%s11022 + $0x151] sm:$0xff]
    %v12459 = vld [vmem:[%s11022 + $0x169] sm:$0xff]
    %v12460 = vld [vmem:[%s11022 + $0x171] sm:$0xff]
    %v12461 = vld [vmem:[%s11022 + $0x189] sm:$0xff]
    %v12462 = vld [vmem:[%s11022 + $0x191] sm:$0xff]
    %v12463 = vld [vmem:[%s11022 + $0x1a9] sm:$0xff]
    %v12464 = vld [vmem:[%s11022 + $0x1b1] sm:$0xff]
    %v12465 = vld [vmem:[%s11022 + $0x1c9] sm:$0xff]
    %v12466 = vld [vmem:[%s11022 + $0x1d1] sm:$0xff]
    %v12467 = vld [vmem:[%s11022 + $0x1e9] sm:$0xff]
    %v12468 = vld [vmem:[%s11022 + $0x1f1] sm:$0xff]
    %v12469 = vld [vmem:[%s11022 + $0x249] sm:$0xff]
    %v12470 = vld [vmem:[%s11022 + $0x251] sm:$0xff]
    %v12471 = vld [vmem:[%s11022 + $0x269] sm:$0xff]
    %v12472 = vld [vmem:[%s11022 + $0x271] sm:$0xff]
    %v12473 = vld [vmem:[%s11022 + $0x289] sm:$0xff]
    %v12474 = vld [vmem:[%s11022 + $0x291] sm:$0xff]
    %v12475 = vld [vmem:[%s11022 + $0x2a9] sm:$0xff]
    %v12476 = vld [vmem:[%s11022 + $0x2b1] sm:$0xff]
    %v12477 = vld [vmem:[%s11022 + $0x2c9] sm:$0xff]
    %v12478 = vld [vmem:[%s11022 + $0x2d1] sm:$0xff]
    %v12479 = vld [vmem:[%s11022 + $0x2e9] sm:$0xff]
    %v12480 = vld [vmem:[%s11022 + $0x2f1] sm:$0xff]
    %v12481 = vld [vmem:[%s11022 + $0x309] sm:$0xff]
    %v12482 = vld [vmem:[%s11022 + $0x311] sm:$0xff]
    %v12483 = vld [vmem:[%s11022 + $0x329] sm:$0xff]
    %v12484 = vld [vmem:[%s11022 + $0x331] sm:$0xff]
    %v12485 = vld [vmem:[%s11022 + $0x349] sm:$0xff]
    %v12486 = vld [vmem:[%s11022 + $0x351] sm:$0xff]
    %v12487 = vld [vmem:[%s11022 + $0x369] sm:$0xff]
    %v12488 = vld [vmem:[%s11022 + $0x371] sm:$0xff]
    %v12489 = vld [vmem:[%s11022 + $0x389] sm:$0xff]
    %v12490 = vld [vmem:[%s11022 + $0x391] sm:$0xff]
    %v12491 = vld [vmem:[%s11022 + $0x3a9] sm:$0xff]
    %v12492 = vld [vmem:[%s11022 + $0x3b1] sm:$0xff]
    %v12493 = vld [vmem:[%s11022 + $0x3c9] sm:$0xff]
    %v12494 = vld [vmem:[%s11022 + $0x3d1] sm:$0xff]
    %v12495 = vld [vmem:[%s11022 + $0x3e9] sm:$0xff]
    %v12496 = vld [vmem:[%s11022 + $0x3f1] sm:$0xff]
    %v12497 = vld [vmem:[%s11022 + $0x409] sm:$0xff]
    %v12498 = vld [vmem:[%s11022 + $0x411] sm:$0xff]
    %v12499 = vld [vmem:[%s11022 + $0x429] sm:$0xff]
    %v12500 = vld [vmem:[%s11022 + $0x431] sm:$0xff]
    %s12501 = scalar_lea.vmem %s3, 64
    %v12502 = vld [vmem:[%s12501] sm:$0xff]
    %v12504 = vsel %vm6699, %v12437, 0
    %v12507 = vsel %vm6699, %v12438, 0
    %v12510 = vsel %vm6699, %v12439, 0
    %v12513 = vsel %vm6699, %v12440, 0
    %v12516 = vsel %vm6699, %v12441, 0
    %v12519 = vsel %vm6699, %v12442, 0
    %v12522 = vsel %vm6699, %v12443, 0
    %v12525 = vsel %vm6699, %v12444, 0
    %v12528 = vsel %vm6699, %v12445, 0
    %v12531 = vsel %vm6699, %v12446, 0
    %v12534 = vsel %vm6699, %v12447, 0
    %v12537 = vsel %vm6699, %v12448, 0
    %v12540 = vsel %vm6699, %v12449, 0
    %v12543 = vsel %vm6699, %v12450, 0
    %v12546 = vsel %vm6699, %v12451, 0
    %v12549 = vsel %vm6699, %v12452, 0
    %v12552 = vsel %vm6699, %v12453, 0
    %v12555 = vsel %vm6699, %v12454, 0
    %v12558 = vsel %vm6699, %v12455, 0
    %v12561 = vsel %vm6699, %v12456, 0
    %v12564 = vsel %vm6699, %v12457, 0
    %v12567 = vsel %vm6699, %v12458, 0
    %v12570 = vsel %vm6699, %v12459, 0
    %v12573 = vsel %vm6699, %v12460, 0
    %v12576 = vsel %vm6699, %v12461, 0
    %v12579 = vsel %vm6699, %v12462, 0
    %v12582 = vsel %vm6699, %v12463, 0
    %v12585 = vsel %vm6699, %v12464, 0
    %v12588 = vsel %vm6699, %v12465, 0
    %v12591 = vsel %vm6699, %v12466, 0
    %v12594 = vsel %vm6699, %v12467, 0
    %v12597 = vsel %vm6699, %v12468, 0
    %v12600 = vsel %vm6699, %v12469, 0
    %v12603 = vsel %vm6699, %v12470, 0
    %v12606 = vsel %vm6699, %v12471, 0
    %v12609 = vsel %vm6699, %v12472, 0
    %v12612 = vsel %vm6699, %v12473, 0
    %v12615 = vsel %vm6699, %v12474, 0
    %v12618 = vsel %vm6699, %v12475, 0
    %v12621 = vsel %vm6699, %v12476, 0
    %v12624 = vsel %vm6699, %v12477, 0
    %v12627 = vsel %vm6699, %v12478, 0
    %v12630 = vsel %vm6699, %v12479, 0
    %v12633 = vsel %vm6699, %v12480, 0
    %v12636 = vsel %vm6699, %v12481, 0
    %v12639 = vsel %vm6699, %v12482, 0
    %v12642 = vsel %vm6699, %v12483, 0
    %v12645 = vsel %vm6699, %v12484, 0
    %v12648 = vsel %vm6699, %v12485, 0
    %v12651 = vsel %vm6699, %v12486, 0
    %v12654 = vsel %vm6699, %v12487, 0
    %v12657 = vsel %vm6699, %v12488, 0
    %v12660 = vsel %vm6699, %v12489, 0
    %v12663 = vsel %vm6699, %v12490, 0
    %v12666 = vsel %vm6699, %v12491, 0
    %v12669 = vsel %vm6699, %v12492, 0
    %v12672 = vsel %vm6699, %v12493, 0
    %v12675 = vsel %vm6699, %v12494, 0
    %v12678 = vsel %vm6699, %v12495, 0
    %v12681 = vsel %vm6699, %v12496, 0
    %v12684 = vsel %vm6699, %v12497, 0
    %v12687 = vsel %vm6699, %v12498, 0
    %v12690 = vsel %vm6699, %v12499, 0
    %v12693 = vsel %vm6699, %v12500, 0
    %12695 = vmatprep.subr.mxu0 0.0
    %12696 = vmatpush1.msra.mxu0 0.0
    %12697 = vmatprep.subr.mxu0 0.0
    %12698 = vmatpush1.msra.mxu0 0.0
    %12699 = vmatprep.subr.mxu0 0.0
    %12700 = vmatpush1.msra.mxu0 0.0
    %12701 = vmatprep.subr.mxu0 0.0
    %12702 = vmatpush1.msra.mxu0 0.0
    %12703 = vmatprep.subr.mxu0 0.0
    %12704 = vmatpush1.msra.mxu0 0.0
    %12705 = vmatprep.subr.mxu0 0.0
    %12706 = vmatpush1.msra.mxu0 0.0
    %12707 = vmatprep.subr.mxu0 0.0
    %12708 = vmatpush1.msra.mxu0 0.0
    %12709 = vmatprep.subr.mxu0 0.0
    %12710 = vmatpush1.msra.mxu0 0.0
    %12711 = vmatprep.subr.mxu0 0.0
    %12712 = vmatpush1.msra.mxu0 0.0
    %12713 = vmatprep.subr.mxu0 0.0
    %12714 = vmatpush1.msra.mxu0 0.0
    %12715 = vmatprep.subr.mxu0 0.0
    %12716 = vmatpush1.msra.mxu0 0.0
    %12717 = vmatprep.subr.mxu0 0.0
    %12718 = vmatpush1.msra.mxu0 0.0
    %12719 = vmatprep.subr.mxu0 0.0
    %12720 = vmatpush1.msra.mxu0 0.0
    %12721 = vmatprep.subr.mxu0 0.0
    %12722 = vmatpush1.msra.mxu0 0.0
    %12723 = vmatprep.subr.mxu0 0.0
    %12724 = vmatpush1.msra.mxu0 0.0
    %12725 = vmatprep.subr.mxu0 0.0
    %12726 = vmatpush1.msra.mxu0 %v12502
    %12727 = vmatprep.subr.mxu0 0.0
    %12728 = vmatpush2.msra.mxu0 0.0
    %12729 = vmatprep.subr.mxu0 0.0
    %12730 = vmatpush2.msra.mxu0 0.0
    %12731 = vmatprep.subr.mxu0 0.0
    %12732 = vmatpush2.msra.mxu0 0.0
    %12733 = vmatprep.subr.mxu0 0.0
    %12734 = vmatpush2.msra.mxu0 0.0
    %12735 = vmatprep.subr.mxu0 0.0
    %12736 = vmatpush2.msra.mxu0 0.0
    %12737 = vmatprep.subr.mxu0 0.0
    %12738 = vmatpush2.msra.mxu0 0.0
    %12739 = vmatprep.subr.mxu0 0.0
    %12740 = vmatpush2.msra.mxu0 0.0
    %12741 = vmatprep.subr.mxu0 0.0
    %12742 = vmatpush2.msra.mxu0 0.0
    %12743 = vmatprep.subr.mxu0 0.0
    %12744 = vmatpush2.msra.mxu0 0.0
    %12745 = vmatprep.subr.mxu0 0.0
    %12746 = vmatpush2.msra.mxu0 0.0
    %12747 = vmatprep.subr.mxu0 0.0
    %12748 = vmatpush2.msra.mxu0 0.0
    %12749 = vmatprep.subr.mxu0 0.0
    %12750 = vmatpush2.msra.mxu0 0.0
    %12751 = vmatprep.subr.mxu0 0.0
    %12752 = vmatpush2.msra.mxu0 0.0
    %12753 = vmatprep.subr.mxu0 0.0
    %12754 = vmatpush2.msra.mxu0 0.0
    %12755 = vmatprep.subr.mxu0 0.0
    %12756 = vmatpush2.msra.mxu0 0.0
    %12757 = vmatprep.subr.mxu0 0.0
    %12758 = vmatpush2.msra.mxu0 0.0
    %12759 = vmatprep.mubr.f32.mxu0 0.0
    %12760 = vmatmul.mubr.f32.gmra.mxu0 %v12504
    %v12761 = vpop.f32.mrf.mxu0
    %v12762 = vadd.f32 0.0, %v12761
    %v12763 = vpop.f32.mrf.mxu0
    %12764 = vmatprep.mubr.f32.mxu0 0.0
    %12765 = vmatmul.mubr.f32.gmra.mxu0 %v12507
    %v12766 = vpop.f32.mrf.mxu0
    %v12767 = vadd.f32 0.0, %v12766
    %v12768 = vpop.f32.mrf.mxu0
    %12769 = vmatprep.mubr.f32.mxu0 0.0
    %12770 = vmatmul.mubr.f32.gmra.mxu0 %v12510
    %v12771 = vpop.f32.mrf.mxu0
    %v12772 = vadd.f32 0.0, %v12771
    %v12773 = vpop.f32.mrf.mxu0
    %12774 = vmatprep.mubr.f32.mxu0 0.0
    %12775 = vmatmul.mubr.f32.gmra.mxu0 %v12513
    %v12776 = vpop.f32.mrf.mxu0
    %v12777 = vadd.f32 0.0, %v12776
    %v12778 = vpop.f32.mrf.mxu0
    %12779 = vmatprep.mubr.f32.mxu0 0.0
    %12780 = vmatmul.mubr.f32.gmra.mxu0 %v12516
    %v12781 = vpop.f32.mrf.mxu0
    %v12782 = vadd.f32 0.0, %v12781
    %v12783 = vpop.f32.mrf.mxu0
    %12784 = vmatprep.mubr.f32.mxu0 0.0
    %12785 = vmatmul.mubr.f32.gmra.mxu0 %v12519
    %v12786 = vpop.f32.mrf.mxu0
    %v12787 = vadd.f32 0.0, %v12786
    %v12788 = vpop.f32.mrf.mxu0
    %12789 = vmatprep.mubr.f32.mxu0 0.0
    %12790 = vmatmul.mubr.f32.gmra.mxu0 %v12522
    %v12791 = vpop.f32.mrf.mxu0
    %v12792 = vadd.f32 0.0, %v12791
    %v12793 = vpop.f32.mrf.mxu0
    %12794 = vmatprep.mubr.f32.mxu0 0.0
    %12795 = vmatmul.mubr.f32.gmra.mxu0 %v12525
    %v12796 = vpop.f32.mrf.mxu0
    %v12797 = vadd.f32 0.0, %v12796
    %v12798 = vpop.f32.mrf.mxu0
    %12799 = vmatprep.mubr.f32.mxu0 0.0
    %12800 = vmatmul.mubr.f32.gmra.mxu0 %v12528
    %v12801 = vpop.f32.mrf.mxu0
    %v12802 = vadd.f32 0.0, %v12801
    %v12803 = vpop.f32.mrf.mxu0
    %12804 = vmatprep.mubr.f32.mxu0 0.0
    %12805 = vmatmul.mubr.f32.gmra.mxu0 %v12531
    %v12806 = vpop.f32.mrf.mxu0
    %v12807 = vadd.f32 0.0, %v12806
    %v12808 = vpop.f32.mrf.mxu0
    %12809 = vmatprep.mubr.f32.mxu0 0.0
    %12810 = vmatmul.mubr.f32.gmra.mxu0 %v12534
    %v12811 = vpop.f32.mrf.mxu0
    %v12812 = vadd.f32 0.0, %v12811
    %v12813 = vpop.f32.mrf.mxu0
    %12814 = vmatprep.mubr.f32.mxu0 0.0
    %12815 = vmatmul.mubr.f32.gmra.mxu0 %v12537
    %v12816 = vpop.f32.mrf.mxu0
    %v12817 = vadd.f32 0.0, %v12816
    %v12818 = vpop.f32.mrf.mxu0
    %12819 = vmatprep.mubr.f32.mxu0 0.0
    %12820 = vmatmul.mubr.f32.gmra.mxu0 %v12540
    %v12821 = vpop.f32.mrf.mxu0
    %v12822 = vadd.f32 0.0, %v12821
    %v12823 = vpop.f32.mrf.mxu0
    %12824 = vmatprep.mubr.f32.mxu0 0.0
    %12825 = vmatmul.mubr.f32.gmra.mxu0 %v12543
    %v12826 = vpop.f32.mrf.mxu0
    %v12827 = vadd.f32 0.0, %v12826
    %v12828 = vpop.f32.mrf.mxu0
    %12829 = vmatprep.mubr.f32.mxu0 0.0
    %12830 = vmatmul.mubr.f32.gmra.mxu0 %v12546
    %v12831 = vpop.f32.mrf.mxu0
    %v12832 = vadd.f32 0.0, %v12831
    %v12833 = vpop.f32.mrf.mxu0
    %12834 = vmatprep.mubr.f32.mxu0 0.0
    %12835 = vmatmul.mubr.f32.gmra.mxu0 %v12549
    %v12836 = vpop.f32.mrf.mxu0
    %v12837 = vadd.f32 0.0, %v12836
    %v12838 = vpop.f32.mrf.mxu0
    %12839 = vmatprep.mubr.f32.mxu0 0.0
    %12840 = vmatmul.mubr.f32.gmra.mxu0 %v12552
    %v12841 = vpop.f32.mrf.mxu0
    %v12842 = vadd.f32 0.0, %v12841
    %v12843 = vpop.f32.mrf.mxu0
    %12844 = vmatprep.mubr.f32.mxu0 0.0
    %12845 = vmatmul.mubr.f32.gmra.mxu0 %v12555
    %v12846 = vpop.f32.mrf.mxu0
    %v12847 = vadd.f32 0.0, %v12846
    %v12848 = vpop.f32.mrf.mxu0
    %12849 = vmatprep.mubr.f32.mxu0 0.0
    %12850 = vmatmul.mubr.f32.gmra.mxu0 %v12558
    %v12851 = vpop.f32.mrf.mxu0
    %v12852 = vadd.f32 0.0, %v12851
    %v12853 = vpop.f32.mrf.mxu0
    %12854 = vmatprep.mubr.f32.mxu0 0.0
    %12855 = vmatmul.mubr.f32.gmra.mxu0 %v12561
    %v12856 = vpop.f32.mrf.mxu0
    %v12857 = vadd.f32 0.0, %v12856
    %v12858 = vpop.f32.mrf.mxu0
    %12859 = vmatprep.mubr.f32.mxu0 0.0
    %12860 = vmatmul.mubr.f32.gmra.mxu0 %v12564
    %v12861 = vpop.f32.mrf.mxu0
    %v12862 = vadd.f32 0.0, %v12861
    %v12863 = vpop.f32.mrf.mxu0
    %12864 = vmatprep.mubr.f32.mxu0 0.0
    %12865 = vmatmul.mubr.f32.gmra.mxu0 %v12567
    %v12866 = vpop.f32.mrf.mxu0
    %v12867 = vadd.f32 0.0, %v12866
    %v12868 = vpop.f32.mrf.mxu0
    %12869 = vmatprep.mubr.f32.mxu0 0.0
    %12870 = vmatmul.mubr.f32.gmra.mxu0 %v12570
    %v12871 = vpop.f32.mrf.mxu0
    %v12872 = vadd.f32 0.0, %v12871
    %v12873 = vpop.f32.mrf.mxu0
    %12874 = vmatprep.mubr.f32.mxu0 0.0
    %12875 = vmatmul.mubr.f32.gmra.mxu0 %v12573
    %v12876 = vpop.f32.mrf.mxu0
    %v12877 = vadd.f32 0.0, %v12876
    %v12878 = vpop.f32.mrf.mxu0
    %12879 = vmatprep.mubr.f32.mxu0 0.0
    %12880 = vmatmul.mubr.f32.gmra.mxu0 %v12576
    %v12881 = vpop.f32.mrf.mxu0
    %v12882 = vadd.f32 0.0, %v12881
    %v12883 = vpop.f32.mrf.mxu0
    %12884 = vmatprep.mubr.f32.mxu0 0.0
    %12885 = vmatmul.mubr.f32.gmra.mxu0 %v12579
    %v12886 = vpop.f32.mrf.mxu0
    %v12887 = vadd.f32 0.0, %v12886
    %v12888 = vpop.f32.mrf.mxu0
    %12889 = vmatprep.mubr.f32.mxu0 0.0
    %12890 = vmatmul.mubr.f32.gmra.mxu0 %v12582
    %v12891 = vpop.f32.mrf.mxu0
    %v12892 = vadd.f32 0.0, %v12891
    %v12893 = vpop.f32.mrf.mxu0
    %12894 = vmatprep.mubr.f32.mxu0 0.0
    %12895 = vmatmul.mubr.f32.gmra.mxu0 %v12585
    %v12896 = vpop.f32.mrf.mxu0
    %v12897 = vadd.f32 0.0, %v12896
    %v12898 = vpop.f32.mrf.mxu0
    %12899 = vmatprep.mubr.f32.mxu0 0.0
    %12900 = vmatmul.mubr.f32.gmra.mxu0 %v12588
    %v12901 = vpop.f32.mrf.mxu0
    %v12902 = vadd.f32 0.0, %v12901
    %v12903 = vpop.f32.mrf.mxu0
    %12904 = vmatprep.mubr.f32.mxu0 0.0
    %12905 = vmatmul.mubr.f32.gmra.mxu0 %v12591
    %v12906 = vpop.f32.mrf.mxu0
    %v12907 = vadd.f32 0.0, %v12906
    %v12908 = vpop.f32.mrf.mxu0
    %12909 = vmatprep.mubr.f32.mxu0 0.0
    %12910 = vmatmul.mubr.f32.gmra.mxu0 %v12594
    %v12911 = vpop.f32.mrf.mxu0
    %v12912 = vadd.f32 0.0, %v12911
    %v12913 = vpop.f32.mrf.mxu0
    %12914 = vmatprep.mubr.f32.mxu0 0.0
    %12915 = vmatmul.mubr.f32.gmra.mxu0 %v12597
    %v12916 = vpop.f32.mrf.mxu0
    %v12917 = vadd.f32 0.0, %v12916
    %v12918 = vpop.f32.mrf.mxu0
    %12919 = vmatprep.mubr.f32.mxu0 0.0
    %12920 = vmatmul.mubr.f32.gmra.mxu0 %v12600
    %v12921 = vpop.f32.mrf.mxu0
    %v12922 = vadd.f32 0.0, %v12921
    %v12923 = vpop.f32.mrf.mxu0
    %12924 = vmatprep.mubr.f32.mxu0 0.0
    %12925 = vmatmul.mubr.f32.gmra.mxu0 %v12603
    %v12926 = vpop.f32.mrf.mxu0
    %v12927 = vadd.f32 0.0, %v12926
    %v12928 = vpop.f32.mrf.mxu0
    %12929 = vmatprep.mubr.f32.mxu0 0.0
    %12930 = vmatmul.mubr.f32.gmra.mxu0 %v12606
    %v12931 = vpop.f32.mrf.mxu0
    %v12932 = vadd.f32 0.0, %v12931
    %v12933 = vpop.f32.mrf.mxu0
    %12934 = vmatprep.mubr.f32.mxu0 0.0
    %12935 = vmatmul.mubr.f32.gmra.mxu0 %v12609
    %v12936 = vpop.f32.mrf.mxu0
    %v12937 = vadd.f32 0.0, %v12936
    %v12938 = vpop.f32.mrf.mxu0
    %12939 = vmatprep.mubr.f32.mxu0 0.0
    %12940 = vmatmul.mubr.f32.gmra.mxu0 %v12612
    %v12941 = vpop.f32.mrf.mxu0
    %v12942 = vadd.f32 0.0, %v12941
    %v12943 = vpop.f32.mrf.mxu0
    %12944 = vmatprep.mubr.f32.mxu0 0.0
    %12945 = vmatmul.mubr.f32.gmra.mxu0 %v12615
    %v12946 = vpop.f32.mrf.mxu0
    %v12947 = vadd.f32 0.0, %v12946
    %v12948 = vpop.f32.mrf.mxu0
    %12949 = vmatprep.mubr.f32.mxu0 0.0
    %12950 = vmatmul.mubr.f32.gmra.mxu0 %v12618
    %v12951 = vpop.f32.mrf.mxu0
    %v12952 = vadd.f32 0.0, %v12951
    %v12953 = vpop.f32.mrf.mxu0
    %12954 = vmatprep.mubr.f32.mxu0 0.0
    %12955 = vmatmul.mubr.f32.gmra.mxu0 %v12621
    %v12956 = vpop.f32.mrf.mxu0
    %v12957 = vadd.f32 0.0, %v12956
    %v12958 = vpop.f32.mrf.mxu0
    %12959 = vmatprep.mubr.f32.mxu0 0.0
    %12960 = vmatmul.mubr.f32.gmra.mxu0 %v12624
    %v12961 = vpop.f32.mrf.mxu0
    %v12962 = vadd.f32 0.0, %v12961
    %v12963 = vpop.f32.mrf.mxu0
    %12964 = vmatprep.mubr.f32.mxu0 0.0
    %12965 = vmatmul.mubr.f32.gmra.mxu0 %v12627
    %v12966 = vpop.f32.mrf.mxu0
    %v12967 = vadd.f32 0.0, %v12966
    %v12968 = vpop.f32.mrf.mxu0
    %12969 = vmatprep.mubr.f32.mxu0 0.0
    %12970 = vmatmul.mubr.f32.gmra.mxu0 %v12630
    %v12971 = vpop.f32.mrf.mxu0
    %v12972 = vadd.f32 0.0, %v12971
    %v12973 = vpop.f32.mrf.mxu0
    %12974 = vmatprep.mubr.f32.mxu0 0.0
    %12975 = vmatmul.mubr.f32.gmra.mxu0 %v12633
    %v12976 = vpop.f32.mrf.mxu0
    %v12977 = vadd.f32 0.0, %v12976
    %v12978 = vpop.f32.mrf.mxu0
    %12979 = vmatprep.mubr.f32.mxu0 0.0
    %12980 = vmatmul.mubr.f32.gmra.mxu0 %v12636
    %v12981 = vpop.f32.mrf.mxu0
    %v12982 = vadd.f32 0.0, %v12981
    %v12983 = vpop.f32.mrf.mxu0
    %12984 = vmatprep.mubr.f32.mxu0 0.0
    %12985 = vmatmul.mubr.f32.gmra.mxu0 %v12639
    %v12986 = vpop.f32.mrf.mxu0
    %v12987 = vadd.f32 0.0, %v12986
    %v12988 = vpop.f32.mrf.mxu0
    %12989 = vmatprep.mubr.f32.mxu0 0.0
    %12990 = vmatmul.mubr.f32.gmra.mxu0 %v12642
    %v12991 = vpop.f32.mrf.mxu0
    %v12992 = vadd.f32 0.0, %v12991
    %v12993 = vpop.f32.mrf.mxu0
    %12994 = vmatprep.mubr.f32.mxu0 0.0
    %12995 = vmatmul.mubr.f32.gmra.mxu0 %v12645
    %v12996 = vpop.f32.mrf.mxu0
    %v12997 = vadd.f32 0.0, %v12996
    %v12998 = vpop.f32.mrf.mxu0
    %12999 = vmatprep.mubr.f32.mxu0 0.0
    %13000 = vmatmul.mubr.f32.gmra.mxu0 %v12648
    %v13001 = vpop.f32.mrf.mxu0
    %v13002 = vadd.f32 0.0, %v13001
    %v13003 = vpop.f32.mrf.mxu0
    %13004 = vmatprep.mubr.f32.mxu0 0.0
    %13005 = vmatmul.mubr.f32.gmra.mxu0 %v12651
    %v13006 = vpop.f32.mrf.mxu0
    %v13007 = vadd.f32 0.0, %v13006
    %v13008 = vpop.f32.mrf.mxu0
    %13009 = vmatprep.mubr.f32.mxu0 0.0
    %13010 = vmatmul.mubr.f32.gmra.mxu0 %v12654
    %v13011 = vpop.f32.mrf.mxu0
    %v13012 = vadd.f32 0.0, %v13011
    %v13013 = vpop.f32.mrf.mxu0
    %13014 = vmatprep.mubr.f32.mxu0 0.0
    %13015 = vmatmul.mubr.f32.gmra.mxu0 %v12657
    %v13016 = vpop.f32.mrf.mxu0
    %v13017 = vadd.f32 0.0, %v13016
    %v13018 = vpop.f32.mrf.mxu0
    %13019 = vmatprep.mubr.f32.mxu0 0.0
    %13020 = vmatmul.mubr.f32.gmra.mxu0 %v12660
    %v13021 = vpop.f32.mrf.mxu0
    %v13022 = vadd.f32 0.0, %v13021
    %v13023 = vpop.f32.mrf.mxu0
    %13024 = vmatprep.mubr.f32.mxu0 0.0
    %13025 = vmatmul.mubr.f32.gmra.mxu0 %v12663
    %v13026 = vpop.f32.mrf.mxu0
    %v13027 = vadd.f32 0.0, %v13026
    %v13028 = vpop.f32.mrf.mxu0
    %13029 = vmatprep.mubr.f32.mxu0 0.0
    %13030 = vmatmul.mubr.f32.gmra.mxu0 %v12666
    %v13031 = vpop.f32.mrf.mxu0
    %v13032 = vadd.f32 0.0, %v13031
    %v13033 = vpop.f32.mrf.mxu0
    %13034 = vmatprep.mubr.f32.mxu0 0.0
    %13035 = vmatmul.mubr.f32.gmra.mxu0 %v12669
    %v13036 = vpop.f32.mrf.mxu0
    %v13037 = vadd.f32 0.0, %v13036
    %v13038 = vpop.f32.mrf.mxu0
    %13039 = vmatprep.mubr.f32.mxu0 0.0
    %13040 = vmatmul.mubr.f32.gmra.mxu0 %v12672
    %v13041 = vpop.f32.mrf.mxu0
    %v13042 = vadd.f32 0.0, %v13041
    %v13043 = vpop.f32.mrf.mxu0
    %13044 = vmatprep.mubr.f32.mxu0 0.0
    %13045 = vmatmul.mubr.f32.gmra.mxu0 %v12675
    %v13046 = vpop.f32.mrf.mxu0
    %v13047 = vadd.f32 0.0, %v13046
    %v13048 = vpop.f32.mrf.mxu0
    %13049 = vmatprep.mubr.f32.mxu0 0.0
    %13050 = vmatmul.mubr.f32.gmra.mxu0 %v12678
    %v13051 = vpop.f32.mrf.mxu0
    %v13052 = vadd.f32 0.0, %v13051
    %v13053 = vpop.f32.mrf.mxu0
    %13054 = vmatprep.mubr.f32.mxu0 0.0
    %13055 = vmatmul.mubr.f32.gmra.mxu0 %v12681
    %v13056 = vpop.f32.mrf.mxu0
    %v13057 = vadd.f32 0.0, %v13056
    %v13058 = vpop.f32.mrf.mxu0
    %13059 = vmatprep.mubr.f32.mxu0 0.0
    %13060 = vmatmul.mubr.f32.gmra.mxu0 %v12684
    %v13061 = vpop.f32.mrf.mxu0
    %v13062 = vadd.f32 0.0, %v13061
    %v13063 = vpop.f32.mrf.mxu0
    %13064 = vmatprep.mubr.f32.mxu0 0.0
    %13065 = vmatmul.mubr.f32.gmra.mxu0 %v12687
    %v13066 = vpop.f32.mrf.mxu0
    %v13067 = vadd.f32 0.0, %v13066
    %v13068 = vpop.f32.mrf.mxu0
    %13069 = vmatprep.mubr.f32.mxu0 0.0
    %13070 = vmatmul.mubr.f32.gmra.mxu0 %v12690
    %v13071 = vpop.f32.mrf.mxu0
    %v13072 = vadd.f32 0.0, %v13071
    %v13073 = vpop.f32.mrf.mxu0
    %13074 = vmatprep.mubr.f32.mxu0 0.0
    %13075 = vmatmul.mubr.f32.gmra.mxu0 %v12693
    %v13076 = vpop.f32.mrf.mxu0
    %v13077 = vadd.f32 0.0, %v13076
    %v13078 = vpop.f32.mrf.mxu0
    %13079 = vdwg.mxu0
    %v13080 = vadd.f32 %v12373, %v12762
    %v13081 = vadd.f32 %v12374, %v12767
    %v13082 = vadd.f32 %v12375, %v12772
    %v13083 = vadd.f32 %v12376, %v12777
    %v13084 = vadd.f32 %v12377, %v12782
    %v13085 = vadd.f32 %v12378, %v12787
    %v13086 = vadd.f32 %v12379, %v12792
    %v13087 = vadd.f32 %v12380, %v12797
    %v13088 = vadd.f32 %v12381, %v12802
    %v13089 = vadd.f32 %v12382, %v12807
    %v13090 = vadd.f32 %v12383, %v12812
    %v13091 = vadd.f32 %v12384, %v12817
    %v13092 = vadd.f32 %v12385, %v12822
    %v13093 = vadd.f32 %v12386, %v12827
    %v13094 = vadd.f32 %v12387, %v12832
    %v13095 = vadd.f32 %v12388, %v12837
    %v13096 = vadd.f32 %v12389, %v12842
    %v13097 = vadd.f32 %v12390, %v12847
    %v13098 = vadd.f32 %v12391, %v12852
    %v13099 = vadd.f32 %v12392, %v12857
    %v13100 = vadd.f32 %v12393, %v12862
    %v13101 = vadd.f32 %v12394, %v12867
    %v13102 = vadd.f32 %v12395, %v12872
    %v13103 = vadd.f32 %v12396, %v12877
    %v13104 = vadd.f32 %v12397, %v12882
    %v13105 = vadd.f32 %v12398, %v12887
    %v13106 = vadd.f32 %v12399, %v12892
    %v13107 = vadd.f32 %v12400, %v12897
    %v13108 = vadd.f32 %v12401, %v12902
    %v13109 = vadd.f32 %v12402, %v12907
    %v13110 = vadd.f32 %v12403, %v12912
    %v13111 = vadd.f32 %v12404, %v12917
    %v13112 = vadd.f32 %v12405, %v12922
    %v13113 = vadd.f32 %v12406, %v12927
    %v13114 = vadd.f32 %v12407, %v12932
    %v13115 = vadd.f32 %v12408, %v12937
    %v13116 = vadd.f32 %v12409, %v12942
    %v13117 = vadd.f32 %v12410, %v12947
    %v13118 = vadd.f32 %v12411, %v12952
    %v13119 = vadd.f32 %v12412, %v12957
    %v13120 = vadd.f32 %v12413, %v12962
    %v13121 = vadd.f32 %v12414, %v12967
    %v13122 = vadd.f32 %v12415, %v12972
    %v13123 = vadd.f32 %v12416, %v12977
    %v13124 = vadd.f32 %v12417, %v12982
    %v13125 = vadd.f32 %v12418, %v12987
    %v13126 = vadd.f32 %v12419, %v12992
    %v13127 = vadd.f32 %v12420, %v12997
    %v13128 = vadd.f32 %v12421, %v13002
    %v13129 = vadd.f32 %v12422, %v13007
    %v13130 = vadd.f32 %v12423, %v13012
    %v13131 = vadd.f32 %v12424, %v13017
    %v13132 = vadd.f32 %v12425, %v13022
    %v13133 = vadd.f32 %v12426, %v13027
    %v13134 = vadd.f32 %v12427, %v13032
    %v13135 = vadd.f32 %v12428, %v13037
    %v13136 = vadd.f32 %v12429, %v13042
    %v13137 = vadd.f32 %v12430, %v13047
    %v13138 = vadd.f32 %v12431, %v13052
    %v13139 = vadd.f32 %v12432, %v13057
    %v13140 = vadd.f32 %v12433, %v13062
    %v13141 = vadd.f32 %v12434, %v13067
    %v13142 = vadd.f32 %v12435, %v13072
    %v13143 = vadd.f32 %v12436, %v13077
    %v13144 = vld [vmem:[%s4] sm:$0x1]
    %v13146 = vlaneseq
    %v13147 = vshrl.u32 %v13146, 7
    %v13148 = vsub.s32 0, %v13147
    %v13149 = vrot.slane %v13144, %v13148
    %v13151 = vadd.f32 %v13080, %v13149
    %v13152 = vadd.f32 %v13081, %v13149
    %v13153 = vadd.f32 %v13082, %v13149
    %v13154 = vadd.f32 %v13083, %v13149
    %v13155 = vadd.f32 %v13084, %v13149
    %v13156 = vadd.f32 %v13085, %v13149
    %v13157 = vadd.f32 %v13086, %v13149
    %v13158 = vadd.f32 %v13087, %v13149
    %v13159 = vadd.f32 %v13088, %v13149
    %v13160 = vadd.f32 %v13089, %v13149
    %v13161 = vadd.f32 %v13090, %v13149
    %v13162 = vadd.f32 %v13091, %v13149
    %v13163 = vadd.f32 %v13092, %v13149
    %v13164 = vadd.f32 %v13093, %v13149
    %v13165 = vadd.f32 %v13094, %v13149
    %v13166 = vadd.f32 %v13095, %v13149
    %v13167 = vadd.f32 %v13096, %v13149
    %v13168 = vadd.f32 %v13097, %v13149
    %v13169 = vadd.f32 %v13098, %v13149
    %v13170 = vadd.f32 %v13099, %v13149
    %v13171 = vadd.f32 %v13100, %v13149
    %v13172 = vadd.f32 %v13101, %v13149
    %v13173 = vadd.f32 %v13102, %v13149
    %v13174 = vadd.f32 %v13103, %v13149
    %v13175 = vadd.f32 %v13104, %v13149
    %v13176 = vadd.f32 %v13105, %v13149
    %v13177 = vadd.f32 %v13106, %v13149
    %v13178 = vadd.f32 %v13107, %v13149
    %v13179 = vadd.f32 %v13108, %v13149
    %v13180 = vadd.f32 %v13109, %v13149
    %v13181 = vadd.f32 %v13110, %v13149
    %v13182 = vadd.f32 %v13111, %v13149
    %v13183 = vadd.f32 %v13112, %v13149
    %v13184 = vadd.f32 %v13113, %v13149
    %v13185 = vadd.f32 %v13114, %v13149
    %v13186 = vadd.f32 %v13115, %v13149
    %v13187 = vadd.f32 %v13116, %v13149
    %v13188 = vadd.f32 %v13117, %v13149
    %v13189 = vadd.f32 %v13118, %v13149
    %v13190 = vadd.f32 %v13119, %v13149
    %v13191 = vadd.f32 %v13120, %v13149
    %v13192 = vadd.f32 %v13121, %v13149
    %v13193 = vadd.f32 %v13122, %v13149
    %v13194 = vadd.f32 %v13123, %v13149
    %v13195 = vadd.f32 %v13124, %v13149
    %v13196 = vadd.f32 %v13125, %v13149
    %v13197 = vadd.f32 %v13126, %v13149
    %v13198 = vadd.f32 %v13127, %v13149
    %v13199 = vadd.f32 %v13128, %v13149
    %v13200 = vadd.f32 %v13129, %v13149
    %v13201 = vadd.f32 %v13130, %v13149
    %v13202 = vadd.f32 %v13131, %v13149
    %v13203 = vadd.f32 %v13132, %v13149
    %v13204 = vadd.f32 %v13133, %v13149
    %v13205 = vadd.f32 %v13134, %v13149
    %v13206 = vadd.f32 %v13135, %v13149
    %v13207 = vadd.f32 %v13136, %v13149
    %v13208 = vadd.f32 %v13137, %v13149
    %v13209 = vadd.f32 %v13138, %v13149
    %v13210 = vadd.f32 %v13139, %v13149
    %v13211 = vadd.f32 %v13140, %v13149
    %v13212 = vadd.f32 %v13141, %v13149
    %v13213 = vadd.f32 %v13142, %v13149
    %v13214 = vadd.f32 %v13143, %v13149
    %v13215 = vmax.f32 %v13151, 0.0
    %v13216 = vmax.f32 %v13152, 0.0
    %v13217 = vmax.f32 %v13153, 0.0
    %v13218 = vmax.f32 %v13154, 0.0
    %v13219 = vmax.f32 %v13155, 0.0
    %v13220 = vmax.f32 %v13156, 0.0
    %v13221 = vmax.f32 %v13157, 0.0
    %v13222 = vmax.f32 %v13158, 0.0
    %v13223 = vmax.f32 %v13159, 0.0
    %v13224 = vmax.f32 %v13160, 0.0
    %v13225 = vmax.f32 %v13161, 0.0
    %v13226 = vmax.f32 %v13162, 0.0
    %v13227 = vmax.f32 %v13163, 0.0
    %v13228 = vmax.f32 %v13164, 0.0
    %v13229 = vmax.f32 %v13165, 0.0
    %v13230 = vmax.f32 %v13166, 0.0
    %v13231 = vmax.f32 %v13167, 0.0
    %v13232 = vmax.f32 %v13168, 0.0
    %v13233 = vmax.f32 %v13169, 0.0
    %v13234 = vmax.f32 %v13170, 0.0
    %v13235 = vmax.f32 %v13171, 0.0
    %v13236 = vmax.f32 %v13172, 0.0
    %v13237 = vmax.f32 %v13173, 0.0
    %v13238 = vmax.f32 %v13174, 0.0
    %v13239 = vmax.f32 %v13175, 0.0
    %v13240 = vmax.f32 %v13176, 0.0
    %v13241 = vmax.f32 %v13177, 0.0
    %v13242 = vmax.f32 %v13178, 0.0
    %v13243 = vmax.f32 %v13179, 0.0
    %v13244 = vmax.f32 %v13180, 0.0
    %v13245 = vmax.f32 %v13181, 0.0
    %v13246 = vmax.f32 %v13182, 0.0
    %v13247 = vmax.f32 %v13183, 0.0
    %v13248 = vmax.f32 %v13184, 0.0
    %v13249 = vmax.f32 %v13185, 0.0
    %v13250 = vmax.f32 %v13186, 0.0
    %v13251 = vmax.f32 %v13187, 0.0
    %v13252 = vmax.f32 %v13188, 0.0
    %v13253 = vmax.f32 %v13189, 0.0
    %v13254 = vmax.f32 %v13190, 0.0
    %v13255 = vmax.f32 %v13191, 0.0
    %v13256 = vmax.f32 %v13192, 0.0
    %v13257 = vmax.f32 %v13193, 0.0
    %v13258 = vmax.f32 %v13194, 0.0
    %v13259 = vmax.f32 %v13195, 0.0
    %v13260 = vmax.f32 %v13196, 0.0
    %v13261 = vmax.f32 %v13197, 0.0
    %v13262 = vmax.f32 %v13198, 0.0
    %v13263 = vmax.f32 %v13199, 0.0
    %v13264 = vmax.f32 %v13200, 0.0
    %v13265 = vmax.f32 %v13201, 0.0
    %v13266 = vmax.f32 %v13202, 0.0
    %v13267 = vmax.f32 %v13203, 0.0
    %v13268 = vmax.f32 %v13204, 0.0
    %v13269 = vmax.f32 %v13205, 0.0
    %v13270 = vmax.f32 %v13206, 0.0
    %v13271 = vmax.f32 %v13207, 0.0
    %v13272 = vmax.f32 %v13208, 0.0
    %v13273 = vmax.f32 %v13209, 0.0
    %v13274 = vmax.f32 %v13210, 0.0
    %v13275 = vmax.f32 %v13211, 0.0
    %v13276 = vmax.f32 %v13212, 0.0
    %v13277 = vmax.f32 %v13213, 0.0
    %v13278 = vmax.f32 %v13214, 0.0
    %v13279 = vlaneseq
    %v13280 = vshrl.u32 %v13279, 7
    %v13281 = vlaneseq
    %v13282 = vand.u32 %v13281, 127
    %v13283 = vadd.s32 %v13282, 128
    %v13284 = vadd.s32 %v13282, 256
    %v13285 = vadd.s32 %v13282, 384
    %v13286 = vmul.u32 %v13280, 256
    %v13287 = vsub.s32 %v13282, %v13286
    %v13288 = vsub.s32 %v13283, %v13286
    %v13289 = vsub.s32 %v13284, %v13286
    %v13290 = vsub.s32 %v13285, %v13286
    %vm13291 = vcmp.ge.s32.totalorder %v13287, 0
    %vm13292 = vcmp.ge.s32.totalorder %v13288, 0
    %vm13293 = vcmp.ge.s32.totalorder %v13289, 0
    %vm13294 = vcmp.ge.s32.totalorder %v13290, 0
    %vm13295 = vcmp.lt.s32.totalorder %v13287, 256
    %vm13296 = vcmp.lt.s32.totalorder %v13288, 256
    %vm13297 = vcmp.lt.s32.totalorder %v13289, 256
    %vm13298 = vcmp.lt.s32.totalorder %v13290, 256
    %vm13299 = vmand %vm13291, %vm13295
    %vm13300 = vmand %vm13292, %vm13296
    %vm13301 = vmand %vm13293, %vm13297
    %vm13302 = vmand %vm13294, %vm13298
    %v13303 = vsel %vm13299, 0.00390625, 0.0
    %v13304 = vsel %vm13300, 0.00390625, 0.0
    %v13305 = vsel %vm13301, 0.00390625, 0.0
    %v13306 = vsel %vm13302, 0.00390625, 0.0
    %13307 = vmatprep.subr.mxu0 0.0
    %13308 = vmatpush1.msra.mxu0 %v13230
    %13309 = vmatprep.subr.mxu0 0.0
    %13310 = vmatpush1.msra.mxu0 %v13229
    %13311 = vmatprep.subr.mxu0 0.0
    %13312 = vmatpush1.msra.mxu0 %v13228
    %13313 = vmatprep.subr.mxu0 0.0
    %13314 = vmatpush1.msra.mxu0 %v13227
    %13315 = vmatprep.subr.mxu0 0.0
    %13316 = vmatpush1.msra.mxu0 %v13226
    %13317 = vmatprep.subr.mxu0 0.0
    %13318 = vmatpush1.msra.mxu0 %v13225
    %13319 = vmatprep.subr.mxu0 0.0
    %13320 = vmatpush1.msra.mxu0 %v13224
    %13321 = vmatprep.subr.mxu0 0.0
    %13322 = vmatpush1.msra.mxu0 %v13223
    %13323 = vmatprep.subr.mxu0 0.0
    %13324 = vmatpush1.msra.mxu0 %v13222
    %13325 = vmatprep.subr.mxu0 0.0
    %13326 = vmatpush1.msra.mxu0 %v13221
    %13327 = vmatprep.subr.mxu0 0.0
    %13328 = vmatpush1.msra.mxu0 %v13220
    %13329 = vmatprep.subr.mxu0 0.0
    %13330 = vmatpush1.msra.mxu0 %v13219
    %13331 = vmatprep.subr.mxu0 0.0
    %13332 = vmatpush1.msra.mxu0 %v13218
    %13333 = vmatprep.subr.mxu0 0.0
    %13334 = vmatpush1.msra.mxu0 %v13217
    %13335 = vmatprep.subr.mxu0 0.0
    %13336 = vmatpush1.msra.mxu0 %v13216
    %13337 = vmatprep.subr.mxu0 0.0
    %13338 = vmatpush1.msra.mxu0 %v13215
    %13339 = vmatprep.subr.mxu0 0.0
    %13340 = vmatpush2.msra.mxu0 %v13246
    %13341 = vmatprep.subr.mxu0 0.0
    %13342 = vmatpush2.msra.mxu0 %v13245
    %13343 = vmatprep.subr.mxu0 0.0
    %13344 = vmatpush2.msra.mxu0 %v13244
    %13345 = vmatprep.subr.mxu0 0.0
    %13346 = vmatpush2.msra.mxu0 %v13243
    %13347 = vmatprep.subr.mxu0 0.0
    %13348 = vmatpush2.msra.mxu0 %v13242
    %13349 = vmatprep.subr.mxu0 0.0
    %13350 = vmatpush2.msra.mxu0 %v13241
    %13351 = vmatprep.subr.mxu0 0.0
    %13352 = vmatpush2.msra.mxu0 %v13240
    %13353 = vmatprep.subr.mxu0 0.0
    %13354 = vmatpush2.msra.mxu0 %v13239
    %13355 = vmatprep.subr.mxu0 0.0
    %13356 = vmatpush2.msra.mxu0 %v13238
    %13357 = vmatprep.subr.mxu0 0.0
    %13358 = vmatpush2.msra.mxu0 %v13237
    %13359 = vmatprep.subr.mxu0 0.0
    %13360 = vmatpush2.msra.mxu0 %v13236
    %13361 = vmatprep.subr.mxu0 0.0
    %13362 = vmatpush2.msra.mxu0 %v13235
    %13363 = vmatprep.subr.mxu0 0.0
    %13364 = vmatpush2.msra.mxu0 %v13234
    %13365 = vmatprep.subr.mxu0 0.0
    %13366 = vmatpush2.msra.mxu0 %v13233
    %13367 = vmatprep.subr.mxu0 0.0
    %13368 = vmatpush2.msra.mxu0 %v13232
    %13369 = vmatprep.subr.mxu0 0.0
    %13370 = vmatpush2.msra.mxu0 %v13231
    %13371 = vmatprep.mubr.f32.mxu0 %v13304
    %13372 = vmatmul.mubr.f32.gmra.mxu0 %v13303
    %v13373 = vpop.f32.mrf.mxu0
    %v13374 = vadd.f32 0.0, %v13373
    %v13375 = vpop.f32.mrf.mxu0
    %13376 = vdwg.mxu0
    %13377 = vmatprep.subr.mxu0 0.0
    %13378 = vmatpush1.msra.mxu0 %v13262
    %13379 = vmatprep.subr.mxu0 0.0
    %13380 = vmatpush1.msra.mxu0 %v13261
    %13381 = vmatprep.subr.mxu0 0.0
    %13382 = vmatpush1.msra.mxu0 %v13260
    %13383 = vmatprep.subr.mxu0 0.0
    %13384 = vmatpush1.msra.mxu0 %v13259
    %13385 = vmatprep.subr.mxu0 0.0
    %13386 = vmatpush1.msra.mxu0 %v13258
    %13387 = vmatprep.subr.mxu0 0.0
    %13388 = vmatpush1.msra.mxu0 %v13257
    %13389 = vmatprep.subr.mxu0 0.0
    %13390 = vmatpush1.msra.mxu0 %v13256
    %13391 = vmatprep.subr.mxu0 0.0
    %13392 = vmatpush1.msra.mxu0 %v13255
    %13393 = vmatprep.subr.mxu0 0.0
    %13394 = vmatpush1.msra.mxu0 %v13254
    %13395 = vmatprep.subr.mxu0 0.0
    %13396 = vmatpush1.msra.mxu0 %v13253
    %13397 = vmatprep.subr.mxu0 0.0
    %13398 = vmatpush1.msra.mxu0 %v13252
    %13399 = vmatprep.subr.mxu0 0.0
    %13400 = vmatpush1.msra.mxu0 %v13251
    %13401 = vmatprep.subr.mxu0 0.0
    %13402 = vmatpush1.msra.mxu0 %v13250
    %13403 = vmatprep.subr.mxu0 0.0
    %13404 = vmatpush1.msra.mxu0 %v13249
    %13405 = vmatprep.subr.mxu0 0.0
    %13406 = vmatpush1.msra.mxu0 %v13248
    %13407 = vmatprep.subr.mxu0 0.0
    %13408 = vmatpush1.msra.mxu0 %v13247
    %13409 = vmatprep.subr.mxu0 0.0
    %13410 = vmatpush2.msra.mxu0 %v13278
    %13411 = vmatprep.subr.mxu0 0.0
    %13412 = vmatpush2.msra.mxu0 %v13277
    %13413 = vmatprep.subr.mxu0 0.0
    %13414 = vmatpush2.msra.mxu0 %v13276
    %13415 = vmatprep.subr.mxu0 0.0
    %13416 = vmatpush2.msra.mxu0 %v13275
    %13417 = vmatprep.subr.mxu0 0.0
    %13418 = vmatpush2.msra.mxu0 %v13274
    %13419 = vmatprep.subr.mxu0 0.0
    %13420 = vmatpush2.msra.mxu0 %v13273
    %13421 = vmatprep.subr.mxu0 0.0
    %13422 = vmatpush2.msra.mxu0 %v13272
    %13423 = vmatprep.subr.mxu0 0.0
    %13424 = vmatpush2.msra.mxu0 %v13271
    %13425 = vmatprep.subr.mxu0 0.0
    %13426 = vmatpush2.msra.mxu0 %v13270
    %13427 = vmatprep.subr.mxu0 0.0
    %13428 = vmatpush2.msra.mxu0 %v13269
    %13429 = vmatprep.subr.mxu0 0.0
    %13430 = vmatpush2.msra.mxu0 %v13268
    %13431 = vmatprep.subr.mxu0 0.0
    %13432 = vmatpush2.msra.mxu0 %v13267
    %13433 = vmatprep.subr.mxu0 0.0
    %13434 = vmatpush2.msra.mxu0 %v13266
    %13435 = vmatprep.subr.mxu0 0.0
    %13436 = vmatpush2.msra.mxu0 %v13265
    %13437 = vmatprep.subr.mxu0 0.0
    %13438 = vmatpush2.msra.mxu0 %v13264
    %13439 = vmatprep.subr.mxu0 0.0
    %13440 = vmatpush2.msra.mxu0 %v13263
    %13441 = vmatprep.mubr.f32.mxu0 %v13306
    %13442 = vmatmul.mubr.f32.gmra.mxu0 %v13305
    %v13443 = vpop.f32.mrf.mxu0
    %v13444 = vadd.f32 %v13374, %v13443
    %v13445 = vpop.f32.mrf.mxu0
    %13446 = vdwg.mxu0
    %v13447 = vld [vmem:[%s5] sm:$0xff]
    %v13448 = vld [vmem:[%s5 + $0x8] sm:$0xff]
    %v13449 = vld [vmem:[%s6] sm:$0x1]
    %v13451 = vlaneseq
    %v13452 = vshrl.u32 %v13451, 7
    %v13453 = vsub.s32 0, %v13452
    %v13454 = vrot.slane %v13449, %v13453
    %vm13456 = vcmask 130048
    %v13458 = vsel %vm13456, %v13444, 0
    %13460 = vmatprep.subr.mxu0 0.0
    %13461 = vmatpush1.msra.mxu0 0.0
    %13462 = vmatprep.subr.mxu0 0.0
    %13463 = vmatpush1.msra.mxu0 0.0
    %13464 = vmatprep.subr.mxu0 0.0
    %13465 = vmatpush1.msra.mxu0 0.0
    %13466 = vmatprep.subr.mxu0 0.0
    %13467 = vmatpush1.msra.mxu0 0.0
    %13468 = vmatprep.subr.mxu0 0.0
    %13469 = vmatpush1.msra.mxu0 0.0
    %13470 = vmatprep.subr.mxu0 0.0
    %13471 = vmatpush1.msra.mxu0 0.0
    %13472 = vmatprep.subr.mxu0 0.0
    %13473 = vmatpush1.msra.mxu0 0.0
    %13474 = vmatprep.subr.mxu0 0.0
    %13475 = vmatpush1.msra.mxu0 0.0
    %13476 = vmatprep.subr.mxu0 0.0
    %13477 = vmatpush1.msra.mxu0 0.0
    %13478 = vmatprep.subr.mxu0 0.0
    %13479 = vmatpush1.msra.mxu0 0.0
    %13480 = vmatprep.subr.mxu0 0.0
    %13481 = vmatpush1.msra.mxu0 0.0
    %13482 = vmatprep.subr.mxu0 0.0
    %13483 = vmatpush1.msra.mxu0 0.0
    %13484 = vmatprep.subr.mxu0 0.0
    %13485 = vmatpush1.msra.mxu0 0.0
    %13486 = vmatprep.subr.mxu0 0.0
    %13487 = vmatpush1.msra.mxu0 0.0
    %13488 = vmatprep.subr.mxu0 0.0
    %13489 = vmatpush1.msra.mxu0 %v13448
    %13490 = vmatprep.subr.mxu0 0.0
    %13491 = vmatpush1.msra.mxu0 %v13447
    %13492 = vmatprep.subr.mxu0 0.0
    %13493 = vmatpush2.msra.mxu0 0.0
    %13494 = vmatprep.subr.mxu0 0.0
    %13495 = vmatpush2.msra.mxu0 0.0
    %13496 = vmatprep.subr.mxu0 0.0
    %13497 = vmatpush2.msra.mxu0 0.0
    %13498 = vmatprep.subr.mxu0 0.0
    %13499 = vmatpush2.msra.mxu0 0.0
    %13500 = vmatprep.subr.mxu0 0.0
    %13501 = vmatpush2.msra.mxu0 0.0
    %13502 = vmatprep.subr.mxu0 0.0
    %13503 = vmatpush2.msra.mxu0 0.0
    %13504 = vmatprep.subr.mxu0 0.0
    %13505 = vmatpush2.msra.mxu0 0.0
    %13506 = vmatprep.subr.mxu0 0.0
    %13507 = vmatpush2.msra.mxu0 0.0
    %13508 = vmatprep.subr.mxu0 0.0
    %13509 = vmatpush2.msra.mxu0 0.0
    %13510 = vmatprep.subr.mxu0 0.0
    %13511 = vmatpush2.msra.mxu0 0.0
    %13512 = vmatprep.subr.mxu0 0.0
    %13513 = vmatpush2.msra.mxu0 0.0
    %13514 = vmatprep.subr.mxu0 0.0
    %13515 = vmatpush2.msra.mxu0 0.0
    %13516 = vmatprep.subr.mxu0 0.0
    %13517 = vmatpush2.msra.mxu0 0.0
    %13518 = vmatprep.subr.mxu0 0.0
    %13519 = vmatpush2.msra.mxu0 0.0
    %13520 = vmatprep.subr.mxu0 0.0
    %13521 = vmatpush2.msra.mxu0 0.0
    %13522 = vmatprep.subr.mxu0 0.0
    %13523 = vmatpush2.msra.mxu0 0.0
    %13524 = vmatprep.mubr.f32.mxu0 0.0
    %13525 = vmatmul.mubr.f32.gmra.mxu0 %v13458
    %v13526 = vpop.f32.mrf.mxu0
    %v13527 = vadd.f32 %v13454, %v13526
    %v13528 = vpop.f32.mrf.mxu0
    %13529 = vdwg.mxu0
    %13530 = vst [vmem:[#allocation4] sm:$0x3] %v13527
    // Predicated region
    $region30: #{modified_model_forward.1} parent=1 // pred_check
      _
    $region31: #{modified_model_forward.1} parent=1 // pred_check_branch
      %13532 = sbr.rel (0) target = $region33
    $region32: #{modified_model_forward.1} parent=1 // pred_region
      %s13534 = ssub.s32 32, 32
      %13535 = vsyncadd [#allocation5], %s13534
      %s13537 = sshll.u32 [#allocation4], 4
      %s13538 = int_to_ptr.vmem [resolvable:$true] %s13537
      %13540 = dma.vmem_to_hbm [thread:$0]  %s13538, 32, %s7, [#allocation5]
    $region33: #{modified_model_forward.1} parent=1 // pred_fallthru
      _
    // Predicated region
    $region34: #{modified_model_forward.1} parent=1 // pred_check
      _
    $region35: #{modified_model_forward.1} parent=1 // pred_check_branch
      %13542 = sbr.rel (0) target = $region37
    $region36: #{modified_model_forward.1} parent=1 // pred_region
      %13543 = dma.done [#allocation5], 32
    $region37: #{modified_model_forward.1} parent=1 // pred_fallthru
      _
    %13544 = vsyncpa [#allocation5], 1

</llo_original>
